<compile_context>
chip_gen: v7x
topology: tpu7x:2x2x1
jax: 0.10.0
libtpu: 0.0.40
codegen_flags: <defaults>
</compile_context>

<pallas_src>
import functools
import math

import jax
import jax.numpy as jnp
from jax import lax
from jax.experimental import pallas as pl
from jax.experimental.pallas import tpu as pltpu


# --------------------------- in-kernel helpers --------------------------------

def _bf16(x):
    return x.astype(jnp.bfloat16)   # no-op if already bf16


def _cgemm(ar, ai, br, bi, cr=None, ci=None):
    """Complex matmul via 3 real MXU matmuls (Gauss), bf16 operands, f32 acc."""
    t1 = jnp.dot(_bf16(ar), _bf16(br), preferred_element_type=jnp.float32)
    t2 = jnp.dot(_bf16(ai), _bf16(bi), preferred_element_type=jnp.float32)
    t3 = jnp.dot(_bf16(ar + ai), _bf16(br + bi), preferred_element_type=jnp.float32)
    or_, oi_ = t1 - t2, t3 - t1 - t2
    if cr is not None:
        or_ = or_ + cr
        oi_ = oi_ + ci
    return or_, oi_


def _mean_all(x):
    """Mean over all elements of a 2-D value, result shape (1, 1)."""
    return jnp.mean(jnp.mean(x, axis=-1, keepdims=True), axis=-2, keepdims=True)


def _clayernorm_sample(xr, xi, eps=1e-5):
    """Complex LayerNorm (Trabelsi whitening) with per-sample statistics.
    Default affine: gamma = (1/sqrt(2)) * I, beta = 0."""
    mr, mi = _mean_all(xr), _mean_all(xi)
    cr, ci = xr - mr, xi - mi
    vrr = _mean_all(cr * cr) + eps
    vii = _mean_all(ci * ci) + eps
    vri = _mean_all(cr * ci)
    s = jnp.sqrt(vrr * vii - vri * vri)
    t = jnp.sqrt(vrr + vii + 2.0 * s)
    inv = 1.0 / (s * t)
    wrr = (vii + s) * inv
    wii = (vrr + s) * inv
    wri = -vri * inv
    g = 0.7071067811865476
    return g * (wrr * cr + wri * ci), g * (wri * cr + wii * ci)


def _crmsnorm_rows(xr, xi, eps=1e-6):
    """Complex RMSNorm over the last (feature) axis, per token."""
    ms = jnp.mean(xr * xr + xi * xi, axis=-1, keepdims=True)
    inv = lax.rsqrt(ms + eps)
    return xr * inv, xi * inv


def _cattention(qr, qi, kr, ki, vr, vi, heads):
    """Multi-head complex attention: softmax(Re(q conj(k)^T)/sqrt(dh)) @ v.
    Real/imag fused along the contraction (scores) / lane (values) axis."""
    # TODO(synk): torchcvnn MultiheadAttention's exact complex scoring rule is
    # not documented here; softmax over Re(q @ conj(k)^T)/sqrt(dh) is used.
    N, D = qr.shape
    dh = D // heads
    scale = 1.0 / math.sqrt(dh)
    qr = qr * scale                      # fold scale into Q once (not per-head score)
    qi = qi * scale
    dn = (((1,), (1,)), ((), ()))        # contract last dims: a @ b^T
    outs_r, outs_i = [], []
    for h in range(heads):
        sl = slice(h * dh, (h + 1) * dh)
        qc = _bf16(jnp.concatenate([qr[:, sl], qi[:, sl]], axis=-1))  # (N, 2dh)
        kc = _bf16(jnp.concatenate([kr[:, sl], ki[:, sl]], axis=-1))
        vc = _bf16(jnp.concatenate([vr[:, sl], vi[:, sl]], axis=-1))
        s = lax.dot_general(qc, kc, dn, preferred_element_type=jnp.float32)
        s = s - jnp.max(s, axis=-1, keepdims=True)
        p = jnp.exp(s)
        p = p * pl.reciprocal(jnp.sum(p, axis=-1, keepdims=True), approx=True)
        o = jnp.dot(_bf16(p), vc, preferred_element_type=jnp.float32)  # (N, 2dh)
        outs_r.append(o[:, :dh])
        outs_i.append(o[:, dh:])
    return jnp.concatenate(outs_r, axis=-1), jnp.concatenate(outs_i, axis=-1)


# --------------------------- the fused model kernel ---------------------------

def _model_kernel(pr_ref, pi_ref, rope_r_ref, rope_i_ref,
                  conv_wr_ref, conv_wi_ref, conv_br_ref, conv_bi_ref,
                  in_wr_ref, in_wi_ref, in_br_ref, in_bi_ref,
                  out_wr_ref, out_wi_ref, out_br_ref, out_bi_ref,
                  w1r_ref, w1i_ref, b1r_ref, b1i_ref,
                  w2r_ref, w2i_ref, b2r_ref, b2i_ref,
                  head_wr_ref, head_wi_ref, head_br_ref, head_bi_ref,
                  out_ref, *, heads):
    # one grid step == one batch sample; everything below stays in VMEM/vregs.
    xr = pr_ref[0]                       # (N, cin*patch*patch), f32
    xi = pi_ref[0]

    # LayerNorm over [cin, H, W]: stats are per-sample and permutation-
    # invariant, so applying them on the patchified layout is equivalent.
    xr, xi = _clayernorm_sample(xr, xi)

    # Conv2d(cin, D, kernel=patch, stride=patch) == patch matmul + bias.
    er, ei = _cgemm(xr, xi, conv_wr_ref[...], conv_wi_ref[...],
                    conv_br_ref[...], conv_bi_ref[...])      # (N, D)

    # LayerNorm over [D, Hp, Wp] per sample.
    er, ei = _clayernorm_sample(er, ei)

    # 2D RoPE positional embedding.
    er = er + rope_r_ref[...]
    ei = ei + rope_i_ref[...]

    num_layers = in_wr_ref.shape[0]
    D = er.shape[-1]
    for l in range(num_layers):
        # --- attention sublayer (pre-norm RMSNorm) ---
        hr, hi = _crmsnorm_rows(er, ei)
        qkvr, qkvi = _cgemm(hr, hi, in_wr_ref[l], in_wi_ref[l],
                            in_br_ref[l], in_bi_ref[l])       # (N, 3D)
        qr, kr, vr = qkvr[:, :D], qkvr[:, D:2 * D], qkvr[:, 2 * D:]
        qi_, ki_, vi_ = qkvi[:, :D], qkvi[:, D:2 * D], qkvi[:, 2 * D:]
        ar, ai = _cattention(qr, qi_, kr, ki_, vr, vi_, heads)
        pr_, pi_ = _cgemm(ar, ai, out_wr_ref[l], out_wi_ref[l],
                          out_br_ref[l], out_bi_ref[l])
        er = er + pr_
        ei = ei + pi_

        # --- MLP sublayer (pre-norm RMSNorm) ---
        hr, hi = _crmsnorm_rows(er, ei)
        h1r, h1i = _cgemm(hr, hi, w1r_ref[l], w1i_ref[l],
                          b1r_ref[l], b1i_ref[l])             # (N, mlp_dim)
        # TODO(synk): torchcvnn ViT activation unknown; split-complex GELU used.
        h1r = jax.nn.gelu(h1r, approximate=True)
        h1i = jax.nn.gelu(h1i, approximate=True)
        mr_, mi_ = _cgemm(h1r, h1i, w2r_ref[l], w2i_ref[l],
                          b2r_ref[l], b2i_ref[l])
        er = er + mr_
        ei = ei + mi_

    # TODO(synk): c_nn.ViT internals (cls token, final norm choice) unavailable;
    # standard pre-norm ViT with a final RMSNorm is used, dropout=0 (eval).
    fr, fi = _crmsnorm_rows(er, ei)

    # mean over tokens + complex Linear head + Mod() = |z|.
    tr = jnp.mean(fr, axis=0, keepdims=True)                  # (1, D)
    ti = jnp.mean(fi, axis=0, keepdims=True)
    hr, hi = _cgemm(tr, ti, head_wr_ref[...], head_wi_ref[...],
                    head_br_ref[...], head_bi_ref[...])       # (1, num_classes)
    out_ref[0] = jnp.sqrt(hr * hr + hi * hi)


# --------------------------- JAX glue (wrapper) --------------------------------

def patchify(x, p):
    B, C, H, W = x.shape
    Hp, Wp = H // p, W // p
    x = x.reshape(B, C, Hp, p, Wp, p).transpose(0, 2, 4, 1, 3, 5)
    return x.reshape(B, Hp * Wp, C * p * p)


def rope_embedding(Hp, Wp, D):
    """Replicates PatchEmbedder.rope_embedding using real arithmetic."""
    fs = 100.0
    pos_h = jnp.arange(Hp, dtype=jnp.float32)
    pos_w = jnp.arange(Wp, dtype=jnp.float32)
    theta = fs ** (jnp.arange(0, D, 2, dtype=jnp.float32) / (D / 2))
    base_r, base_i = jnp.cos(theta), jnp.sin(theta)
    mag = jnp.sqrt(base_r * base_r + base_i * base_i)
    ang = jnp.arctan2(base_i, base_r)  # principal branch, as complex pow uses

    def cpow(p):
        m = mag[:, None] ** p[None, :]
        a = ang[:, None] * p[None, :]
        return m * jnp.cos(a), m * jnp.sin(a)

    eh_r, eh_i = cpow(pos_h)  # (D//2, Hp)
    ew_r, ew_i = cpow(pos_w)  # (D//2, Wp)
    rope_r = jnp.zeros((D, Hp, Wp), jnp.float32)
    rope_i = jnp.zeros((D, Hp, Wp), jnp.float32)
    rope_r = rope_r.at[0::2].set(eh_r[:, :, None])
    rope_i = rope_i.at[0::2].set(eh_i[:, :, None])
    rope_r = rope_r.at[1::2].set(ew_r[:, None, :])
    rope_i = rope_i.at[1::2].set(ew_i[:, None, :])
    rope_r = rope_r.transpose(1, 2, 0).reshape(Hp * Wp, D)
    rope_i = rope_i.transpose(1, 2, 0).reshape(Hp * Wp, D)
    return rope_r, rope_i


def _cdense(key, fan_in, shape):
    kr, ki = jax.random.split(key)
    s = 1.0 / math.sqrt(2.0 * fan_in)
    return (jax.random.normal(kr, shape, jnp.float32) * s,
            jax.random.normal(ki, shape, jnp.float32) * s)


def init_params(key, cin, D, patch, num_layers, mlp_dim, num_classes):
    keys = jax.random.split(key, 2 + 4 * num_layers)
    kpp = cin * patch * patch

    def zbias(shape):
        return (jnp.zeros(shape, jnp.float32), jnp.zeros(shape, jnp.float32))

    def stack(parts):
        return (jnp.stack([p[0] for p in parts]), jnp.stack([p[1] for p in parts]))

    in_w, out_w, w1, w2 = [], [], [], []
    for l in range(num_layers):
        b = 2 + 4 * l
        in_w.append(_cdense(keys[b], D, (D, 3 * D)))
        out_w.append(_cdense(keys[b + 1], D, (D, D)))
        w1.append(_cdense(keys[b + 2], D, (D, mlp_dim)))
        w2.append(_cdense(keys[b + 3], mlp_dim, (mlp_dim, D)))

    return {
        'conv_w': _cdense(keys[0], kpp, (kpp, D)),
        'conv_b': zbias((1, D)),
        'head_w': _cdense(keys[1], D, (D, num_classes)),
        'head_b': zbias((1, num_classes)),
        'in_w': stack(in_w), 'in_b': zbias((num_layers, 1, 3 * D)),
        'out_w': stack(out_w), 'out_b': zbias((num_layers, 1, D)),
        'w1': stack(w1), 'b1': zbias((num_layers, 1, mlp_dim)),
        'w2': stack(w2), 'b2': zbias((num_layers, 1, D)),
    }


def model_forward(params, xr, xi, patch, heads):
    B, C, H, W = xr.shape
    Hp, Wp = H // patch, W // patch
    N = Hp * Wp
    # patchify is pure (per-sample) data movement; LN stats are permutation-
    # invariant so the first LayerNorm can run on the patchified layout.
    pr = patchify(xr, patch)   # (B, N, C*p*p)
    pi = patchify(xi, patch)
    kpp = pr.shape[-1]
    D = params['conv_w'][0].shape[-1]
    num_classes = params['head_w'][0].shape[-1]
    rope_r, rope_i = rope_embedding(Hp, Wp, D)

    # GEMM weights go to the kernel as bf16 (MXU operand dtype): halves weight
    # DMA bytes / VMEM and removes in-kernel casts.  Biases / rope stay f32.
    def _w(a):
        return a.astype(jnp.bfloat16)

    inputs = [
        pr, pi, rope_r, rope_i,
        _w(params['conv_w'][0]), _w(params['conv_w'][1]),
        params['conv_b'][0], params['conv_b'][1],
        _w(params['in_w'][0]), _w(params['in_w'][1]),
        params['in_b'][0], params['in_b'][1],
        _w(params['out_w'][0]), _w(params['out_w'][1]),
        params['out_b'][0], params['out_b'][1],
        _w(params['w1'][0]), _w(params['w1'][1]),
        params['b1'][0], params['b1'][1],
        _w(params['w2'][0]), _w(params['w2'][1]),
        params['b2'][0], params['b2'][1],
        _w(params['head_w'][0]), _w(params['head_w'][1]),
        params['head_b'][0], params['head_b'][1],
    ]

    def full_spec(a):
        nd = a.ndim
        return pl.BlockSpec(tuple(a.shape), lambda b, _n=nd: (0,) * _n)

    in_specs = [
        pl.BlockSpec((1, N, kpp), lambda b: (b, 0, 0)),
        pl.BlockSpec((1, N, kpp), lambda b: (b, 0, 0)),
    ] + [full_spec(a) for a in inputs[2:]]

    out = pl.pallas_call(
        functools.partial(_model_kernel, heads=heads),
        out_shape=jax.ShapeDtypeStruct((B, 1, num_classes), jnp.float32),
        grid=(B,),
        in_specs=in_specs,
        out_specs=pl.BlockSpec((1, 1, num_classes), lambda b: (b, 0, 0)),
        compiler_params=pltpu.CompilerParams(
            dimension_semantics=("parallel",),      # megacore: 2 TCs split the batch
            vmem_limit_bytes=32 * 1024 * 1024,      # explicit, safe on v5e/v6e/v7x
        ),
    )(*inputs)
    return out.reshape(B, num_classes)


if __name__ == "__main__":
    B, Cin, H, W = 2, 1, 16, 16          # small MSTAR-like complex image
    hidden_dim, patch, num_layers, heads, num_classes = 32, 4, 2, 4, 10
    mlp_dim = 4 * hidden_dim

    key = jax.random.PRNGKey(0)
    kx1, kx2, kp = jax.random.split(key, 3)
    x_real = jax.random.normal(kx1, (B, Cin, H, W), jnp.float32)
    x_imag = jax.random.normal(kx2, (B, Cin, H, W), jnp.float32)

    params = init_params(kp, Cin, hidden_dim, patch, num_layers, mlp_dim,
                         num_classes)
    fwd = jax.jit(functools.partial(model_forward, patch=patch, heads=heads))
    out = fwd(params, x_real, x_imag)
    out = jax.block_until_ready(out)
    assert out.shape == (B, num_classes) and out.dtype == jnp.float32
    assert bool(jnp.all(jnp.isfinite(out)))
    print("KERNEL_OK")
</pallas_src>

<mosaic_0001>
module attributes {stable_mosaic.version = 11 : i64} {
  func.func @_model_kernel(%arg0: i32, %arg1: memref<1x16x16xf32, #tpu.memory_space<vmem>>, %arg2: memref<1x16x16xf32, #tpu.memory_space<vmem>>, %arg3: memref<16x32xf32, #tpu.memory_space<vmem>>, %arg4: memref<16x32xf32, #tpu.memory_space<vmem>>, %arg5: memref<16x32xbf16, #tpu.memory_space<vmem>>, %arg6: memref<16x32xbf16, #tpu.memory_space<vmem>>, %arg7: memref<1x32xf32, #tpu.memory_space<vmem>>, %arg8: memref<1x32xf32, #tpu.memory_space<vmem>>, %arg9: memref<2x32x96xbf16, #tpu.memory_space<vmem>>, %arg10: memref<2x32x96xbf16, #tpu.memory_space<vmem>>, %arg11: memref<2x1x96xf32, #tpu.memory_space<vmem>>, %arg12: memref<2x1x96xf32, #tpu.memory_space<vmem>>, %arg13: memref<2x32x32xbf16, #tpu.memory_space<vmem>>, %arg14: memref<2x32x32xbf16, #tpu.memory_space<vmem>>, %arg15: memref<2x1x32xf32, #tpu.memory_space<vmem>>, %arg16: memref<2x1x32xf32, #tpu.memory_space<vmem>>, %arg17: memref<2x32x128xbf16, #tpu.memory_space<vmem>>, %arg18: memref<2x32x128xbf16, #tpu.memory_space<vmem>>, %arg19: memref<2x1x128xf32, #tpu.memory_space<vmem>>, %arg20: memref<2x1x128xf32, #tpu.memory_space<vmem>>, %arg21: memref<2x128x32xbf16, #tpu.memory_space<vmem>>, %arg22: memref<2x128x32xbf16, #tpu.memory_space<vmem>>, %arg23: memref<2x1x32xf32, #tpu.memory_space<vmem>>, %arg24: memref<2x1x32xf32, #tpu.memory_space<vmem>>, %arg25: memref<32x10xbf16, #tpu.memory_space<vmem>>, %arg26: memref<32x10xbf16, #tpu.memory_space<vmem>>, %arg27: memref<1x10xf32, #tpu.memory_space<vmem>>, %arg28: memref<1x10xf32, #tpu.memory_space<vmem>>, %arg29: memref<1x1x10xf32, #tpu.memory_space<vmem>>) attributes {dimension_semantics = [#tpu.dimension_semantics<parallel>], iteration_bounds = array<i64: 2>, scalar_prefetch = 0 : i64, scratch_operands = 0 : i64, tpu.core_type = #tpu.core_type<tc>, window_params = [{transform_indices = @transform_0, window_bounds = array<i64: 1, 16, 16>}, {transform_indices = @transform_1, window_bounds = array<i64: 1, 16, 16>}, {pipeline_mode = #tpu.pipeline_mode<synchronous>, transform_indices = @transform_2, window_bounds = array<i64: 16, 32>}, {pipeline_mode = #tpu.pipeline_mode<synchronous>, transform_indices = @transform_3, window_bounds = array<i64: 16, 32>}, {pipeline_mode = #tpu.pipeline_mode<synchronous>, transform_indices = @transform_4, window_bounds = array<i64: 16, 32>}, {pipeline_mode = #tpu.pipeline_mode<synchronous>, transform_indices = @transform_5, window_bounds = array<i64: 16, 32>}, {pipeline_mode = #tpu.pipeline_mode<synchronous>, transform_indices = @transform_6, window_bounds = array<i64: 1, 32>}, {pipeline_mode = #tpu.pipeline_mode<synchronous>, transform_indices = @transform_7, window_bounds = array<i64: 1, 32>}, {pipeline_mode = #tpu.pipeline_mode<synchronous>, transform_indices = @transform_8, window_bounds = array<i64: 2, 32, 96>}, {pipeline_mode = #tpu.pipeline_mode<synchronous>, transform_indices = @transform_9, window_bounds = array<i64: 2, 32, 96>}, {pipeline_mode = #tpu.pipeline_mode<synchronous>, transform_indices = @transform_10, window_bounds = array<i64: 2, 1, 96>}, {pipeline_mode = #tpu.pipeline_mode<synchronous>, transform_indices = @transform_11, window_bounds = array<i64: 2, 1, 96>}, {pipeline_mode = #tpu.pipeline_mode<synchronous>, transform_indices = @transform_12, window_bounds = array<i64: 2, 32, 32>}, {pipeline_mode = #tpu.pipeline_mode<synchronous>, transform_indices = @transform_13, window_bounds = array<i64: 2, 32, 32>}, {pipeline_mode = #tpu.pipeline_mode<synchronous>, transform_indices = @transform_14, window_bounds = array<i64: 2, 1, 32>}, {pipeline_mode = #tpu.pipeline_mode<synchronous>, transform_indices = @transform_15, window_bounds = array<i64: 2, 1, 32>}, {pipeline_mode = #tpu.pipeline_mode<synchronous>, transform_indices = @transform_16, window_bounds = array<i64: 2, 32, 128>}, {pipeline_mode = #tpu.pipeline_mode<synchronous>, transform_indices = @transform_17, window_bounds = array<i64: 2, 32, 128>}, {pipeline_mode = #tpu.pipeline_mode<synchronous>, transform_indices = @transform_18, window_bounds = array<i64: 2, 1, 128>}, {pipeline_mode = #tpu.pipeline_mode<synchronous>, transform_indices = @transform_19, window_bounds = array<i64: 2, 1, 128>}, {pipeline_mode = #tpu.pipeline_mode<synchronous>, transform_indices = @transform_20, window_bounds = array<i64: 2, 128, 32>}, {pipeline_mode = #tpu.pipeline_mode<synchronous>, transform_indices = @transform_21, window_bounds = array<i64: 2, 128, 32>}, {pipeline_mode = #tpu.pipeline_mode<synchronous>, transform_indices = @transform_22, window_bounds = array<i64: 2, 1, 32>}, {pipeline_mode = #tpu.pipeline_mode<synchronous>, transform_indices = @transform_23, window_bounds = array<i64: 2, 1, 32>}, {pipeline_mode = #tpu.pipeline_mode<synchronous>, transform_indices = @transform_24, window_bounds = array<i64: 32, 10>}, {pipeline_mode = #tpu.pipeline_mode<synchronous>, transform_indices = @transform_25, window_bounds = array<i64: 32, 10>}, {pipeline_mode = #tpu.pipeline_mode<synchronous>, transform_indices = @transform_26, window_bounds = array<i64: 1, 10>}, {pipeline_mode = #tpu.pipeline_mode<synchronous>, transform_indices = @transform_27, window_bounds = array<i64: 1, 10>}, {transform_indices = @transform_28, window_bounds = array<i64: 1, 1, 10>}]} {
    %c0 = arith.constant 0 : index
    %c0_0 = arith.constant 0 : index
    %c0_1 = arith.constant 0 : index
    %0 = vector.load %arg1[%c0, %c0_0, %c0_1] : memref<1x16x16xf32, #tpu.memory_space<vmem>>, vector<1x16x16xf32>
    %1 = vector.shape_cast %0 : vector<1x16x16xf32> to vector<16x16xf32>
    %c0_2 = arith.constant 0 : index
    %c0_3 = arith.constant 0 : index
    %c0_4 = arith.constant 0 : index
    %2 = vector.load %arg2[%c0_2, %c0_3, %c0_4] : memref<1x16x16xf32, #tpu.memory_space<vmem>>, vector<1x16x16xf32>
    %3 = vector.shape_cast %2 : vector<1x16x16xf32> to vector<16x16xf32>
    %cst = arith.constant dense<0.000000e+00> : vector<16xf32>
    %4 = vector.multi_reduction <add>, %1, %cst [1] : vector<16x16xf32> to vector<16xf32>
    %5 = vector.shape_cast %4 : vector<16xf32> to vector<16x1xf32>
    %cst_5 = arith.constant 1.600000e+01 : f32
    %6 = vector.broadcast %cst_5 : f32 to vector<16x1xf32>
    %7 = arith.divf %5, %6 : vector<16x1xf32>
    %cst_6 = arith.constant dense<0.000000e+00> : vector<1xf32>
    %8 = vector.multi_reduction <add>, %7, %cst_6 [0] : vector<16x1xf32> to vector<1xf32>
    %9 = vector.shape_cast %8 : vector<1xf32> to vector<1x1xf32>
    %cst_7 = arith.constant 1.600000e+01 : f32
    %10 = vector.broadcast %cst_7 : f32 to vector<1x1xf32>
    %11 = arith.divf %9, %10 : vector<1x1xf32>
    %cst_8 = arith.constant dense<0.000000e+00> : vector<16xf32>
    %12 = vector.multi_reduction <add>, %3, %cst_8 [1] : vector<16x16xf32> to vector<16xf32>
    %13 = vector.shape_cast %12 : vector<16xf32> to vector<16x1xf32>
    %cst_9 = arith.constant 1.600000e+01 : f32
    %14 = vector.broadcast %cst_9 : f32 to vector<16x1xf32>
    %15 = arith.divf %13, %14 : vector<16x1xf32>
    %cst_10 = arith.constant dense<0.000000e+00> : vector<1xf32>
    %16 = vector.multi_reduction <add>, %15, %cst_10 [0] : vector<16x1xf32> to vector<1xf32>
    %17 = vector.shape_cast %16 : vector<1xf32> to vector<1x1xf32>
    %cst_11 = arith.constant 1.600000e+01 : f32
    %18 = vector.broadcast %cst_11 : f32 to vector<1x1xf32>
    %19 = arith.divf %17, %18 : vector<1x1xf32>
    %20 = vector.broadcast %11 : vector<1x1xf32> to vector<16x16xf32>
    %21 = arith.subf %1, %20 : vector<16x16xf32>
    %22 = vector.broadcast %19 : vector<1x1xf32> to vector<16x16xf32>
    %23 = arith.subf %3, %22 : vector<16x16xf32>
    %24 = arith.mulf %21, %21 : vector<16x16xf32>
    %cst_12 = arith.constant dense<0.000000e+00> : vector<16xf32>
    %25 = vector.multi_reduction <add>, %24, %cst_12 [1] : vector<16x16xf32> to vector<16xf32>
    %26 = vector.shape_cast %25 : vector<16xf32> to vector<16x1xf32>
    %cst_13 = arith.constant 1.600000e+01 : f32
    %27 = vector.broadcast %cst_13 : f32 to vector<16x1xf32>
    %28 = arith.divf %26, %27 : vector<16x1xf32>
    %cst_14 = arith.constant dense<0.000000e+00> : vector<1xf32>
    %29 = vector.multi_reduction <add>, %28, %cst_14 [0] : vector<16x1xf32> to vector<1xf32>
    %30 = vector.shape_cast %29 : vector<1xf32> to vector<1x1xf32>
    %cst_15 = arith.constant 1.600000e+01 : f32
    %31 = vector.broadcast %cst_15 : f32 to vector<1x1xf32>
    %32 = arith.divf %30, %31 : vector<1x1xf32>
    %cst_16 = arith.constant 9.99999974E-6 : f32
    %33 = vector.broadcast %cst_16 : f32 to vector<1x1xf32>
    %34 = arith.addf %32, %33 : vector<1x1xf32>
    %35 = arith.mulf %23, %23 : vector<16x16xf32>
    %cst_17 = arith.constant dense<0.000000e+00> : vector<16xf32>
    %36 = vector.multi_reduction <add>, %35, %cst_17 [1] : vector<16x16xf32> to vector<16xf32>
    %37 = vector.shape_cast %36 : vector<16xf32> to vector<16x1xf32>
    %cst_18 = arith.constant 1.600000e+01 : f32
    %38 = vector.broadcast %cst_18 : f32 to vector<16x1xf32>
    %39 = arith.divf %37, %38 : vector<16x1xf32>
    %cst_19 = arith.constant dense<0.000000e+00> : vector<1xf32>
    %40 = vector.multi_reduction <add>, %39, %cst_19 [0] : vector<16x1xf32> to vector<1xf32>
    %41 = vector.shape_cast %40 : vector<1xf32> to vector<1x1xf32>
    %cst_20 = arith.constant 1.600000e+01 : f32
    %42 = vector.broadcast %cst_20 : f32 to vector<1x1xf32>
    %43 = arith.divf %41, %42 : vector<1x1xf32>
    %cst_21 = arith.constant 9.99999974E-6 : f32
    %44 = vector.broadcast %cst_21 : f32 to vector<1x1xf32>
    %45 = arith.addf %43, %44 : vector<1x1xf32>
    %46 = arith.mulf %21, %23 : vector<16x16xf32>
    %cst_22 = arith.constant dense<0.000000e+00> : vector<16xf32>
    %47 = vector.multi_reduction <add>, %46, %cst_22 [1] : vector<16x16xf32> to vector<16xf32>
    %48 = vector.shape_cast %47 : vector<16xf32> to vector<16x1xf32>
    %cst_23 = arith.constant 1.600000e+01 : f32
    %49 = vector.broadcast %cst_23 : f32 to vector<16x1xf32>
    %50 = arith.divf %48, %49 : vector<16x1xf32>
    %cst_24 = arith.constant dense<0.000000e+00> : vector<1xf32>
    %51 = vector.multi_reduction <add>, %50, %cst_24 [0] : vector<16x1xf32> to vector<1xf32>
    %52 = vector.shape_cast %51 : vector<1xf32> to vector<1x1xf32>
    %cst_25 = arith.constant 1.600000e+01 : f32
    %53 = vector.broadcast %cst_25 : f32 to vector<1x1xf32>
    %54 = arith.divf %52, %53 : vector<1x1xf32>
    %55 = arith.mulf %34, %45 : vector<1x1xf32>
    %56 = arith.mulf %54, %54 : vector<1x1xf32>
    %57 = arith.subf %55, %56 : vector<1x1xf32>
    %58 = math.sqrt %57 : vector<1x1xf32>
    %59 = arith.addf %34, %45 : vector<1x1xf32>
    %cst_26 = arith.constant 2.000000e+00 : f32
    %60 = vector.broadcast %cst_26 : f32 to vector<1x1xf32>
    %61 = arith.mulf %60, %58 : vector<1x1xf32>
    %62 = arith.addf %59, %61 : vector<1x1xf32>
    %63 = math.sqrt %62 : vector<1x1xf32>
    %64 = arith.mulf %58, %63 : vector<1x1xf32>
    %cst_27 = arith.constant 1.000000e+00 : f32
    %65 = vector.broadcast %cst_27 : f32 to vector<1x1xf32>
    %66 = arith.divf %65, %64 : vector<1x1xf32>
    %67 = arith.addf %45, %58 : vector<1x1xf32>
    %68 = arith.mulf %67, %66 : vector<1x1xf32>
    %69 = arith.addf %34, %58 : vector<1x1xf32>
    %70 = arith.mulf %69, %66 : vector<1x1xf32>
    %cst_28 = arith.constant 0.000000e+00 : f32
    %71 = vector.broadcast %cst_28 : f32 to vector<1x1xf32>
    %72 = arith.subf %71, %54 : vector<1x1xf32>
    %73 = arith.mulf %72, %66 : vector<1x1xf32>
    %74 = vector.broadcast %68 : vector<1x1xf32> to vector<16x16xf32>
    %75 = arith.mulf %74, %21 : vector<16x16xf32>
    %76 = vector.broadcast %73 : vector<1x1xf32> to vector<16x16xf32>
    %77 = arith.mulf %76, %23 : vector<16x16xf32>
    %78 = arith.addf %75, %77 : vector<16x16xf32>
    %cst_29 = arith.constant 0.707106769 : f32
    %79 = vector.broadcast %cst_29 : f32 to vector<16x16xf32>
    %80 = arith.mulf %79, %78 : vector<16x16xf32>
    %81 = vector.broadcast %73 : vector<1x1xf32> to vector<16x16xf32>
    %82 = arith.mulf %81, %21 : vector<16x16xf32>
    %83 = vector.broadcast %70 : vector<1x1xf32> to vector<16x16xf32>
    %84 = arith.mulf %83, %23 : vector<16x16xf32>
    %85 = arith.addf %82, %84 : vector<16x16xf32>
    %cst_30 = arith.constant 0.707106769 : f32
    %86 = vector.broadcast %cst_30 : f32 to vector<16x16xf32>
    %87 = arith.mulf %86, %85 : vector<16x16xf32>
    %c0_31 = arith.constant 0 : index
    %c0_32 = arith.constant 0 : index
    %88 = vector.load %arg5[%c0_31, %c0_32] : memref<16x32xbf16, #tpu.memory_space<vmem>>, vector<16x32xbf16>
    %c0_33 = arith.constant 0 : index
    %c0_34 = arith.constant 0 : index
    %89 = vector.load %arg6[%c0_33, %c0_34] : memref<16x32xbf16, #tpu.memory_space<vmem>>, vector<16x32xbf16>
    %c0_35 = arith.constant 0 : index
    %c0_36 = arith.constant 0 : index
    %90 = vector.load %arg7[%c0_35, %c0_36] : memref<1x32xf32, #tpu.memory_space<vmem>>, vector<1x32xf32>
    %c0_37 = arith.constant 0 : index
    %c0_38 = arith.constant 0 : index
    %91 = vector.load %arg8[%c0_37, %c0_38] : memref<1x32xf32, #tpu.memory_space<vmem>>, vector<1x32xf32>
    %92 = arith.truncf %80 : vector<16x16xf32> to vector<16x16xbf16>
    %cst_39 = arith.constant dense<0.000000e+00> : vector<16x32xf32>
    %93 = tpu.matmul %92, %88, %cst_39 {dimension_numbers = #tpu.dot_dimension_numbers<[1], [0], [0], [1], [0, 0, 1, 1], [], []>} : vector<16x16xbf16>, vector<16x32xbf16>, vector<16x32xf32> -> vector<16x32xf32>
    %94 = arith.truncf %87 : vector<16x16xf32> to vector<16x16xbf16>
    %cst_40 = arith.constant dense<0.000000e+00> : vector<16x32xf32>
    %95 = tpu.matmul %94, %89, %cst_40 {dimension_numbers = #tpu.dot_dimension_numbers<[1], [0], [0], [1], [0, 0, 1, 1], [], []>} : vector<16x16xbf16>, vector<16x32xbf16>, vector<16x32xf32> -> vector<16x32xf32>
    %96 = arith.addf %80, %87 : vector<16x16xf32>
    %97 = arith.truncf %96 : vector<16x16xf32> to vector<16x16xbf16>
    %98 = arith.addf %88, %89 : vector<16x32xbf16>
    %cst_41 = arith.constant dense<0.000000e+00> : vector<16x32xf32>
    %99 = tpu.matmul %97, %98, %cst_41 {dimension_numbers = #tpu.dot_dimension_numbers<[1], [0], [0], [1], [0, 0, 1, 1], [], []>} : vector<16x16xbf16>, vector<16x32xbf16>, vector<16x32xf32> -> vector<16x32xf32>
    %100 = arith.subf %93, %95 : vector<16x32xf32>
    %101 = arith.subf %99, %93 : vector<16x32xf32>
    %102 = arith.subf %101, %95 : vector<16x32xf32>
    %103 = vector.broadcast %90 : vector<1x32xf32> to vector<16x32xf32>
    %104 = arith.addf %100, %103 : vector<16x32xf32>
    %105 = vector.broadcast %91 : vector<1x32xf32> to vector<16x32xf32>
    %106 = arith.addf %102, %105 : vector<16x32xf32>
    %cst_42 = arith.constant dense<0.000000e+00> : vector<16xf32>
    %107 = vector.multi_reduction <add>, %104, %cst_42 [1] : vector<16x32xf32> to vector<16xf32>
    %108 = vector.shape_cast %107 : vector<16xf32> to vector<16x1xf32>
    %cst_43 = arith.constant 3.200000e+01 : f32
    %109 = vector.broadcast %cst_43 : f32 to vector<16x1xf32>
    %110 = arith.divf %108, %109 : vector<16x1xf32>
    %cst_44 = arith.constant dense<0.000000e+00> : vector<1xf32>
    %111 = vector.multi_reduction <add>, %110, %cst_44 [0] : vector<16x1xf32> to vector<1xf32>
    %112 = vector.shape_cast %111 : vector<1xf32> to vector<1x1xf32>
    %cst_45 = arith.constant 1.600000e+01 : f32
    %113 = vector.broadcast %cst_45 : f32 to vector<1x1xf32>
    %114 = arith.divf %112, %113 : vector<1x1xf32>
    %cst_46 = arith.constant dense<0.000000e+00> : vector<16xf32>
    %115 = vector.multi_reduction <add>, %106, %cst_46 [1] : vector<16x32xf32> to vector<16xf32>
    %116 = vector.shape_cast %115 : vector<16xf32> to vector<16x1xf32>
    %cst_47 = arith.constant 3.200000e+01 : f32
    %117 = vector.broadcast %cst_47 : f32 to vector<16x1xf32>
    %118 = arith.divf %116, %117 : vector<16x1xf32>
    %cst_48 = arith.constant dense<0.000000e+00> : vector<1xf32>
    %119 = vector.multi_reduction <add>, %118, %cst_48 [0] : vector<16x1xf32> to vector<1xf32>
    %120 = vector.shape_cast %119 : vector<1xf32> to vector<1x1xf32>
    %cst_49 = arith.constant 1.600000e+01 : f32
    %121 = vector.broadcast %cst_49 : f32 to vector<1x1xf32>
    %122 = arith.divf %120, %121 : vector<1x1xf32>
    %123 = vector.broadcast %114 : vector<1x1xf32> to vector<16x32xf32>
    %124 = arith.subf %104, %123 : vector<16x32xf32>
    %125 = vector.broadcast %122 : vector<1x1xf32> to vector<16x32xf32>
    %126 = arith.subf %106, %125 : vector<16x32xf32>
    %127 = arith.mulf %124, %124 : vector<16x32xf32>
    %cst_50 = arith.constant dense<0.000000e+00> : vector<16xf32>
    %128 = vector.multi_reduction <add>, %127, %cst_50 [1] : vector<16x32xf32> to vector<16xf32>
    %129 = vector.shape_cast %128 : vector<16xf32> to vector<16x1xf32>
    %cst_51 = arith.constant 3.200000e+01 : f32
    %130 = vector.broadcast %cst_51 : f32 to vector<16x1xf32>
    %131 = arith.divf %129, %130 : vector<16x1xf32>
    %cst_52 = arith.constant dense<0.000000e+00> : vector<1xf32>
    %132 = vector.multi_reduction <add>, %131, %cst_52 [0] : vector<16x1xf32> to vector<1xf32>
    %133 = vector.shape_cast %132 : vector<1xf32> to vector<1x1xf32>
    %cst_53 = arith.constant 1.600000e+01 : f32
    %134 = vector.broadcast %cst_53 : f32 to vector<1x1xf32>
    %135 = arith.divf %133, %134 : vector<1x1xf32>
    %cst_54 = arith.constant 9.99999974E-6 : f32
    %136 = vector.broadcast %cst_54 : f32 to vector<1x1xf32>
    %137 = arith.addf %135, %136 : vector<1x1xf32>
    %138 = arith.mulf %126, %126 : vector<16x32xf32>
    %cst_55 = arith.constant dense<0.000000e+00> : vector<16xf32>
    %139 = vector.multi_reduction <add>, %138, %cst_55 [1] : vector<16x32xf32> to vector<16xf32>
    %140 = vector.shape_cast %139 : vector<16xf32> to vector<16x1xf32>
    %cst_56 = arith.constant 3.200000e+01 : f32
    %141 = vector.broadcast %cst_56 : f32 to vector<16x1xf32>
    %142 = arith.divf %140, %141 : vector<16x1xf32>
    %cst_57 = arith.constant dense<0.000000e+00> : vector<1xf32>
    %143 = vector.multi_reduction <add>, %142, %cst_57 [0] : vector<16x1xf32> to vector<1xf32>
    %144 = vector.shape_cast %143 : vector<1xf32> to vector<1x1xf32>
    %cst_58 = arith.constant 1.600000e+01 : f32
    %145 = vector.broadcast %cst_58 : f32 to vector<1x1xf32>
    %146 = arith.divf %144, %145 : vector<1x1xf32>
    %cst_59 = arith.constant 9.99999974E-6 : f32
    %147 = vector.broadcast %cst_59 : f32 to vector<1x1xf32>
    %148 = arith.addf %146, %147 : vector<1x1xf32>
    %149 = arith.mulf %124, %126 : vector<16x32xf32>
    %cst_60 = arith.constant dense<0.000000e+00> : vector<16xf32>
    %150 = vector.multi_reduction <add>, %149, %cst_60 [1] : vector<16x32xf32> to vector<16xf32>
    %151 = vector.shape_cast %150 : vector<16xf32> to vector<16x1xf32>
    %cst_61 = arith.constant 3.200000e+01 : f32
    %152 = vector.broadcast %cst_61 : f32 to vector<16x1xf32>
    %153 = arith.divf %151, %152 : vector<16x1xf32>
    %cst_62 = arith.constant dense<0.000000e+00> : vector<1xf32>
    %154 = vector.multi_reduction <add>, %153, %cst_62 [0] : vector<16x1xf32> to vector<1xf32>
    %155 = vector.shape_cast %154 : vector<1xf32> to vector<1x1xf32>
    %cst_63 = arith.constant 1.600000e+01 : f32
    %156 = vector.broadcast %cst_63 : f32 to vector<1x1xf32>
    %157 = arith.divf %155, %156 : vector<1x1xf32>
    %158 = arith.mulf %137, %148 : vector<1x1xf32>
    %159 = arith.mulf %157, %157 : vector<1x1xf32>
    %160 = arith.subf %158, %159 : vector<1x1xf32>
    %161 = math.sqrt %160 : vector<1x1xf32>
    %162 = arith.addf %137, %148 : vector<1x1xf32>
    %cst_64 = arith.constant 2.000000e+00 : f32
    %163 = vector.broadcast %cst_64 : f32 to vector<1x1xf32>
    %164 = arith.mulf %163, %161 : vector<1x1xf32>
    %165 = arith.addf %162, %164 : vector<1x1xf32>
    %166 = math.sqrt %165 : vector<1x1xf32>
    %167 = arith.mulf %161, %166 : vector<1x1xf32>
    %cst_65 = arith.constant 1.000000e+00 : f32
    %168 = vector.broadcast %cst_65 : f32 to vector<1x1xf32>
    %169 = arith.divf %168, %167 : vector<1x1xf32>
    %170 = arith.addf %148, %161 : vector<1x1xf32>
    %171 = arith.mulf %170, %169 : vector<1x1xf32>
    %172 = arith.addf %137, %161 : vector<1x1xf32>
    %173 = arith.mulf %172, %169 : vector<1x1xf32>
    %cst_66 = arith.constant 0.000000e+00 : f32
    %174 = vector.broadcast %cst_66 : f32 to vector<1x1xf32>
    %175 = arith.subf %174, %157 : vector<1x1xf32>
    %176 = arith.mulf %175, %169 : vector<1x1xf32>
    %177 = vector.broadcast %171 : vector<1x1xf32> to vector<16x32xf32>
    %178 = arith.mulf %177, %124 : vector<16x32xf32>
    %179 = vector.broadcast %176 : vector<1x1xf32> to vector<16x32xf32>
    %180 = arith.mulf %179, %126 : vector<16x32xf32>
    %181 = arith.addf %178, %180 : vector<16x32xf32>
    %cst_67 = arith.constant 0.707106769 : f32
    %182 = vector.broadcast %cst_67 : f32 to vector<16x32xf32>
    %183 = arith.mulf %182, %181 : vector<16x32xf32>
    %184 = vector.broadcast %176 : vector<1x1xf32> to vector<16x32xf32>
    %185 = arith.mulf %184, %124 : vector<16x32xf32>
    %186 = vector.broadcast %173 : vector<1x1xf32> to vector<16x32xf32>
    %187 = arith.mulf %186, %126 : vector<16x32xf32>
    %188 = arith.addf %185, %187 : vector<16x32xf32>
    %cst_68 = arith.constant 0.707106769 : f32
    %189 = vector.broadcast %cst_68 : f32 to vector<16x32xf32>
    %190 = arith.mulf %189, %188 : vector<16x32xf32>
    %c0_69 = arith.constant 0 : index
    %c0_70 = arith.constant 0 : index
    %191 = vector.load %arg3[%c0_69, %c0_70] : memref<16x32xf32, #tpu.memory_space<vmem>>, vector<16x32xf32>
    %192 = arith.addf %183, %191 : vector<16x32xf32>
    %c0_71 = arith.constant 0 : index
    %c0_72 = arith.constant 0 : index
    %193 = vector.load %arg4[%c0_71, %c0_72] : memref<16x32xf32, #tpu.memory_space<vmem>>, vector<16x32xf32>
    %194 = arith.addf %190, %193 : vector<16x32xf32>
    %195 = arith.mulf %192, %192 : vector<16x32xf32>
    %196 = arith.mulf %194, %194 : vector<16x32xf32>
    %197 = arith.addf %195, %196 : vector<16x32xf32>
    %cst_73 = arith.constant dense<0.000000e+00> : vector<16xf32>
    %198 = vector.multi_reduction <add>, %197, %cst_73 [1] : vector<16x32xf32> to vector<16xf32>
    %199 = vector.shape_cast %198 : vector<16xf32> to vector<16x1xf32>
    %cst_74 = arith.constant 3.200000e+01 : f32
    %200 = vector.broadcast %cst_74 : f32 to vector<16x1xf32>
    %201 = arith.divf %199, %200 : vector<16x1xf32>
    %cst_75 = arith.constant 9.99999997E-7 : f32
    %202 = vector.broadcast %cst_75 : f32 to vector<16x1xf32>
    %203 = arith.addf %201, %202 : vector<16x1xf32>
    %204 = math.rsqrt %203 : vector<16x1xf32>
    %205 = vector.broadcast %204 : vector<16x1xf32> to vector<16x32xf32>
    %206 = arith.mulf %192, %205 : vector<16x32xf32>
    %207 = vector.broadcast %204 : vector<16x1xf32> to vector<16x32xf32>
    %208 = arith.mulf %194, %207 : vector<16x32xf32>
    %c0_76 = arith.constant 0 : index
    %c0_77 = arith.constant 0 : index
    %c0_78 = arith.constant 0 : index
    %209 = vector.load %arg9[%c0_76, %c0_77, %c0_78] : memref<2x32x96xbf16, #tpu.memory_space<vmem>>, vector<1x32x96xbf16>
    %210 = vector.shape_cast %209 : vector<1x32x96xbf16> to vector<32x96xbf16>
    %c0_79 = arith.constant 0 : index
    %c0_80 = arith.constant 0 : index
    %c0_81 = arith.constant 0 : index
    %211 = vector.load %arg10[%c0_79, %c0_80, %c0_81] : memref<2x32x96xbf16, #tpu.memory_space<vmem>>, vector<1x32x96xbf16>
    %212 = vector.shape_cast %211 : vector<1x32x96xbf16> to vector<32x96xbf16>
    %c0_82 = arith.constant 0 : index
    %c0_83 = arith.constant 0 : index
    %c0_84 = arith.constant 0 : index
    %213 = vector.load %arg11[%c0_82, %c0_83, %c0_84] : memref<2x1x96xf32, #tpu.memory_space<vmem>>, vector<1x1x96xf32>
    %214 = vector.shape_cast %213 : vector<1x1x96xf32> to vector<1x96xf32>
    %c0_85 = arith.constant 0 : index
    %c0_86 = arith.constant 0 : index
    %c0_87 = arith.constant 0 : index
    %215 = vector.load %arg12[%c0_85, %c0_86, %c0_87] : memref<2x1x96xf32, #tpu.memory_space<vmem>>, vector<1x1x96xf32>
    %216 = vector.shape_cast %215 : vector<1x1x96xf32> to vector<1x96xf32>
    %217 = arith.truncf %206 : vector<16x32xf32> to vector<16x32xbf16>
    %cst_88 = arith.constant dense<0.000000e+00> : vector<16x96xf32>
    %218 = tpu.matmul %217, %210, %cst_88 {dimension_numbers = #tpu.dot_dimension_numbers<[1], [0], [0], [1], [0, 0, 1, 1], [], []>} : vector<16x32xbf16>, vector<32x96xbf16>, vector<16x96xf32> -> vector<16x96xf32>
    %219 = arith.truncf %208 : vector<16x32xf32> to vector<16x32xbf16>
    %cst_89 = arith.constant dense<0.000000e+00> : vector<16x96xf32>
    %220 = tpu.matmul %219, %212, %cst_89 {dimension_numbers = #tpu.dot_dimension_numbers<[1], [0], [0], [1], [0, 0, 1, 1], [], []>} : vector<16x32xbf16>, vector<32x96xbf16>, vector<16x96xf32> -> vector<16x96xf32>
    %221 = arith.addf %206, %208 : vector<16x32xf32>
    %222 = arith.truncf %221 : vector<16x32xf32> to vector<16x32xbf16>
    %223 = arith.addf %210, %212 : vector<32x96xbf16>
    %cst_90 = arith.constant dense<0.000000e+00> : vector<16x96xf32>
    %224 = tpu.matmul %222, %223, %cst_90 {dimension_numbers = #tpu.dot_dimension_numbers<[1], [0], [0], [1], [0, 0, 1, 1], [], []>} : vector<16x32xbf16>, vector<32x96xbf16>, vector<16x96xf32> -> vector<16x96xf32>
    %225 = arith.subf %218, %220 : vector<16x96xf32>
    %226 = arith.subf %224, %218 : vector<16x96xf32>
    %227 = arith.subf %226, %220 : vector<16x96xf32>
    %228 = vector.broadcast %214 : vector<1x96xf32> to vector<16x96xf32>
    %229 = arith.addf %225, %228 : vector<16x96xf32>
    %230 = vector.broadcast %216 : vector<1x96xf32> to vector<16x96xf32>
    %231 = arith.addf %227, %230 : vector<16x96xf32>
    %232 = vector.extract_strided_slice %229 {offsets = [0, 0], sizes = [16, 32], strides = [1, 1]} : vector<16x96xf32> to vector<16x32xf32>
    %233 = vector.extract_strided_slice %229 {offsets = [0, 32], sizes = [16, 32], strides = [1, 1]} : vector<16x96xf32> to vector<16x32xf32>
    %234 = vector.extract_strided_slice %229 {offsets = [0, 64], sizes = [16, 32], strides = [1, 1]} : vector<16x96xf32> to vector<16x32xf32>
    %235 = vector.extract_strided_slice %231 {offsets = [0, 0], sizes = [16, 32], strides = [1, 1]} : vector<16x96xf32> to vector<16x32xf32>
    %236 = vector.extract_strided_slice %231 {offsets = [0, 32], sizes = [16, 32], strides = [1, 1]} : vector<16x96xf32> to vector<16x32xf32>
    %237 = vector.extract_strided_slice %231 {offsets = [0, 64], sizes = [16, 32], strides = [1, 1]} : vector<16x96xf32> to vector<16x32xf32>
    %cst_91 = arith.constant 0.353553385 : f32
    %238 = vector.broadcast %cst_91 : f32 to vector<16x32xf32>
    %239 = arith.mulf %232, %238 : vector<16x32xf32>
    %cst_92 = arith.constant 0.353553385 : f32
    %240 = vector.broadcast %cst_92 : f32 to vector<16x32xf32>
    %241 = arith.mulf %235, %240 : vector<16x32xf32>
    %242 = vector.extract_strided_slice %239 {offsets = [0, 0], sizes = [16, 8], strides = [1, 1]} : vector<16x32xf32> to vector<16x8xf32>
    %243 = vector.extract_strided_slice %241 {offsets = [0, 0], sizes = [16, 8], strides = [1, 1]} : vector<16x32xf32> to vector<16x8xf32>
    %244 = tpu.concatenate %242, %243 in 1 : vector<16x8xf32>, vector<16x8xf32> -> vector<16x16xf32>
    %245 = arith.truncf %244 : vector<16x16xf32> to vector<16x16xbf16>
    %246 = vector.extract_strided_slice %233 {offsets = [0, 0], sizes = [16, 8], strides = [1, 1]} : vector<16x32xf32> to vector<16x8xf32>
    %247 = vector.extract_strided_slice %236 {offsets = [0, 0], sizes = [16, 8], strides = [1, 1]} : vector<16x32xf32> to vector<16x8xf32>
    %248 = tpu.concatenate %246, %247 in 1 : vector<16x8xf32>, vector<16x8xf32> -> vector<16x16xf32>
    %249 = arith.truncf %248 : vector<16x16xf32> to vector<16x16xbf16>
    %250 = vector.extract_strided_slice %234 {offsets = [0, 0], sizes = [16, 8], strides = [1, 1]} : vector<16x32xf32> to vector<16x8xf32>
    %251 = vector.extract_strided_slice %237 {offsets = [0, 0], sizes = [16, 8], strides = [1, 1]} : vector<16x32xf32> to vector<16x8xf32>
    %252 = tpu.concatenate %250, %251 in 1 : vector<16x8xf32>, vector<16x8xf32> -> vector<16x16xf32>
    %253 = arith.truncf %252 : vector<16x16xf32> to vector<16x16xbf16>
    %cst_93 = arith.constant dense<0.000000e+00> : vector<16x16xf32>
    %254 = tpu.matmul %245, %249, %cst_93 {dimension_numbers = #tpu.dot_dimension_numbers<[1], [1], [0], [0], [0, 0, 1, 0], [], []>} : vector<16x16xbf16>, vector<16x16xbf16>, vector<16x16xf32> -> vector<16x16xf32>
    %cst_94 = arith.constant dense<0xFF800000> : vector<16xf32>
    %255 = vector.multi_reduction <maximumf>, %254, %cst_94 [1] : vector<16x16xf32> to vector<16xf32>
    %256 = vector.shape_cast %255 : vector<16xf32> to vector<16x1xf32>
    %257 = vector.broadcast %256 : vector<16x1xf32> to vector<16x16xf32>
    %258 = arith.subf %254, %257 : vector<16x16xf32>
    %259 = math.exp %258 : vector<16x16xf32>
    %cst_95 = arith.constant dense<0.000000e+00> : vector<16xf32>
    %260 = vector.multi_reduction <add>, %259, %cst_95 [1] : vector<16x16xf32> to vector<16xf32>
    %261 = vector.shape_cast %260 : vector<16xf32> to vector<16x1xf32>
    %262 = tpu.reciprocal %261 {approx = true} : vector<16x1xf32> -> vector<16x1xf32>
    %263 = vector.broadcast %262 : vector<16x1xf32> to vector<16x16xf32>
    %264 = arith.mulf %259, %263 : vector<16x16xf32>
    %265 = arith.truncf %264 : vector<16x16xf32> to vector<16x16xbf16>
    %cst_96 = arith.constant dense<0.000000e+00> : vector<16x16xf32>
    %266 = tpu.matmul %265, %253, %cst_96 {dimension_numbers = #tpu.dot_dimension_numbers<[1], [0], [0], [1], [0, 0, 1, 1], [], []>} : vector<16x16xbf16>, vector<16x16xbf16>, vector<16x16xf32> -> vector<16x16xf32>
    %267 = vector.extract_strided_slice %266 {offsets = [0, 0], sizes = [16, 8], strides = [1, 1]} : vector<16x16xf32> to vector<16x8xf32>
    %268 = vector.extract_strided_slice %266 {offsets = [0, 8], sizes = [16, 8], strides = [1, 1]} : vector<16x16xf32> to vector<16x8xf32>
    %269 = vector.extract_strided_slice %239 {offsets = [0, 8], sizes = [16, 8], strides = [1, 1]} : vector<16x32xf32> to vector<16x8xf32>
    %270 = vector.extract_strided_slice %241 {offsets = [0, 8], sizes = [16, 8], strides = [1, 1]} : vector<16x32xf32> to vector<16x8xf32>
    %271 = tpu.concatenate %269, %270 in 1 : vector<16x8xf32>, vector<16x8xf32> -> vector<16x16xf32>
    %272 = arith.truncf %271 : vector<16x16xf32> to vector<16x16xbf16>
    %273 = vector.extract_strided_slice %233 {offsets = [0, 8], sizes = [16, 8], strides = [1, 1]} : vector<16x32xf32> to vector<16x8xf32>
    %274 = vector.extract_strided_slice %236 {offsets = [0, 8], sizes = [16, 8], strides = [1, 1]} : vector<16x32xf32> to vector<16x8xf32>
    %275 = tpu.concatenate %273, %274 in 1 : vector<16x8xf32>, vector<16x8xf32> -> vector<16x16xf32>
    %276 = arith.truncf %275 : vector<16x16xf32> to vector<16x16xbf16>
    %277 = vector.extract_strided_slice %234 {offsets = [0, 8], sizes = [16, 8], strides = [1, 1]} : vector<16x32xf32> to vector<16x8xf32>
    %278 = vector.extract_strided_slice %237 {offsets = [0, 8], sizes = [16, 8], strides = [1, 1]} : vector<16x32xf32> to vector<16x8xf32>
    %279 = tpu.concatenate %277, %278 in 1 : vector<16x8xf32>, vector<16x8xf32> -> vector<16x16xf32>
    %280 = arith.truncf %279 : vector<16x16xf32> to vector<16x16xbf16>
    %cst_97 = arith.constant dense<0.000000e+00> : vector<16x16xf32>
    %281 = tpu.matmul %272, %276, %cst_97 {dimension_numbers = #tpu.dot_dimension_numbers<[1], [1], [0], [0], [0, 0, 1, 0], [], []>} : vector<16x16xbf16>, vector<16x16xbf16>, vector<16x16xf32> -> vector<16x16xf32>
    %cst_98 = arith.constant dense<0xFF800000> : vector<16xf32>
    %282 = vector.multi_reduction <maximumf>, %281, %cst_98 [1] : vector<16x16xf32> to vector<16xf32>
    %283 = vector.shape_cast %282 : vector<16xf32> to vector<16x1xf32>
    %284 = vector.broadcast %283 : vector<16x1xf32> to vector<16x16xf32>
    %285 = arith.subf %281, %284 : vector<16x16xf32>
    %286 = math.exp %285 : vector<16x16xf32>
    %cst_99 = arith.constant dense<0.000000e+00> : vector<16xf32>
    %287 = vector.multi_reduction <add>, %286, %cst_99 [1] : vector<16x16xf32> to vector<16xf32>
    %288 = vector.shape_cast %287 : vector<16xf32> to vector<16x1xf32>
    %289 = tpu.reciprocal %288 {approx = true} : vector<16x1xf32> -> vector<16x1xf32>
    %290 = vector.broadcast %289 : vector<16x1xf32> to vector<16x16xf32>
    %291 = arith.mulf %286, %290 : vector<16x16xf32>
    %292 = arith.truncf %291 : vector<16x16xf32> to vector<16x16xbf16>
    %cst_100 = arith.constant dense<0.000000e+00> : vector<16x16xf32>
    %293 = tpu.matmul %292, %280, %cst_100 {dimension_numbers = #tpu.dot_dimension_numbers<[1], [0], [0], [1], [0, 0, 1, 1], [], []>} : vector<16x16xbf16>, vector<16x16xbf16>, vector<16x16xf32> -> vector<16x16xf32>
    %294 = vector.extract_strided_slice %293 {offsets = [0, 0], sizes = [16, 8], strides = [1, 1]} : vector<16x16xf32> to vector<16x8xf32>
    %295 = vector.extract_strided_slice %293 {offsets = [0, 8], sizes = [16, 8], strides = [1, 1]} : vector<16x16xf32> to vector<16x8xf32>
    %296 = vector.extract_strided_slice %239 {offsets = [0, 16], sizes = [16, 8], strides = [1, 1]} : vector<16x32xf32> to vector<16x8xf32>
    %297 = vector.extract_strided_slice %241 {offsets = [0, 16], sizes = [16, 8], strides = [1, 1]} : vector<16x32xf32> to vector<16x8xf32>
    %298 = tpu.concatenate %296, %297 in 1 : vector<16x8xf32>, vector<16x8xf32> -> vector<16x16xf32>
    %299 = arith.truncf %298 : vector<16x16xf32> to vector<16x16xbf16>
    %300 = vector.extract_strided_slice %233 {offsets = [0, 16], sizes = [16, 8], strides = [1, 1]} : vector<16x32xf32> to vector<16x8xf32>
    %301 = vector.extract_strided_slice %236 {offsets = [0, 16], sizes = [16, 8], strides = [1, 1]} : vector<16x32xf32> to vector<16x8xf32>
    %302 = tpu.concatenate %300, %301 in 1 : vector<16x8xf32>, vector<16x8xf32> -> vector<16x16xf32>
    %303 = arith.truncf %302 : vector<16x16xf32> to vector<16x16xbf16>
    %304 = vector.extract_strided_slice %234 {offsets = [0, 16], sizes = [16, 8], strides = [1, 1]} : vector<16x32xf32> to vector<16x8xf32>
    %305 = vector.extract_strided_slice %237 {offsets = [0, 16], sizes = [16, 8], strides = [1, 1]} : vector<16x32xf32> to vector<16x8xf32>
    %306 = tpu.concatenate %304, %305 in 1 : vector<16x8xf32>, vector<16x8xf32> -> vector<16x16xf32>
    %307 = arith.truncf %306 : vector<16x16xf32> to vector<16x16xbf16>
    %cst_101 = arith.constant dense<0.000000e+00> : vector<16x16xf32>
    %308 = tpu.matmul %299, %303, %cst_101 {dimension_numbers = #tpu.dot_dimension_numbers<[1], [1], [0], [0], [0, 0, 1, 0], [], []>} : vector<16x16xbf16>, vector<16x16xbf16>, vector<16x16xf32> -> vector<16x16xf32>
    %cst_102 = arith.constant dense<0xFF800000> : vector<16xf32>
    %309 = vector.multi_reduction <maximumf>, %308, %cst_102 [1] : vector<16x16xf32> to vector<16xf32>
    %310 = vector.shape_cast %309 : vector<16xf32> to vector<16x1xf32>
    %311 = vector.broadcast %310 : vector<16x1xf32> to vector<16x16xf32>
    %312 = arith.subf %308, %311 : vector<16x16xf32>
    %313 = math.exp %312 : vector<16x16xf32>
    %cst_103 = arith.constant dense<0.000000e+00> : vector<16xf32>
    %314 = vector.multi_reduction <add>, %313, %cst_103 [1] : vector<16x16xf32> to vector<16xf32>
    %315 = vector.shape_cast %314 : vector<16xf32> to vector<16x1xf32>
    %316 = tpu.reciprocal %315 {approx = true} : vector<16x1xf32> -> vector<16x1xf32>
    %317 = vector.broadcast %316 : vector<16x1xf32> to vector<16x16xf32>
    %318 = arith.mulf %313, %317 : vector<16x16xf32>
    %319 = arith.truncf %318 : vector<16x16xf32> to vector<16x16xbf16>
    %cst_104 = arith.constant dense<0.000000e+00> : vector<16x16xf32>
    %320 = tpu.matmul %319, %307, %cst_104 {dimension_numbers = #tpu.dot_dimension_numbers<[1], [0], [0], [1], [0, 0, 1, 1], [], []>} : vector<16x16xbf16>, vector<16x16xbf16>, vector<16x16xf32> -> vector<16x16xf32>
    %321 = vector.extract_strided_slice %320 {offsets = [0, 0], sizes = [16, 8], strides = [1, 1]} : vector<16x16xf32> to vector<16x8xf32>
    %322 = vector.extract_strided_slice %320 {offsets = [0, 8], sizes = [16, 8], strides = [1, 1]} : vector<16x16xf32> to vector<16x8xf32>
    %323 = vector.extract_strided_slice %239 {offsets = [0, 24], sizes = [16, 8], strides = [1, 1]} : vector<16x32xf32> to vector<16x8xf32>
    %324 = vector.extract_strided_slice %241 {offsets = [0, 24], sizes = [16, 8], strides = [1, 1]} : vector<16x32xf32> to vector<16x8xf32>
    %325 = tpu.concatenate %323, %324 in 1 : vector<16x8xf32>, vector<16x8xf32> -> vector<16x16xf32>
    %326 = arith.truncf %325 : vector<16x16xf32> to vector<16x16xbf16>
    %327 = vector.extract_strided_slice %233 {offsets = [0, 24], sizes = [16, 8], strides = [1, 1]} : vector<16x32xf32> to vector<16x8xf32>
    %328 = vector.extract_strided_slice %236 {offsets = [0, 24], sizes = [16, 8], strides = [1, 1]} : vector<16x32xf32> to vector<16x8xf32>
    %329 = tpu.concatenate %327, %328 in 1 : vector<16x8xf32>, vector<16x8xf32> -> vector<16x16xf32>
    %330 = arith.truncf %329 : vector<16x16xf32> to vector<16x16xbf16>
    %331 = vector.extract_strided_slice %234 {offsets = [0, 24], sizes = [16, 8], strides = [1, 1]} : vector<16x32xf32> to vector<16x8xf32>
    %332 = vector.extract_strided_slice %237 {offsets = [0, 24], sizes = [16, 8], strides = [1, 1]} : vector<16x32xf32> to vector<16x8xf32>
    %333 = tpu.concatenate %331, %332 in 1 : vector<16x8xf32>, vector<16x8xf32> -> vector<16x16xf32>
    %334 = arith.truncf %333 : vector<16x16xf32> to vector<16x16xbf16>
    %cst_105 = arith.constant dense<0.000000e+00> : vector<16x16xf32>
    %335 = tpu.matmul %326, %330, %cst_105 {dimension_numbers = #tpu.dot_dimension_numbers<[1], [1], [0], [0], [0, 0, 1, 0], [], []>} : vector<16x16xbf16>, vector<16x16xbf16>, vector<16x16xf32> -> vector<16x16xf32>
    %cst_106 = arith.constant dense<0xFF800000> : vector<16xf32>
    %336 = vector.multi_reduction <maximumf>, %335, %cst_106 [1] : vector<16x16xf32> to vector<16xf32>
    %337 = vector.shape_cast %336 : vector<16xf32> to vector<16x1xf32>
    %338 = vector.broadcast %337 : vector<16x1xf32> to vector<16x16xf32>
    %339 = arith.subf %335, %338 : vector<16x16xf32>
    %340 = math.exp %339 : vector<16x16xf32>
    %cst_107 = arith.constant dense<0.000000e+00> : vector<16xf32>
    %341 = vector.multi_reduction <add>, %340, %cst_107 [1] : vector<16x16xf32> to vector<16xf32>
    %342 = vector.shape_cast %341 : vector<16xf32> to vector<16x1xf32>
    %343 = tpu.reciprocal %342 {approx = true} : vector<16x1xf32> -> vector<16x1xf32>
    %344 = vector.broadcast %343 : vector<16x1xf32> to vector<16x16xf32>
    %345 = arith.mulf %340, %344 : vector<16x16xf32>
    %346 = arith.truncf %345 : vector<16x16xf32> to vector<16x16xbf16>
    %cst_108 = arith.constant dense<0.000000e+00> : vector<16x16xf32>
    %347 = tpu.matmul %346, %334, %cst_108 {dimension_numbers = #tpu.dot_dimension_numbers<[1], [0], [0], [1], [0, 0, 1, 1], [], []>} : vector<16x16xbf16>, vector<16x16xbf16>, vector<16x16xf32> -> vector<16x16xf32>
    %348 = vector.extract_strided_slice %347 {offsets = [0, 0], sizes = [16, 8], strides = [1, 1]} : vector<16x16xf32> to vector<16x8xf32>
    %349 = vector.extract_strided_slice %347 {offsets = [0, 8], sizes = [16, 8], strides = [1, 1]} : vector<16x16xf32> to vector<16x8xf32>
    %350 = tpu.concatenate %267, %294, %321, %348 in 1 : vector<16x8xf32>, vector<16x8xf32>, vector<16x8xf32>, vector<16x8xf32> -> vector<16x32xf32>
    %351 = tpu.concatenate %268, %295, %322, %349 in 1 : vector<16x8xf32>, vector<16x8xf32>, vector<16x8xf32>, vector<16x8xf32> -> vector<16x32xf32>
    %c0_109 = arith.constant 0 : index
    %c0_110 = arith.constant 0 : index
    %c0_111 = arith.constant 0 : index
    %352 = vector.load %arg13[%c0_109, %c0_110, %c0_111] : memref<2x32x32xbf16, #tpu.memory_space<vmem>>, vector<1x32x32xbf16>
    %353 = vector.shape_cast %352 : vector<1x32x32xbf16> to vector<32x32xbf16>
    %c0_112 = arith.constant 0 : index
    %c0_113 = arith.constant 0 : index
    %c0_114 = arith.constant 0 : index
    %354 = vector.load %arg14[%c0_112, %c0_113, %c0_114] : memref<2x32x32xbf16, #tpu.memory_space<vmem>>, vector<1x32x32xbf16>
    %355 = vector.shape_cast %354 : vector<1x32x32xbf16> to vector<32x32xbf16>
    %c0_115 = arith.constant 0 : index
    %c0_116 = arith.constant 0 : index
    %c0_117 = arith.constant 0 : index
    %356 = vector.load %arg15[%c0_115, %c0_116, %c0_117] : memref<2x1x32xf32, #tpu.memory_space<vmem>>, vector<1x1x32xf32>
    %357 = vector.shape_cast %356 : vector<1x1x32xf32> to vector<1x32xf32>
    %c0_118 = arith.constant 0 : index
    %c0_119 = arith.constant 0 : index
    %c0_120 = arith.constant 0 : index
    %358 = vector.load %arg16[%c0_118, %c0_119, %c0_120] : memref<2x1x32xf32, #tpu.memory_space<vmem>>, vector<1x1x32xf32>
    %359 = vector.shape_cast %358 : vector<1x1x32xf32> to vector<1x32xf32>
    %360 = arith.truncf %350 : vector<16x32xf32> to vector<16x32xbf16>
    %cst_121 = arith.constant dense<0.000000e+00> : vector<16x32xf32>
    %361 = tpu.matmul %360, %353, %cst_121 {dimension_numbers = #tpu.dot_dimension_numbers<[1], [0], [0], [1], [0, 0, 1, 1], [], []>} : vector<16x32xbf16>, vector<32x32xbf16>, vector<16x32xf32> -> vector<16x32xf32>
    %362 = arith.truncf %351 : vector<16x32xf32> to vector<16x32xbf16>
    %cst_122 = arith.constant dense<0.000000e+00> : vector<16x32xf32>
    %363 = tpu.matmul %362, %355, %cst_122 {dimension_numbers = #tpu.dot_dimension_numbers<[1], [0], [0], [1], [0, 0, 1, 1], [], []>} : vector<16x32xbf16>, vector<32x32xbf16>, vector<16x32xf32> -> vector<16x32xf32>
    %364 = arith.addf %350, %351 : vector<16x32xf32>
    %365 = arith.truncf %364 : vector<16x32xf32> to vector<16x32xbf16>
    %366 = arith.addf %353, %355 : vector<32x32xbf16>
    %cst_123 = arith.constant dense<0.000000e+00> : vector<16x32xf32>
    %367 = tpu.matmul %365, %366, %cst_123 {dimension_numbers = #tpu.dot_dimension_numbers<[1], [0], [0], [1], [0, 0, 1, 1], [], []>} : vector<16x32xbf16>, vector<32x32xbf16>, vector<16x32xf32> -> vector<16x32xf32>
    %368 = arith.subf %361, %363 : vector<16x32xf32>
    %369 = arith.subf %367, %361 : vector<16x32xf32>
    %370 = arith.subf %369, %363 : vector<16x32xf32>
    %371 = vector.broadcast %357 : vector<1x32xf32> to vector<16x32xf32>
    %372 = arith.addf %368, %371 : vector<16x32xf32>
    %373 = vector.broadcast %359 : vector<1x32xf32> to vector<16x32xf32>
    %374 = arith.addf %370, %373 : vector<16x32xf32>
    %375 = arith.addf %192, %372 : vector<16x32xf32>
    %376 = arith.addf %194, %374 : vector<16x32xf32>
    %377 = arith.mulf %375, %375 : vector<16x32xf32>
    %378 = arith.mulf %376, %376 : vector<16x32xf32>
    %379 = arith.addf %377, %378 : vector<16x32xf32>
    %cst_124 = arith.constant dense<0.000000e+00> : vector<16xf32>
    %380 = vector.multi_reduction <add>, %379, %cst_124 [1] : vector<16x32xf32> to vector<16xf32>
    %381 = vector.shape_cast %380 : vector<16xf32> to vector<16x1xf32>
    %cst_125 = arith.constant 3.200000e+01 : f32
    %382 = vector.broadcast %cst_125 : f32 to vector<16x1xf32>
    %383 = arith.divf %381, %382 : vector<16x1xf32>
    %cst_126 = arith.constant 9.99999997E-7 : f32
    %384 = vector.broadcast %cst_126 : f32 to vector<16x1xf32>
    %385 = arith.addf %383, %384 : vector<16x1xf32>
    %386 = math.rsqrt %385 : vector<16x1xf32>
    %387 = vector.broadcast %386 : vector<16x1xf32> to vector<16x32xf32>
    %388 = arith.mulf %375, %387 : vector<16x32xf32>
    %389 = vector.broadcast %386 : vector<16x1xf32> to vector<16x32xf32>
    %390 = arith.mulf %376, %389 : vector<16x32xf32>
    %c0_127 = arith.constant 0 : index
    %c0_128 = arith.constant 0 : index
    %c0_129 = arith.constant 0 : index
    %391 = vector.load %arg17[%c0_127, %c0_128, %c0_129] : memref<2x32x128xbf16, #tpu.memory_space<vmem>>, vector<1x32x128xbf16>
    %392 = vector.shape_cast %391 : vector<1x32x128xbf16> to vector<32x128xbf16>
    %c0_130 = arith.constant 0 : index
    %c0_131 = arith.constant 0 : index
    %c0_132 = arith.constant 0 : index
    %393 = vector.load %arg18[%c0_130, %c0_131, %c0_132] : memref<2x32x128xbf16, #tpu.memory_space<vmem>>, vector<1x32x128xbf16>
    %394 = vector.shape_cast %393 : vector<1x32x128xbf16> to vector<32x128xbf16>
    %c0_133 = arith.constant 0 : index
    %c0_134 = arith.constant 0 : index
    %c0_135 = arith.constant 0 : index
    %395 = vector.load %arg19[%c0_133, %c0_134, %c0_135] : memref<2x1x128xf32, #tpu.memory_space<vmem>>, vector<1x1x128xf32>
    %396 = vector.shape_cast %395 : vector<1x1x128xf32> to vector<1x128xf32>
    %c0_136 = arith.constant 0 : index
    %c0_137 = arith.constant 0 : index
    %c0_138 = arith.constant 0 : index
    %397 = vector.load %arg20[%c0_136, %c0_137, %c0_138] : memref<2x1x128xf32, #tpu.memory_space<vmem>>, vector<1x1x128xf32>
    %398 = vector.shape_cast %397 : vector<1x1x128xf32> to vector<1x128xf32>
    %399 = arith.truncf %388 : vector<16x32xf32> to vector<16x32xbf16>
    %cst_139 = arith.constant dense<0.000000e+00> : vector<16x128xf32>
    %400 = tpu.matmul %399, %392, %cst_139 {dimension_numbers = #tpu.dot_dimension_numbers<[1], [0], [0], [1], [0, 0, 1, 1], [], []>} : vector<16x32xbf16>, vector<32x128xbf16>, vector<16x128xf32> -> vector<16x128xf32>
    %401 = arith.truncf %390 : vector<16x32xf32> to vector<16x32xbf16>
    %cst_140 = arith.constant dense<0.000000e+00> : vector<16x128xf32>
    %402 = tpu.matmul %401, %394, %cst_140 {dimension_numbers = #tpu.dot_dimension_numbers<[1], [0], [0], [1], [0, 0, 1, 1], [], []>} : vector<16x32xbf16>, vector<32x128xbf16>, vector<16x128xf32> -> vector<16x128xf32>
    %403 = arith.addf %388, %390 : vector<16x32xf32>
    %404 = arith.truncf %403 : vector<16x32xf32> to vector<16x32xbf16>
    %405 = arith.addf %392, %394 : vector<32x128xbf16>
    %cst_141 = arith.constant dense<0.000000e+00> : vector<16x128xf32>
    %406 = tpu.matmul %404, %405, %cst_141 {dimension_numbers = #tpu.dot_dimension_numbers<[1], [0], [0], [1], [0, 0, 1, 1], [], []>} : vector<16x32xbf16>, vector<32x128xbf16>, vector<16x128xf32> -> vector<16x128xf32>
    %407 = arith.subf %400, %402 : vector<16x128xf32>
    %408 = arith.subf %406, %400 : vector<16x128xf32>
    %409 = arith.subf %408, %402 : vector<16x128xf32>
    %410 = vector.broadcast %396 : vector<1x128xf32> to vector<16x128xf32>
    %411 = arith.addf %407, %410 : vector<16x128xf32>
    %412 = vector.broadcast %398 : vector<1x128xf32> to vector<16x128xf32>
    %413 = arith.addf %409, %412 : vector<16x128xf32>
    %414 = arith.mulf %411, %411 : vector<16x128xf32>
    %415 = arith.mulf %411, %414 : vector<16x128xf32>
    %cst_142 = arith.constant 4.471500e-02 : f32
    %416 = vector.broadcast %cst_142 : f32 to vector<16x128xf32>
    %417 = arith.mulf %416, %415 : vector<16x128xf32>
    %418 = arith.addf %411, %417 : vector<16x128xf32>
    %cst_143 = arith.constant 0.797884583 : f32
    %419 = vector.broadcast %cst_143 : f32 to vector<16x128xf32>
    %420 = arith.mulf %419, %418 : vector<16x128xf32>
    %421 = math.tanh %420 : vector<16x128xf32>
    %cst_144 = arith.constant 1.000000e+00 : f32
    %422 = vector.broadcast %cst_144 : f32 to vector<16x128xf32>
    %423 = arith.addf %422, %421 : vector<16x128xf32>
    %cst_145 = arith.constant 5.000000e-01 : f32
    %424 = vector.broadcast %cst_145 : f32 to vector<16x128xf32>
    %425 = arith.mulf %424, %423 : vector<16x128xf32>
    %426 = arith.mulf %411, %425 : vector<16x128xf32>
    %427 = arith.mulf %413, %413 : vector<16x128xf32>
    %428 = arith.mulf %413, %427 : vector<16x128xf32>
    %cst_146 = arith.constant 4.471500e-02 : f32
    %429 = vector.broadcast %cst_146 : f32 to vector<16x128xf32>
    %430 = arith.mulf %429, %428 : vector<16x128xf32>
    %431 = arith.addf %413, %430 : vector<16x128xf32>
    %cst_147 = arith.constant 0.797884583 : f32
    %432 = vector.broadcast %cst_147 : f32 to vector<16x128xf32>
    %433 = arith.mulf %432, %431 : vector<16x128xf32>
    %434 = math.tanh %433 : vector<16x128xf32>
    %cst_148 = arith.constant 1.000000e+00 : f32
    %435 = vector.broadcast %cst_148 : f32 to vector<16x128xf32>
    %436 = arith.addf %435, %434 : vector<16x128xf32>
    %cst_149 = arith.constant 5.000000e-01 : f32
    %437 = vector.broadcast %cst_149 : f32 to vector<16x128xf32>
    %438 = arith.mulf %437, %436 : vector<16x128xf32>
    %439 = arith.mulf %413, %438 : vector<16x128xf32>
    %c0_150 = arith.constant 0 : index
    %c0_151 = arith.constant 0 : index
    %c0_152 = arith.constant 0 : index
    %440 = vector.load %arg21[%c0_150, %c0_151, %c0_152] : memref<2x128x32xbf16, #tpu.memory_space<vmem>>, vector<1x128x32xbf16>
    %441 = vector.shape_cast %440 : vector<1x128x32xbf16> to vector<128x32xbf16>
    %c0_153 = arith.constant 0 : index
    %c0_154 = arith.constant 0 : index
    %c0_155 = arith.constant 0 : index
    %442 = vector.load %arg22[%c0_153, %c0_154, %c0_155] : memref<2x128x32xbf16, #tpu.memory_space<vmem>>, vector<1x128x32xbf16>
    %443 = vector.shape_cast %442 : vector<1x128x32xbf16> to vector<128x32xbf16>
    %c0_156 = arith.constant 0 : index
    %c0_157 = arith.constant 0 : index
    %c0_158 = arith.constant 0 : index
    %444 = vector.load %arg23[%c0_156, %c0_157, %c0_158] : memref<2x1x32xf32, #tpu.memory_space<vmem>>, vector<1x1x32xf32>
    %445 = vector.shape_cast %444 : vector<1x1x32xf32> to vector<1x32xf32>
    %c0_159 = arith.constant 0 : index
    %c0_160 = arith.constant 0 : index
    %c0_161 = arith.constant 0 : index
    %446 = vector.load %arg24[%c0_159, %c0_160, %c0_161] : memref<2x1x32xf32, #tpu.memory_space<vmem>>, vector<1x1x32xf32>
    %447 = vector.shape_cast %446 : vector<1x1x32xf32> to vector<1x32xf32>
    %448 = arith.truncf %426 : vector<16x128xf32> to vector<16x128xbf16>
    %cst_162 = arith.constant dense<0.000000e+00> : vector<16x32xf32>
    %449 = tpu.matmul %448, %441, %cst_162 {dimension_numbers = #tpu.dot_dimension_numbers<[1], [0], [0], [1], [0, 0, 1, 1], [], []>} : vector<16x128xbf16>, vector<128x32xbf16>, vector<16x32xf32> -> vector<16x32xf32>
    %450 = arith.truncf %439 : vector<16x128xf32> to vector<16x128xbf16>
    %cst_163 = arith.constant dense<0.000000e+00> : vector<16x32xf32>
    %451 = tpu.matmul %450, %443, %cst_163 {dimension_numbers = #tpu.dot_dimension_numbers<[1], [0], [0], [1], [0, 0, 1, 1], [], []>} : vector<16x128xbf16>, vector<128x32xbf16>, vector<16x32xf32> -> vector<16x32xf32>
    %452 = arith.addf %426, %439 : vector<16x128xf32>
    %453 = arith.truncf %452 : vector<16x128xf32> to vector<16x128xbf16>
    %454 = arith.addf %441, %443 : vector<128x32xbf16>
    %cst_164 = arith.constant dense<0.000000e+00> : vector<16x32xf32>
    %455 = tpu.matmul %453, %454, %cst_164 {dimension_numbers = #tpu.dot_dimension_numbers<[1], [0], [0], [1], [0, 0, 1, 1], [], []>} : vector<16x128xbf16>, vector<128x32xbf16>, vector<16x32xf32> -> vector<16x32xf32>
    %456 = arith.subf %449, %451 : vector<16x32xf32>
    %457 = arith.subf %455, %449 : vector<16x32xf32>
    %458 = arith.subf %457, %451 : vector<16x32xf32>
    %459 = vector.broadcast %445 : vector<1x32xf32> to vector<16x32xf32>
    %460 = arith.addf %456, %459 : vector<16x32xf32>
    %461 = vector.broadcast %447 : vector<1x32xf32> to vector<16x32xf32>
    %462 = arith.addf %458, %461 : vector<16x32xf32>
    %463 = arith.addf %375, %460 : vector<16x32xf32>
    %464 = arith.addf %376, %462 : vector<16x32xf32>
    %465 = arith.mulf %463, %463 : vector<16x32xf32>
    %466 = arith.mulf %464, %464 : vector<16x32xf32>
    %467 = arith.addf %465, %466 : vector<16x32xf32>
    %cst_165 = arith.constant dense<0.000000e+00> : vector<16xf32>
    %468 = vector.multi_reduction <add>, %467, %cst_165 [1] : vector<16x32xf32> to vector<16xf32>
    %469 = vector.shape_cast %468 : vector<16xf32> to vector<16x1xf32>
    %cst_166 = arith.constant 3.200000e+01 : f32
    %470 = vector.broadcast %cst_166 : f32 to vector<16x1xf32>
    %471 = arith.divf %469, %470 : vector<16x1xf32>
    %cst_167 = arith.constant 9.99999997E-7 : f32
    %472 = vector.broadcast %cst_167 : f32 to vector<16x1xf32>
    %473 = arith.addf %471, %472 : vector<16x1xf32>
    %474 = math.rsqrt %473 : vector<16x1xf32>
    %475 = vector.broadcast %474 : vector<16x1xf32> to vector<16x32xf32>
    %476 = arith.mulf %463, %475 : vector<16x32xf32>
    %477 = vector.broadcast %474 : vector<16x1xf32> to vector<16x32xf32>
    %478 = arith.mulf %464, %477 : vector<16x32xf32>
    %c1 = arith.constant 1 : index
    %c0_168 = arith.constant 0 : index
    %c0_169 = arith.constant 0 : index
    %479 = vector.load %arg9[%c1, %c0_168, %c0_169] : memref<2x32x96xbf16, #tpu.memory_space<vmem>>, vector<1x32x96xbf16>
    %480 = vector.shape_cast %479 : vector<1x32x96xbf16> to vector<32x96xbf16>
    %c1_170 = arith.constant 1 : index
    %c0_171 = arith.constant 0 : index
    %c0_172 = arith.constant 0 : index
    %481 = vector.load %arg10[%c1_170, %c0_171, %c0_172] : memref<2x32x96xbf16, #tpu.memory_space<vmem>>, vector<1x32x96xbf16>
    %482 = vector.shape_cast %481 : vector<1x32x96xbf16> to vector<32x96xbf16>
    %c1_173 = arith.constant 1 : index
    %c0_174 = arith.constant 0 : index
    %c0_175 = arith.constant 0 : index
    %483 = vector.load %arg11[%c1_173, %c0_174, %c0_175] : memref<2x1x96xf32, #tpu.memory_space<vmem>>, vector<1x1x96xf32>
    %484 = vector.shape_cast %483 : vector<1x1x96xf32> to vector<1x96xf32>
    %c1_176 = arith.constant 1 : index
    %c0_177 = arith.constant 0 : index
    %c0_178 = arith.constant 0 : index
    %485 = vector.load %arg12[%c1_176, %c0_177, %c0_178] : memref<2x1x96xf32, #tpu.memory_space<vmem>>, vector<1x1x96xf32>
    %486 = vector.shape_cast %485 : vector<1x1x96xf32> to vector<1x96xf32>
    %487 = arith.truncf %476 : vector<16x32xf32> to vector<16x32xbf16>
    %cst_179 = arith.constant dense<0.000000e+00> : vector<16x96xf32>
    %488 = tpu.matmul %487, %480, %cst_179 {dimension_numbers = #tpu.dot_dimension_numbers<[1], [0], [0], [1], [0, 0, 1, 1], [], []>} : vector<16x32xbf16>, vector<32x96xbf16>, vector<16x96xf32> -> vector<16x96xf32>
    %489 = arith.truncf %478 : vector<16x32xf32> to vector<16x32xbf16>
    %cst_180 = arith.constant dense<0.000000e+00> : vector<16x96xf32>
    %490 = tpu.matmul %489, %482, %cst_180 {dimension_numbers = #tpu.dot_dimension_numbers<[1], [0], [0], [1], [0, 0, 1, 1], [], []>} : vector<16x32xbf16>, vector<32x96xbf16>, vector<16x96xf32> -> vector<16x96xf32>
    %491 = arith.addf %476, %478 : vector<16x32xf32>
    %492 = arith.truncf %491 : vector<16x32xf32> to vector<16x32xbf16>
    %493 = arith.addf %480, %482 : vector<32x96xbf16>
    %cst_181 = arith.constant dense<0.000000e+00> : vector<16x96xf32>
    %494 = tpu.matmul %492, %493, %cst_181 {dimension_numbers = #tpu.dot_dimension_numbers<[1], [0], [0], [1], [0, 0, 1, 1], [], []>} : vector<16x32xbf16>, vector<32x96xbf16>, vector<16x96xf32> -> vector<16x96xf32>
    %495 = arith.subf %488, %490 : vector<16x96xf32>
    %496 = arith.subf %494, %488 : vector<16x96xf32>
    %497 = arith.subf %496, %490 : vector<16x96xf32>
    %498 = vector.broadcast %484 : vector<1x96xf32> to vector<16x96xf32>
    %499 = arith.addf %495, %498 : vector<16x96xf32>
    %500 = vector.broadcast %486 : vector<1x96xf32> to vector<16x96xf32>
    %501 = arith.addf %497, %500 : vector<16x96xf32>
    %502 = vector.extract_strided_slice %499 {offsets = [0, 0], sizes = [16, 32], strides = [1, 1]} : vector<16x96xf32> to vector<16x32xf32>
    %503 = vector.extract_strided_slice %499 {offsets = [0, 32], sizes = [16, 32], strides = [1, 1]} : vector<16x96xf32> to vector<16x32xf32>
    %504 = vector.extract_strided_slice %499 {offsets = [0, 64], sizes = [16, 32], strides = [1, 1]} : vector<16x96xf32> to vector<16x32xf32>
    %505 = vector.extract_strided_slice %501 {offsets = [0, 0], sizes = [16, 32], strides = [1, 1]} : vector<16x96xf32> to vector<16x32xf32>
    %506 = vector.extract_strided_slice %501 {offsets = [0, 32], sizes = [16, 32], strides = [1, 1]} : vector<16x96xf32> to vector<16x32xf32>
    %507 = vector.extract_strided_slice %501 {offsets = [0, 64], sizes = [16, 32], strides = [1, 1]} : vector<16x96xf32> to vector<16x32xf32>
    %cst_182 = arith.constant 0.353553385 : f32
    %508 = vector.broadcast %cst_182 : f32 to vector<16x32xf32>
    %509 = arith.mulf %502, %508 : vector<16x32xf32>
    %cst_183 = arith.constant 0.353553385 : f32
    %510 = vector.broadcast %cst_183 : f32 to vector<16x32xf32>
    %511 = arith.mulf %505, %510 : vector<16x32xf32>
    %512 = vector.extract_strided_slice %509 {offsets = [0, 0], sizes = [16, 8], strides = [1, 1]} : vector<16x32xf32> to vector<16x8xf32>
    %513 = vector.extract_strided_slice %511 {offsets = [0, 0], sizes = [16, 8], strides = [1, 1]} : vector<16x32xf32> to vector<16x8xf32>
    %514 = tpu.concatenate %512, %513 in 1 : vector<16x8xf32>, vector<16x8xf32> -> vector<16x16xf32>
    %515 = arith.truncf %514 : vector<16x16xf32> to vector<16x16xbf16>
    %516 = vector.extract_strided_slice %503 {offsets = [0, 0], sizes = [16, 8], strides = [1, 1]} : vector<16x32xf32> to vector<16x8xf32>
    %517 = vector.extract_strided_slice %506 {offsets = [0, 0], sizes = [16, 8], strides = [1, 1]} : vector<16x32xf32> to vector<16x8xf32>
    %518 = tpu.concatenate %516, %517 in 1 : vector<16x8xf32>, vector<16x8xf32> -> vector<16x16xf32>
    %519 = arith.truncf %518 : vector<16x16xf32> to vector<16x16xbf16>
    %520 = vector.extract_strided_slice %504 {offsets = [0, 0], sizes = [16, 8], strides = [1, 1]} : vector<16x32xf32> to vector<16x8xf32>
    %521 = vector.extract_strided_slice %507 {offsets = [0, 0], sizes = [16, 8], strides = [1, 1]} : vector<16x32xf32> to vector<16x8xf32>
    %522 = tpu.concatenate %520, %521 in 1 : vector<16x8xf32>, vector<16x8xf32> -> vector<16x16xf32>
    %523 = arith.truncf %522 : vector<16x16xf32> to vector<16x16xbf16>
    %cst_184 = arith.constant dense<0.000000e+00> : vector<16x16xf32>
    %524 = tpu.matmul %515, %519, %cst_184 {dimension_numbers = #tpu.dot_dimension_numbers<[1], [1], [0], [0], [0, 0, 1, 0], [], []>} : vector<16x16xbf16>, vector<16x16xbf16>, vector<16x16xf32> -> vector<16x16xf32>
    %cst_185 = arith.constant dense<0xFF800000> : vector<16xf32>
    %525 = vector.multi_reduction <maximumf>, %524, %cst_185 [1] : vector<16x16xf32> to vector<16xf32>
    %526 = vector.shape_cast %525 : vector<16xf32> to vector<16x1xf32>
    %527 = vector.broadcast %526 : vector<16x1xf32> to vector<16x16xf32>
    %528 = arith.subf %524, %527 : vector<16x16xf32>
    %529 = math.exp %528 : vector<16x16xf32>
    %cst_186 = arith.constant dense<0.000000e+00> : vector<16xf32>
    %530 = vector.multi_reduction <add>, %529, %cst_186 [1] : vector<16x16xf32> to vector<16xf32>
    %531 = vector.shape_cast %530 : vector<16xf32> to vector<16x1xf32>
    %532 = tpu.reciprocal %531 {approx = true} : vector<16x1xf32> -> vector<16x1xf32>
    %533 = vector.broadcast %532 : vector<16x1xf32> to vector<16x16xf32>
    %534 = arith.mulf %529, %533 : vector<16x16xf32>
    %535 = arith.truncf %534 : vector<16x16xf32> to vector<16x16xbf16>
    %cst_187 = arith.constant dense<0.000000e+00> : vector<16x16xf32>
    %536 = tpu.matmul %535, %523, %cst_187 {dimension_numbers = #tpu.dot_dimension_numbers<[1], [0], [0], [1], [0, 0, 1, 1], [], []>} : vector<16x16xbf16>, vector<16x16xbf16>, vector<16x16xf32> -> vector<16x16xf32>
    %537 = vector.extract_strided_slice %536 {offsets = [0, 0], sizes = [16, 8], strides = [1, 1]} : vector<16x16xf32> to vector<16x8xf32>
    %538 = vector.extract_strided_slice %536 {offsets = [0, 8], sizes = [16, 8], strides = [1, 1]} : vector<16x16xf32> to vector<16x8xf32>
    %539 = vector.extract_strided_slice %509 {offsets = [0, 8], sizes = [16, 8], strides = [1, 1]} : vector<16x32xf32> to vector<16x8xf32>
    %540 = vector.extract_strided_slice %511 {offsets = [0, 8], sizes = [16, 8], strides = [1, 1]} : vector<16x32xf32> to vector<16x8xf32>
    %541 = tpu.concatenate %539, %540 in 1 : vector<16x8xf32>, vector<16x8xf32> -> vector<16x16xf32>
    %542 = arith.truncf %541 : vector<16x16xf32> to vector<16x16xbf16>
    %543 = vector.extract_strided_slice %503 {offsets = [0, 8], sizes = [16, 8], strides = [1, 1]} : vector<16x32xf32> to vector<16x8xf32>
    %544 = vector.extract_strided_slice %506 {offsets = [0, 8], sizes = [16, 8], strides = [1, 1]} : vector<16x32xf32> to vector<16x8xf32>
    %545 = tpu.concatenate %543, %544 in 1 : vector<16x8xf32>, vector<16x8xf32> -> vector<16x16xf32>
    %546 = arith.truncf %545 : vector<16x16xf32> to vector<16x16xbf16>
    %547 = vector.extract_strided_slice %504 {offsets = [0, 8], sizes = [16, 8], strides = [1, 1]} : vector<16x32xf32> to vector<16x8xf32>
    %548 = vector.extract_strided_slice %507 {offsets = [0, 8], sizes = [16, 8], strides = [1, 1]} : vector<16x32xf32> to vector<16x8xf32>
    %549 = tpu.concatenate %547, %548 in 1 : vector<16x8xf32>, vector<16x8xf32> -> vector<16x16xf32>
    %550 = arith.truncf %549 : vector<16x16xf32> to vector<16x16xbf16>
    %cst_188 = arith.constant dense<0.000000e+00> : vector<16x16xf32>
    %551 = tpu.matmul %542, %546, %cst_188 {dimension_numbers = #tpu.dot_dimension_numbers<[1], [1], [0], [0], [0, 0, 1, 0], [], []>} : vector<16x16xbf16>, vector<16x16xbf16>, vector<16x16xf32> -> vector<16x16xf32>
    %cst_189 = arith.constant dense<0xFF800000> : vector<16xf32>
    %552 = vector.multi_reduction <maximumf>, %551, %cst_189 [1] : vector<16x16xf32> to vector<16xf32>
    %553 = vector.shape_cast %552 : vector<16xf32> to vector<16x1xf32>
    %554 = vector.broadcast %553 : vector<16x1xf32> to vector<16x16xf32>
    %555 = arith.subf %551, %554 : vector<16x16xf32>
    %556 = math.exp %555 : vector<16x16xf32>
    %cst_190 = arith.constant dense<0.000000e+00> : vector<16xf32>
    %557 = vector.multi_reduction <add>, %556, %cst_190 [1] : vector<16x16xf32> to vector<16xf32>
    %558 = vector.shape_cast %557 : vector<16xf32> to vector<16x1xf32>
    %559 = tpu.reciprocal %558 {approx = true} : vector<16x1xf32> -> vector<16x1xf32>
    %560 = vector.broadcast %559 : vector<16x1xf32> to vector<16x16xf32>
    %561 = arith.mulf %556, %560 : vector<16x16xf32>
    %562 = arith.truncf %561 : vector<16x16xf32> to vector<16x16xbf16>
    %cst_191 = arith.constant dense<0.000000e+00> : vector<16x16xf32>
    %563 = tpu.matmul %562, %550, %cst_191 {dimension_numbers = #tpu.dot_dimension_numbers<[1], [0], [0], [1], [0, 0, 1, 1], [], []>} : vector<16x16xbf16>, vector<16x16xbf16>, vector<16x16xf32> -> vector<16x16xf32>
    %564 = vector.extract_strided_slice %563 {offsets = [0, 0], sizes = [16, 8], strides = [1, 1]} : vector<16x16xf32> to vector<16x8xf32>
    %565 = vector.extract_strided_slice %563 {offsets = [0, 8], sizes = [16, 8], strides = [1, 1]} : vector<16x16xf32> to vector<16x8xf32>
    %566 = vector.extract_strided_slice %509 {offsets = [0, 16], sizes = [16, 8], strides = [1, 1]} : vector<16x32xf32> to vector<16x8xf32>
    %567 = vector.extract_strided_slice %511 {offsets = [0, 16], sizes = [16, 8], strides = [1, 1]} : vector<16x32xf32> to vector<16x8xf32>
    %568 = tpu.concatenate %566, %567 in 1 : vector<16x8xf32>, vector<16x8xf32> -> vector<16x16xf32>
    %569 = arith.truncf %568 : vector<16x16xf32> to vector<16x16xbf16>
    %570 = vector.extract_strided_slice %503 {offsets = [0, 16], sizes = [16, 8], strides = [1, 1]} : vector<16x32xf32> to vector<16x8xf32>
    %571 = vector.extract_strided_slice %506 {offsets = [0, 16], sizes = [16, 8], strides = [1, 1]} : vector<16x32xf32> to vector<16x8xf32>
    %572 = tpu.concatenate %570, %571 in 1 : vector<16x8xf32>, vector<16x8xf32> -> vector<16x16xf32>
    %573 = arith.truncf %572 : vector<16x16xf32> to vector<16x16xbf16>
    %574 = vector.extract_strided_slice %504 {offsets = [0, 16], sizes = [16, 8], strides = [1, 1]} : vector<16x32xf32> to vector<16x8xf32>
    %575 = vector.extract_strided_slice %507 {offsets = [0, 16], sizes = [16, 8], strides = [1, 1]} : vector<16x32xf32> to vector<16x8xf32>
    %576 = tpu.concatenate %574, %575 in 1 : vector<16x8xf32>, vector<16x8xf32> -> vector<16x16xf32>
    %577 = arith.truncf %576 : vector<16x16xf32> to vector<16x16xbf16>
    %cst_192 = arith.constant dense<0.000000e+00> : vector<16x16xf32>
    %578 = tpu.matmul %569, %573, %cst_192 {dimension_numbers = #tpu.dot_dimension_numbers<[1], [1], [0], [0], [0, 0, 1, 0], [], []>} : vector<16x16xbf16>, vector<16x16xbf16>, vector<16x16xf32> -> vector<16x16xf32>
    %cst_193 = arith.constant dense<0xFF800000> : vector<16xf32>
    %579 = vector.multi_reduction <maximumf>, %578, %cst_193 [1] : vector<16x16xf32> to vector<16xf32>
    %580 = vector.shape_cast %579 : vector<16xf32> to vector<16x1xf32>
    %581 = vector.broadcast %580 : vector<16x1xf32> to vector<16x16xf32>
    %582 = arith.subf %578, %581 : vector<16x16xf32>
    %583 = math.exp %582 : vector<16x16xf32>
    %cst_194 = arith.constant dense<0.000000e+00> : vector<16xf32>
    %584 = vector.multi_reduction <add>, %583, %cst_194 [1] : vector<16x16xf32> to vector<16xf32>
    %585 = vector.shape_cast %584 : vector<16xf32> to vector<16x1xf32>
    %586 = tpu.reciprocal %585 {approx = true} : vector<16x1xf32> -> vector<16x1xf32>
    %587 = vector.broadcast %586 : vector<16x1xf32> to vector<16x16xf32>
    %588 = arith.mulf %583, %587 : vector<16x16xf32>
    %589 = arith.truncf %588 : vector<16x16xf32> to vector<16x16xbf16>
    %cst_195 = arith.constant dense<0.000000e+00> : vector<16x16xf32>
    %590 = tpu.matmul %589, %577, %cst_195 {dimension_numbers = #tpu.dot_dimension_numbers<[1], [0], [0], [1], [0, 0, 1, 1], [], []>} : vector<16x16xbf16>, vector<16x16xbf16>, vector<16x16xf32> -> vector<16x16xf32>
    %591 = vector.extract_strided_slice %590 {offsets = [0, 0], sizes = [16, 8], strides = [1, 1]} : vector<16x16xf32> to vector<16x8xf32>
    %592 = vector.extract_strided_slice %590 {offsets = [0, 8], sizes = [16, 8], strides = [1, 1]} : vector<16x16xf32> to vector<16x8xf32>
    %593 = vector.extract_strided_slice %509 {offsets = [0, 24], sizes = [16, 8], strides = [1, 1]} : vector<16x32xf32> to vector<16x8xf32>
    %594 = vector.extract_strided_slice %511 {offsets = [0, 24], sizes = [16, 8], strides = [1, 1]} : vector<16x32xf32> to vector<16x8xf32>
    %595 = tpu.concatenate %593, %594 in 1 : vector<16x8xf32>, vector<16x8xf32> -> vector<16x16xf32>
    %596 = arith.truncf %595 : vector<16x16xf32> to vector<16x16xbf16>
    %597 = vector.extract_strided_slice %503 {offsets = [0, 24], sizes = [16, 8], strides = [1, 1]} : vector<16x32xf32> to vector<16x8xf32>
    %598 = vector.extract_strided_slice %506 {offsets = [0, 24], sizes = [16, 8], strides = [1, 1]} : vector<16x32xf32> to vector<16x8xf32>
    %599 = tpu.concatenate %597, %598 in 1 : vector<16x8xf32>, vector<16x8xf32> -> vector<16x16xf32>
    %600 = arith.truncf %599 : vector<16x16xf32> to vector<16x16xbf16>
    %601 = vector.extract_strided_slice %504 {offsets = [0, 24], sizes = [16, 8], strides = [1, 1]} : vector<16x32xf32> to vector<16x8xf32>
    %602 = vector.extract_strided_slice %507 {offsets = [0, 24], sizes = [16, 8], strides = [1, 1]} : vector<16x32xf32> to vector<16x8xf32>
    %603 = tpu.concatenate %601, %602 in 1 : vector<16x8xf32>, vector<16x8xf32> -> vector<16x16xf32>
    %604 = arith.truncf %603 : vector<16x16xf32> to vector<16x16xbf16>
    %cst_196 = arith.constant dense<0.000000e+00> : vector<16x16xf32>
    %605 = tpu.matmul %596, %600, %cst_196 {dimension_numbers = #tpu.dot_dimension_numbers<[1], [1], [0], [0], [0, 0, 1, 0], [], []>} : vector<16x16xbf16>, vector<16x16xbf16>, vector<16x16xf32> -> vector<16x16xf32>
    %cst_197 = arith.constant dense<0xFF800000> : vector<16xf32>
    %606 = vector.multi_reduction <maximumf>, %605, %cst_197 [1] : vector<16x16xf32> to vector<16xf32>
    %607 = vector.shape_cast %606 : vector<16xf32> to vector<16x1xf32>
    %608 = vector.broadcast %607 : vector<16x1xf32> to vector<16x16xf32>
    %609 = arith.subf %605, %608 : vector<16x16xf32>
    %610 = math.exp %609 : vector<16x16xf32>
    %cst_198 = arith.constant dense<0.000000e+00> : vector<16xf32>
    %611 = vector.multi_reduction <add>, %610, %cst_198 [1] : vector<16x16xf32> to vector<16xf32>
    %612 = vector.shape_cast %611 : vector<16xf32> to vector<16x1xf32>
    %613 = tpu.reciprocal %612 {approx = true} : vector<16x1xf32> -> vector<16x1xf32>
    %614 = vector.broadcast %613 : vector<16x1xf32> to vector<16x16xf32>
    %615 = arith.mulf %610, %614 : vector<16x16xf32>
    %616 = arith.truncf %615 : vector<16x16xf32> to vector<16x16xbf16>
    %cst_199 = arith.constant dense<0.000000e+00> : vector<16x16xf32>
    %617 = tpu.matmul %616, %604, %cst_199 {dimension_numbers = #tpu.dot_dimension_numbers<[1], [0], [0], [1], [0, 0, 1, 1], [], []>} : vector<16x16xbf16>, vector<16x16xbf16>, vector<16x16xf32> -> vector<16x16xf32>
    %618 = vector.extract_strided_slice %617 {offsets = [0, 0], sizes = [16, 8], strides = [1, 1]} : vector<16x16xf32> to vector<16x8xf32>
    %619 = vector.extract_strided_slice %617 {offsets = [0, 8], sizes = [16, 8], strides = [1, 1]} : vector<16x16xf32> to vector<16x8xf32>
    %620 = tpu.concatenate %537, %564, %591, %618 in 1 : vector<16x8xf32>, vector<16x8xf32>, vector<16x8xf32>, vector<16x8xf32> -> vector<16x32xf32>
    %621 = tpu.concatenate %538, %565, %592, %619 in 1 : vector<16x8xf32>, vector<16x8xf32>, vector<16x8xf32>, vector<16x8xf32> -> vector<16x32xf32>
    %c1_200 = arith.constant 1 : index
    %c0_201 = arith.constant 0 : index
    %c0_202 = arith.constant 0 : index
    %622 = vector.load %arg13[%c1_200, %c0_201, %c0_202] : memref<2x32x32xbf16, #tpu.memory_space<vmem>>, vector<1x32x32xbf16>
    %623 = vector.shape_cast %622 : vector<1x32x32xbf16> to vector<32x32xbf16>
    %c1_203 = arith.constant 1 : index
    %c0_204 = arith.constant 0 : index
    %c0_205 = arith.constant 0 : index
    %624 = vector.load %arg14[%c1_203, %c0_204, %c0_205] : memref<2x32x32xbf16, #tpu.memory_space<vmem>>, vector<1x32x32xbf16>
    %625 = vector.shape_cast %624 : vector<1x32x32xbf16> to vector<32x32xbf16>
    %c1_206 = arith.constant 1 : index
    %c0_207 = arith.constant 0 : index
    %c0_208 = arith.constant 0 : index
    %626 = vector.load %arg15[%c1_206, %c0_207, %c0_208] : memref<2x1x32xf32, #tpu.memory_space<vmem>>, vector<1x1x32xf32>
    %627 = vector.shape_cast %626 : vector<1x1x32xf32> to vector<1x32xf32>
    %c1_209 = arith.constant 1 : index
    %c0_210 = arith.constant 0 : index
    %c0_211 = arith.constant 0 : index
    %628 = vector.load %arg16[%c1_209, %c0_210, %c0_211] : memref<2x1x32xf32, #tpu.memory_space<vmem>>, vector<1x1x32xf32>
    %629 = vector.shape_cast %628 : vector<1x1x32xf32> to vector<1x32xf32>
    %630 = arith.truncf %620 : vector<16x32xf32> to vector<16x32xbf16>
    %cst_212 = arith.constant dense<0.000000e+00> : vector<16x32xf32>
    %631 = tpu.matmul %630, %623, %cst_212 {dimension_numbers = #tpu.dot_dimension_numbers<[1], [0], [0], [1], [0, 0, 1, 1], [], []>} : vector<16x32xbf16>, vector<32x32xbf16>, vector<16x32xf32> -> vector<16x32xf32>
    %632 = arith.truncf %621 : vector<16x32xf32> to vector<16x32xbf16>
    %cst_213 = arith.constant dense<0.000000e+00> : vector<16x32xf32>
    %633 = tpu.matmul %632, %625, %cst_213 {dimension_numbers = #tpu.dot_dimension_numbers<[1], [0], [0], [1], [0, 0, 1, 1], [], []>} : vector<16x32xbf16>, vector<32x32xbf16>, vector<16x32xf32> -> vector<16x32xf32>
    %634 = arith.addf %620, %621 : vector<16x32xf32>
    %635 = arith.truncf %634 : vector<16x32xf32> to vector<16x32xbf16>
    %636 = arith.addf %623, %625 : vector<32x32xbf16>
    %cst_214 = arith.constant dense<0.000000e+00> : vector<16x32xf32>
    %637 = tpu.matmul %635, %636, %cst_214 {dimension_numbers = #tpu.dot_dimension_numbers<[1], [0], [0], [1], [0, 0, 1, 1], [], []>} : vector<16x32xbf16>, vector<32x32xbf16>, vector<16x32xf32> -> vector<16x32xf32>
    %638 = arith.subf %631, %633 : vector<16x32xf32>
    %639 = arith.subf %637, %631 : vector<16x32xf32>
    %640 = arith.subf %639, %633 : vector<16x32xf32>
    %641 = vector.broadcast %627 : vector<1x32xf32> to vector<16x32xf32>
    %642 = arith.addf %638, %641 : vector<16x32xf32>
    %643 = vector.broadcast %629 : vector<1x32xf32> to vector<16x32xf32>
    %644 = arith.addf %640, %643 : vector<16x32xf32>
    %645 = arith.addf %463, %642 : vector<16x32xf32>
    %646 = arith.addf %464, %644 : vector<16x32xf32>
    %647 = arith.mulf %645, %645 : vector<16x32xf32>
    %648 = arith.mulf %646, %646 : vector<16x32xf32>
    %649 = arith.addf %647, %648 : vector<16x32xf32>
    %cst_215 = arith.constant dense<0.000000e+00> : vector<16xf32>
    %650 = vector.multi_reduction <add>, %649, %cst_215 [1] : vector<16x32xf32> to vector<16xf32>
    %651 = vector.shape_cast %650 : vector<16xf32> to vector<16x1xf32>
    %cst_216 = arith.constant 3.200000e+01 : f32
    %652 = vector.broadcast %cst_216 : f32 to vector<16x1xf32>
    %653 = arith.divf %651, %652 : vector<16x1xf32>
    %cst_217 = arith.constant 9.99999997E-7 : f32
    %654 = vector.broadcast %cst_217 : f32 to vector<16x1xf32>
    %655 = arith.addf %653, %654 : vector<16x1xf32>
    %656 = math.rsqrt %655 : vector<16x1xf32>
    %657 = vector.broadcast %656 : vector<16x1xf32> to vector<16x32xf32>
    %658 = arith.mulf %645, %657 : vector<16x32xf32>
    %659 = vector.broadcast %656 : vector<16x1xf32> to vector<16x32xf32>
    %660 = arith.mulf %646, %659 : vector<16x32xf32>
    %c1_218 = arith.constant 1 : index
    %c0_219 = arith.constant 0 : index
    %c0_220 = arith.constant 0 : index
    %661 = vector.load %arg17[%c1_218, %c0_219, %c0_220] : memref<2x32x128xbf16, #tpu.memory_space<vmem>>, vector<1x32x128xbf16>
    %662 = vector.shape_cast %661 : vector<1x32x128xbf16> to vector<32x128xbf16>
    %c1_221 = arith.constant 1 : index
    %c0_222 = arith.constant 0 : index
    %c0_223 = arith.constant 0 : index
    %663 = vector.load %arg18[%c1_221, %c0_222, %c0_223] : memref<2x32x128xbf16, #tpu.memory_space<vmem>>, vector<1x32x128xbf16>
    %664 = vector.shape_cast %663 : vector<1x32x128xbf16> to vector<32x128xbf16>
    %c1_224 = arith.constant 1 : index
    %c0_225 = arith.constant 0 : index
    %c0_226 = arith.constant 0 : index
    %665 = vector.load %arg19[%c1_224, %c0_225, %c0_226] : memref<2x1x128xf32, #tpu.memory_space<vmem>>, vector<1x1x128xf32>
    %666 = vector.shape_cast %665 : vector<1x1x128xf32> to vector<1x128xf32>
    %c1_227 = arith.constant 1 : index
    %c0_228 = arith.constant 0 : index
    %c0_229 = arith.constant 0 : index
    %667 = vector.load %arg20[%c1_227, %c0_228, %c0_229] : memref<2x1x128xf32, #tpu.memory_space<vmem>>, vector<1x1x128xf32>
    %668 = vector.shape_cast %667 : vector<1x1x128xf32> to vector<1x128xf32>
    %669 = arith.truncf %658 : vector<16x32xf32> to vector<16x32xbf16>
    %cst_230 = arith.constant dense<0.000000e+00> : vector<16x128xf32>
    %670 = tpu.matmul %669, %662, %cst_230 {dimension_numbers = #tpu.dot_dimension_numbers<[1], [0], [0], [1], [0, 0, 1, 1], [], []>} : vector<16x32xbf16>, vector<32x128xbf16>, vector<16x128xf32> -> vector<16x128xf32>
    %671 = arith.truncf %660 : vector<16x32xf32> to vector<16x32xbf16>
    %cst_231 = arith.constant dense<0.000000e+00> : vector<16x128xf32>
    %672 = tpu.matmul %671, %664, %cst_231 {dimension_numbers = #tpu.dot_dimension_numbers<[1], [0], [0], [1], [0, 0, 1, 1], [], []>} : vector<16x32xbf16>, vector<32x128xbf16>, vector<16x128xf32> -> vector<16x128xf32>
    %673 = arith.addf %658, %660 : vector<16x32xf32>
    %674 = arith.truncf %673 : vector<16x32xf32> to vector<16x32xbf16>
    %675 = arith.addf %662, %664 : vector<32x128xbf16>
    %cst_232 = arith.constant dense<0.000000e+00> : vector<16x128xf32>
    %676 = tpu.matmul %674, %675, %cst_232 {dimension_numbers = #tpu.dot_dimension_numbers<[1], [0], [0], [1], [0, 0, 1, 1], [], []>} : vector<16x32xbf16>, vector<32x128xbf16>, vector<16x128xf32> -> vector<16x128xf32>
    %677 = arith.subf %670, %672 : vector<16x128xf32>
    %678 = arith.subf %676, %670 : vector<16x128xf32>
    %679 = arith.subf %678, %672 : vector<16x128xf32>
    %680 = vector.broadcast %666 : vector<1x128xf32> to vector<16x128xf32>
    %681 = arith.addf %677, %680 : vector<16x128xf32>
    %682 = vector.broadcast %668 : vector<1x128xf32> to vector<16x128xf32>
    %683 = arith.addf %679, %682 : vector<16x128xf32>
    %684 = arith.mulf %681, %681 : vector<16x128xf32>
    %685 = arith.mulf %681, %684 : vector<16x128xf32>
    %cst_233 = arith.constant 4.471500e-02 : f32
    %686 = vector.broadcast %cst_233 : f32 to vector<16x128xf32>
    %687 = arith.mulf %686, %685 : vector<16x128xf32>
    %688 = arith.addf %681, %687 : vector<16x128xf32>
    %cst_234 = arith.constant 0.797884583 : f32
    %689 = vector.broadcast %cst_234 : f32 to vector<16x128xf32>
    %690 = arith.mulf %689, %688 : vector<16x128xf32>
    %691 = math.tanh %690 : vector<16x128xf32>
    %cst_235 = arith.constant 1.000000e+00 : f32
    %692 = vector.broadcast %cst_235 : f32 to vector<16x128xf32>
    %693 = arith.addf %692, %691 : vector<16x128xf32>
    %cst_236 = arith.constant 5.000000e-01 : f32
    %694 = vector.broadcast %cst_236 : f32 to vector<16x128xf32>
    %695 = arith.mulf %694, %693 : vector<16x128xf32>
    %696 = arith.mulf %681, %695 : vector<16x128xf32>
    %697 = arith.mulf %683, %683 : vector<16x128xf32>
    %698 = arith.mulf %683, %697 : vector<16x128xf32>
    %cst_237 = arith.constant 4.471500e-02 : f32
    %699 = vector.broadcast %cst_237 : f32 to vector<16x128xf32>
    %700 = arith.mulf %699, %698 : vector<16x128xf32>
    %701 = arith.addf %683, %700 : vector<16x128xf32>
    %cst_238 = arith.constant 0.797884583 : f32
    %702 = vector.broadcast %cst_238 : f32 to vector<16x128xf32>
    %703 = arith.mulf %702, %701 : vector<16x128xf32>
    %704 = math.tanh %703 : vector<16x128xf32>
    %cst_239 = arith.constant 1.000000e+00 : f32
    %705 = vector.broadcast %cst_239 : f32 to vector<16x128xf32>
    %706 = arith.addf %705, %704 : vector<16x128xf32>
    %cst_240 = arith.constant 5.000000e-01 : f32
    %707 = vector.broadcast %cst_240 : f32 to vector<16x128xf32>
    %708 = arith.mulf %707, %706 : vector<16x128xf32>
    %709 = arith.mulf %683, %708 : vector<16x128xf32>
    %c1_241 = arith.constant 1 : index
    %c0_242 = arith.constant 0 : index
    %c0_243 = arith.constant 0 : index
    %710 = vector.load %arg21[%c1_241, %c0_242, %c0_243] : memref<2x128x32xbf16, #tpu.memory_space<vmem>>, vector<1x128x32xbf16>
    %711 = vector.shape_cast %710 : vector<1x128x32xbf16> to vector<128x32xbf16>
    %c1_244 = arith.constant 1 : index
    %c0_245 = arith.constant 0 : index
    %c0_246 = arith.constant 0 : index
    %712 = vector.load %arg22[%c1_244, %c0_245, %c0_246] : memref<2x128x32xbf16, #tpu.memory_space<vmem>>, vector<1x128x32xbf16>
    %713 = vector.shape_cast %712 : vector<1x128x32xbf16> to vector<128x32xbf16>
    %c1_247 = arith.constant 1 : index
    %c0_248 = arith.constant 0 : index
    %c0_249 = arith.constant 0 : index
    %714 = vector.load %arg23[%c1_247, %c0_248, %c0_249] : memref<2x1x32xf32, #tpu.memory_space<vmem>>, vector<1x1x32xf32>
    %715 = vector.shape_cast %714 : vector<1x1x32xf32> to vector<1x32xf32>
    %c1_250 = arith.constant 1 : index
    %c0_251 = arith.constant 0 : index
    %c0_252 = arith.constant 0 : index
    %716 = vector.load %arg24[%c1_250, %c0_251, %c0_252] : memref<2x1x32xf32, #tpu.memory_space<vmem>>, vector<1x1x32xf32>
    %717 = vector.shape_cast %716 : vector<1x1x32xf32> to vector<1x32xf32>
    %718 = arith.truncf %696 : vector<16x128xf32> to vector<16x128xbf16>
    %cst_253 = arith.constant dense<0.000000e+00> : vector<16x32xf32>
    %719 = tpu.matmul %718, %711, %cst_253 {dimension_numbers = #tpu.dot_dimension_numbers<[1], [0], [0], [1], [0, 0, 1, 1], [], []>} : vector<16x128xbf16>, vector<128x32xbf16>, vector<16x32xf32> -> vector<16x32xf32>
    %720 = arith.truncf %709 : vector<16x128xf32> to vector<16x128xbf16>
    %cst_254 = arith.constant dense<0.000000e+00> : vector<16x32xf32>
    %721 = tpu.matmul %720, %713, %cst_254 {dimension_numbers = #tpu.dot_dimension_numbers<[1], [0], [0], [1], [0, 0, 1, 1], [], []>} : vector<16x128xbf16>, vector<128x32xbf16>, vector<16x32xf32> -> vector<16x32xf32>
    %722 = arith.addf %696, %709 : vector<16x128xf32>
    %723 = arith.truncf %722 : vector<16x128xf32> to vector<16x128xbf16>
    %724 = arith.addf %711, %713 : vector<128x32xbf16>
    %cst_255 = arith.constant dense<0.000000e+00> : vector<16x32xf32>
    %725 = tpu.matmul %723, %724, %cst_255 {dimension_numbers = #tpu.dot_dimension_numbers<[1], [0], [0], [1], [0, 0, 1, 1], [], []>} : vector<16x128xbf16>, vector<128x32xbf16>, vector<16x32xf32> -> vector<16x32xf32>
    %726 = arith.subf %719, %721 : vector<16x32xf32>
    %727 = arith.subf %725, %719 : vector<16x32xf32>
    %728 = arith.subf %727, %721 : vector<16x32xf32>
    %729 = vector.broadcast %715 : vector<1x32xf32> to vector<16x32xf32>
    %730 = arith.addf %726, %729 : vector<16x32xf32>
    %731 = vector.broadcast %717 : vector<1x32xf32> to vector<16x32xf32>
    %732 = arith.addf %728, %731 : vector<16x32xf32>
    %733 = arith.addf %645, %730 : vector<16x32xf32>
    %734 = arith.addf %646, %732 : vector<16x32xf32>
    %735 = arith.mulf %733, %733 : vector<16x32xf32>
    %736 = arith.mulf %734, %734 : vector<16x32xf32>
    %737 = arith.addf %735, %736 : vector<16x32xf32>
    %cst_256 = arith.constant dense<0.000000e+00> : vector<16xf32>
    %738 = vector.multi_reduction <add>, %737, %cst_256 [1] : vector<16x32xf32> to vector<16xf32>
    %739 = vector.shape_cast %738 : vector<16xf32> to vector<16x1xf32>
    %cst_257 = arith.constant 3.200000e+01 : f32
    %740 = vector.broadcast %cst_257 : f32 to vector<16x1xf32>
    %741 = arith.divf %739, %740 : vector<16x1xf32>
    %cst_258 = arith.constant 9.99999997E-7 : f32
    %742 = vector.broadcast %cst_258 : f32 to vector<16x1xf32>
    %743 = arith.addf %741, %742 : vector<16x1xf32>
    %744 = math.rsqrt %743 : vector<16x1xf32>
    %745 = vector.broadcast %744 : vector<16x1xf32> to vector<16x32xf32>
    %746 = arith.mulf %733, %745 : vector<16x32xf32>
    %747 = vector.broadcast %744 : vector<16x1xf32> to vector<16x32xf32>
    %748 = arith.mulf %734, %747 : vector<16x32xf32>
    %cst_259 = arith.constant dense<0.000000e+00> : vector<32xf32>
    %749 = vector.multi_reduction <add>, %746, %cst_259 [0] : vector<16x32xf32> to vector<32xf32>
    %750 = vector.shape_cast %749 : vector<32xf32> to vector<1x32xf32>
    %cst_260 = arith.constant 1.600000e+01 : f32
    %751 = vector.broadcast %cst_260 : f32 to vector<1x32xf32>
    %752 = arith.divf %750, %751 : vector<1x32xf32>
    %cst_261 = arith.constant dense<0.000000e+00> : vector<32xf32>
    %753 = vector.multi_reduction <add>, %748, %cst_261 [0] : vector<16x32xf32> to vector<32xf32>
    %754 = vector.shape_cast %753 : vector<32xf32> to vector<1x32xf32>
    %cst_262 = arith.constant 1.600000e+01 : f32
    %755 = vector.broadcast %cst_262 : f32 to vector<1x32xf32>
    %756 = arith.divf %754, %755 : vector<1x32xf32>
    %c0_263 = arith.constant 0 : index
    %c0_264 = arith.constant 0 : index
    %757 = vector.load %arg25[%c0_263, %c0_264] : memref<32x10xbf16, #tpu.memory_space<vmem>>, vector<32x10xbf16>
    %c0_265 = arith.constant 0 : index
    %c0_266 = arith.constant 0 : index
    %758 = vector.load %arg26[%c0_265, %c0_266] : memref<32x10xbf16, #tpu.memory_space<vmem>>, vector<32x10xbf16>
    %c0_267 = arith.constant 0 : index
    %c0_268 = arith.constant 0 : index
    %759 = vector.load %arg27[%c0_267, %c0_268] : memref<1x10xf32, #tpu.memory_space<vmem>>, vector<1x10xf32>
    %c0_269 = arith.constant 0 : index
    %c0_270 = arith.constant 0 : index
    %760 = vector.load %arg28[%c0_269, %c0_270] : memref<1x10xf32, #tpu.memory_space<vmem>>, vector<1x10xf32>
    %761 = arith.truncf %752 : vector<1x32xf32> to vector<1x32xbf16>
    %cst_271 = arith.constant dense<0.000000e+00> : vector<1x10xf32>
    %762 = tpu.matmul %761, %757, %cst_271 {dimension_numbers = #tpu.dot_dimension_numbers<[1], [0], [0], [1], [0, 0, 1, 1], [], []>} : vector<1x32xbf16>, vector<32x10xbf16>, vector<1x10xf32> -> vector<1x10xf32>
    %763 = arith.truncf %756 : vector<1x32xf32> to vector<1x32xbf16>
    %cst_272 = arith.constant dense<0.000000e+00> : vector<1x10xf32>
    %764 = tpu.matmul %763, %758, %cst_272 {dimension_numbers = #tpu.dot_dimension_numbers<[1], [0], [0], [1], [0, 0, 1, 1], [], []>} : vector<1x32xbf16>, vector<32x10xbf16>, vector<1x10xf32> -> vector<1x10xf32>
    %765 = arith.addf %752, %756 : vector<1x32xf32>
    %766 = arith.truncf %765 : vector<1x32xf32> to vector<1x32xbf16>
    %767 = arith.addf %757, %758 : vector<32x10xbf16>
    %cst_273 = arith.constant dense<0.000000e+00> : vector<1x10xf32>
    %768 = tpu.matmul %766, %767, %cst_273 {dimension_numbers = #tpu.dot_dimension_numbers<[1], [0], [0], [1], [0, 0, 1, 1], [], []>} : vector<1x32xbf16>, vector<32x10xbf16>, vector<1x10xf32> -> vector<1x10xf32>
    %769 = arith.subf %762, %764 : vector<1x10xf32>
    %770 = arith.subf %768, %762 : vector<1x10xf32>
    %771 = arith.subf %770, %764 : vector<1x10xf32>
    %772 = arith.addf %769, %759 : vector<1x10xf32>
    %773 = arith.addf %771, %760 : vector<1x10xf32>
    %774 = arith.mulf %772, %772 : vector<1x10xf32>
    %775 = arith.mulf %773, %773 : vector<1x10xf32>
    %776 = arith.addf %774, %775 : vector<1x10xf32>
    %777 = math.sqrt %776 : vector<1x10xf32>
    %c0_274 = arith.constant 0 : index
    %c0_275 = arith.constant 0 : index
    %c0_276 = arith.constant 0 : index
    %778 = vector.load %arg29[%c0_274, %c0_275, %c0_276] : memref<1x1x10xf32, #tpu.memory_space<vmem>>, vector<1x1x10xf32>
    %779 = vector.shape_cast %778 : vector<1x1x10xf32> to vector<1x10xf32>
    %780 = vector.shape_cast %777 : vector<1x10xf32> to vector<1x1x10xf32>
    tpu.vector_store %arg29[%c0_274, %c0_275, %c0_276], %780 {strides = array<i32>} : memref<1x1x10xf32, #tpu.memory_space<vmem>>, vector<1x1x10xf32>,
    return
  }
  func.func @transform_0(%arg0: i32) -> (i32, i32, i32) {
    %c0_i32 = arith.constant 0 : i32
    %c0_i32_0 = arith.constant 0 : i32
    %c0_i32_1 = arith.constant 0 : i32
    return %arg0, %c0_i32, %c0_i32_0 : i32, i32, i32
  }
  func.func @transform_1(%arg0: i32) -> (i32, i32, i32) {
    %c0_i32 = arith.constant 0 : i32
    %c0_i32_0 = arith.constant 0 : i32
    %c0_i32_1 = arith.constant 0 : i32
    return %arg0, %c0_i32, %c0_i32_0 : i32, i32, i32
  }
  func.func @transform_2(%arg0: i32) -> (i32, i32) {
    %c0_i32 = arith.constant 0 : i32
    %c0_i32_0 = arith.constant 0 : i32
    %c0_i32_1 = arith.constant 0 : i32
    return %c0_i32, %c0_i32_0 : i32, i32
  }
  func.func @transform_3(%arg0: i32) -> (i32, i32) {
    %c0_i32 = arith.constant 0 : i32
    %c0_i32_0 = arith.constant 0 : i32
    %c0_i32_1 = arith.constant 0 : i32
    return %c0_i32, %c0_i32_0 : i32, i32
  }
  func.func @transform_4(%arg0: i32) -> (i32, i32) {
    %c0_i32 = arith.constant 0 : i32
    %c0_i32_0 = arith.constant 0 : i32
    %c0_i32_1 = arith.constant 0 : i32
    return %c0_i32, %c0_i32_0 : i32, i32
  }
  func.func @transform_5(%arg0: i32) -> (i32, i32) {
    %c0_i32 = arith.constant 0 : i32
    %c0_i32_0 = arith.constant 0 : i32
    %c0_i32_1 = arith.constant 0 : i32
    return %c0_i32, %c0_i32_0 : i32, i32
  }
  func.func @transform_6(%arg0: i32) -> (i32, i32) {
    %c0_i32 = arith.constant 0 : i32
    %c0_i32_0 = arith.constant 0 : i32
    %c0_i32_1 = arith.constant 0 : i32
    return %c0_i32, %c0_i32_0 : i32, i32
  }
  func.func @transform_7(%arg0: i32) -> (i32, i32) {
    %c0_i32 = arith.constant 0 : i32
    %c0_i32_0 = arith.constant 0 : i32
    %c0_i32_1 = arith.constant 0 : i32
    return %c0_i32, %c0_i32_0 : i32, i32
  }
  func.func @transform_8(%arg0: i32) -> (i32, i32, i32) {
    %c0_i32 = arith.constant 0 : i32
    %c0_i32_0 = arith.constant 0 : i32
    %c0_i32_1 = arith.constant 0 : i32
    %c0_i32_2 = arith.constant 0 : i32
    return %c0_i32, %c0_i32_0, %c0_i32_1 : i32, i32, i32
  }
  func.func @transform_9(%arg0: i32) -> (i32, i32, i32) {
    %c0_i32 = arith.constant 0 : i32
    %c0_i32_0 = arith.constant 0 : i32
    %c0_i32_1 = arith.constant 0 : i32
    %c0_i32_2 = arith.constant 0 : i32
    return %c0_i32, %c0_i32_0, %c0_i32_1 : i32, i32, i32
  }
  func.func @transform_10(%arg0: i32) -> (i32, i32, i32) {
    %c0_i32 = arith.constant 0 : i32
    %c0_i32_0 = arith.constant 0 : i32
    %c0_i32_1 = arith.constant 0 : i32
    %c0_i32_2 = arith.constant 0 : i32
    return %c0_i32, %c0_i32_0, %c0_i32_1 : i32, i32, i32
  }
  func.func @transform_11(%arg0: i32) -> (i32, i32, i32) {
    %c0_i32 = arith.constant 0 : i32
    %c0_i32_0 = arith.constant 0 : i32
    %c0_i32_1 = arith.constant 0 : i32
    %c0_i32_2 = arith.constant 0 : i32
    return %c0_i32, %c0_i32_0, %c0_i32_1 : i32, i32, i32
  }
  func.func @transform_12(%arg0: i32) -> (i32, i32, i32) {
    %c0_i32 = arith.constant 0 : i32
    %c0_i32_0 = arith.constant 0 : i32
    %c0_i32_1 = arith.constant 0 : i32
    %c0_i32_2 = arith.constant 0 : i32
    return %c0_i32, %c0_i32_0, %c0_i32_1 : i32, i32, i32
  }
  func.func @transform_13(%arg0: i32) -> (i32, i32, i32) {
    %c0_i32 = arith.constant 0 : i32
    %c0_i32_0 = arith.constant 0 : i32
    %c0_i32_1 = arith.constant 0 : i32
    %c0_i32_2 = arith.constant 0 : i32
    return %c0_i32, %c0_i32_0, %c0_i32_1 : i32, i32, i32
  }
  func.func @transform_14(%arg0: i32) -> (i32, i32, i32) {
    %c0_i32 = arith.constant 0 : i32
    %c0_i32_0 = arith.constant 0 : i32
    %c0_i32_1 = arith.constant 0 : i32
    %c0_i32_2 = arith.constant 0 : i32
    return %c0_i32, %c0_i32_0, %c0_i32_1 : i32, i32, i32
  }
  func.func @transform_15(%arg0: i32) -> (i32, i32, i32) {
    %c0_i32 = arith.constant 0 : i32
    %c0_i32_0 = arith.constant 0 : i32
    %c0_i32_1 = arith.constant 0 : i32
    %c0_i32_2 = arith.constant 0 : i32
    return %c0_i32, %c0_i32_0, %c0_i32_1 : i32, i32, i32
  }
  func.func @transform_16(%arg0: i32) -> (i32, i32, i32) {
    %c0_i32 = arith.constant 0 : i32
    %c0_i32_0 = arith.constant 0 : i32
    %c0_i32_1 = arith.constant 0 : i32
    %c0_i32_2 = arith.constant 0 : i32
    return %c0_i32, %c0_i32_0, %c0_i32_1 : i32, i32, i32
  }
  func.func @transform_17(%arg0: i32) -> (i32, i32, i32) {
    %c0_i32 = arith.constant 0 : i32
    %c0_i32_0 = arith.constant 0 : i32
    %c0_i32_1 = arith.constant 0 : i32
    %c0_i32_2 = arith.constant 0 : i32
    return %c0_i32, %c0_i32_0, %c0_i32_1 : i32, i32, i32
  }
  func.func @transform_18(%arg0: i32) -> (i32, i32, i32) {
    %c0_i32 = arith.constant 0 : i32
    %c0_i32_0 = arith.constant 0 : i32
    %c0_i32_1 = arith.constant 0 : i32
    %c0_i32_2 = arith.constant 0 : i32
    return %c0_i32, %c0_i32_0, %c0_i32_1 : i32, i32, i32
  }
  func.func @transform_19(%arg0: i32) -> (i32, i32, i32) {
    %c0_i32 = arith.constant 0 : i32
    %c0_i32_0 = arith.constant 0 : i32
    %c0_i32_1 = arith.constant 0 : i32
    %c0_i32_2 = arith.constant 0 : i32
    return %c0_i32, %c0_i32_0, %c0_i32_1 : i32, i32, i32
  }
  func.func @transform_20(%arg0: i32) -> (i32, i32, i32) {
    %c0_i32 = arith.constant 0 : i32
    %c0_i32_0 = arith.constant 0 : i32
    %c0_i32_1 = arith.constant 0 : i32
    %c0_i32_2 = arith.constant 0 : i32
    return %c0_i32, %c0_i32_0, %c0_i32_1 : i32, i32, i32
  }
  func.func @transform_21(%arg0: i32) -> (i32, i32, i32) {
    %c0_i32 = arith.constant 0 : i32
    %c0_i32_0 = arith.constant 0 : i32
    %c0_i32_1 = arith.constant 0 : i32
    %c0_i32_2 = arith.constant 0 : i32
    return %c0_i32, %c0_i32_0, %c0_i32_1 : i32, i32, i32
  }
  func.func @transform_22(%arg0: i32) -> (i32, i32, i32) {
    %c0_i32 = arith.constant 0 : i32
    %c0_i32_0 = arith.constant 0 : i32
    %c0_i32_1 = arith.constant 0 : i32
    %c0_i32_2 = arith.constant 0 : i32
    return %c0_i32, %c0_i32_0, %c0_i32_1 : i32, i32, i32
  }
  func.func @transform_23(%arg0: i32) -> (i32, i32, i32) {
    %c0_i32 = arith.constant 0 : i32
    %c0_i32_0 = arith.constant 0 : i32
    %c0_i32_1 = arith.constant 0 : i32
    %c0_i32_2 = arith.constant 0 : i32
    return %c0_i32, %c0_i32_0, %c0_i32_1 : i32, i32, i32
  }
  func.func @transform_24(%arg0: i32) -> (i32, i32) {
    %c0_i32 = arith.constant 0 : i32
    %c0_i32_0 = arith.constant 0 : i32
    %c0_i32_1 = arith.constant 0 : i32
    return %c0_i32, %c0_i32_0 : i32, i32
  }
  func.func @transform_25(%arg0: i32) -> (i32, i32) {
    %c0_i32 = arith.constant 0 : i32
    %c0_i32_0 = arith.constant 0 : i32
    %c0_i32_1 = arith.constant 0 : i32
    return %c0_i32, %c0_i32_0 : i32, i32
  }
  func.func @transform_26(%arg0: i32) -> (i32, i32) {
    %c0_i32 = arith.constant 0 : i32
    %c0_i32_0 = arith.constant 0 : i32
    %c0_i32_1 = arith.constant 0 : i32
    return %c0_i32, %c0_i32_0 : i32, i32
  }
  func.func @transform_27(%arg0: i32) -> (i32, i32) {
    %c0_i32 = arith.constant 0 : i32
    %c0_i32_0 = arith.constant 0 : i32
    %c0_i32_1 = arith.constant 0 : i32
    return %c0_i32, %c0_i32_0 : i32, i32
  }
  func.func @transform_28(%arg0: i32) -> (i32, i32, i32) {
    %c0_i32 = arith.constant 0 : i32
    %c0_i32_0 = arith.constant 0 : i32
    %c0_i32_1 = arith.constant 0 : i32
    return %arg0, %c0_i32, %c0_i32_0 : i32, i32, i32
  }
}

</mosaic_0001>

<llo_original>
// kernel: model_forward.1
$region0: #{model_forward.1}
  #allocation0 [shape = 'u32[]', space=smem, size = 0x4, offset = 0x4, fixed_abs, tag = 'smem constant byte address 0x4 - core index']
  #allocation1 [shape = 'u32[144,128]{1,0:T(1,128)}', space=vmem, size = 0x12000, scoped, tag = 'internal scratch']
  %s0 = inlined_call_operand.vmem [shape: f32[2,16,16], index: 0, kind: input, shape index: {}]
  %s1 = inlined_call_operand.vmem [shape: f32[2,16,16], index: 1, kind: input, shape index: {}]
  %s2 = inlined_call_operand.vmem [shape: f32[16,32], index: 2, kind: input, shape index: {}]
  %s3 = inlined_call_operand.vmem [shape: f32[16,32], index: 3, kind: input, shape index: {}]
  %s4 = inlined_call_operand.vmem [shape: bf16[16,32], index: 4, kind: input, shape index: {}]
  %s5 = inlined_call_operand.vmem [shape: bf16[16,32], index: 5, kind: input, shape index: {}]
  %s6 = inlined_call_operand.vmem [shape: f32[1,32], index: 6, kind: input, shape index: {}]
  %s7 = inlined_call_operand.vmem [shape: f32[1,32], index: 7, kind: input, shape index: {}]
  %s8 = inlined_call_operand.vmem [shape: bf16[2,32,96], index: 8, kind: input, shape index: {}]
  %s9 = inlined_call_operand.vmem [shape: bf16[2,32,96], index: 9, kind: input, shape index: {}]
  %s10 = inlined_call_operand.vmem [shape: f32[2,1,96], index: 10, kind: input, shape index: {}]
  %s11 = inlined_call_operand.vmem [shape: f32[2,1,96], index: 11, kind: input, shape index: {}]
  %s12 = inlined_call_operand.vmem [shape: bf16[2,32,32], index: 12, kind: input, shape index: {}]
  %s13 = inlined_call_operand.vmem [shape: bf16[2,32,32], index: 13, kind: input, shape index: {}]
  %s14 = inlined_call_operand.vmem [shape: f32[2,1,32], index: 14, kind: input, shape index: {}]
  %s15 = inlined_call_operand.vmem [shape: f32[2,1,32], index: 15, kind: input, shape index: {}]
  %s16 = inlined_call_operand.vmem [shape: bf16[2,32,128], index: 16, kind: input, shape index: {}]
  %s17 = inlined_call_operand.vmem [shape: bf16[2,32,128], index: 17, kind: input, shape index: {}]
  %s18 = inlined_call_operand.vmem [shape: f32[2,1,128], index: 18, kind: input, shape index: {}]
  %s19 = inlined_call_operand.vmem [shape: f32[2,1,128], index: 19, kind: input, shape index: {}]
  %s20 = inlined_call_operand.vmem [shape: bf16[2,128,32], index: 20, kind: input, shape index: {}]
  %s21 = inlined_call_operand.vmem [shape: bf16[2,128,32], index: 21, kind: input, shape index: {}]
  %s22 = inlined_call_operand.vmem [shape: f32[2,1,32], index: 22, kind: input, shape index: {}]
  %s23 = inlined_call_operand.vmem [shape: f32[2,1,32], index: 23, kind: input, shape index: {}]
  %s24 = inlined_call_operand.vmem [shape: bf16[32,10], index: 24, kind: input, shape index: {}]
  %s25 = inlined_call_operand.vmem [shape: bf16[32,10], index: 25, kind: input, shape index: {}]
  %s26 = inlined_call_operand.vmem [shape: f32[1,10], index: 26, kind: input, shape index: {}]
  %s27 = inlined_call_operand.vmem [shape: f32[1,10], index: 27, kind: input, shape index: {}]
  %s28 = inlined_call_operand.hbm [shape: f32[2,1,10], index: 28, kind: output, shape index: {}]
  %s29 = sld [smem:[#allocation0]]
  $region145: #{model_forward.1} parent=0
    _
  %s31 = ssub.s32 1, %s29
  %s32 = scalar_select 0, %s31, %s29
  $region1: #{model_forward.1} parent=0
    #allocation2 [shape = 'u8[1024]{0}', space=vmem, size = 0x400, scoped, tag = 'output window, operand 0']
    #allocation3 [shape = 's32[2]{0}', space=sflag, size = 0x8, scoped, tag = 'scoped memory for model_forward.1']
    %33 = vsyncpa [#allocation3], 0
    %s34 = scalar_lea.sflag [#allocation3], 1
    %35 = vsyncpa %s34, 0
    loop: start=0, step=1, limit=4
    $region2: #{model_forward.1} parent=1 // loop_pre_header
      _
    $region3: #{model_forward.1} parent=1 // loop_header
      %s37 = sphi 0, %s41
      %p38 = scmp.ge.s32.totalorder %s37, 4
      %s47 = sphi 0, %s49
      %s50 = sphi 0, %s47
      %s51 = sphi 0, %s50
      %s67 = sphi 0, %s51
      %s73 = sphi 0, %s75
      %s76 = sphi 0, %s73
      %s77 = sphi 0, %s76
      %s93 = sphi 0, %s77
      %s97 = sphi 0, %s97
      %s99 = sphi 0, %s97
      %s100 = sphi 0, %s99
      %s114 = sphi 0, %s100
      %s118 = sphi 0, %s118
      %s120 = sphi 0, %s118
      %s121 = sphi 0, %s120
      %s135 = sphi 0, %s121
      %s139 = sphi 0, %s139
      %s141 = sphi 0, %s139
      %s142 = sphi 0, %s141
      %s156 = sphi 0, %s142
      %s160 = sphi 0, %s160
      %s162 = sphi 0, %s160
      %s163 = sphi 0, %s162
      %s177 = sphi 0, %s163
      %s181 = sphi 0, %s181
      %s183 = sphi 0, %s181
      %s184 = sphi 0, %s183
      %s198 = sphi 0, %s184
      %s202 = sphi 0, %s202
      %s204 = sphi 0, %s202
      %s205 = sphi 0, %s204
      %s219 = sphi 0, %s205
      %s223 = sphi 0, %s223
      %s225 = sphi 0, %s223
      %s226 = sphi 0, %s225
      %s240 = sphi 0, %s226
      %s244 = sphi 0, %s244
      %s246 = sphi 0, %s244
      %s247 = sphi 0, %s246
      %s261 = sphi 0, %s247
      %s265 = sphi 0, %s265
      %s267 = sphi 0, %s265
      %s268 = sphi 0, %s267
      %s282 = sphi 0, %s268
      %s286 = sphi 0, %s286
      %s288 = sphi 0, %s286
      %s289 = sphi 0, %s288
      %s303 = sphi 0, %s289
      %s307 = sphi 0, %s307
      %s309 = sphi 0, %s307
      %s310 = sphi 0, %s309
      %s324 = sphi 0, %s310
      %s328 = sphi 0, %s328
      %s330 = sphi 0, %s328
      %s331 = sphi 0, %s330
      %s345 = sphi 0, %s331
      %s349 = sphi 0, %s349
      %s351 = sphi 0, %s349
      %s352 = sphi 0, %s351
      %s366 = sphi 0, %s352
      %s370 = sphi 0, %s370
      %s372 = sphi 0, %s370
      %s373 = sphi 0, %s372
      %s387 = sphi 0, %s373
      %s391 = sphi 0, %s391
      %s393 = sphi 0, %s391
      %s394 = sphi 0, %s393
      %s408 = sphi 0, %s394
      %s412 = sphi 0, %s412
      %s414 = sphi 0, %s412
      %s415 = sphi 0, %s414
      %s429 = sphi 0, %s415
      %s433 = sphi 0, %s433
      %s435 = sphi 0, %s433
      %s436 = sphi 0, %s435
      %s450 = sphi 0, %s436
      %s454 = sphi 0, %s454
      %s456 = sphi 0, %s454
      %s457 = sphi 0, %s456
      %s471 = sphi 0, %s457
      %s475 = sphi 0, %s475
      %s477 = sphi 0, %s475
      %s478 = sphi 0, %s477
      %s492 = sphi 0, %s478
      %s496 = sphi 0, %s496
      %s498 = sphi 0, %s496
      %s499 = sphi 0, %s498
      %s513 = sphi 0, %s499
      %s517 = sphi 0, %s517
      %s519 = sphi 0, %s517
      %s520 = sphi 0, %s519
      %s534 = sphi 0, %s520
      %s538 = sphi 0, %s538
      %s540 = sphi 0, %s538
      %s541 = sphi 0, %s540
      %s555 = sphi 0, %s541
      %s559 = sphi 0, %s559
      %s561 = sphi 0, %s559
      %s562 = sphi 0, %s561
      %s576 = sphi 0, %s562
      %s580 = sphi 0, %s580
      %s582 = sphi 0, %s580
      %s583 = sphi 0, %s582
      %s597 = sphi 0, %s583
      %s601 = sphi 0, %s601
      %s603 = sphi 0, %s601
      %s604 = sphi 0, %s603
      %s618 = sphi 0, %s604
      %s622 = sphi 0, %s622
      %s624 = sphi 0, %s622
      %s625 = sphi 0, %s624
      %s639 = sphi 0, %s625
      %s645 = sphi 0, %s647
      %s648 = sphi 0, %s645
      %s649 = sphi 0, %s648
      %s665 = sphi 0, %s649
    $region4: #{model_forward.1} parent=1 // loop_header_branch
      %40 = sbr.rel (%p38) target = $region8
    $region5: #{model_forward.1} parent=1 // loop_body
      %s42 = ssub.s32 %s37, 1
      %s43 = ssub.s32 %s37, 2
      %s44 = sadd.s32 %s37, 1
      %s45 = ssub.s32 %s37, %s44
      %p46 = scmp.eq.s32.totalorder %s45, 0
      %s48 = sadd.s32 %s47, 1
      %s49 = scalar_select %p46, %s47, %s48
      %p52 = pneg %p46
      %p53 = scmp.eq.s32.totalorder %s37, 1
      %p54 = por %p52, %p53
      %p55 = scmp.ne.s32.totalorder %s47, %s50
      %p56 = scmp.eq.s32.totalorder %s37, 0
      %p57 = por %p55, %p56
      %p58 = scmp.ne.s32.totalorder %s47, %s50
      %p59 = scmp.eq.s32.totalorder %s42, 1
      %p60 = por %p58, %p59
      %p61 = scmp.ne.s32.totalorder %s50, %s51
      %p62 = scmp.eq.s32.totalorder %s42, 0
      %p63 = por %p61, %p62
      %p64 = scmp.ne.s32.totalorder %s50, %s51
      %p65 = scmp.eq.s32.totalorder %s43, 1
      %p66 = por %p64, %p65
      %p68 = scmp.ne.s32.totalorder %s51, %s67
      %p69 = scmp.eq.s32.totalorder %s43, 0
      %p70 = por %p68, %p69
      %s71 = ssub.s32 %s37, %s44
      %p72 = scmp.eq.s32.totalorder %s71, 0
      %s74 = sadd.s32 %s73, 1
      %s75 = scalar_select %p72, %s73, %s74
      %p78 = pneg %p72
      %p79 = scmp.eq.s32.totalorder %s37, 1
      %p80 = por %p78, %p79
      %p81 = scmp.ne.s32.totalorder %s73, %s76
      %p82 = scmp.eq.s32.totalorder %s37, 0
      %p83 = por %p81, %p82
      %p84 = scmp.ne.s32.totalorder %s73, %s76
      %p85 = scmp.eq.s32.totalorder %s42, 1
      %p86 = por %p84, %p85
      %p87 = scmp.ne.s32.totalorder %s76, %s77
      %p88 = scmp.eq.s32.totalorder %s42, 0
      %p89 = por %p87, %p88
      %p90 = scmp.ne.s32.totalorder %s76, %s77
      %p91 = scmp.eq.s32.totalorder %s43, 1
      %p92 = por %p90, %p91
      %p94 = scmp.ne.s32.totalorder %s77, %s93
      %p95 = scmp.eq.s32.totalorder %s43, 0
      %p96 = por %p94, %p95
      %s98 = sadd.s32 %s97, 1
      %p101 = scmp.eq.s32.totalorder %s37, 1
      %p102 = scmp.ne.s32.totalorder %s97, %s99
      %p103 = scmp.eq.s32.totalorder %s37, 0
      %p104 = por %p102, %p103
      %p105 = scmp.ne.s32.totalorder %s97, %s99
      %p106 = scmp.eq.s32.totalorder %s42, 1
      %p107 = por %p105, %p106
      %p108 = scmp.ne.s32.totalorder %s99, %s100
      %p109 = scmp.eq.s32.totalorder %s42, 0
      %p110 = por %p108, %p109
      %p111 = scmp.ne.s32.totalorder %s99, %s100
      %p112 = scmp.eq.s32.totalorder %s43, 1
      %p113 = por %p111, %p112
      %p115 = scmp.ne.s32.totalorder %s100, %s114
      %p116 = scmp.eq.s32.totalorder %s43, 0
      %p117 = por %p115, %p116
      %s119 = sadd.s32 %s118, 1
      %p122 = scmp.eq.s32.totalorder %s37, 1
      %p123 = scmp.ne.s32.totalorder %s118, %s120
      %p124 = scmp.eq.s32.totalorder %s37, 0
      %p125 = por %p123, %p124
      %p126 = scmp.ne.s32.totalorder %s118, %s120
      %p127 = scmp.eq.s32.totalorder %s42, 1
      %p128 = por %p126, %p127
      %p129 = scmp.ne.s32.totalorder %s120, %s121
      %p130 = scmp.eq.s32.totalorder %s42, 0
      %p131 = por %p129, %p130
      %p132 = scmp.ne.s32.totalorder %s120, %s121
      %p133 = scmp.eq.s32.totalorder %s43, 1
      %p134 = por %p132, %p133
      %p136 = scmp.ne.s32.totalorder %s121, %s135
      %p137 = scmp.eq.s32.totalorder %s43, 0
      %p138 = por %p136, %p137
      %s140 = sadd.s32 %s139, 1
      %p143 = scmp.eq.s32.totalorder %s37, 1
      %p144 = scmp.ne.s32.totalorder %s139, %s141
      %p145 = scmp.eq.s32.totalorder %s37, 0
      %p146 = por %p144, %p145
      %p147 = scmp.ne.s32.totalorder %s139, %s141
      %p148 = scmp.eq.s32.totalorder %s42, 1
      %p149 = por %p147, %p148
      %p150 = scmp.ne.s32.totalorder %s141, %s142
      %p151 = scmp.eq.s32.totalorder %s42, 0
      %p152 = por %p150, %p151
      %p153 = scmp.ne.s32.totalorder %s141, %s142
      %p154 = scmp.eq.s32.totalorder %s43, 1
      %p155 = por %p153, %p154
      %p157 = scmp.ne.s32.totalorder %s142, %s156
      %p158 = scmp.eq.s32.totalorder %s43, 0
      %p159 = por %p157, %p158
      %s161 = sadd.s32 %s160, 1
      %p164 = scmp.eq.s32.totalorder %s37, 1
      %p165 = scmp.ne.s32.totalorder %s160, %s162
      %p166 = scmp.eq.s32.totalorder %s37, 0
      %p167 = por %p165, %p166
      %p168 = scmp.ne.s32.totalorder %s160, %s162
      %p169 = scmp.eq.s32.totalorder %s42, 1
      %p170 = por %p168, %p169
      %p171 = scmp.ne.s32.totalorder %s162, %s163
      %p172 = scmp.eq.s32.totalorder %s42, 0
      %p173 = por %p171, %p172
      %p174 = scmp.ne.s32.totalorder %s162, %s163
      %p175 = scmp.eq.s32.totalorder %s43, 1
      %p176 = por %p174, %p175
      %p178 = scmp.ne.s32.totalorder %s163, %s177
      %p179 = scmp.eq.s32.totalorder %s43, 0
      %p180 = por %p178, %p179
      %s182 = sadd.s32 %s181, 1
      %p185 = scmp.eq.s32.totalorder %s37, 1
      %p186 = scmp.ne.s32.totalorder %s181, %s183
      %p187 = scmp.eq.s32.totalorder %s37, 0
      %p188 = por %p186, %p187
      %p189 = scmp.ne.s32.totalorder %s181, %s183
      %p190 = scmp.eq.s32.totalorder %s42, 1
      %p191 = por %p189, %p190
      %p192 = scmp.ne.s32.totalorder %s183, %s184
      %p193 = scmp.eq.s32.totalorder %s42, 0
      %p194 = por %p192, %p193
      %p195 = scmp.ne.s32.totalorder %s183, %s184
      %p196 = scmp.eq.s32.totalorder %s43, 1
      %p197 = por %p195, %p196
      %p199 = scmp.ne.s32.totalorder %s184, %s198
      %p200 = scmp.eq.s32.totalorder %s43, 0
      %p201 = por %p199, %p200
      %s203 = sadd.s32 %s202, 1
      %p206 = scmp.eq.s32.totalorder %s37, 1
      %p207 = scmp.ne.s32.totalorder %s202, %s204
      %p208 = scmp.eq.s32.totalorder %s37, 0
      %p209 = por %p207, %p208
      %p210 = scmp.ne.s32.totalorder %s202, %s204
      %p211 = scmp.eq.s32.totalorder %s42, 1
      %p212 = por %p210, %p211
      %p213 = scmp.ne.s32.totalorder %s204, %s205
      %p214 = scmp.eq.s32.totalorder %s42, 0
      %p215 = por %p213, %p214
      %p216 = scmp.ne.s32.totalorder %s204, %s205
      %p217 = scmp.eq.s32.totalorder %s43, 1
      %p218 = por %p216, %p217
      %p220 = scmp.ne.s32.totalorder %s205, %s219
      %p221 = scmp.eq.s32.totalorder %s43, 0
      %p222 = por %p220, %p221
      %s224 = sadd.s32 %s223, 1
      %p227 = scmp.eq.s32.totalorder %s37, 1
      %p228 = scmp.ne.s32.totalorder %s223, %s225
      %p229 = scmp.eq.s32.totalorder %s37, 0
      %p230 = por %p228, %p229
      %p231 = scmp.ne.s32.totalorder %s223, %s225
      %p232 = scmp.eq.s32.totalorder %s42, 1
      %p233 = por %p231, %p232
      %p234 = scmp.ne.s32.totalorder %s225, %s226
      %p235 = scmp.eq.s32.totalorder %s42, 0
      %p236 = por %p234, %p235
      %p237 = scmp.ne.s32.totalorder %s225, %s226
      %p238 = scmp.eq.s32.totalorder %s43, 1
      %p239 = por %p237, %p238
      %p241 = scmp.ne.s32.totalorder %s226, %s240
      %p242 = scmp.eq.s32.totalorder %s43, 0
      %p243 = por %p241, %p242
      %s245 = sadd.s32 %s244, 1
      %p248 = scmp.eq.s32.totalorder %s37, 1
      %p249 = scmp.ne.s32.totalorder %s244, %s246
      %p250 = scmp.eq.s32.totalorder %s37, 0
      %p251 = por %p249, %p250
      %p252 = scmp.ne.s32.totalorder %s244, %s246
      %p253 = scmp.eq.s32.totalorder %s42, 1
      %p254 = por %p252, %p253
      %p255 = scmp.ne.s32.totalorder %s246, %s247
      %p256 = scmp.eq.s32.totalorder %s42, 0
      %p257 = por %p255, %p256
      %p258 = scmp.ne.s32.totalorder %s246, %s247
      %p259 = scmp.eq.s32.totalorder %s43, 1
      %p260 = por %p258, %p259
      %p262 = scmp.ne.s32.totalorder %s247, %s261
      %p263 = scmp.eq.s32.totalorder %s43, 0
      %p264 = por %p262, %p263
      %s266 = sadd.s32 %s265, 1
      %p269 = scmp.eq.s32.totalorder %s37, 1
      %p270 = scmp.ne.s32.totalorder %s265, %s267
      %p271 = scmp.eq.s32.totalorder %s37, 0
      %p272 = por %p270, %p271
      %p273 = scmp.ne.s32.totalorder %s265, %s267
      %p274 = scmp.eq.s32.totalorder %s42, 1
      %p275 = por %p273, %p274
      %p276 = scmp.ne.s32.totalorder %s267, %s268
      %p277 = scmp.eq.s32.totalorder %s42, 0
      %p278 = por %p276, %p277
      %p279 = scmp.ne.s32.totalorder %s267, %s268
      %p280 = scmp.eq.s32.totalorder %s43, 1
      %p281 = por %p279, %p280
      %p283 = scmp.ne.s32.totalorder %s268, %s282
      %p284 = scmp.eq.s32.totalorder %s43, 0
      %p285 = por %p283, %p284
      %s287 = sadd.s32 %s286, 1
      %p290 = scmp.eq.s32.totalorder %s37, 1
      %p291 = scmp.ne.s32.totalorder %s286, %s288
      %p292 = scmp.eq.s32.totalorder %s37, 0
      %p293 = por %p291, %p292
      %p294 = scmp.ne.s32.totalorder %s286, %s288
      %p295 = scmp.eq.s32.totalorder %s42, 1
      %p296 = por %p294, %p295
      %p297 = scmp.ne.s32.totalorder %s288, %s289
      %p298 = scmp.eq.s32.totalorder %s42, 0
      %p299 = por %p297, %p298
      %p300 = scmp.ne.s32.totalorder %s288, %s289
      %p301 = scmp.eq.s32.totalorder %s43, 1
      %p302 = por %p300, %p301
      %p304 = scmp.ne.s32.totalorder %s289, %s303
      %p305 = scmp.eq.s32.totalorder %s43, 0
      %p306 = por %p304, %p305
      %s308 = sadd.s32 %s307, 1
      %p311 = scmp.eq.s32.totalorder %s37, 1
      %p312 = scmp.ne.s32.totalorder %s307, %s309
      %p313 = scmp.eq.s32.totalorder %s37, 0
      %p314 = por %p312, %p313
      %p315 = scmp.ne.s32.totalorder %s307, %s309
      %p316 = scmp.eq.s32.totalorder %s42, 1
      %p317 = por %p315, %p316
      %p318 = scmp.ne.s32.totalorder %s309, %s310
      %p319 = scmp.eq.s32.totalorder %s42, 0
      %p320 = por %p318, %p319
      %p321 = scmp.ne.s32.totalorder %s309, %s310
      %p322 = scmp.eq.s32.totalorder %s43, 1
      %p323 = por %p321, %p322
      %p325 = scmp.ne.s32.totalorder %s310, %s324
      %p326 = scmp.eq.s32.totalorder %s43, 0
      %p327 = por %p325, %p326
      %s329 = sadd.s32 %s328, 1
      %p332 = scmp.eq.s32.totalorder %s37, 1
      %p333 = scmp.ne.s32.totalorder %s328, %s330
      %p334 = scmp.eq.s32.totalorder %s37, 0
      %p335 = por %p333, %p334
      %p336 = scmp.ne.s32.totalorder %s328, %s330
      %p337 = scmp.eq.s32.totalorder %s42, 1
      %p338 = por %p336, %p337
      %p339 = scmp.ne.s32.totalorder %s330, %s331
      %p340 = scmp.eq.s32.totalorder %s42, 0
      %p341 = por %p339, %p340
      %p342 = scmp.ne.s32.totalorder %s330, %s331
      %p343 = scmp.eq.s32.totalorder %s43, 1
      %p344 = por %p342, %p343
      %p346 = scmp.ne.s32.totalorder %s331, %s345
      %p347 = scmp.eq.s32.totalorder %s43, 0
      %p348 = por %p346, %p347
      %s350 = sadd.s32 %s349, 1
      %p353 = scmp.eq.s32.totalorder %s37, 1
      %p354 = scmp.ne.s32.totalorder %s349, %s351
      %p355 = scmp.eq.s32.totalorder %s37, 0
      %p356 = por %p354, %p355
      %p357 = scmp.ne.s32.totalorder %s349, %s351
      %p358 = scmp.eq.s32.totalorder %s42, 1
      %p359 = por %p357, %p358
      %p360 = scmp.ne.s32.totalorder %s351, %s352
      %p361 = scmp.eq.s32.totalorder %s42, 0
      %p362 = por %p360, %p361
      %p363 = scmp.ne.s32.totalorder %s351, %s352
      %p364 = scmp.eq.s32.totalorder %s43, 1
      %p365 = por %p363, %p364
      %p367 = scmp.ne.s32.totalorder %s352, %s366
      %p368 = scmp.eq.s32.totalorder %s43, 0
      %p369 = por %p367, %p368
      %s371 = sadd.s32 %s370, 1
      %p374 = scmp.eq.s32.totalorder %s37, 1
      %p375 = scmp.ne.s32.totalorder %s370, %s372
      %p376 = scmp.eq.s32.totalorder %s37, 0
      %p377 = por %p375, %p376
      %p378 = scmp.ne.s32.totalorder %s370, %s372
      %p379 = scmp.eq.s32.totalorder %s42, 1
      %p380 = por %p378, %p379
      %p381 = scmp.ne.s32.totalorder %s372, %s373
      %p382 = scmp.eq.s32.totalorder %s42, 0
      %p383 = por %p381, %p382
      %p384 = scmp.ne.s32.totalorder %s372, %s373
      %p385 = scmp.eq.s32.totalorder %s43, 1
      %p386 = por %p384, %p385
      %p388 = scmp.ne.s32.totalorder %s373, %s387
      %p389 = scmp.eq.s32.totalorder %s43, 0
      %p390 = por %p388, %p389
      %s392 = sadd.s32 %s391, 1
      %p395 = scmp.eq.s32.totalorder %s37, 1
      %p396 = scmp.ne.s32.totalorder %s391, %s393
      %p397 = scmp.eq.s32.totalorder %s37, 0
      %p398 = por %p396, %p397
      %p399 = scmp.ne.s32.totalorder %s391, %s393
      %p400 = scmp.eq.s32.totalorder %s42, 1
      %p401 = por %p399, %p400
      %p402 = scmp.ne.s32.totalorder %s393, %s394
      %p403 = scmp.eq.s32.totalorder %s42, 0
      %p404 = por %p402, %p403
      %p405 = scmp.ne.s32.totalorder %s393, %s394
      %p406 = scmp.eq.s32.totalorder %s43, 1
      %p407 = por %p405, %p406
      %p409 = scmp.ne.s32.totalorder %s394, %s408
      %p410 = scmp.eq.s32.totalorder %s43, 0
      %p411 = por %p409, %p410
      %s413 = sadd.s32 %s412, 1
      %p416 = scmp.eq.s32.totalorder %s37, 1
      %p417 = scmp.ne.s32.totalorder %s412, %s414
      %p418 = scmp.eq.s32.totalorder %s37, 0
      %p419 = por %p417, %p418
      %p420 = scmp.ne.s32.totalorder %s412, %s414
      %p421 = scmp.eq.s32.totalorder %s42, 1
      %p422 = por %p420, %p421
      %p423 = scmp.ne.s32.totalorder %s414, %s415
      %p424 = scmp.eq.s32.totalorder %s42, 0
      %p425 = por %p423, %p424
      %p426 = scmp.ne.s32.totalorder %s414, %s415
      %p427 = scmp.eq.s32.totalorder %s43, 1
      %p428 = por %p426, %p427
      %p430 = scmp.ne.s32.totalorder %s415, %s429
      %p431 = scmp.eq.s32.totalorder %s43, 0
      %p432 = por %p430, %p431
      %s434 = sadd.s32 %s433, 1
      %p437 = scmp.eq.s32.totalorder %s37, 1
      %p438 = scmp.ne.s32.totalorder %s433, %s435
      %p439 = scmp.eq.s32.totalorder %s37, 0
      %p440 = por %p438, %p439
      %p441 = scmp.ne.s32.totalorder %s433, %s435
      %p442 = scmp.eq.s32.totalorder %s42, 1
      %p443 = por %p441, %p442
      %p444 = scmp.ne.s32.totalorder %s435, %s436
      %p445 = scmp.eq.s32.totalorder %s42, 0
      %p446 = por %p444, %p445
      %p447 = scmp.ne.s32.totalorder %s435, %s436
      %p448 = scmp.eq.s32.totalorder %s43, 1
      %p449 = por %p447, %p448
      %p451 = scmp.ne.s32.totalorder %s436, %s450
      %p452 = scmp.eq.s32.totalorder %s43, 0
      %p453 = por %p451, %p452
      %s455 = sadd.s32 %s454, 1
      %p458 = scmp.eq.s32.totalorder %s37, 1
      %p459 = scmp.ne.s32.totalorder %s454, %s456
      %p460 = scmp.eq.s32.totalorder %s37, 0
      %p461 = por %p459, %p460
      %p462 = scmp.ne.s32.totalorder %s454, %s456
      %p463 = scmp.eq.s32.totalorder %s42, 1
      %p464 = por %p462, %p463
      %p465 = scmp.ne.s32.totalorder %s456, %s457
      %p466 = scmp.eq.s32.totalorder %s42, 0
      %p467 = por %p465, %p466
      %p468 = scmp.ne.s32.totalorder %s456, %s457
      %p469 = scmp.eq.s32.totalorder %s43, 1
      %p470 = por %p468, %p469
      %p472 = scmp.ne.s32.totalorder %s457, %s471
      %p473 = scmp.eq.s32.totalorder %s43, 0
      %p474 = por %p472, %p473
      %s476 = sadd.s32 %s475, 1
      %p479 = scmp.eq.s32.totalorder %s37, 1
      %p480 = scmp.ne.s32.totalorder %s475, %s477
      %p481 = scmp.eq.s32.totalorder %s37, 0
      %p482 = por %p480, %p481
      %p483 = scmp.ne.s32.totalorder %s475, %s477
      %p484 = scmp.eq.s32.totalorder %s42, 1
      %p485 = por %p483, %p484
      %p486 = scmp.ne.s32.totalorder %s477, %s478
      %p487 = scmp.eq.s32.totalorder %s42, 0
      %p488 = por %p486, %p487
      %p489 = scmp.ne.s32.totalorder %s477, %s478
      %p490 = scmp.eq.s32.totalorder %s43, 1
      %p491 = por %p489, %p490
      %p493 = scmp.ne.s32.totalorder %s478, %s492
      %p494 = scmp.eq.s32.totalorder %s43, 0
      %p495 = por %p493, %p494
      %s497 = sadd.s32 %s496, 1
      %p500 = scmp.eq.s32.totalorder %s37, 1
      %p501 = scmp.ne.s32.totalorder %s496, %s498
      %p502 = scmp.eq.s32.totalorder %s37, 0
      %p503 = por %p501, %p502
      %p504 = scmp.ne.s32.totalorder %s496, %s498
      %p505 = scmp.eq.s32.totalorder %s42, 1
      %p506 = por %p504, %p505
      %p507 = scmp.ne.s32.totalorder %s498, %s499
      %p508 = scmp.eq.s32.totalorder %s42, 0
      %p509 = por %p507, %p508
      %p510 = scmp.ne.s32.totalorder %s498, %s499
      %p511 = scmp.eq.s32.totalorder %s43, 1
      %p512 = por %p510, %p511
      %p514 = scmp.ne.s32.totalorder %s499, %s513
      %p515 = scmp.eq.s32.totalorder %s43, 0
      %p516 = por %p514, %p515
      %s518 = sadd.s32 %s517, 1
      %p521 = scmp.eq.s32.totalorder %s37, 1
      %p522 = scmp.ne.s32.totalorder %s517, %s519
      %p523 = scmp.eq.s32.totalorder %s37, 0
      %p524 = por %p522, %p523
      %p525 = scmp.ne.s32.totalorder %s517, %s519
      %p526 = scmp.eq.s32.totalorder %s42, 1
      %p527 = por %p525, %p526
      %p528 = scmp.ne.s32.totalorder %s519, %s520
      %p529 = scmp.eq.s32.totalorder %s42, 0
      %p530 = por %p528, %p529
      %p531 = scmp.ne.s32.totalorder %s519, %s520
      %p532 = scmp.eq.s32.totalorder %s43, 1
      %p533 = por %p531, %p532
      %p535 = scmp.ne.s32.totalorder %s520, %s534
      %p536 = scmp.eq.s32.totalorder %s43, 0
      %p537 = por %p535, %p536
      %s539 = sadd.s32 %s538, 1
      %p542 = scmp.eq.s32.totalorder %s37, 1
      %p543 = scmp.ne.s32.totalorder %s538, %s540
      %p544 = scmp.eq.s32.totalorder %s37, 0
      %p545 = por %p543, %p544
      %p546 = scmp.ne.s32.totalorder %s538, %s540
      %p547 = scmp.eq.s32.totalorder %s42, 1
      %p548 = por %p546, %p547
      %p549 = scmp.ne.s32.totalorder %s540, %s541
      %p550 = scmp.eq.s32.totalorder %s42, 0
      %p551 = por %p549, %p550
      %p552 = scmp.ne.s32.totalorder %s540, %s541
      %p553 = scmp.eq.s32.totalorder %s43, 1
      %p554 = por %p552, %p553
      %p556 = scmp.ne.s32.totalorder %s541, %s555
      %p557 = scmp.eq.s32.totalorder %s43, 0
      %p558 = por %p556, %p557
      %s560 = sadd.s32 %s559, 1
      %p563 = scmp.eq.s32.totalorder %s37, 1
      %p564 = scmp.ne.s32.totalorder %s559, %s561
      %p565 = scmp.eq.s32.totalorder %s37, 0
      %p566 = por %p564, %p565
      %p567 = scmp.ne.s32.totalorder %s559, %s561
      %p568 = scmp.eq.s32.totalorder %s42, 1
      %p569 = por %p567, %p568
      %p570 = scmp.ne.s32.totalorder %s561, %s562
      %p571 = scmp.eq.s32.totalorder %s42, 0
      %p572 = por %p570, %p571
      %p573 = scmp.ne.s32.totalorder %s561, %s562
      %p574 = scmp.eq.s32.totalorder %s43, 1
      %p575 = por %p573, %p574
      %p577 = scmp.ne.s32.totalorder %s562, %s576
      %p578 = scmp.eq.s32.totalorder %s43, 0
      %p579 = por %p577, %p578
      %s581 = sadd.s32 %s580, 1
      %p584 = scmp.eq.s32.totalorder %s37, 1
      %p585 = scmp.ne.s32.totalorder %s580, %s582
      %p586 = scmp.eq.s32.totalorder %s37, 0
      %p587 = por %p585, %p586
      %p588 = scmp.ne.s32.totalorder %s580, %s582
      %p589 = scmp.eq.s32.totalorder %s42, 1
      %p590 = por %p588, %p589
      %p591 = scmp.ne.s32.totalorder %s582, %s583
      %p592 = scmp.eq.s32.totalorder %s42, 0
      %p593 = por %p591, %p592
      %p594 = scmp.ne.s32.totalorder %s582, %s583
      %p595 = scmp.eq.s32.totalorder %s43, 1
      %p596 = por %p594, %p595
      %p598 = scmp.ne.s32.totalorder %s583, %s597
      %p599 = scmp.eq.s32.totalorder %s43, 0
      %p600 = por %p598, %p599
      %s602 = sadd.s32 %s601, 1
      %p605 = scmp.eq.s32.totalorder %s37, 1
      %p606 = scmp.ne.s32.totalorder %s601, %s603
      %p607 = scmp.eq.s32.totalorder %s37, 0
      %p608 = por %p606, %p607
      %p609 = scmp.ne.s32.totalorder %s601, %s603
      %p610 = scmp.eq.s32.totalorder %s42, 1
      %p611 = por %p609, %p610
      %p612 = scmp.ne.s32.totalorder %s603, %s604
      %p613 = scmp.eq.s32.totalorder %s42, 0
      %p614 = por %p612, %p613
      %p615 = scmp.ne.s32.totalorder %s603, %s604
      %p616 = scmp.eq.s32.totalorder %s43, 1
      %p617 = por %p615, %p616
      %p619 = scmp.ne.s32.totalorder %s604, %s618
      %p620 = scmp.eq.s32.totalorder %s43, 0
      %p621 = por %p619, %p620
      %s623 = sadd.s32 %s622, 1
      %p626 = scmp.eq.s32.totalorder %s37, 1
      %p627 = scmp.ne.s32.totalorder %s622, %s624
      %p628 = scmp.eq.s32.totalorder %s37, 0
      %p629 = por %p627, %p628
      %p630 = scmp.ne.s32.totalorder %s622, %s624
      %p631 = scmp.eq.s32.totalorder %s42, 1
      %p632 = por %p630, %p631
      %p633 = scmp.ne.s32.totalorder %s624, %s625
      %p634 = scmp.eq.s32.totalorder %s42, 0
      %p635 = por %p633, %p634
      %p636 = scmp.ne.s32.totalorder %s624, %s625
      %p637 = scmp.eq.s32.totalorder %s43, 1
      %p638 = por %p636, %p637
      %p640 = scmp.ne.s32.totalorder %s625, %s639
      %p641 = scmp.eq.s32.totalorder %s43, 0
      %p642 = por %p640, %p641
      %s643 = ssub.s32 %s37, %s44
      %p644 = scmp.eq.s32.totalorder %s643, 0
      %s646 = sadd.s32 %s645, 1
      %s647 = scalar_select %p644, %s645, %s646
      %p650 = pneg %p644
      %p651 = scmp.eq.s32.totalorder %s37, 1
      %p652 = por %p650, %p651
      %p653 = scmp.ne.s32.totalorder %s645, %s648
      %p654 = scmp.eq.s32.totalorder %s37, 0
      %p655 = por %p653, %p654
      %p656 = scmp.ne.s32.totalorder %s645, %s648
      %p657 = scmp.eq.s32.totalorder %s42, 1
      %p658 = por %p656, %p657
      %p659 = scmp.ne.s32.totalorder %s648, %s649
      %p660 = scmp.eq.s32.totalorder %s42, 0
      %p661 = por %p659, %p660
      %p662 = scmp.ne.s32.totalorder %s648, %s649
      %p663 = scmp.eq.s32.totalorder %s43, 1
      %p664 = por %p662, %p663
      %p666 = scmp.ne.s32.totalorder %s649, %s665
      %p667 = scmp.eq.s32.totalorder %s43, 0
      %p668 = por %p666, %p667
      %p669 = scmp.le.s32.totalorder 1, %s37
      %p670 = scmp.lt.s32.totalorder %s37, 3
      %p671 = pnand %p669, %p670
      %p672 = pneg %p671
      // Predicated region
      $region9: #{model_forward.1} parent=5 // pred_check
        _
      $region10: #{model_forward.1} parent=5 // pred_check_branch
        %674 = sbr.rel (%p671) target = $region12
      $region11: #{model_forward.1} parent=5 // pred_region
        %s675 = ssub.s32 %s37, 1
        // Predicated region
        $region13: #{model_forward.1} parent=11 // pred_check
          %p676 = pneg %p110
        $region14: #{model_forward.1} parent=11 // pred_check_branch
          %678 = sbr.rel (%p676) target = $region16
        $region15: #{model_forward.1} parent=11 // pred_region
          _
        $region16: #{model_forward.1} parent=11 // pred_fallthru
          _
        // Predicated region
        $region17: #{model_forward.1} parent=11 // pred_check
          %p679 = pneg %p131
        $region18: #{model_forward.1} parent=11 // pred_check_branch
          %681 = sbr.rel (%p679) target = $region20
        $region19: #{model_forward.1} parent=11 // pred_region
          _
        $region20: #{model_forward.1} parent=11 // pred_fallthru
          _
        // Predicated region
        $region21: #{model_forward.1} parent=11 // pred_check
          %p682 = pneg %p152
        $region22: #{model_forward.1} parent=11 // pred_check_branch
          %684 = sbr.rel (%p682) target = $region24
        $region23: #{model_forward.1} parent=11 // pred_region
          _
        $region24: #{model_forward.1} parent=11 // pred_fallthru
          _
        // Predicated region
        $region25: #{model_forward.1} parent=11 // pred_check
          %p685 = pneg %p173
        $region26: #{model_forward.1} parent=11 // pred_check_branch
          %687 = sbr.rel (%p685) target = $region28
        $region27: #{model_forward.1} parent=11 // pred_region
          _
        $region28: #{model_forward.1} parent=11 // pred_fallthru
          _
        // Predicated region
        $region29: #{model_forward.1} parent=11 // pred_check
          %p688 = pneg %p194
        $region30: #{model_forward.1} parent=11 // pred_check_branch
          %690 = sbr.rel (%p688) target = $region32
        $region31: #{model_forward.1} parent=11 // pred_region
          _
        $region32: #{model_forward.1} parent=11 // pred_fallthru
          _
        // Predicated region
        $region33: #{model_forward.1} parent=11 // pred_check
          %p691 = pneg %p215
        $region34: #{model_forward.1} parent=11 // pred_check_branch
          %693 = sbr.rel (%p691) target = $region36
        $region35: #{model_forward.1} parent=11 // pred_region
          _
        $region36: #{model_forward.1} parent=11 // pred_fallthru
          _
        // Predicated region
        $region37: #{model_forward.1} parent=11 // pred_check
          %p694 = pneg %p236
        $region38: #{model_forward.1} parent=11 // pred_check_branch
          %696 = sbr.rel (%p694) target = $region40
        $region39: #{model_forward.1} parent=11 // pred_region
          _
        $region40: #{model_forward.1} parent=11 // pred_fallthru
          _
        // Predicated region
        $region41: #{model_forward.1} parent=11 // pred_check
          %p697 = pneg %p257
        $region42: #{model_forward.1} parent=11 // pred_check_branch
          %699 = sbr.rel (%p697) target = $region44
        $region43: #{model_forward.1} parent=11 // pred_region
          _
        $region44: #{model_forward.1} parent=11 // pred_fallthru
          _
        // Predicated region
        $region45: #{model_forward.1} parent=11 // pred_check
          %p700 = pneg %p278
        $region46: #{model_forward.1} parent=11 // pred_check_branch
          %702 = sbr.rel (%p700) target = $region48
        $region47: #{model_forward.1} parent=11 // pred_region
          _
        $region48: #{model_forward.1} parent=11 // pred_fallthru
          _
        // Predicated region
        $region49: #{model_forward.1} parent=11 // pred_check
          %p703 = pneg %p299
        $region50: #{model_forward.1} parent=11 // pred_check_branch
          %705 = sbr.rel (%p703) target = $region52
        $region51: #{model_forward.1} parent=11 // pred_region
          _
        $region52: #{model_forward.1} parent=11 // pred_fallthru
          _
        // Predicated region
        $region53: #{model_forward.1} parent=11 // pred_check
          %p706 = pneg %p320
        $region54: #{model_forward.1} parent=11 // pred_check_branch
          %708 = sbr.rel (%p706) target = $region56
        $region55: #{model_forward.1} parent=11 // pred_region
          _
        $region56: #{model_forward.1} parent=11 // pred_fallthru
          _
        // Predicated region
        $region57: #{model_forward.1} parent=11 // pred_check
          %p709 = pneg %p341
        $region58: #{model_forward.1} parent=11 // pred_check_branch
          %711 = sbr.rel (%p709) target = $region60
        $region59: #{model_forward.1} parent=11 // pred_region
          _
        $region60: #{model_forward.1} parent=11 // pred_fallthru
          _
        // Predicated region
        $region61: #{model_forward.1} parent=11 // pred_check
          %p712 = pneg %p362
        $region62: #{model_forward.1} parent=11 // pred_check_branch
          %714 = sbr.rel (%p712) target = $region64
        $region63: #{model_forward.1} parent=11 // pred_region
          _
        $region64: #{model_forward.1} parent=11 // pred_fallthru
          _
        // Predicated region
        $region65: #{model_forward.1} parent=11 // pred_check
          %p715 = pneg %p383
        $region66: #{model_forward.1} parent=11 // pred_check_branch
          %717 = sbr.rel (%p715) target = $region68
        $region67: #{model_forward.1} parent=11 // pred_region
          _
        $region68: #{model_forward.1} parent=11 // pred_fallthru
          _
        // Predicated region
        $region69: #{model_forward.1} parent=11 // pred_check
          %p718 = pneg %p404
        $region70: #{model_forward.1} parent=11 // pred_check_branch
          %720 = sbr.rel (%p718) target = $region72
        $region71: #{model_forward.1} parent=11 // pred_region
          _
        $region72: #{model_forward.1} parent=11 // pred_fallthru
          _
        // Predicated region
        $region73: #{model_forward.1} parent=11 // pred_check
          %p721 = pneg %p425
        $region74: #{model_forward.1} parent=11 // pred_check_branch
          %723 = sbr.rel (%p721) target = $region76
        $region75: #{model_forward.1} parent=11 // pred_region
          _
        $region76: #{model_forward.1} parent=11 // pred_fallthru
          _
        // Predicated region
        $region77: #{model_forward.1} parent=11 // pred_check
          %p724 = pneg %p446
        $region78: #{model_forward.1} parent=11 // pred_check_branch
          %726 = sbr.rel (%p724) target = $region80
        $region79: #{model_forward.1} parent=11 // pred_region
          _
        $region80: #{model_forward.1} parent=11 // pred_fallthru
          _
        // Predicated region
        $region81: #{model_forward.1} parent=11 // pred_check
          %p727 = pneg %p467
        $region82: #{model_forward.1} parent=11 // pred_check_branch
          %729 = sbr.rel (%p727) target = $region84
        $region83: #{model_forward.1} parent=11 // pred_region
          _
        $region84: #{model_forward.1} parent=11 // pred_fallthru
          _
        // Predicated region
        $region85: #{model_forward.1} parent=11 // pred_check
          %p730 = pneg %p488
        $region86: #{model_forward.1} parent=11 // pred_check_branch
          %732 = sbr.rel (%p730) target = $region88
        $region87: #{model_forward.1} parent=11 // pred_region
          _
        $region88: #{model_forward.1} parent=11 // pred_fallthru
          _
        // Predicated region
        $region89: #{model_forward.1} parent=11 // pred_check
          %p733 = pneg %p509
        $region90: #{model_forward.1} parent=11 // pred_check_branch
          %735 = sbr.rel (%p733) target = $region92
        $region91: #{model_forward.1} parent=11 // pred_region
          _
        $region92: #{model_forward.1} parent=11 // pred_fallthru
          _
        // Predicated region
        $region93: #{model_forward.1} parent=11 // pred_check
          %p736 = pneg %p530
        $region94: #{model_forward.1} parent=11 // pred_check_branch
          %738 = sbr.rel (%p736) target = $region96
        $region95: #{model_forward.1} parent=11 // pred_region
          _
        $region96: #{model_forward.1} parent=11 // pred_fallthru
          _
        // Predicated region
        $region97: #{model_forward.1} parent=11 // pred_check
          %p739 = pneg %p551
        $region98: #{model_forward.1} parent=11 // pred_check_branch
          %741 = sbr.rel (%p739) target = $region100
        $region99: #{model_forward.1} parent=11 // pred_region
          _
        $region100: #{model_forward.1} parent=11 // pred_fallthru
          _
        // Predicated region
        $region101: #{model_forward.1} parent=11 // pred_check
          %p742 = pneg %p572
        $region102: #{model_forward.1} parent=11 // pred_check_branch
          %744 = sbr.rel (%p742) target = $region104
        $region103: #{model_forward.1} parent=11 // pred_region
          _
        $region104: #{model_forward.1} parent=11 // pred_fallthru
          _
        // Predicated region
        $region105: #{model_forward.1} parent=11 // pred_check
          %p745 = pneg %p593
        $region106: #{model_forward.1} parent=11 // pred_check_branch
          %747 = sbr.rel (%p745) target = $region108
        $region107: #{model_forward.1} parent=11 // pred_region
          _
        $region108: #{model_forward.1} parent=11 // pred_fallthru
          _
        // Predicated region
        $region109: #{model_forward.1} parent=11 // pred_check
          %p748 = pneg %p614
        $region110: #{model_forward.1} parent=11 // pred_check_branch
          %750 = sbr.rel (%p748) target = $region112
        $region111: #{model_forward.1} parent=11 // pred_region
          _
        $region112: #{model_forward.1} parent=11 // pred_fallthru
          _
        // Predicated region
        $region113: #{model_forward.1} parent=11 // pred_check
          %p751 = pneg %p635
        $region114: #{model_forward.1} parent=11 // pred_check_branch
          %753 = sbr.rel (%p751) target = $region116
        $region115: #{model_forward.1} parent=11 // pred_region
          _
        $region116: #{model_forward.1} parent=11 // pred_fallthru
          _
      $region12: #{model_forward.1} parent=5 // pred_fallthru
        _
      %p754 = scmp.lt.s32.totalorder %s37, 2
      // Predicated region
      $region117: #{model_forward.1} parent=5 // pred_check
        %p755 = pneg %p754
      $region118: #{model_forward.1} parent=5 // pred_check_branch
        %757 = sbr.rel (%p755) target = $region120
      $region119: #{model_forward.1} parent=5 // pred_region
        // Predicated region
        $region121: #{model_forward.1} parent=119 // pred_check
          %p758 = pneg %p57
        $region122: #{model_forward.1} parent=119 // pred_check_branch
          %760 = sbr.rel (%p758) target = $region124
        $region123: #{model_forward.1} parent=119 // pred_region
          %p761 = scmp.lt.s32.totalorder %s37, 1
          %s762 = scalar_select %p761, %s37, 1
          %s763 = smul.addr %s762, 2
          %s764 = smul.addr %s763, 8
          %s765 = scalar_lea.vmem %s0, %s764
        $region124: #{model_forward.1} parent=119 // pred_fallthru
          _
        // Predicated region
        $region125: #{model_forward.1} parent=119 // pred_check
          %p766 = pneg %p83
        $region126: #{model_forward.1} parent=119 // pred_check_branch
          %768 = sbr.rel (%p766) target = $region128
        $region127: #{model_forward.1} parent=119 // pred_region
          %p769 = scmp.lt.s32.totalorder %s37, 1
          %s770 = scalar_select %p769, %s37, 1
          %s771 = smul.addr %s770, 2
          %s772 = smul.addr %s771, 8
          %s773 = scalar_lea.vmem %s1, %s772
        $region128: #{model_forward.1} parent=119 // pred_fallthru
          _
      $region120: #{model_forward.1} parent=5 // pred_fallthru
        _
      %p774 = scmp.le.s32.totalorder 1, %s37
      %p775 = scmp.lt.s32.totalorder %s37, 3
      %p776 = pnand %p774, %p775
      %p777 = pneg %p776
      // Predicated region
      $region129: #{model_forward.1} parent=5 // pred_check
        _
      $region130: #{model_forward.1} parent=5 // pred_check_branch
        %779 = sbr.rel (%p776) target = $region132
      $region131: #{model_forward.1} parent=5 // pred_region
        %s780 = ssub.s32 %s37, 1
        %p781 = scmp.lt.s32.totalorder %s42, 1
        %s782 = scalar_select %p781, %s42, 1
        %s783 = smul.addr %s782, 2
        %s784 = smul.addr %s783, 8
        %s785 = scalar_lea.vmem %s0, %s784
        %p786 = pneg %p63
        %p787 = pneg %p60
        %p788 = scmp.lt.s32.totalorder %s42, 1
        %s789 = scalar_select %p788, %s42, 1
        %s790 = smul.addr %s789, 2
        %s791 = smul.addr %s790, 8
        %s792 = scalar_lea.vmem %s1, %s791
        %p793 = pneg %p89
        %p794 = pneg %p86
        %p795 = pneg %p110
        %p796 = pneg %p107
        %p797 = pneg %p131
        %p798 = pneg %p128
        %p799 = pneg %p152
        %p800 = pneg %p149
        %p801 = pneg %p173
        %p802 = pneg %p170
        %p803 = pneg %p194
        %p804 = pneg %p191
        %p805 = pneg %p215
        %p806 = pneg %p212
        %p807 = pneg %p236
        %p808 = pneg %p233
        %p809 = pneg %p257
        %p810 = pneg %p254
        %p811 = pneg %p278
        %p812 = pneg %p275
        %p813 = pneg %p299
        %p814 = pneg %p296
        %p815 = pneg %p320
        %p816 = pneg %p317
        %p817 = pneg %p341
        %p818 = pneg %p338
        %p819 = pneg %p362
        %p820 = pneg %p359
        %p821 = pneg %p383
        %p822 = pneg %p380
        %p823 = pneg %p404
        %p824 = pneg %p401
        %p825 = pneg %p425
        %p826 = pneg %p422
        %p827 = pneg %p446
        %p828 = pneg %p443
        %p829 = pneg %p467
        %p830 = pneg %p464
        %p831 = pneg %p488
        %p832 = pneg %p485
        %p833 = pneg %p509
        %p834 = pneg %p506
        %p835 = pneg %p530
        %p836 = pneg %p527
        %p837 = pneg %p551
        %p838 = pneg %p548
        %p839 = pneg %p572
        %p840 = pneg %p569
        %p841 = pneg %p593
        %p842 = pneg %p590
        %p843 = pneg %p614
        %p844 = pneg %p611
        %p845 = pneg %p635
        %p846 = pneg %p632
        %p847 = pneg %p661
        %p848 = pneg %p658
        %s849 = sand.u32 %s648, 1
        %s850 = scalar_lea.sflag [#allocation3], %s849
        %s851 = sand.u32 %s648, 1
        %s852 = scalar_lea.vmem [#allocation2], %s851
        %p853 = scmp.lt.s32.totalorder %s42, 1
        %s854 = scalar_select %p853, %s42, 1
        %s855 = smul.addr %s854, 2
        %s856 = smul.addr %s855, 8
        %s857 = scalar_lea.vmem %s0, %s856
        %p858 = scmp.lt.s32.totalorder %s42, 1
        %s859 = scalar_select %p858, %s42, 1
        %s860 = smul.addr %s859, 2
        %s861 = smul.addr %s860, 8
        %s862 = scalar_lea.vmem %s1, %s861
        %v864 = vld [vmem:[%s857] sm:$0xff]
        %v865 = vld [vmem:[%s857 + $0x8] sm:$0xff]
        %v866 = vld [vmem:[%s862] sm:$0xff]
        %v867 = vld [vmem:[%s862 + $0x8] sm:$0xff]
        %vm868 = vcmask 130048
        %v869 = vsel %vm868, %v864, 0.0
        %870 = vadd.xlane.f32.xlu0 %v869
        %v871 = vpop.xlane.xlu0 %870
        %v872 = vsel %vm868, %v865, 0.0
        %873 = vadd.xlane.f32.xlu0 %v872
        %v874 = vpop.xlane.xlu0 %873
        %v875 = vrcp.pop 16.0
        %v876 = vmul.f32 %v871, %v875
        %v877 = vmul.f32 %v874, %v875
        %v878 = vadd.f32 %v876, %v877
        %v879 = vrot.slane %v878, 4
        %v880 = vadd.f32 %v878, %v879
        %v881 = vrot.slane %v880, 2
        %v882 = vadd.f32 %v880, %v881
        %v883 = vrot.slane %v882, 1
        %v884 = vadd.f32 %v882, %v883
        %v885 = vmul.f32 %v884, %v875
        %v886 = vsel %vm868, %v866, 0.0
        %887 = vadd.xlane.f32.xlu0 %v886
        %v888 = vpop.xlane.xlu0 %887
        %v889 = vsel %vm868, %v867, 0.0
        %890 = vadd.xlane.f32.xlu0 %v889
        %v891 = vpop.xlane.xlu0 %890
        %v892 = vmul.f32 %v888, %v875
        %v893 = vmul.f32 %v891, %v875
        %v894 = vadd.f32 %v892, %v893
        %v895 = vrot.slane %v894, 4
        %v896 = vadd.f32 %v894, %v895
        %v897 = vrot.slane %v896, 2
        %v898 = vadd.f32 %v896, %v897
        %v899 = vrot.slane %v898, 1
        %v900 = vadd.f32 %v898, %v899
        %v901 = vmul.f32 %v900, %v875
        %v902 = vsub.f32 %v864, %v885
        %v903 = vsub.f32 %v865, %v885
        %v904 = vsub.f32 %v866, %v901
        %v905 = vsub.f32 %v867, %v901
        %v906 = vmul.f32 %v902, %v902
        %v907 = vmul.f32 %v903, %v903
        %v908 = vsel %vm868, %v906, 0.0
        %909 = vadd.xlane.f32.xlu0 %v908
        %v910 = vpop.xlane.xlu0 %909
        %v911 = vsel %vm868, %v907, 0.0
        %912 = vadd.xlane.f32.xlu0 %v911
        %v913 = vpop.xlane.xlu0 %912
        %v914 = vmul.f32 %v910, %v875
        %v915 = vmul.f32 %v913, %v875
        %v916 = vadd.f32 %v914, %v915
        %v917 = vrot.slane %v916, 4
        %v918 = vadd.f32 %v916, %v917
        %v919 = vrot.slane %v918, 2
        %v920 = vadd.f32 %v918, %v919
        %v921 = vrot.slane %v920, 1
        %v922 = vadd.f32 %v920, %v921
        %v923 = vmul.f32 %v922, %v875
        %v924 = vadd.f32 %v923, 1e-05
        %v925 = vmul.f32 %v904, %v904
        %v926 = vmul.f32 %v905, %v905
        %v927 = vsel %vm868, %v925, 0.0
        %928 = vadd.xlane.f32.xlu0 %v927
        %v929 = vpop.xlane.xlu0 %928
        %v930 = vsel %vm868, %v926, 0.0
        %931 = vadd.xlane.f32.xlu0 %v930
        %v932 = vpop.xlane.xlu0 %931
        %v933 = vmul.f32 %v929, %v875
        %v934 = vmul.f32 %v932, %v875
        %v935 = vadd.f32 %v933, %v934
        %v936 = vrot.slane %v935, 4
        %v937 = vadd.f32 %v935, %v936
        %v938 = vrot.slane %v937, 2
        %v939 = vadd.f32 %v937, %v938
        %v940 = vrot.slane %v939, 1
        %v941 = vadd.f32 %v939, %v940
        %v942 = vmul.f32 %v941, %v875
        %v943 = vadd.f32 %v942, 1e-05
        %v944 = vmul.f32 %v902, %v904
        %v945 = vmul.f32 %v903, %v905
        %v946 = vsel %vm868, %v944, 0.0
        %947 = vadd.xlane.f32.xlu0 %v946
        %v948 = vpop.xlane.xlu0 %947
        %v949 = vsel %vm868, %v945, 0.0
        %950 = vadd.xlane.f32.xlu0 %v949
        %v951 = vpop.xlane.xlu0 %950
        %v952 = vmul.f32 %v948, %v875
        %v953 = vmul.f32 %v951, %v875
        %v954 = vadd.f32 %v952, %v953
        %v955 = vrot.slane %v954, 4
        %v956 = vadd.f32 %v954, %v955
        %v957 = vrot.slane %v956, 2
        %v958 = vadd.f32 %v956, %v957
        %v959 = vrot.slane %v958, 1
        %v960 = vadd.f32 %v958, %v959
        %v961 = vmul.f32 %v960, %v875
        %v962 = vmul.f32 %v924, %v943
        %v963 = vmul.f32 %v961, %v961
        %v964 = vsub.f32 %v962, %v963
        %v965 = vrsqrt.pop %v964
        %v966 = vmul.f32 %v964, %v965
        %vm967 = vcmp.eq.f32.partialorder %v964, inf
        %v968 = vsel %vm967, %v964, %v966
        %vm969 = vcmp.eq.f32.partialorder %v964, 0.0
        %v970 = vand.u32 %v964, 2147483648
        %v971 = vsel %vm969, %v970, %v968
        %v972 = vadd.f32 %v924, %v943
        %v973 = vmul.f32 %v971, 2.0
        %v974 = vadd.f32 %v972, %v973
        %v975 = vrsqrt.pop %v974
        %v976 = vmul.f32 %v974, %v975
        %vm977 = vcmp.eq.f32.partialorder %v974, inf
        %v978 = vsel %vm977, %v974, %v976
        %vm979 = vcmp.eq.f32.partialorder %v974, 0.0
        %v980 = vand.u32 %v974, 2147483648
        %v981 = vsel %vm979, %v980, %v978
        %v982 = vmul.f32 %v971, %v981
        %v983 = vrcp.pop %v982
        %v984 = vmul.f32 1.0, %v983
        %v985 = vadd.f32 %v943, %v971
        %v986 = vmul.f32 %v985, %v984
        %v987 = vadd.f32 %v924, %v971
        %v988 = vmul.f32 %v987, %v984
        %v989 = vsub.f32 0.0, %v961
        %v990 = vmul.f32 %v989, %v984
        %v991 = vmul.f32 %v986, %v902
        %v992 = vmul.f32 %v986, %v903
        %v993 = vmul.f32 %v990, %v904
        %v994 = vmul.f32 %v990, %v905
        %v995 = vadd.f32 %v991, %v993
        %v996 = vadd.f32 %v992, %v994
        %v997 = vmul.f32 %v995, 0.70710677
        %v998 = vmul.f32 %v996, 0.70710677
        %v999 = vmul.f32 %v990, %v902
        %v1000 = vmul.f32 %v990, %v903
        %v1001 = vmul.f32 %v988, %v904
        %v1002 = vmul.f32 %v988, %v905
        %v1003 = vadd.f32 %v999, %v1001
        %v1004 = vadd.f32 %v1000, %v1002
        %v1005 = vmul.f32 %v1003, 0.70710677
        %v1006 = vmul.f32 %v1004, 0.70710677
        %v1007 = vld [vmem:[%s4] sm:$0xf]
        %v1008 = vld [vmem:[%s4 + $0x4] sm:$0xf]
        %v1009 = vld [vmem:[%s5] sm:$0xf]
        %v1010 = vld [vmem:[%s5 + $0x4] sm:$0xf]
        %v1011 = vld [vmem:[%s6] sm:$0x1]
        %v1012 = vld [vmem:[%s7] sm:$0x1]
        %v1013 = vpack.c.bf16 %v998, %v997
        %v1016 = vunpack.c.l.b16 %v1007
        %v1017 = vunpack.c.l.b16 %v1008
        %v1018 = vpack.c.b16 %v1017, %v1016
        %v1021 = vsel %vm868, %v1013, 0
        %1023 = vmatprep.subr.bf16.mxu0 0
        %1024 = vmatpush1.bf16.msra.mxu0 %v1018
        %1025 = vmatprep.subr.bf16.mxu0 0
        %1026 = vmatpush1.bf16.msra.mxu0 0
        %1027 = vmatprep.subr.bf16.mxu0 0
        %1028 = vmatpush1.bf16.msra.mxu0 0
        %1029 = vmatprep.subr.bf16.mxu0 0
        %1030 = vmatpush1.bf16.msra.mxu0 0
        %1031 = vmatprep.subr.bf16.mxu0 0
        %1032 = vmatpush1.bf16.msra.mxu0 0
        %1033 = vmatprep.subr.bf16.mxu0 0
        %1034 = vmatpush1.bf16.msra.mxu0 0
        %1035 = vmatprep.subr.bf16.mxu0 0
        %1036 = vmatpush1.bf16.msra.mxu0 0
        %1037 = vmatprep.subr.bf16.mxu0 0
        %1038 = vmatpush1.bf16.msra.mxu0 0
        %1039 = vmatprep.subr.bf16.mxu0 0
        %1040 = vmatpush1.bf16.msra.mxu0 0
        %1041 = vmatprep.subr.bf16.mxu0 0
        %1042 = vmatpush1.bf16.msra.mxu0 0
        %1043 = vmatprep.subr.bf16.mxu0 0
        %1044 = vmatpush1.bf16.msra.mxu0 0
        %1045 = vmatprep.subr.bf16.mxu0 0
        %1046 = vmatpush1.bf16.msra.mxu0 0
        %1047 = vmatprep.subr.bf16.mxu0 0
        %1048 = vmatpush1.bf16.msra.mxu0 0
        %1049 = vmatprep.subr.bf16.mxu0 0
        %1050 = vmatpush1.bf16.msra.mxu0 0
        %1051 = vmatprep.subr.bf16.mxu0 0
        %1052 = vmatpush1.bf16.msra.mxu0 0
        %1053 = vmatprep.subr.bf16.mxu0 0
        %1054 = vmatpush1.bf16.msra.mxu0 0
        %1055 = vmatprep.mubr.bf16.mxu0 0
        %1056 = vmatmul.mubr.bf16.gmra.mrb[0].mxu0 %v1021
        %v1057 = vpop.f32.mrb[0].mxu0
        %v1058 = vadd.f32 0.0, %v1057
        %v1059 = vpop.f32.mrb[0].mxu0
        %v1060 = vpop.f32.mrb[0].mxu0
        %v1061 = vadd.f32 0.0, %v1060
        %v1062 = vpop.f32.mrb[0].mxu0
        %1063 = vdwg.mxu0
        %v1064 = vpack.c.bf16 %v1006, %v1005
        %v1067 = vunpack.c.l.b16 %v1009
        %v1068 = vunpack.c.l.b16 %v1010
        %v1069 = vpack.c.b16 %v1068, %v1067
        %v1072 = vsel %vm868, %v1064, 0
        %1074 = vmatprep.subr.bf16.mxu0 0
        %1075 = vmatpush1.bf16.msra.mxu0 %v1069
        %1076 = vmatprep.subr.bf16.mxu0 0
        %1077 = vmatpush1.bf16.msra.mxu0 0
        %1078 = vmatprep.subr.bf16.mxu0 0
        %1079 = vmatpush1.bf16.msra.mxu0 0
        %1080 = vmatprep.subr.bf16.mxu0 0
        %1081 = vmatpush1.bf16.msra.mxu0 0
        %1082 = vmatprep.subr.bf16.mxu0 0
        %1083 = vmatpush1.bf16.msra.mxu0 0
        %1084 = vmatprep.subr.bf16.mxu0 0
        %1085 = vmatpush1.bf16.msra.mxu0 0
        %1086 = vmatprep.subr.bf16.mxu0 0
        %1087 = vmatpush1.bf16.msra.mxu0 0
        %1088 = vmatprep.subr.bf16.mxu0 0
        %1089 = vmatpush1.bf16.msra.mxu0 0
        %1090 = vmatprep.subr.bf16.mxu0 0
        %1091 = vmatpush1.bf16.msra.mxu0 0
        %1092 = vmatprep.subr.bf16.mxu0 0
        %1093 = vmatpush1.bf16.msra.mxu0 0
        %1094 = vmatprep.subr.bf16.mxu0 0
        %1095 = vmatpush1.bf16.msra.mxu0 0
        %1096 = vmatprep.subr.bf16.mxu0 0
        %1097 = vmatpush1.bf16.msra.mxu0 0
        %1098 = vmatprep.subr.bf16.mxu0 0
        %1099 = vmatpush1.bf16.msra.mxu0 0
        %1100 = vmatprep.subr.bf16.mxu0 0
        %1101 = vmatpush1.bf16.msra.mxu0 0
        %1102 = vmatprep.subr.bf16.mxu0 0
        %1103 = vmatpush1.bf16.msra.mxu0 0
        %1104 = vmatprep.subr.bf16.mxu0 0
        %1105 = vmatpush1.bf16.msra.mxu0 0
        %1106 = vmatprep.mubr.bf16.mxu0 0
        %1107 = vmatmul.mubr.bf16.gmra.mrb[0].mxu0 %v1072
        %v1108 = vpop.f32.mrb[0].mxu0
        %v1109 = vadd.f32 0.0, %v1108
        %v1110 = vpop.f32.mrb[0].mxu0
        %v1111 = vpop.f32.mrb[0].mxu0
        %v1112 = vadd.f32 0.0, %v1111
        %v1113 = vpop.f32.mrb[0].mxu0
        %1114 = vdwg.mxu0
        %v1115 = vadd.f32 %v997, %v1005
        %v1116 = vadd.f32 %v998, %v1006
        %v1117 = vpack.c.bf16 %v1116, %v1115
        %v1118 = vadd.bf16 %v1007, %v1009
        %v1119 = vadd.bf16 %v1008, %v1010
        %v1122 = vunpack.c.l.b16 %v1118
        %v1123 = vunpack.c.l.b16 %v1119
        %v1124 = vpack.c.b16 %v1123, %v1122
        %v1127 = vsel %vm868, %v1117, 0
        %1129 = vmatprep.subr.bf16.mxu0 0
        %1130 = vmatpush1.bf16.msra.mxu0 %v1124
        %1131 = vmatprep.subr.bf16.mxu0 0
        %1132 = vmatpush1.bf16.msra.mxu0 0
        %1133 = vmatprep.subr.bf16.mxu0 0
        %1134 = vmatpush1.bf16.msra.mxu0 0
        %1135 = vmatprep.subr.bf16.mxu0 0
        %1136 = vmatpush1.bf16.msra.mxu0 0
        %1137 = vmatprep.subr.bf16.mxu0 0
        %1138 = vmatpush1.bf16.msra.mxu0 0
        %1139 = vmatprep.subr.bf16.mxu0 0
        %1140 = vmatpush1.bf16.msra.mxu0 0
        %1141 = vmatprep.subr.bf16.mxu0 0
        %1142 = vmatpush1.bf16.msra.mxu0 0
        %1143 = vmatprep.subr.bf16.mxu0 0
        %1144 = vmatpush1.bf16.msra.mxu0 0
        %1145 = vmatprep.subr.bf16.mxu0 0
        %1146 = vmatpush1.bf16.msra.mxu0 0
        %1147 = vmatprep.subr.bf16.mxu0 0
        %1148 = vmatpush1.bf16.msra.mxu0 0
        %1149 = vmatprep.subr.bf16.mxu0 0
        %1150 = vmatpush1.bf16.msra.mxu0 0
        %1151 = vmatprep.subr.bf16.mxu0 0
        %1152 = vmatpush1.bf16.msra.mxu0 0
        %1153 = vmatprep.subr.bf16.mxu0 0
        %1154 = vmatpush1.bf16.msra.mxu0 0
        %1155 = vmatprep.subr.bf16.mxu0 0
        %1156 = vmatpush1.bf16.msra.mxu0 0
        %1157 = vmatprep.subr.bf16.mxu0 0
        %1158 = vmatpush1.bf16.msra.mxu0 0
        %1159 = vmatprep.subr.bf16.mxu0 0
        %1160 = vmatpush1.bf16.msra.mxu0 0
        %1161 = vmatprep.mubr.bf16.mxu0 0
        %1162 = vmatmul.mubr.bf16.gmra.mrb[0].mxu0 %v1127
        %v1163 = vpop.f32.mrb[0].mxu0
        %v1164 = vadd.f32 0.0, %v1163
        %v1165 = vpop.f32.mrb[0].mxu0
        %v1166 = vpop.f32.mrb[0].mxu0
        %v1167 = vadd.f32 0.0, %v1166
        %v1168 = vpop.f32.mrb[0].mxu0
        %1169 = vdwg.mxu0
        %v1170 = vsub.f32 %v1058, %v1109
        %v1171 = vsub.f32 %v1061, %v1112
        %v1172 = vsub.f32 %v1164, %v1058
        %v1173 = vsub.f32 %v1167, %v1061
        %v1174 = vsub.f32 %v1172, %v1109
        %v1175 = vsub.f32 %v1173, %v1112
        %v1177 = vlaneseq
        %v1178 = vshrl.u32 %v1177, 7
        %v1179 = vsub.s32 0, %v1178
        %v1180 = vrot.slane %v1011, %v1179
        %v1182 = vadd.f32 %v1170, %v1180
        %v1183 = vadd.f32 %v1171, %v1180
        %v1185 = vlaneseq
        %v1186 = vshrl.u32 %v1185, 7
        %v1187 = vsub.s32 0, %v1186
        %v1188 = vrot.slane %v1012, %v1187
        %v1190 = vadd.f32 %v1174, %v1188
        %v1191 = vadd.f32 %v1175, %v1188
        %vm1192 = vcmask 261120
        %v1193 = vsel %vm1192, %v1182, 0.0
        %1194 = vadd.xlane.f32.xlu0 %v1193
        %v1195 = vpop.xlane.xlu0 %1194
        %v1196 = vsel %vm1192, %v1183, 0.0
        %1197 = vadd.xlane.f32.xlu0 %v1196
        %v1198 = vpop.xlane.xlu0 %1197
        %v1199 = vrcp.pop 32.0
        %v1200 = vmul.f32 %v1195, %v1199
        %v1201 = vmul.f32 %v1198, %v1199
        %v1202 = vadd.f32 %v1200, %v1201
        %v1203 = vrot.slane %v1202, 4
        %v1204 = vadd.f32 %v1202, %v1203
        %v1205 = vrot.slane %v1204, 2
        %v1206 = vadd.f32 %v1204, %v1205
        %v1207 = vrot.slane %v1206, 1
        %v1208 = vadd.f32 %v1206, %v1207
        %v1209 = vmul.f32 %v1208, %v875
        %v1210 = vsel %vm1192, %v1190, 0.0
        %1211 = vadd.xlane.f32.xlu0 %v1210
        %v1212 = vpop.xlane.xlu0 %1211
        %v1213 = vsel %vm1192, %v1191, 0.0
        %1214 = vadd.xlane.f32.xlu0 %v1213
        %v1215 = vpop.xlane.xlu0 %1214
        %v1216 = vmul.f32 %v1212, %v1199
        %v1217 = vmul.f32 %v1215, %v1199
        %v1218 = vadd.f32 %v1216, %v1217
        %v1219 = vrot.slane %v1218, 4
        %v1220 = vadd.f32 %v1218, %v1219
        %v1221 = vrot.slane %v1220, 2
        %v1222 = vadd.f32 %v1220, %v1221
        %v1223 = vrot.slane %v1222, 1
        %v1224 = vadd.f32 %v1222, %v1223
        %v1225 = vmul.f32 %v1224, %v875
        %v1226 = vsub.f32 %v1182, %v1209
        %v1227 = vsub.f32 %v1183, %v1209
        %v1228 = vsub.f32 %v1190, %v1225
        %v1229 = vsub.f32 %v1191, %v1225
        %v1230 = vmul.f32 %v1226, %v1226
        %v1231 = vmul.f32 %v1227, %v1227
        %v1232 = vsel %vm1192, %v1230, 0.0
        %1233 = vadd.xlane.f32.xlu0 %v1232
        %v1234 = vpop.xlane.xlu0 %1233
        %v1235 = vsel %vm1192, %v1231, 0.0
        %1236 = vadd.xlane.f32.xlu0 %v1235
        %v1237 = vpop.xlane.xlu0 %1236
        %v1238 = vmul.f32 %v1234, %v1199
        %v1239 = vmul.f32 %v1237, %v1199
        %v1240 = vadd.f32 %v1238, %v1239
        %v1241 = vrot.slane %v1240, 4
        %v1242 = vadd.f32 %v1240, %v1241
        %v1243 = vrot.slane %v1242, 2
        %v1244 = vadd.f32 %v1242, %v1243
        %v1245 = vrot.slane %v1244, 1
        %v1246 = vadd.f32 %v1244, %v1245
        %v1247 = vmul.f32 %v1246, %v875
        %v1248 = vadd.f32 %v1247, 1e-05
        %v1249 = vmul.f32 %v1228, %v1228
        %v1250 = vmul.f32 %v1229, %v1229
        %v1251 = vsel %vm1192, %v1249, 0.0
        %1252 = vadd.xlane.f32.xlu0 %v1251
        %v1253 = vpop.xlane.xlu0 %1252
        %v1254 = vsel %vm1192, %v1250, 0.0
        %1255 = vadd.xlane.f32.xlu0 %v1254
        %v1256 = vpop.xlane.xlu0 %1255
        %v1257 = vmul.f32 %v1253, %v1199
        %v1258 = vmul.f32 %v1256, %v1199
        %v1259 = vadd.f32 %v1257, %v1258
        %v1260 = vrot.slane %v1259, 4
        %v1261 = vadd.f32 %v1259, %v1260
        %v1262 = vrot.slane %v1261, 2
        %v1263 = vadd.f32 %v1261, %v1262
        %v1264 = vrot.slane %v1263, 1
        %v1265 = vadd.f32 %v1263, %v1264
        %v1266 = vmul.f32 %v1265, %v875
        %v1267 = vadd.f32 %v1266, 1e-05
        %v1268 = vmul.f32 %v1226, %v1228
        %v1269 = vmul.f32 %v1227, %v1229
        %v1270 = vsel %vm1192, %v1268, 0.0
        %1271 = vadd.xlane.f32.xlu0 %v1270
        %v1272 = vpop.xlane.xlu0 %1271
        %v1273 = vsel %vm1192, %v1269, 0.0
        %1274 = vadd.xlane.f32.xlu0 %v1273
        %v1275 = vpop.xlane.xlu0 %1274
        %v1276 = vmul.f32 %v1272, %v1199
        %v1277 = vmul.f32 %v1275, %v1199
        %v1278 = vadd.f32 %v1276, %v1277
        %v1279 = vrot.slane %v1278, 4
        %v1280 = vadd.f32 %v1278, %v1279
        %v1281 = vrot.slane %v1280, 2
        %v1282 = vadd.f32 %v1280, %v1281
        %v1283 = vrot.slane %v1282, 1
        %v1284 = vadd.f32 %v1282, %v1283
        %v1285 = vmul.f32 %v1284, %v875
        %v1286 = vmul.f32 %v1248, %v1267
        %v1287 = vmul.f32 %v1285, %v1285
        %v1288 = vsub.f32 %v1286, %v1287
        %v1289 = vrsqrt.pop %v1288
        %v1290 = vmul.f32 %v1288, %v1289
        %vm1291 = vcmp.eq.f32.partialorder %v1288, inf
        %v1292 = vsel %vm1291, %v1288, %v1290
        %vm1293 = vcmp.eq.f32.partialorder %v1288, 0.0
        %v1294 = vand.u32 %v1288, 2147483648
        %v1295 = vsel %vm1293, %v1294, %v1292
        %v1296 = vadd.f32 %v1248, %v1267
        %v1297 = vmul.f32 %v1295, 2.0
        %v1298 = vadd.f32 %v1296, %v1297
        %v1299 = vrsqrt.pop %v1298
        %v1300 = vmul.f32 %v1298, %v1299
        %vm1301 = vcmp.eq.f32.partialorder %v1298, inf
        %v1302 = vsel %vm1301, %v1298, %v1300
        %vm1303 = vcmp.eq.f32.partialorder %v1298, 0.0
        %v1304 = vand.u32 %v1298, 2147483648
        %v1305 = vsel %vm1303, %v1304, %v1302
        %v1306 = vmul.f32 %v1295, %v1305
        %v1307 = vrcp.pop %v1306
        %v1308 = vmul.f32 1.0, %v1307
        %v1309 = vadd.f32 %v1267, %v1295
        %v1310 = vmul.f32 %v1309, %v1308
        %v1311 = vadd.f32 %v1248, %v1295
        %v1312 = vmul.f32 %v1311, %v1308
        %v1313 = vsub.f32 0.0, %v1285
        %v1314 = vmul.f32 %v1313, %v1308
        %v1315 = vmul.f32 %v1310, %v1226
        %v1316 = vmul.f32 %v1310, %v1227
        %v1317 = vmul.f32 %v1314, %v1228
        %v1318 = vmul.f32 %v1314, %v1229
        %v1319 = vadd.f32 %v1315, %v1317
        %v1320 = vadd.f32 %v1316, %v1318
        %v1321 = vmul.f32 %v1319, 0.70710677
        %v1322 = vmul.f32 %v1320, 0.70710677
        %v1323 = vmul.f32 %v1314, %v1226
        %v1324 = vmul.f32 %v1314, %v1227
        %v1325 = vmul.f32 %v1312, %v1228
        %v1326 = vmul.f32 %v1312, %v1229
        %v1327 = vadd.f32 %v1323, %v1325
        %v1328 = vadd.f32 %v1324, %v1326
        %v1329 = vmul.f32 %v1327, 0.70710677
        %v1330 = vmul.f32 %v1328, 0.70710677
        %v1331 = vld [vmem:[%s2] sm:$0xff]
        %v1332 = vld [vmem:[%s2 + $0x8] sm:$0xff]
        %v1333 = vadd.f32 %v1321, %v1331
        %v1334 = vadd.f32 %v1322, %v1332
        %v1335 = vld [vmem:[%s3] sm:$0xff]
        %v1336 = vld [vmem:[%s3 + $0x8] sm:$0xff]
        %v1337 = vadd.f32 %v1329, %v1335
        %v1338 = vadd.f32 %v1330, %v1336
        %v1339 = vmul.f32 %v1333, %v1333
        %v1340 = vmul.f32 %v1334, %v1334
        %v1341 = vmul.f32 %v1337, %v1337
        %v1342 = vmul.f32 %v1338, %v1338
        %v1343 = vadd.f32 %v1339, %v1341
        %v1344 = vadd.f32 %v1340, %v1342
        %v1345 = vsel %vm1192, %v1343, 0.0
        %1346 = vadd.xlane.f32.xlu0 %v1345
        %v1347 = vpop.xlane.xlu0 %1346
        %v1348 = vsel %vm1192, %v1344, 0.0
        %1349 = vadd.xlane.f32.xlu0 %v1348
        %v1350 = vpop.xlane.xlu0 %1349
        %v1351 = vmul.f32 %v1347, %v1199
        %v1352 = vmul.f32 %v1350, %v1199
        %v1353 = vadd.f32 %v1351, 1e-06
        %v1354 = vadd.f32 %v1352, 1e-06
        %v1355 = vrsqrt.pop %v1353
        %v1356 = vrsqrt.pop %v1354
        %v1357 = vmul.f32 %v1333, %v1355
        %v1358 = vmul.f32 %v1334, %v1356
        %v1359 = vmul.f32 %v1337, %v1355
        %v1360 = vmul.f32 %v1338, %v1356
        %v1361 = vld [vmem:[%s8] sm:$0xf]
        %v1362 = vld [vmem:[%s8 + $0x4] sm:$0xf]
        %v1363 = vld [vmem:[%s8 + $0x8] sm:$0xf]
        %v1364 = vld [vmem:[%s8 + $0xc] sm:$0xf]
        %v1365 = vld [vmem:[%s9] sm:$0xf]
        %v1366 = vld [vmem:[%s9 + $0x4] sm:$0xf]
        %v1367 = vld [vmem:[%s9 + $0x8] sm:$0xf]
        %v1368 = vld [vmem:[%s9 + $0xc] sm:$0xf]
        %v1369 = vld [vmem:[%s10] sm:$0x1]
        %v1370 = vld [vmem:[%s11] sm:$0x1]
        %v1371 = vpack.c.bf16 %v1358, %v1357
        %v1376 = vunpack.c.l.b16 %v1361
        %v1377 = vunpack.c.l.b16 %v1362
        %v1378 = vunpack.c.l.b16 %v1363
        %v1379 = vunpack.c.l.b16 %v1364
        %v1380 = vpack.c.b16 %v1377, %v1376
        %v1381 = vpack.c.b16 %v1379, %v1378
        %v1385 = vsel %vm1192, %v1371, 0
        %1387 = vmatprep.subr.bf16.mxu0 0
        %1388 = vmatpush1.bf16.msra.mxu0 %v1380
        %1389 = vmatprep.subr.bf16.mxu0 0
        %1390 = vmatpush1.bf16.msra.mxu0 %v1381
        %1391 = vmatprep.subr.bf16.mxu0 0
        %1392 = vmatpush1.bf16.msra.mxu0 0
        %1393 = vmatprep.subr.bf16.mxu0 0
        %1394 = vmatpush1.bf16.msra.mxu0 0
        %1395 = vmatprep.subr.bf16.mxu0 0
        %1396 = vmatpush1.bf16.msra.mxu0 0
        %1397 = vmatprep.subr.bf16.mxu0 0
        %1398 = vmatpush1.bf16.msra.mxu0 0
        %1399 = vmatprep.subr.bf16.mxu0 0
        %1400 = vmatpush1.bf16.msra.mxu0 0
        %1401 = vmatprep.subr.bf16.mxu0 0
        %1402 = vmatpush1.bf16.msra.mxu0 0
        %1403 = vmatprep.subr.bf16.mxu0 0
        %1404 = vmatpush1.bf16.msra.mxu0 0
        %1405 = vmatprep.subr.bf16.mxu0 0
        %1406 = vmatpush1.bf16.msra.mxu0 0
        %1407 = vmatprep.subr.bf16.mxu0 0
        %1408 = vmatpush1.bf16.msra.mxu0 0
        %1409 = vmatprep.subr.bf16.mxu0 0
        %1410 = vmatpush1.bf16.msra.mxu0 0
        %1411 = vmatprep.subr.bf16.mxu0 0
        %1412 = vmatpush1.bf16.msra.mxu0 0
        %1413 = vmatprep.subr.bf16.mxu0 0
        %1414 = vmatpush1.bf16.msra.mxu0 0
        %1415 = vmatprep.subr.bf16.mxu0 0
        %1416 = vmatpush1.bf16.msra.mxu0 0
        %1417 = vmatprep.subr.bf16.mxu0 0
        %1418 = vmatpush1.bf16.msra.mxu0 0
        %1419 = vmatprep.mubr.bf16.mxu0 0
        %1420 = vmatmul.mubr.bf16.gmra.mrb[0].mxu0 %v1385
        %v1421 = vpop.f32.mrb[0].mxu0
        %v1422 = vadd.f32 0.0, %v1421
        %v1423 = vpop.f32.mrb[0].mxu0
        %v1424 = vpop.f32.mrb[0].mxu0
        %v1425 = vadd.f32 0.0, %v1424
        %v1426 = vpop.f32.mrb[0].mxu0
        %1427 = vdwg.mxu0
        %v1428 = vpack.c.bf16 %v1360, %v1359
        %v1433 = vunpack.c.l.b16 %v1365
        %v1434 = vunpack.c.l.b16 %v1366
        %v1435 = vunpack.c.l.b16 %v1367
        %v1436 = vunpack.c.l.b16 %v1368
        %v1437 = vpack.c.b16 %v1434, %v1433
        %v1438 = vpack.c.b16 %v1436, %v1435
        %v1442 = vsel %vm1192, %v1428, 0
        %1444 = vmatprep.subr.bf16.mxu0 0
        %1445 = vmatpush1.bf16.msra.mxu0 %v1437
        %1446 = vmatprep.subr.bf16.mxu0 0
        %1447 = vmatpush1.bf16.msra.mxu0 %v1438
        %1448 = vmatprep.subr.bf16.mxu0 0
        %1449 = vmatpush1.bf16.msra.mxu0 0
        %1450 = vmatprep.subr.bf16.mxu0 0
        %1451 = vmatpush1.bf16.msra.mxu0 0
        %1452 = vmatprep.subr.bf16.mxu0 0
        %1453 = vmatpush1.bf16.msra.mxu0 0
        %1454 = vmatprep.subr.bf16.mxu0 0
        %1455 = vmatpush1.bf16.msra.mxu0 0
        %1456 = vmatprep.subr.bf16.mxu0 0
        %1457 = vmatpush1.bf16.msra.mxu0 0
        %1458 = vmatprep.subr.bf16.mxu0 0
        %1459 = vmatpush1.bf16.msra.mxu0 0
        %1460 = vmatprep.subr.bf16.mxu0 0
        %1461 = vmatpush1.bf16.msra.mxu0 0
        %1462 = vmatprep.subr.bf16.mxu0 0
        %1463 = vmatpush1.bf16.msra.mxu0 0
        %1464 = vmatprep.subr.bf16.mxu0 0
        %1465 = vmatpush1.bf16.msra.mxu0 0
        %1466 = vmatprep.subr.bf16.mxu0 0
        %1467 = vmatpush1.bf16.msra.mxu0 0
        %1468 = vmatprep.subr.bf16.mxu0 0
        %1469 = vmatpush1.bf16.msra.mxu0 0
        %1470 = vmatprep.subr.bf16.mxu0 0
        %1471 = vmatpush1.bf16.msra.mxu0 0
        %1472 = vmatprep.subr.bf16.mxu0 0
        %1473 = vmatpush1.bf16.msra.mxu0 0
        %1474 = vmatprep.subr.bf16.mxu0 0
        %1475 = vmatpush1.bf16.msra.mxu0 0
        %1476 = vmatprep.mubr.bf16.mxu0 0
        %1477 = vmatmul.mubr.bf16.gmra.mrb[0].mxu0 %v1442
        %v1478 = vpop.f32.mrb[0].mxu0
        %v1479 = vadd.f32 0.0, %v1478
        %v1480 = vpop.f32.mrb[0].mxu0
        %v1481 = vpop.f32.mrb[0].mxu0
        %v1482 = vadd.f32 0.0, %v1481
        %v1483 = vpop.f32.mrb[0].mxu0
        %1484 = vdwg.mxu0
        %v1485 = vadd.f32 %v1357, %v1359
        %v1486 = vadd.f32 %v1358, %v1360
        %v1487 = vpack.c.bf16 %v1486, %v1485
        %v1488 = vadd.bf16 %v1361, %v1365
        %v1489 = vadd.bf16 %v1362, %v1366
        %v1490 = vadd.bf16 %v1363, %v1367
        %v1491 = vadd.bf16 %v1364, %v1368
        %v1496 = vunpack.c.l.b16 %v1488
        %v1497 = vunpack.c.l.b16 %v1489
        %v1498 = vunpack.c.l.b16 %v1490
        %v1499 = vunpack.c.l.b16 %v1491
        %v1500 = vpack.c.b16 %v1497, %v1496
        %v1501 = vpack.c.b16 %v1499, %v1498
        %v1505 = vsel %vm1192, %v1487, 0
        %1507 = vmatprep.subr.bf16.mxu0 0
        %1508 = vmatpush1.bf16.msra.mxu0 %v1500
        %1509 = vmatprep.subr.bf16.mxu0 0
        %1510 = vmatpush1.bf16.msra.mxu0 %v1501
        %1511 = vmatprep.subr.bf16.mxu0 0
        %1512 = vmatpush1.bf16.msra.mxu0 0
        %1513 = vmatprep.subr.bf16.mxu0 0
        %1514 = vmatpush1.bf16.msra.mxu0 0
        %1515 = vmatprep.subr.bf16.mxu0 0
        %1516 = vmatpush1.bf16.msra.mxu0 0
        %1517 = vmatprep.subr.bf16.mxu0 0
        %1518 = vmatpush1.bf16.msra.mxu0 0
        %1519 = vmatprep.subr.bf16.mxu0 0
        %1520 = vmatpush1.bf16.msra.mxu0 0
        %1521 = vmatprep.subr.bf16.mxu0 0
        %1522 = vmatpush1.bf16.msra.mxu0 0
        %1523 = vmatprep.subr.bf16.mxu0 0
        %1524 = vmatpush1.bf16.msra.mxu0 0
        %1525 = vmatprep.subr.bf16.mxu0 0
        %1526 = vmatpush1.bf16.msra.mxu0 0
        %1527 = vmatprep.subr.bf16.mxu0 0
        %1528 = vmatpush1.bf16.msra.mxu0 0
        %1529 = vmatprep.subr.bf16.mxu0 0
        %1530 = vmatpush1.bf16.msra.mxu0 0
        %1531 = vmatprep.subr.bf16.mxu0 0
        %1532 = vmatpush1.bf16.msra.mxu0 0
        %1533 = vmatprep.subr.bf16.mxu0 0
        %1534 = vmatpush1.bf16.msra.mxu0 0
        %1535 = vmatprep.subr.bf16.mxu0 0
        %1536 = vmatpush1.bf16.msra.mxu0 0
        %1537 = vmatprep.subr.bf16.mxu0 0
        %1538 = vmatpush1.bf16.msra.mxu0 0
        %1539 = vmatprep.mubr.bf16.mxu0 0
        %1540 = vmatmul.mubr.bf16.gmra.mrb[0].mxu0 %v1505
        %v1541 = vpop.f32.mrb[0].mxu0
        %v1542 = vadd.f32 0.0, %v1541
        %v1543 = vpop.f32.mrb[0].mxu0
        %v1544 = vpop.f32.mrb[0].mxu0
        %v1545 = vadd.f32 0.0, %v1544
        %v1546 = vpop.f32.mrb[0].mxu0
        %1547 = vdwg.mxu0
        %v1548 = vsub.f32 %v1422, %v1479
        %v1549 = vsub.f32 %v1425, %v1482
        %v1550 = vsub.f32 %v1542, %v1422
        %v1551 = vsub.f32 %v1545, %v1425
        %v1552 = vsub.f32 %v1550, %v1479
        %v1553 = vsub.f32 %v1551, %v1482
        %v1555 = vlaneseq
        %v1556 = vshrl.u32 %v1555, 7
        %v1557 = vsub.s32 0, %v1556
        %v1558 = vrot.slane %v1369, %v1557
        %v1560 = vadd.f32 %v1548, %v1558
        %v1561 = vadd.f32 %v1549, %v1558
        %v1563 = vlaneseq
        %v1564 = vshrl.u32 %v1563, 7
        %v1565 = vsub.s32 0, %v1564
        %v1566 = vrot.slane %v1370, %v1565
        %v1568 = vadd.f32 %v1552, %v1566
        %v1569 = vadd.f32 %v1553, %v1566
        %v1570 = vmul.f32 %v1560, 0.35355338
        %v1571 = vmul.f32 %v1561, 0.35355338
        %v1572 = vmul.f32 %v1568, 0.35355338
        %v1573 = vmul.f32 %v1569, 0.35355338
        %1576 = vrot.lane.b32.xlu0 %v1572, 8
        %v1577 = vpop.permute.xlu0 %1576
        %1578 = vrot.lane.b32.xlu0 %v1573, 8
        %v1579 = vpop.permute.xlu0 %1578
        %vm1582 = vcmask 64512
        %v1583 = vsel %vm1582, %v1570, %v1577
        %v1584 = vsel %vm1582, %v1571, %v1579
        %v1585 = vpack.c.bf16 %v1584, %v1583
        %1588 = vrot.lane.b32.xlu0 %v1560, 96
        %v1589 = vpop.permute.xlu0 %1588
        %1590 = vrot.lane.b32.xlu0 %v1561, 96
        %v1591 = vpop.permute.xlu0 %1590
        %1596 = vrot.lane.b32.xlu0 %v1568, 104
        %v1597 = vpop.permute.xlu0 %1596
        %1598 = vrot.lane.b32.xlu0 %v1569, 104
        %v1599 = vpop.permute.xlu0 %1598
        %v1602 = vsel %vm1582, %v1589, %v1597
        %v1603 = vsel %vm1582, %v1591, %v1599
        %v1604 = vpack.c.bf16 %v1603, %v1602
        %1605 = vrot.lane.b32.xlu0 %v1560, 64
        %v1606 = vpop.permute.xlu0 %1605
        %1607 = vrot.lane.b32.xlu0 %v1561, 64
        %v1608 = vpop.permute.xlu0 %1607
        %1611 = vrot.lane.b32.xlu0 %v1568, 72
        %v1612 = vpop.permute.xlu0 %1611
        %1613 = vrot.lane.b32.xlu0 %v1569, 72
        %v1614 = vpop.permute.xlu0 %1613
        %v1617 = vsel %vm1582, %v1606, %v1612
        %v1618 = vsel %vm1582, %v1608, %v1614
        %v1619 = vpack.c.bf16 %v1618, %v1617
        %v1621 = vsel %vm868, %v1585, 0
        %v1624 = vsel %vm868, %v1604, 0
        %1626 = vmatprep.subr.bf16.mxu0 0
        %1627 = vmatpush1.bf16.xpose.msra.mxu0 %v1624
        %1628 = vmatprep.subr.bf16.mxu0 0
        %1629 = vmatpush1.bf16.xpose.msra.mxu0 0
        %1630 = vmatprep.subr.bf16.mxu0 0
        %1631 = vmatpush1.bf16.xpose.msra.mxu0 0
        %1632 = vmatprep.subr.bf16.mxu0 0
        %1633 = vmatpush1.bf16.xpose.msra.mxu0 0
        %1634 = vmatprep.subr.bf16.mxu0 0
        %1635 = vmatpush1.bf16.xpose.msra.mxu0 0
        %1636 = vmatprep.subr.bf16.mxu0 0
        %1637 = vmatpush1.bf16.xpose.msra.mxu0 0
        %1638 = vmatprep.subr.bf16.mxu0 0
        %1639 = vmatpush1.bf16.xpose.msra.mxu0 0
        %1640 = vmatprep.subr.bf16.mxu0 0
        %1641 = vmatpush1.bf16.xpose.msra.mxu0 0
        %1642 = vmatprep.subr.bf16.mxu0 0
        %1643 = vmatpush1.bf16.xpose.msra.mxu0 0
        %1644 = vmatprep.subr.bf16.mxu0 0
        %1645 = vmatpush1.bf16.xpose.msra.mxu0 0
        %1646 = vmatprep.subr.bf16.mxu0 0
        %1647 = vmatpush1.bf16.xpose.msra.mxu0 0
        %1648 = vmatprep.subr.bf16.mxu0 0
        %1649 = vmatpush1.bf16.xpose.msra.mxu0 0
        %1650 = vmatprep.subr.bf16.mxu0 0
        %1651 = vmatpush1.bf16.xpose.msra.mxu0 0
        %1652 = vmatprep.subr.bf16.mxu0 0
        %1653 = vmatpush1.bf16.xpose.msra.mxu0 0
        %1654 = vmatprep.subr.bf16.mxu0 0
        %1655 = vmatpush1.bf16.xpose.msra.mxu0 0
        %1656 = vmatprep.subr.bf16.mxu0 0
        %1657 = vmatpush1.bf16.xpose.msra.mxu0 0
        %1658 = vmatprep.mubr.bf16.mxu0 0
        %1659 = vmatmul.mubr.bf16.gmra.mrb[0].mxu0 %v1621
        %v1660 = vpop.f32.mrb[0].mxu0
        %v1661 = vadd.f32 0.0, %v1660
        %v1662 = vpop.f32.mrb[0].mxu0
        %v1663 = vpop.f32.mrb[0].mxu0
        %v1664 = vadd.f32 0.0, %v1663
        %v1665 = vpop.f32.mrb[0].mxu0
        %1666 = vdwg.mxu0
        %v1667 = vsel %vm868, %v1661, -inf
        %1668 = vmax.xlane.f32.xlu0 %v1667
        %v1669 = vpop.xlane.xlu0 %1668
        %v1670 = vsel %vm868, %v1664, -inf
        %1671 = vmax.xlane.f32.xlu0 %v1670
        %v1672 = vpop.xlane.xlu0 %1671
        %v1673 = vsub.f32 %v1661, %v1669
        %v1674 = vsub.f32 %v1664, %v1672
        %v1675 = vmul.f32 %v1673, 1.442695
        %v1676 = vpow.pop %v1675
        %v1677 = vmul.f32 %v1674, 1.442695
        %v1678 = vpow.pop %v1677
        %v1679 = vsel %vm868, %v1676, 0.0
        %1680 = vadd.xlane.f32.xlu0 %v1679
        %v1681 = vpop.xlane.xlu0 %1680
        %v1682 = vsel %vm868, %v1678, 0.0
        %1683 = vadd.xlane.f32.xlu0 %v1682
        %v1684 = vpop.xlane.xlu0 %1683
        %v1685 = vrcp.pop %v1681
        %v1686 = vrcp.pop %v1684
        %v1687 = vmul.f32 %v1676, %v1685
        %v1688 = vmul.f32 %v1678, %v1686
        %v1689 = vpack.c.bf16 %v1688, %v1687
        %v1691 = vsel %vm868, %v1689, 0
        %1693 = vmatprep.subr.bf16.mxu0 0
        %1694 = vmatpush1.bf16.msra.mxu0 %v1619
        %1695 = vmatprep.subr.bf16.mxu0 0
        %1696 = vmatpush1.bf16.msra.mxu0 0
        %1697 = vmatprep.subr.bf16.mxu0 0
        %1698 = vmatpush1.bf16.msra.mxu0 0
        %1699 = vmatprep.subr.bf16.mxu0 0
        %1700 = vmatpush1.bf16.msra.mxu0 0
        %1701 = vmatprep.subr.bf16.mxu0 0
        %1702 = vmatpush1.bf16.msra.mxu0 0
        %1703 = vmatprep.subr.bf16.mxu0 0
        %1704 = vmatpush1.bf16.msra.mxu0 0
        %1705 = vmatprep.subr.bf16.mxu0 0
        %1706 = vmatpush1.bf16.msra.mxu0 0
        %1707 = vmatprep.subr.bf16.mxu0 0
        %1708 = vmatpush1.bf16.msra.mxu0 0
        %1709 = vmatprep.subr.bf16.mxu0 0
        %1710 = vmatpush1.bf16.msra.mxu0 0
        %1711 = vmatprep.subr.bf16.mxu0 0
        %1712 = vmatpush1.bf16.msra.mxu0 0
        %1713 = vmatprep.subr.bf16.mxu0 0
        %1714 = vmatpush1.bf16.msra.mxu0 0
        %1715 = vmatprep.subr.bf16.mxu0 0
        %1716 = vmatpush1.bf16.msra.mxu0 0
        %1717 = vmatprep.subr.bf16.mxu0 0
        %1718 = vmatpush1.bf16.msra.mxu0 0
        %1719 = vmatprep.subr.bf16.mxu0 0
        %1720 = vmatpush1.bf16.msra.mxu0 0
        %1721 = vmatprep.subr.bf16.mxu0 0
        %1722 = vmatpush1.bf16.msra.mxu0 0
        %1723 = vmatprep.subr.bf16.mxu0 0
        %1724 = vmatpush1.bf16.msra.mxu0 0
        %1725 = vmatprep.mubr.bf16.mxu0 0
        %1726 = vmatmul.mubr.bf16.gmra.mrb[0].mxu0 %v1691
        %v1727 = vpop.f32.mrb[0].mxu0
        %v1728 = vadd.f32 0.0, %v1727
        %v1729 = vpop.f32.mrb[0].mxu0
        %v1730 = vpop.f32.mrb[0].mxu0
        %v1731 = vadd.f32 0.0, %v1730
        %v1732 = vpop.f32.mrb[0].mxu0
        %1733 = vdwg.mxu0
        %1736 = vrot.lane.b32.xlu0 %v1570, 120
        %v1737 = vpop.permute.xlu0 %1736
        %1738 = vrot.lane.b32.xlu0 %v1571, 120
        %v1739 = vpop.permute.xlu0 %1738
        %v1742 = vsel %vm1582, %v1737, %v1572
        %v1743 = vsel %vm1582, %v1739, %v1573
        %v1744 = vpack.c.bf16 %v1743, %v1742
        %1745 = vrot.lane.b32.xlu0 %v1560, 88
        %v1746 = vpop.permute.xlu0 %1745
        %1747 = vrot.lane.b32.xlu0 %v1561, 88
        %v1748 = vpop.permute.xlu0 %1747
        %1751 = vrot.lane.b32.xlu0 %v1568, 96
        %v1752 = vpop.permute.xlu0 %1751
        %1753 = vrot.lane.b32.xlu0 %v1569, 96
        %v1754 = vpop.permute.xlu0 %1753
        %v1757 = vsel %vm1582, %v1746, %v1752
        %v1758 = vsel %vm1582, %v1748, %v1754
        %v1759 = vpack.c.bf16 %v1758, %v1757
        %1760 = vrot.lane.b32.xlu0 %v1560, 56
        %v1761 = vpop.permute.xlu0 %1760
        %1762 = vrot.lane.b32.xlu0 %v1561, 56
        %v1763 = vpop.permute.xlu0 %1762
        %1766 = vrot.lane.b32.xlu0 %v1568, 64
        %v1767 = vpop.permute.xlu0 %1766
        %1768 = vrot.lane.b32.xlu0 %v1569, 64
        %v1769 = vpop.permute.xlu0 %1768
        %v1772 = vsel %vm1582, %v1761, %v1767
        %v1773 = vsel %vm1582, %v1763, %v1769
        %v1774 = vpack.c.bf16 %v1773, %v1772
        %v1776 = vsel %vm868, %v1744, 0
        %v1779 = vsel %vm868, %v1759, 0
        %1781 = vmatprep.subr.bf16.mxu0 0
        %1782 = vmatpush1.bf16.xpose.msra.mxu0 %v1779
        %1783 = vmatprep.subr.bf16.mxu0 0
        %1784 = vmatpush1.bf16.xpose.msra.mxu0 0
        %1785 = vmatprep.subr.bf16.mxu0 0
        %1786 = vmatpush1.bf16.xpose.msra.mxu0 0
        %1787 = vmatprep.subr.bf16.mxu0 0
        %1788 = vmatpush1.bf16.xpose.msra.mxu0 0
        %1789 = vmatprep.subr.bf16.mxu0 0
        %1790 = vmatpush1.bf16.xpose.msra.mxu0 0
        %1791 = vmatprep.subr.bf16.mxu0 0
        %1792 = vmatpush1.bf16.xpose.msra.mxu0 0
        %1793 = vmatprep.subr.bf16.mxu0 0
        %1794 = vmatpush1.bf16.xpose.msra.mxu0 0
        %1795 = vmatprep.subr.bf16.mxu0 0
        %1796 = vmatpush1.bf16.xpose.msra.mxu0 0
        %1797 = vmatprep.subr.bf16.mxu0 0
        %1798 = vmatpush1.bf16.xpose.msra.mxu0 0
        %1799 = vmatprep.subr.bf16.mxu0 0
        %1800 = vmatpush1.bf16.xpose.msra.mxu0 0
        %1801 = vmatprep.subr.bf16.mxu0 0
        %1802 = vmatpush1.bf16.xpose.msra.mxu0 0
        %1803 = vmatprep.subr.bf16.mxu0 0
        %1804 = vmatpush1.bf16.xpose.msra.mxu0 0
        %1805 = vmatprep.subr.bf16.mxu0 0
        %1806 = vmatpush1.bf16.xpose.msra.mxu0 0
        %1807 = vmatprep.subr.bf16.mxu0 0
        %1808 = vmatpush1.bf16.xpose.msra.mxu0 0
        %1809 = vmatprep.subr.bf16.mxu0 0
        %1810 = vmatpush1.bf16.xpose.msra.mxu0 0
        %1811 = vmatprep.subr.bf16.mxu0 0
        %1812 = vmatpush1.bf16.xpose.msra.mxu0 0
        %1813 = vmatprep.mubr.bf16.mxu0 0
        %1814 = vmatmul.mubr.bf16.gmra.mrb[0].mxu0 %v1776
        %v1815 = vpop.f32.mrb[0].mxu0
        %v1816 = vadd.f32 0.0, %v1815
        %v1817 = vpop.f32.mrb[0].mxu0
        %v1818 = vpop.f32.mrb[0].mxu0
        %v1819 = vadd.f32 0.0, %v1818
        %v1820 = vpop.f32.mrb[0].mxu0
        %1821 = vdwg.mxu0
        %v1822 = vsel %vm868, %v1816, -inf
        %1823 = vmax.xlane.f32.xlu0 %v1822
        %v1824 = vpop.xlane.xlu0 %1823
        %v1825 = vsel %vm868, %v1819, -inf
        %1826 = vmax.xlane.f32.xlu0 %v1825
        %v1827 = vpop.xlane.xlu0 %1826
        %v1828 = vsub.f32 %v1816, %v1824
        %v1829 = vsub.f32 %v1819, %v1827
        %v1830 = vmul.f32 %v1828, 1.442695
        %v1831 = vpow.pop %v1830
        %v1832 = vmul.f32 %v1829, 1.442695
        %v1833 = vpow.pop %v1832
        %v1834 = vsel %vm868, %v1831, 0.0
        %1835 = vadd.xlane.f32.xlu0 %v1834
        %v1836 = vpop.xlane.xlu0 %1835
        %v1837 = vsel %vm868, %v1833, 0.0
        %1838 = vadd.xlane.f32.xlu0 %v1837
        %v1839 = vpop.xlane.xlu0 %1838
        %v1840 = vrcp.pop %v1836
        %v1841 = vrcp.pop %v1839
        %v1842 = vmul.f32 %v1831, %v1840
        %v1843 = vmul.f32 %v1833, %v1841
        %v1844 = vpack.c.bf16 %v1843, %v1842
        %v1846 = vsel %vm868, %v1844, 0
        %1848 = vmatprep.subr.bf16.mxu0 0
        %1849 = vmatpush1.bf16.msra.mxu0 %v1774
        %1850 = vmatprep.subr.bf16.mxu0 0
        %1851 = vmatpush1.bf16.msra.mxu0 0
        %1852 = vmatprep.subr.bf16.mxu0 0
        %1853 = vmatpush1.bf16.msra.mxu0 0
        %1854 = vmatprep.subr.bf16.mxu0 0
        %1855 = vmatpush1.bf16.msra.mxu0 0
        %1856 = vmatprep.subr.bf16.mxu0 0
        %1857 = vmatpush1.bf16.msra.mxu0 0
        %1858 = vmatprep.subr.bf16.mxu0 0
        %1859 = vmatpush1.bf16.msra.mxu0 0
        %1860 = vmatprep.subr.bf16.mxu0 0
        %1861 = vmatpush1.bf16.msra.mxu0 0
        %1862 = vmatprep.subr.bf16.mxu0 0
        %1863 = vmatpush1.bf16.msra.mxu0 0
        %1864 = vmatprep.subr.bf16.mxu0 0
        %1865 = vmatpush1.bf16.msra.mxu0 0
        %1866 = vmatprep.subr.bf16.mxu0 0
        %1867 = vmatpush1.bf16.msra.mxu0 0
        %1868 = vmatprep.subr.bf16.mxu0 0
        %1869 = vmatpush1.bf16.msra.mxu0 0
        %1870 = vmatprep.subr.bf16.mxu0 0
        %1871 = vmatpush1.bf16.msra.mxu0 0
        %1872 = vmatprep.subr.bf16.mxu0 0
        %1873 = vmatpush1.bf16.msra.mxu0 0
        %1874 = vmatprep.subr.bf16.mxu0 0
        %1875 = vmatpush1.bf16.msra.mxu0 0
        %1876 = vmatprep.subr.bf16.mxu0 0
        %1877 = vmatpush1.bf16.msra.mxu0 0
        %1878 = vmatprep.subr.bf16.mxu0 0
        %1879 = vmatpush1.bf16.msra.mxu0 0
        %1880 = vmatprep.mubr.bf16.mxu0 0
        %1881 = vmatmul.mubr.bf16.gmra.mrb[0].mxu0 %v1846
        %v1882 = vpop.f32.mrb[0].mxu0
        %v1883 = vadd.f32 0.0, %v1882
        %v1884 = vpop.f32.mrb[0].mxu0
        %v1885 = vpop.f32.mrb[0].mxu0
        %v1886 = vadd.f32 0.0, %v1885
        %v1887 = vpop.f32.mrb[0].mxu0
        %1888 = vdwg.mxu0
        %1889 = vrot.lane.b32.xlu0 %v1570, 112
        %v1890 = vpop.permute.xlu0 %1889
        %1891 = vrot.lane.b32.xlu0 %v1571, 112
        %v1892 = vpop.permute.xlu0 %1891
        %1895 = vrot.lane.b32.xlu0 %v1572, 120
        %v1896 = vpop.permute.xlu0 %1895
        %1897 = vrot.lane.b32.xlu0 %v1573, 120
        %v1898 = vpop.permute.xlu0 %1897
        %v1901 = vsel %vm1582, %v1890, %v1896
        %v1902 = vsel %vm1582, %v1892, %v1898
        %v1903 = vpack.c.bf16 %v1902, %v1901
        %1904 = vrot.lane.b32.xlu0 %v1560, 80
        %v1905 = vpop.permute.xlu0 %1904
        %1906 = vrot.lane.b32.xlu0 %v1561, 80
        %v1907 = vpop.permute.xlu0 %1906
        %1910 = vrot.lane.b32.xlu0 %v1568, 88
        %v1911 = vpop.permute.xlu0 %1910
        %1912 = vrot.lane.b32.xlu0 %v1569, 88
        %v1913 = vpop.permute.xlu0 %1912
        %v1916 = vsel %vm1582, %v1905, %v1911
        %v1917 = vsel %vm1582, %v1907, %v1913
        %v1918 = vpack.c.bf16 %v1917, %v1916
        %1919 = vrot.lane.b32.xlu0 %v1560, 48
        %v1920 = vpop.permute.xlu0 %1919
        %1921 = vrot.lane.b32.xlu0 %v1561, 48
        %v1922 = vpop.permute.xlu0 %1921
        %1925 = vrot.lane.b32.xlu0 %v1568, 56
        %v1926 = vpop.permute.xlu0 %1925
        %1927 = vrot.lane.b32.xlu0 %v1569, 56
        %v1928 = vpop.permute.xlu0 %1927
        %v1931 = vsel %vm1582, %v1920, %v1926
        %v1932 = vsel %vm1582, %v1922, %v1928
        %v1933 = vpack.c.bf16 %v1932, %v1931
        %v1935 = vsel %vm868, %v1903, 0
        %v1938 = vsel %vm868, %v1918, 0
        %1940 = vmatprep.subr.bf16.mxu0 0
        %1941 = vmatpush1.bf16.xpose.msra.mxu0 %v1938
        %1942 = vmatprep.subr.bf16.mxu0 0
        %1943 = vmatpush1.bf16.xpose.msra.mxu0 0
        %1944 = vmatprep.subr.bf16.mxu0 0
        %1945 = vmatpush1.bf16.xpose.msra.mxu0 0
        %1946 = vmatprep.subr.bf16.mxu0 0
        %1947 = vmatpush1.bf16.xpose.msra.mxu0 0
        %1948 = vmatprep.subr.bf16.mxu0 0
        %1949 = vmatpush1.bf16.xpose.msra.mxu0 0
        %1950 = vmatprep.subr.bf16.mxu0 0
        %1951 = vmatpush1.bf16.xpose.msra.mxu0 0
        %1952 = vmatprep.subr.bf16.mxu0 0
        %1953 = vmatpush1.bf16.xpose.msra.mxu0 0
        %1954 = vmatprep.subr.bf16.mxu0 0
        %1955 = vmatpush1.bf16.xpose.msra.mxu0 0
        %1956 = vmatprep.subr.bf16.mxu0 0
        %1957 = vmatpush1.bf16.xpose.msra.mxu0 0
        %1958 = vmatprep.subr.bf16.mxu0 0
        %1959 = vmatpush1.bf16.xpose.msra.mxu0 0
        %1960 = vmatprep.subr.bf16.mxu0 0
        %1961 = vmatpush1.bf16.xpose.msra.mxu0 0
        %1962 = vmatprep.subr.bf16.mxu0 0
        %1963 = vmatpush1.bf16.xpose.msra.mxu0 0
        %1964 = vmatprep.subr.bf16.mxu0 0
        %1965 = vmatpush1.bf16.xpose.msra.mxu0 0
        %1966 = vmatprep.subr.bf16.mxu0 0
        %1967 = vmatpush1.bf16.xpose.msra.mxu0 0
        %1968 = vmatprep.subr.bf16.mxu0 0
        %1969 = vmatpush1.bf16.xpose.msra.mxu0 0
        %1970 = vmatprep.subr.bf16.mxu0 0
        %1971 = vmatpush1.bf16.xpose.msra.mxu0 0
        %1972 = vmatprep.mubr.bf16.mxu0 0
        %1973 = vmatmul.mubr.bf16.gmra.mrb[0].mxu0 %v1935
        %v1974 = vpop.f32.mrb[0].mxu0
        %v1975 = vadd.f32 0.0, %v1974
        %v1976 = vpop.f32.mrb[0].mxu0
        %v1977 = vpop.f32.mrb[0].mxu0
        %v1978 = vadd.f32 0.0, %v1977
        %v1979 = vpop.f32.mrb[0].mxu0
        %1980 = vdwg.mxu0
        %v1981 = vsel %vm868, %v1975, -inf
        %1982 = vmax.xlane.f32.xlu0 %v1981
        %v1983 = vpop.xlane.xlu0 %1982
        %v1984 = vsel %vm868, %v1978, -inf
        %1985 = vmax.xlane.f32.xlu0 %v1984
        %v1986 = vpop.xlane.xlu0 %1985
        %v1987 = vsub.f32 %v1975, %v1983
        %v1988 = vsub.f32 %v1978, %v1986
        %v1989 = vmul.f32 %v1987, 1.442695
        %v1990 = vpow.pop %v1989
        %v1991 = vmul.f32 %v1988, 1.442695
        %v1992 = vpow.pop %v1991
        %v1993 = vsel %vm868, %v1990, 0.0
        %1994 = vadd.xlane.f32.xlu0 %v1993
        %v1995 = vpop.xlane.xlu0 %1994
        %v1996 = vsel %vm868, %v1992, 0.0
        %1997 = vadd.xlane.f32.xlu0 %v1996
        %v1998 = vpop.xlane.xlu0 %1997
        %v1999 = vrcp.pop %v1995
        %v2000 = vrcp.pop %v1998
        %v2001 = vmul.f32 %v1990, %v1999
        %v2002 = vmul.f32 %v1992, %v2000
        %v2003 = vpack.c.bf16 %v2002, %v2001
        %v2005 = vsel %vm868, %v2003, 0
        %2007 = vmatprep.subr.bf16.mxu0 0
        %2008 = vmatpush1.bf16.msra.mxu0 %v1933
        %2009 = vmatprep.subr.bf16.mxu0 0
        %2010 = vmatpush1.bf16.msra.mxu0 0
        %2011 = vmatprep.subr.bf16.mxu0 0
        %2012 = vmatpush1.bf16.msra.mxu0 0
        %2013 = vmatprep.subr.bf16.mxu0 0
        %2014 = vmatpush1.bf16.msra.mxu0 0
        %2015 = vmatprep.subr.bf16.mxu0 0
        %2016 = vmatpush1.bf16.msra.mxu0 0
        %2017 = vmatprep.subr.bf16.mxu0 0
        %2018 = vmatpush1.bf16.msra.mxu0 0
        %2019 = vmatprep.subr.bf16.mxu0 0
        %2020 = vmatpush1.bf16.msra.mxu0 0
        %2021 = vmatprep.subr.bf16.mxu0 0
        %2022 = vmatpush1.bf16.msra.mxu0 0
        %2023 = vmatprep.subr.bf16.mxu0 0
        %2024 = vmatpush1.bf16.msra.mxu0 0
        %2025 = vmatprep.subr.bf16.mxu0 0
        %2026 = vmatpush1.bf16.msra.mxu0 0
        %2027 = vmatprep.subr.bf16.mxu0 0
        %2028 = vmatpush1.bf16.msra.mxu0 0
        %2029 = vmatprep.subr.bf16.mxu0 0
        %2030 = vmatpush1.bf16.msra.mxu0 0
        %2031 = vmatprep.subr.bf16.mxu0 0
        %2032 = vmatpush1.bf16.msra.mxu0 0
        %2033 = vmatprep.subr.bf16.mxu0 0
        %2034 = vmatpush1.bf16.msra.mxu0 0
        %2035 = vmatprep.subr.bf16.mxu0 0
        %2036 = vmatpush1.bf16.msra.mxu0 0
        %2037 = vmatprep.subr.bf16.mxu0 0
        %2038 = vmatpush1.bf16.msra.mxu0 0
        %2039 = vmatprep.mubr.bf16.mxu0 0
        %2040 = vmatmul.mubr.bf16.gmra.mrb[0].mxu0 %v2005
        %v2041 = vpop.f32.mrb[0].mxu0
        %v2042 = vadd.f32 0.0, %v2041
        %v2043 = vpop.f32.mrb[0].mxu0
        %v2044 = vpop.f32.mrb[0].mxu0
        %v2045 = vadd.f32 0.0, %v2044
        %v2046 = vpop.f32.mrb[0].mxu0
        %2047 = vdwg.mxu0
        %2048 = vrot.lane.b32.xlu0 %v1570, 104
        %v2049 = vpop.permute.xlu0 %2048
        %2050 = vrot.lane.b32.xlu0 %v1571, 104
        %v2051 = vpop.permute.xlu0 %2050
        %2054 = vrot.lane.b32.xlu0 %v1572, 112
        %v2055 = vpop.permute.xlu0 %2054
        %2056 = vrot.lane.b32.xlu0 %v1573, 112
        %v2057 = vpop.permute.xlu0 %2056
        %v2060 = vsel %vm1582, %v2049, %v2055
        %v2061 = vsel %vm1582, %v2051, %v2057
        %v2062 = vpack.c.bf16 %v2061, %v2060
        %2063 = vrot.lane.b32.xlu0 %v1560, 72
        %v2064 = vpop.permute.xlu0 %2063
        %2065 = vrot.lane.b32.xlu0 %v1561, 72
        %v2066 = vpop.permute.xlu0 %2065
        %2069 = vrot.lane.b32.xlu0 %v1568, 80
        %v2070 = vpop.permute.xlu0 %2069
        %2071 = vrot.lane.b32.xlu0 %v1569, 80
        %v2072 = vpop.permute.xlu0 %2071
        %v2075 = vsel %vm1582, %v2064, %v2070
        %v2076 = vsel %vm1582, %v2066, %v2072
        %v2077 = vpack.c.bf16 %v2076, %v2075
        %2078 = vrot.lane.b32.xlu0 %v1560, 40
        %v2079 = vpop.permute.xlu0 %2078
        %2080 = vrot.lane.b32.xlu0 %v1561, 40
        %v2081 = vpop.permute.xlu0 %2080
        %2084 = vrot.lane.b32.xlu0 %v1568, 48
        %v2085 = vpop.permute.xlu0 %2084
        %2086 = vrot.lane.b32.xlu0 %v1569, 48
        %v2087 = vpop.permute.xlu0 %2086
        %v2090 = vsel %vm1582, %v2079, %v2085
        %v2091 = vsel %vm1582, %v2081, %v2087
        %v2092 = vpack.c.bf16 %v2091, %v2090
        %v2094 = vsel %vm868, %v2062, 0
        %v2097 = vsel %vm868, %v2077, 0
        %2099 = vmatprep.subr.bf16.mxu0 0
        %2100 = vmatpush1.bf16.xpose.msra.mxu0 %v2097
        %2101 = vmatprep.subr.bf16.mxu0 0
        %2102 = vmatpush1.bf16.xpose.msra.mxu0 0
        %2103 = vmatprep.subr.bf16.mxu0 0
        %2104 = vmatpush1.bf16.xpose.msra.mxu0 0
        %2105 = vmatprep.subr.bf16.mxu0 0
        %2106 = vmatpush1.bf16.xpose.msra.mxu0 0
        %2107 = vmatprep.subr.bf16.mxu0 0
        %2108 = vmatpush1.bf16.xpose.msra.mxu0 0
        %2109 = vmatprep.subr.bf16.mxu0 0
        %2110 = vmatpush1.bf16.xpose.msra.mxu0 0
        %2111 = vmatprep.subr.bf16.mxu0 0
        %2112 = vmatpush1.bf16.xpose.msra.mxu0 0
        %2113 = vmatprep.subr.bf16.mxu0 0
        %2114 = vmatpush1.bf16.xpose.msra.mxu0 0
        %2115 = vmatprep.subr.bf16.mxu0 0
        %2116 = vmatpush1.bf16.xpose.msra.mxu0 0
        %2117 = vmatprep.subr.bf16.mxu0 0
        %2118 = vmatpush1.bf16.xpose.msra.mxu0 0
        %2119 = vmatprep.subr.bf16.mxu0 0
        %2120 = vmatpush1.bf16.xpose.msra.mxu0 0
        %2121 = vmatprep.subr.bf16.mxu0 0
        %2122 = vmatpush1.bf16.xpose.msra.mxu0 0
        %2123 = vmatprep.subr.bf16.mxu0 0
        %2124 = vmatpush1.bf16.xpose.msra.mxu0 0
        %2125 = vmatprep.subr.bf16.mxu0 0
        %2126 = vmatpush1.bf16.xpose.msra.mxu0 0
        %2127 = vmatprep.subr.bf16.mxu0 0
        %2128 = vmatpush1.bf16.xpose.msra.mxu0 0
        %2129 = vmatprep.subr.bf16.mxu0 0
        %2130 = vmatpush1.bf16.xpose.msra.mxu0 0
        %2131 = vmatprep.mubr.bf16.mxu0 0
        %2132 = vmatmul.mubr.bf16.gmra.mrb[0].mxu0 %v2094
        %v2133 = vpop.f32.mrb[0].mxu0
        %v2134 = vadd.f32 0.0, %v2133
        %v2135 = vpop.f32.mrb[0].mxu0
        %v2136 = vpop.f32.mrb[0].mxu0
        %v2137 = vadd.f32 0.0, %v2136
        %v2138 = vpop.f32.mrb[0].mxu0
        %2139 = vdwg.mxu0
        %v2140 = vsel %vm868, %v2134, -inf
        %2141 = vmax.xlane.f32.xlu0 %v2140
        %v2142 = vpop.xlane.xlu0 %2141
        %v2143 = vsel %vm868, %v2137, -inf
        %2144 = vmax.xlane.f32.xlu0 %v2143
        %v2145 = vpop.xlane.xlu0 %2144
        %v2146 = vsub.f32 %v2134, %v2142
        %v2147 = vsub.f32 %v2137, %v2145
        %v2148 = vmul.f32 %v2146, 1.442695
        %v2149 = vpow.pop %v2148
        %v2150 = vmul.f32 %v2147, 1.442695
        %v2151 = vpow.pop %v2150
        %v2152 = vsel %vm868, %v2149, 0.0
        %2153 = vadd.xlane.f32.xlu0 %v2152
        %v2154 = vpop.xlane.xlu0 %2153
        %v2155 = vsel %vm868, %v2151, 0.0
        %2156 = vadd.xlane.f32.xlu0 %v2155
        %v2157 = vpop.xlane.xlu0 %2156
        %v2158 = vrcp.pop %v2154
        %v2159 = vrcp.pop %v2157
        %v2160 = vmul.f32 %v2149, %v2158
        %v2161 = vmul.f32 %v2151, %v2159
        %v2162 = vpack.c.bf16 %v2161, %v2160
        %v2164 = vsel %vm868, %v2162, 0
        %2166 = vmatprep.subr.bf16.mxu0 0
        %2167 = vmatpush1.bf16.msra.mxu0 %v2092
        %2168 = vmatprep.subr.bf16.mxu0 0
        %2169 = vmatpush1.bf16.msra.mxu0 0
        %2170 = vmatprep.subr.bf16.mxu0 0
        %2171 = vmatpush1.bf16.msra.mxu0 0
        %2172 = vmatprep.subr.bf16.mxu0 0
        %2173 = vmatpush1.bf16.msra.mxu0 0
        %2174 = vmatprep.subr.bf16.mxu0 0
        %2175 = vmatpush1.bf16.msra.mxu0 0
        %2176 = vmatprep.subr.bf16.mxu0 0
        %2177 = vmatpush1.bf16.msra.mxu0 0
        %2178 = vmatprep.subr.bf16.mxu0 0
        %2179 = vmatpush1.bf16.msra.mxu0 0
        %2180 = vmatprep.subr.bf16.mxu0 0
        %2181 = vmatpush1.bf16.msra.mxu0 0
        %2182 = vmatprep.subr.bf16.mxu0 0
        %2183 = vmatpush1.bf16.msra.mxu0 0
        %2184 = vmatprep.subr.bf16.mxu0 0
        %2185 = vmatpush1.bf16.msra.mxu0 0
        %2186 = vmatprep.subr.bf16.mxu0 0
        %2187 = vmatpush1.bf16.msra.mxu0 0
        %2188 = vmatprep.subr.bf16.mxu0 0
        %2189 = vmatpush1.bf16.msra.mxu0 0
        %2190 = vmatprep.subr.bf16.mxu0 0
        %2191 = vmatpush1.bf16.msra.mxu0 0
        %2192 = vmatprep.subr.bf16.mxu0 0
        %2193 = vmatpush1.bf16.msra.mxu0 0
        %2194 = vmatprep.subr.bf16.mxu0 0
        %2195 = vmatpush1.bf16.msra.mxu0 0
        %2196 = vmatprep.subr.bf16.mxu0 0
        %2197 = vmatpush1.bf16.msra.mxu0 0
        %2198 = vmatprep.mubr.bf16.mxu0 0
        %2199 = vmatmul.mubr.bf16.gmra.mrb[0].mxu0 %v2164
        %v2200 = vpop.f32.mrb[0].mxu0
        %v2201 = vadd.f32 0.0, %v2200
        %v2202 = vpop.f32.mrb[0].mxu0
        %v2203 = vpop.f32.mrb[0].mxu0
        %v2204 = vadd.f32 0.0, %v2203
        %v2205 = vpop.f32.mrb[0].mxu0
        %2206 = vdwg.mxu0
        %2209 = vrot.lane.b32.xlu0 %v1883, 8
        %v2210 = vpop.permute.xlu0 %2209
        %2211 = vrot.lane.b32.xlu0 %v1886, 8
        %v2212 = vpop.permute.xlu0 %2211
        %2217 = vrot.lane.b32.xlu0 %v2042, 16
        %v2218 = vpop.permute.xlu0 %2217
        %2219 = vrot.lane.b32.xlu0 %v2045, 16
        %v2220 = vpop.permute.xlu0 %2219
        %2225 = vrot.lane.b32.xlu0 %v2201, 24
        %v2226 = vpop.permute.xlu0 %2225
        %2227 = vrot.lane.b32.xlu0 %v2204, 24
        %v2228 = vpop.permute.xlu0 %2227
        %v2231 = vsel %vm1582, %v1728, %v2210
        %v2232 = vsel %vm1582, %v1731, %v2212
        %v2233 = vsel %vm868, %v2231, %v2218
        %v2234 = vsel %vm868, %v2232, %v2220
        %vm2235 = vcmask 195584
        %v2236 = vsel %vm2235, %v2233, %v2226
        %v2237 = vsel %vm2235, %v2234, %v2228
        %2240 = vrot.lane.b32.xlu0 %v1728, 120
        %v2241 = vpop.permute.xlu0 %2240
        %2242 = vrot.lane.b32.xlu0 %v1731, 120
        %v2243 = vpop.permute.xlu0 %2242
        %2246 = vrot.lane.b32.xlu0 %v2042, 8
        %v2247 = vpop.permute.xlu0 %2246
        %2248 = vrot.lane.b32.xlu0 %v2045, 8
        %v2249 = vpop.permute.xlu0 %2248
        %2252 = vrot.lane.b32.xlu0 %v2201, 16
        %v2253 = vpop.permute.xlu0 %2252
        %2254 = vrot.lane.b32.xlu0 %v2204, 16
        %v2255 = vpop.permute.xlu0 %2254
        %v2258 = vsel %vm1582, %v2241, %v1883
        %v2259 = vsel %vm1582, %v2243, %v1886
        %v2260 = vsel %vm868, %v2258, %v2247
        %v2261 = vsel %vm868, %v2259, %v2249
        %v2262 = vsel %vm2235, %v2260, %v2253
        %v2263 = vsel %vm2235, %v2261, %v2255
        %v2264 = vld [vmem:[%s12] sm:$0xf]
        %v2265 = vld [vmem:[%s12 + $0x4] sm:$0xf]
        %v2266 = vld [vmem:[%s12 + $0x8] sm:$0xf]
        %v2267 = vld [vmem:[%s12 + $0xc] sm:$0xf]
        %v2268 = vld [vmem:[%s13] sm:$0xf]
        %v2269 = vld [vmem:[%s13 + $0x4] sm:$0xf]
        %v2270 = vld [vmem:[%s13 + $0x8] sm:$0xf]
        %v2271 = vld [vmem:[%s13 + $0xc] sm:$0xf]
        %v2272 = vld [vmem:[%s14] sm:$0x1]
        %v2273 = vld [vmem:[%s15] sm:$0x1]
        %v2274 = vpack.c.bf16 %v2237, %v2236
        %v2279 = vunpack.c.l.b16 %v2264
        %v2280 = vunpack.c.l.b16 %v2265
        %v2281 = vunpack.c.l.b16 %v2266
        %v2282 = vunpack.c.l.b16 %v2267
        %v2283 = vpack.c.b16 %v2280, %v2279
        %v2284 = vpack.c.b16 %v2282, %v2281
        %v2288 = vsel %vm1192, %v2274, 0
        %2290 = vmatprep.subr.bf16.mxu0 0
        %2291 = vmatpush1.bf16.msra.mxu0 %v2283
        %2292 = vmatprep.subr.bf16.mxu0 0
        %2293 = vmatpush1.bf16.msra.mxu0 %v2284
        %2294 = vmatprep.subr.bf16.mxu0 0
        %2295 = vmatpush1.bf16.msra.mxu0 0
        %2296 = vmatprep.subr.bf16.mxu0 0
        %2297 = vmatpush1.bf16.msra.mxu0 0
        %2298 = vmatprep.subr.bf16.mxu0 0
        %2299 = vmatpush1.bf16.msra.mxu0 0
        %2300 = vmatprep.subr.bf16.mxu0 0
        %2301 = vmatpush1.bf16.msra.mxu0 0
        %2302 = vmatprep.subr.bf16.mxu0 0
        %2303 = vmatpush1.bf16.msra.mxu0 0
        %2304 = vmatprep.subr.bf16.mxu0 0
        %2305 = vmatpush1.bf16.msra.mxu0 0
        %2306 = vmatprep.subr.bf16.mxu0 0
        %2307 = vmatpush1.bf16.msra.mxu0 0
        %2308 = vmatprep.subr.bf16.mxu0 0
        %2309 = vmatpush1.bf16.msra.mxu0 0
        %2310 = vmatprep.subr.bf16.mxu0 0
        %2311 = vmatpush1.bf16.msra.mxu0 0
        %2312 = vmatprep.subr.bf16.mxu0 0
        %2313 = vmatpush1.bf16.msra.mxu0 0
        %2314 = vmatprep.subr.bf16.mxu0 0
        %2315 = vmatpush1.bf16.msra.mxu0 0
        %2316 = vmatprep.subr.bf16.mxu0 0
        %2317 = vmatpush1.bf16.msra.mxu0 0
        %2318 = vmatprep.subr.bf16.mxu0 0
        %2319 = vmatpush1.bf16.msra.mxu0 0
        %2320 = vmatprep.subr.bf16.mxu0 0
        %2321 = vmatpush1.bf16.msra.mxu0 0
        %2322 = vmatprep.mubr.bf16.mxu0 0
        %2323 = vmatmul.mubr.bf16.gmra.mrb[0].mxu0 %v2288
        %v2324 = vpop.f32.mrb[0].mxu0
        %v2325 = vadd.f32 0.0, %v2324
        %v2326 = vpop.f32.mrb[0].mxu0
        %v2327 = vpop.f32.mrb[0].mxu0
        %v2328 = vadd.f32 0.0, %v2327
        %v2329 = vpop.f32.mrb[0].mxu0
        %2330 = vdwg.mxu0
        %v2331 = vpack.c.bf16 %v2263, %v2262
        %v2336 = vunpack.c.l.b16 %v2268
        %v2337 = vunpack.c.l.b16 %v2269
        %v2338 = vunpack.c.l.b16 %v2270
        %v2339 = vunpack.c.l.b16 %v2271
        %v2340 = vpack.c.b16 %v2337, %v2336
        %v2341 = vpack.c.b16 %v2339, %v2338
        %v2345 = vsel %vm1192, %v2331, 0
        %2347 = vmatprep.subr.bf16.mxu0 0
        %2348 = vmatpush1.bf16.msra.mxu0 %v2340
        %2349 = vmatprep.subr.bf16.mxu0 0
        %2350 = vmatpush1.bf16.msra.mxu0 %v2341
        %2351 = vmatprep.subr.bf16.mxu0 0
        %2352 = vmatpush1.bf16.msra.mxu0 0
        %2353 = vmatprep.subr.bf16.mxu0 0
        %2354 = vmatpush1.bf16.msra.mxu0 0
        %2355 = vmatprep.subr.bf16.mxu0 0
        %2356 = vmatpush1.bf16.msra.mxu0 0
        %2357 = vmatprep.subr.bf16.mxu0 0
        %2358 = vmatpush1.bf16.msra.mxu0 0
        %2359 = vmatprep.subr.bf16.mxu0 0
        %2360 = vmatpush1.bf16.msra.mxu0 0
        %2361 = vmatprep.subr.bf16.mxu0 0
        %2362 = vmatpush1.bf16.msra.mxu0 0
        %2363 = vmatprep.subr.bf16.mxu0 0
        %2364 = vmatpush1.bf16.msra.mxu0 0
        %2365 = vmatprep.subr.bf16.mxu0 0
        %2366 = vmatpush1.bf16.msra.mxu0 0
        %2367 = vmatprep.subr.bf16.mxu0 0
        %2368 = vmatpush1.bf16.msra.mxu0 0
        %2369 = vmatprep.subr.bf16.mxu0 0
        %2370 = vmatpush1.bf16.msra.mxu0 0
        %2371 = vmatprep.subr.bf16.mxu0 0
        %2372 = vmatpush1.bf16.msra.mxu0 0
        %2373 = vmatprep.subr.bf16.mxu0 0
        %2374 = vmatpush1.bf16.msra.mxu0 0
        %2375 = vmatprep.subr.bf16.mxu0 0
        %2376 = vmatpush1.bf16.msra.mxu0 0
        %2377 = vmatprep.subr.bf16.mxu0 0
        %2378 = vmatpush1.bf16.msra.mxu0 0
        %2379 = vmatprep.mubr.bf16.mxu0 0
        %2380 = vmatmul.mubr.bf16.gmra.mrb[0].mxu0 %v2345
        %v2381 = vpop.f32.mrb[0].mxu0
        %v2382 = vadd.f32 0.0, %v2381
        %v2383 = vpop.f32.mrb[0].mxu0
        %v2384 = vpop.f32.mrb[0].mxu0
        %v2385 = vadd.f32 0.0, %v2384
        %v2386 = vpop.f32.mrb[0].mxu0
        %2387 = vdwg.mxu0
        %v2388 = vadd.f32 %v2236, %v2262
        %v2389 = vadd.f32 %v2237, %v2263
        %v2390 = vpack.c.bf16 %v2389, %v2388
        %v2391 = vadd.bf16 %v2264, %v2268
        %v2392 = vadd.bf16 %v2265, %v2269
        %v2393 = vadd.bf16 %v2266, %v2270
        %v2394 = vadd.bf16 %v2267, %v2271
        %v2399 = vunpack.c.l.b16 %v2391
        %v2400 = vunpack.c.l.b16 %v2392
        %v2401 = vunpack.c.l.b16 %v2393
        %v2402 = vunpack.c.l.b16 %v2394
        %v2403 = vpack.c.b16 %v2400, %v2399
        %v2404 = vpack.c.b16 %v2402, %v2401
        %v2408 = vsel %vm1192, %v2390, 0
        %2410 = vmatprep.subr.bf16.mxu0 0
        %2411 = vmatpush1.bf16.msra.mxu0 %v2403
        %2412 = vmatprep.subr.bf16.mxu0 0
        %2413 = vmatpush1.bf16.msra.mxu0 %v2404
        %2414 = vmatprep.subr.bf16.mxu0 0
        %2415 = vmatpush1.bf16.msra.mxu0 0
        %2416 = vmatprep.subr.bf16.mxu0 0
        %2417 = vmatpush1.bf16.msra.mxu0 0
        %2418 = vmatprep.subr.bf16.mxu0 0
        %2419 = vmatpush1.bf16.msra.mxu0 0
        %2420 = vmatprep.subr.bf16.mxu0 0
        %2421 = vmatpush1.bf16.msra.mxu0 0
        %2422 = vmatprep.subr.bf16.mxu0 0
        %2423 = vmatpush1.bf16.msra.mxu0 0
        %2424 = vmatprep.subr.bf16.mxu0 0
        %2425 = vmatpush1.bf16.msra.mxu0 0
        %2426 = vmatprep.subr.bf16.mxu0 0
        %2427 = vmatpush1.bf16.msra.mxu0 0
        %2428 = vmatprep.subr.bf16.mxu0 0
        %2429 = vmatpush1.bf16.msra.mxu0 0
        %2430 = vmatprep.subr.bf16.mxu0 0
        %2431 = vmatpush1.bf16.msra.mxu0 0
        %2432 = vmatprep.subr.bf16.mxu0 0
        %2433 = vmatpush1.bf16.msra.mxu0 0
        %2434 = vmatprep.subr.bf16.mxu0 0
        %2435 = vmatpush1.bf16.msra.mxu0 0
        %2436 = vmatprep.subr.bf16.mxu0 0
        %2437 = vmatpush1.bf16.msra.mxu0 0
        %2438 = vmatprep.subr.bf16.mxu0 0
        %2439 = vmatpush1.bf16.msra.mxu0 0
        %2440 = vmatprep.subr.bf16.mxu0 0
        %2441 = vmatpush1.bf16.msra.mxu0 0
        %2442 = vmatprep.mubr.bf16.mxu0 0
        %2443 = vmatmul.mubr.bf16.gmra.mrb[0].mxu0 %v2408
        %v2444 = vpop.f32.mrb[0].mxu0
        %v2445 = vadd.f32 0.0, %v2444
        %v2446 = vpop.f32.mrb[0].mxu0
        %v2447 = vpop.f32.mrb[0].mxu0
        %v2448 = vadd.f32 0.0, %v2447
        %v2449 = vpop.f32.mrb[0].mxu0
        %2450 = vdwg.mxu0
        %v2451 = vsub.f32 %v2325, %v2382
        %v2452 = vsub.f32 %v2328, %v2385
        %v2453 = vsub.f32 %v2445, %v2325
        %v2454 = vsub.f32 %v2448, %v2328
        %v2455 = vsub.f32 %v2453, %v2382
        %v2456 = vsub.f32 %v2454, %v2385
        %v2458 = vlaneseq
        %v2459 = vshrl.u32 %v2458, 7
        %v2460 = vsub.s32 0, %v2459
        %v2461 = vrot.slane %v2272, %v2460
        %v2463 = vadd.f32 %v2451, %v2461
        %v2464 = vadd.f32 %v2452, %v2461
        %v2466 = vlaneseq
        %v2467 = vshrl.u32 %v2466, 7
        %v2468 = vsub.s32 0, %v2467
        %v2469 = vrot.slane %v2273, %v2468
        %v2471 = vadd.f32 %v2455, %v2469
        %v2472 = vadd.f32 %v2456, %v2469
        %v2473 = vadd.f32 %v1333, %v2463
        %v2474 = vadd.f32 %v1334, %v2464
        %v2475 = vadd.f32 %v1337, %v2471
        %v2476 = vadd.f32 %v1338, %v2472
        %v2477 = vmul.f32 %v2473, %v2473
        %v2478 = vmul.f32 %v2474, %v2474
        %v2479 = vmul.f32 %v2475, %v2475
        %v2480 = vmul.f32 %v2476, %v2476
        %v2481 = vadd.f32 %v2477, %v2479
        %v2482 = vadd.f32 %v2478, %v2480
        %v2483 = vsel %vm1192, %v2481, 0.0
        %2484 = vadd.xlane.f32.xlu0 %v2483
        %v2485 = vpop.xlane.xlu0 %2484
        %v2486 = vsel %vm1192, %v2482, 0.0
        %2487 = vadd.xlane.f32.xlu0 %v2486
        %v2488 = vpop.xlane.xlu0 %2487
        %v2489 = vmul.f32 %v2485, %v1199
        %v2490 = vmul.f32 %v2488, %v1199
        %v2491 = vadd.f32 %v2489, 1e-06
        %v2492 = vadd.f32 %v2490, 1e-06
        %v2493 = vrsqrt.pop %v2491
        %v2494 = vrsqrt.pop %v2492
        %v2495 = vmul.f32 %v2473, %v2493
        %v2496 = vmul.f32 %v2474, %v2494
        %v2497 = vmul.f32 %v2475, %v2493
        %v2498 = vmul.f32 %v2476, %v2494
        %v2499 = vld [vmem:[%s16] sm:$0xf]
        %v2500 = vld [vmem:[%s16 + $0x4] sm:$0xf]
        %v2501 = vld [vmem:[%s16 + $0x8] sm:$0xf]
        %v2502 = vld [vmem:[%s16 + $0xc] sm:$0xf]
        %v2503 = vld [vmem:[%s17] sm:$0xf]
        %v2504 = vld [vmem:[%s17 + $0x4] sm:$0xf]
        %v2505 = vld [vmem:[%s17 + $0x8] sm:$0xf]
        %v2506 = vld [vmem:[%s17 + $0xc] sm:$0xf]
        %v2507 = vld [vmem:[%s18] sm:$0x1]
        %v2508 = vld [vmem:[%s19] sm:$0x1]
        %v2509 = vpack.c.bf16 %v2496, %v2495
        %v2514 = vunpack.c.l.b16 %v2499
        %v2515 = vunpack.c.l.b16 %v2500
        %v2516 = vunpack.c.l.b16 %v2501
        %v2517 = vunpack.c.l.b16 %v2502
        %v2518 = vpack.c.b16 %v2515, %v2514
        %v2519 = vpack.c.b16 %v2517, %v2516
        %v2523 = vsel %vm1192, %v2509, 0
        %2525 = vmatprep.subr.bf16.mxu0 0
        %2526 = vmatpush1.bf16.msra.mxu0 %v2518
        %2527 = vmatprep.subr.bf16.mxu0 0
        %2528 = vmatpush1.bf16.msra.mxu0 %v2519
        %2529 = vmatprep.subr.bf16.mxu0 0
        %2530 = vmatpush1.bf16.msra.mxu0 0
        %2531 = vmatprep.subr.bf16.mxu0 0
        %2532 = vmatpush1.bf16.msra.mxu0 0
        %2533 = vmatprep.subr.bf16.mxu0 0
        %2534 = vmatpush1.bf16.msra.mxu0 0
        %2535 = vmatprep.subr.bf16.mxu0 0
        %2536 = vmatpush1.bf16.msra.mxu0 0
        %2537 = vmatprep.subr.bf16.mxu0 0
        %2538 = vmatpush1.bf16.msra.mxu0 0
        %2539 = vmatprep.subr.bf16.mxu0 0
        %2540 = vmatpush1.bf16.msra.mxu0 0
        %2541 = vmatprep.subr.bf16.mxu0 0
        %2542 = vmatpush1.bf16.msra.mxu0 0
        %2543 = vmatprep.subr.bf16.mxu0 0
        %2544 = vmatpush1.bf16.msra.mxu0 0
        %2545 = vmatprep.subr.bf16.mxu0 0
        %2546 = vmatpush1.bf16.msra.mxu0 0
        %2547 = vmatprep.subr.bf16.mxu0 0
        %2548 = vmatpush1.bf16.msra.mxu0 0
        %2549 = vmatprep.subr.bf16.mxu0 0
        %2550 = vmatpush1.bf16.msra.mxu0 0
        %2551 = vmatprep.subr.bf16.mxu0 0
        %2552 = vmatpush1.bf16.msra.mxu0 0
        %2553 = vmatprep.subr.bf16.mxu0 0
        %2554 = vmatpush1.bf16.msra.mxu0 0
        %2555 = vmatprep.subr.bf16.mxu0 0
        %2556 = vmatpush1.bf16.msra.mxu0 0
        %2557 = vmatprep.mubr.bf16.mxu0 0
        %2558 = vmatmul.mubr.bf16.gmra.mrb[0].mxu0 %v2523
        %v2559 = vpop.f32.mrb[0].mxu0
        %v2560 = vadd.f32 0.0, %v2559
        %v2561 = vpop.f32.mrb[0].mxu0
        %v2562 = vpop.f32.mrb[0].mxu0
        %v2563 = vadd.f32 0.0, %v2562
        %v2564 = vpop.f32.mrb[0].mxu0
        %2565 = vdwg.mxu0
        %v2566 = vpack.c.bf16 %v2498, %v2497
        %v2571 = vunpack.c.l.b16 %v2503
        %v2572 = vunpack.c.l.b16 %v2504
        %v2573 = vunpack.c.l.b16 %v2505
        %v2574 = vunpack.c.l.b16 %v2506
        %v2575 = vpack.c.b16 %v2572, %v2571
        %v2576 = vpack.c.b16 %v2574, %v2573
        %v2580 = vsel %vm1192, %v2566, 0
        %2582 = vmatprep.subr.bf16.mxu0 0
        %2583 = vmatpush1.bf16.msra.mxu0 %v2575
        %2584 = vmatprep.subr.bf16.mxu0 0
        %2585 = vmatpush1.bf16.msra.mxu0 %v2576
        %2586 = vmatprep.subr.bf16.mxu0 0
        %2587 = vmatpush1.bf16.msra.mxu0 0
        %2588 = vmatprep.subr.bf16.mxu0 0
        %2589 = vmatpush1.bf16.msra.mxu0 0
        %2590 = vmatprep.subr.bf16.mxu0 0
        %2591 = vmatpush1.bf16.msra.mxu0 0
        %2592 = vmatprep.subr.bf16.mxu0 0
        %2593 = vmatpush1.bf16.msra.mxu0 0
        %2594 = vmatprep.subr.bf16.mxu0 0
        %2595 = vmatpush1.bf16.msra.mxu0 0
        %2596 = vmatprep.subr.bf16.mxu0 0
        %2597 = vmatpush1.bf16.msra.mxu0 0
        %2598 = vmatprep.subr.bf16.mxu0 0
        %2599 = vmatpush1.bf16.msra.mxu0 0
        %2600 = vmatprep.subr.bf16.mxu0 0
        %2601 = vmatpush1.bf16.msra.mxu0 0
        %2602 = vmatprep.subr.bf16.mxu0 0
        %2603 = vmatpush1.bf16.msra.mxu0 0
        %2604 = vmatprep.subr.bf16.mxu0 0
        %2605 = vmatpush1.bf16.msra.mxu0 0
        %2606 = vmatprep.subr.bf16.mxu0 0
        %2607 = vmatpush1.bf16.msra.mxu0 0
        %2608 = vmatprep.subr.bf16.mxu0 0
        %2609 = vmatpush1.bf16.msra.mxu0 0
        %2610 = vmatprep.subr.bf16.mxu0 0
        %2611 = vmatpush1.bf16.msra.mxu0 0
        %2612 = vmatprep.subr.bf16.mxu0 0
        %2613 = vmatpush1.bf16.msra.mxu0 0
        %2614 = vmatprep.mubr.bf16.mxu0 0
        %2615 = vmatmul.mubr.bf16.gmra.mrb[0].mxu0 %v2580
        %v2616 = vpop.f32.mrb[0].mxu0
        %v2617 = vadd.f32 0.0, %v2616
        %v2618 = vpop.f32.mrb[0].mxu0
        %v2619 = vpop.f32.mrb[0].mxu0
        %v2620 = vadd.f32 0.0, %v2619
        %v2621 = vpop.f32.mrb[0].mxu0
        %2622 = vdwg.mxu0
        %v2623 = vadd.f32 %v2495, %v2497
        %v2624 = vadd.f32 %v2496, %v2498
        %v2625 = vpack.c.bf16 %v2624, %v2623
        %v2626 = vadd.bf16 %v2499, %v2503
        %v2627 = vadd.bf16 %v2500, %v2504
        %v2628 = vadd.bf16 %v2501, %v2505
        %v2629 = vadd.bf16 %v2502, %v2506
        %v2634 = vunpack.c.l.b16 %v2626
        %v2635 = vunpack.c.l.b16 %v2627
        %v2636 = vunpack.c.l.b16 %v2628
        %v2637 = vunpack.c.l.b16 %v2629
        %v2638 = vpack.c.b16 %v2635, %v2634
        %v2639 = vpack.c.b16 %v2637, %v2636
        %v2643 = vsel %vm1192, %v2625, 0
        %2645 = vmatprep.subr.bf16.mxu0 0
        %2646 = vmatpush1.bf16.msra.mxu0 %v2638
        %2647 = vmatprep.subr.bf16.mxu0 0
        %2648 = vmatpush1.bf16.msra.mxu0 %v2639
        %2649 = vmatprep.subr.bf16.mxu0 0
        %2650 = vmatpush1.bf16.msra.mxu0 0
        %2651 = vmatprep.subr.bf16.mxu0 0
        %2652 = vmatpush1.bf16.msra.mxu0 0
        %2653 = vmatprep.subr.bf16.mxu0 0
        %2654 = vmatpush1.bf16.msra.mxu0 0
        %2655 = vmatprep.subr.bf16.mxu0 0
        %2656 = vmatpush1.bf16.msra.mxu0 0
        %2657 = vmatprep.subr.bf16.mxu0 0
        %2658 = vmatpush1.bf16.msra.mxu0 0
        %2659 = vmatprep.subr.bf16.mxu0 0
        %2660 = vmatpush1.bf16.msra.mxu0 0
        %2661 = vmatprep.subr.bf16.mxu0 0
        %2662 = vmatpush1.bf16.msra.mxu0 0
        %2663 = vmatprep.subr.bf16.mxu0 0
        %2664 = vmatpush1.bf16.msra.mxu0 0
        %2665 = vmatprep.subr.bf16.mxu0 0
        %2666 = vmatpush1.bf16.msra.mxu0 0
        %2667 = vmatprep.subr.bf16.mxu0 0
        %2668 = vmatpush1.bf16.msra.mxu0 0
        %2669 = vmatprep.subr.bf16.mxu0 0
        %2670 = vmatpush1.bf16.msra.mxu0 0
        %2671 = vmatprep.subr.bf16.mxu0 0
        %2672 = vmatpush1.bf16.msra.mxu0 0
        %2673 = vmatprep.subr.bf16.mxu0 0
        %2674 = vmatpush1.bf16.msra.mxu0 0
        %2675 = vmatprep.subr.bf16.mxu0 0
        %2676 = vmatpush1.bf16.msra.mxu0 0
        %2677 = vmatprep.mubr.bf16.mxu0 0
        %2678 = vmatmul.mubr.bf16.gmra.mrb[0].mxu0 %v2643
        %v2679 = vpop.f32.mrb[0].mxu0
        %v2680 = vadd.f32 0.0, %v2679
        %v2681 = vpop.f32.mrb[0].mxu0
        %v2682 = vpop.f32.mrb[0].mxu0
        %v2683 = vadd.f32 0.0, %v2682
        %v2684 = vpop.f32.mrb[0].mxu0
        %2685 = vdwg.mxu0
        %v2686 = vsub.f32 %v2560, %v2617
        %v2687 = vsub.f32 %v2563, %v2620
        %v2688 = vsub.f32 %v2680, %v2560
        %v2689 = vsub.f32 %v2683, %v2563
        %v2690 = vsub.f32 %v2688, %v2617
        %v2691 = vsub.f32 %v2689, %v2620
        %v2693 = vlaneseq
        %v2694 = vshrl.u32 %v2693, 7
        %v2695 = vsub.s32 0, %v2694
        %v2696 = vrot.slane %v2507, %v2695
        %v2698 = vadd.f32 %v2686, %v2696
        %v2699 = vadd.f32 %v2687, %v2696
        %v2701 = vlaneseq
        %v2702 = vshrl.u32 %v2701, 7
        %v2703 = vsub.s32 0, %v2702
        %v2704 = vrot.slane %v2508, %v2703
        %v2706 = vadd.f32 %v2690, %v2704
        %v2707 = vadd.f32 %v2691, %v2704
        %v2708 = vmul.f32 %v2698, %v2698
        %v2709 = vmul.f32 %v2699, %v2699
        %v2710 = vmul.f32 %v2698, %v2708
        %v2711 = vmul.f32 %v2699, %v2709
        %v2712 = vmul.f32 %v2710, 0.044715
        %v2713 = vmul.f32 %v2711, 0.044715
        %v2714 = vadd.f32 %v2698, %v2712
        %v2715 = vadd.f32 %v2699, %v2713
        %v2716 = vmul.f32 %v2714, 0.7978846
        %v2717 = vmul.f32 %v2715, 0.7978846
        %v2718 = vtanh.pop %v2716
        %v2719 = vtanh.pop %v2717
        %v2720 = vadd.f32 %v2718, 1.0
        %v2721 = vadd.f32 %v2719, 1.0
        %v2722 = vmul.f32 %v2720, 0.5
        %v2723 = vmul.f32 %v2721, 0.5
        %v2724 = vmul.f32 %v2698, %v2722
        %v2725 = vmul.f32 %v2699, %v2723
        %v2726 = vmul.f32 %v2706, %v2706
        %v2727 = vmul.f32 %v2707, %v2707
        %v2728 = vmul.f32 %v2706, %v2726
        %v2729 = vmul.f32 %v2707, %v2727
        %v2730 = vmul.f32 %v2728, 0.044715
        %v2731 = vmul.f32 %v2729, 0.044715
        %v2732 = vadd.f32 %v2706, %v2730
        %v2733 = vadd.f32 %v2707, %v2731
        %v2734 = vmul.f32 %v2732, 0.7978846
        %v2735 = vmul.f32 %v2733, 0.7978846
        %v2736 = vtanh.pop %v2734
        %v2737 = vtanh.pop %v2735
        %v2738 = vadd.f32 %v2736, 1.0
        %v2739 = vadd.f32 %v2737, 1.0
        %v2740 = vmul.f32 %v2738, 0.5
        %v2741 = vmul.f32 %v2739, 0.5
        %v2742 = vmul.f32 %v2706, %v2740
        %v2743 = vmul.f32 %v2707, %v2741
        %v2744 = vld [vmem:[%s20] sm:$0xf]
        %v2745 = vld [vmem:[%s20 + $0x4] sm:$0xf]
        %v2746 = vld [vmem:[%s20 + $0x8] sm:$0xf]
        %v2747 = vld [vmem:[%s20 + $0xc] sm:$0xf]
        %v2748 = vld [vmem:[%s20 + $0x10] sm:$0xf]
        %v2749 = vld [vmem:[%s20 + $0x14] sm:$0xf]
        %v2750 = vld [vmem:[%s20 + $0x18] sm:$0xf]
        %v2751 = vld [vmem:[%s20 + $0x1c] sm:$0xf]
        %v2752 = vld [vmem:[%s20 + $0x20] sm:$0xf]
        %v2753 = vld [vmem:[%s20 + $0x24] sm:$0xf]
        %v2754 = vld [vmem:[%s20 + $0x28] sm:$0xf]
        %v2755 = vld [vmem:[%s20 + $0x2c] sm:$0xf]
        %v2756 = vld [vmem:[%s20 + $0x30] sm:$0xf]
        %v2757 = vld [vmem:[%s20 + $0x34] sm:$0xf]
        %v2758 = vld [vmem:[%s20 + $0x38] sm:$0xf]
        %v2759 = vld [vmem:[%s20 + $0x3c] sm:$0xf]
        %v2760 = vld [vmem:[%s21] sm:$0xf]
        %v2761 = vld [vmem:[%s21 + $0x4] sm:$0xf]
        %v2762 = vld [vmem:[%s21 + $0x8] sm:$0xf]
        %v2763 = vld [vmem:[%s21 + $0xc] sm:$0xf]
        %v2764 = vld [vmem:[%s21 + $0x10] sm:$0xf]
        %v2765 = vld [vmem:[%s21 + $0x14] sm:$0xf]
        %v2766 = vld [vmem:[%s21 + $0x18] sm:$0xf]
        %v2767 = vld [vmem:[%s21 + $0x1c] sm:$0xf]
        %v2768 = vld [vmem:[%s21 + $0x20] sm:$0xf]
        %v2769 = vld [vmem:[%s21 + $0x24] sm:$0xf]
        %v2770 = vld [vmem:[%s21 + $0x28] sm:$0xf]
        %v2771 = vld [vmem:[%s21 + $0x2c] sm:$0xf]
        %v2772 = vld [vmem:[%s21 + $0x30] sm:$0xf]
        %v2773 = vld [vmem:[%s21 + $0x34] sm:$0xf]
        %v2774 = vld [vmem:[%s21 + $0x38] sm:$0xf]
        %v2775 = vld [vmem:[%s21 + $0x3c] sm:$0xf]
        %v2776 = vld [vmem:[%s22] sm:$0x1]
        %v2777 = vld [vmem:[%s23] sm:$0x1]
        %v2778 = vpack.c.bf16 %v2725, %v2724
        %v2795 = vunpack.c.l.b16 %v2744
        %v2796 = vunpack.c.l.b16 %v2745
        %v2797 = vunpack.c.l.b16 %v2746
        %v2798 = vunpack.c.l.b16 %v2747
        %v2799 = vunpack.c.l.b16 %v2748
        %v2800 = vunpack.c.l.b16 %v2749
        %v2801 = vunpack.c.l.b16 %v2750
        %v2802 = vunpack.c.l.b16 %v2751
        %v2803 = vunpack.c.l.b16 %v2752
        %v2804 = vunpack.c.l.b16 %v2753
        %v2805 = vunpack.c.l.b16 %v2754
        %v2806 = vunpack.c.l.b16 %v2755
        %v2807 = vunpack.c.l.b16 %v2756
        %v2808 = vunpack.c.l.b16 %v2757
        %v2809 = vunpack.c.l.b16 %v2758
        %v2810 = vunpack.c.l.b16 %v2759
        %v2811 = vpack.c.b16 %v2796, %v2795
        %v2812 = vpack.c.b16 %v2798, %v2797
        %v2813 = vpack.c.b16 %v2800, %v2799
        %v2814 = vpack.c.b16 %v2802, %v2801
        %v2815 = vpack.c.b16 %v2804, %v2803
        %v2816 = vpack.c.b16 %v2806, %v2805
        %v2817 = vpack.c.b16 %v2808, %v2807
        %v2818 = vpack.c.b16 %v2810, %v2809
        %2827 = vmatprep.subr.bf16.mxu0 0
        %2828 = vmatpush1.bf16.msra.mxu0 %v2811
        %2829 = vmatprep.subr.bf16.mxu0 0
        %2830 = vmatpush1.bf16.msra.mxu0 %v2812
        %2831 = vmatprep.subr.bf16.mxu0 0
        %2832 = vmatpush1.bf16.msra.mxu0 %v2813
        %2833 = vmatprep.subr.bf16.mxu0 0
        %2834 = vmatpush1.bf16.msra.mxu0 %v2814
        %2835 = vmatprep.subr.bf16.mxu0 0
        %2836 = vmatpush1.bf16.msra.mxu0 %v2815
        %2837 = vmatprep.subr.bf16.mxu0 0
        %2838 = vmatpush1.bf16.msra.mxu0 %v2816
        %2839 = vmatprep.subr.bf16.mxu0 0
        %2840 = vmatpush1.bf16.msra.mxu0 %v2817
        %2841 = vmatprep.subr.bf16.mxu0 0
        %2842 = vmatpush1.bf16.msra.mxu0 %v2818
        %2843 = vmatprep.subr.bf16.mxu0 0
        %2844 = vmatpush1.bf16.msra.mxu0 0
        %2845 = vmatprep.subr.bf16.mxu0 0
        %2846 = vmatpush1.bf16.msra.mxu0 0
        %2847 = vmatprep.subr.bf16.mxu0 0
        %2848 = vmatpush1.bf16.msra.mxu0 0
        %2849 = vmatprep.subr.bf16.mxu0 0
        %2850 = vmatpush1.bf16.msra.mxu0 0
        %2851 = vmatprep.subr.bf16.mxu0 0
        %2852 = vmatpush1.bf16.msra.mxu0 0
        %2853 = vmatprep.subr.bf16.mxu0 0
        %2854 = vmatpush1.bf16.msra.mxu0 0
        %2855 = vmatprep.subr.bf16.mxu0 0
        %2856 = vmatpush1.bf16.msra.mxu0 0
        %2857 = vmatprep.subr.bf16.mxu0 0
        %2858 = vmatpush1.bf16.msra.mxu0 0
        %2859 = vmatprep.mubr.bf16.mxu0 0
        %2860 = vmatmul.mubr.bf16.gmra.mrb[0].mxu0 %v2778
        %v2861 = vpop.f32.mrb[0].mxu0
        %v2862 = vadd.f32 0.0, %v2861
        %v2863 = vpop.f32.mrb[0].mxu0
        %v2864 = vpop.f32.mrb[0].mxu0
        %v2865 = vadd.f32 0.0, %v2864
        %v2866 = vpop.f32.mrb[0].mxu0
        %2867 = vdwg.mxu0
        %v2868 = vpack.c.bf16 %v2743, %v2742
        %v2885 = vunpack.c.l.b16 %v2760
        %v2886 = vunpack.c.l.b16 %v2761
        %v2887 = vunpack.c.l.b16 %v2762
        %v2888 = vunpack.c.l.b16 %v2763
        %v2889 = vunpack.c.l.b16 %v2764
        %v2890 = vunpack.c.l.b16 %v2765
        %v2891 = vunpack.c.l.b16 %v2766
        %v2892 = vunpack.c.l.b16 %v2767
        %v2893 = vunpack.c.l.b16 %v2768
        %v2894 = vunpack.c.l.b16 %v2769
        %v2895 = vunpack.c.l.b16 %v2770
        %v2896 = vunpack.c.l.b16 %v2771
        %v2897 = vunpack.c.l.b16 %v2772
        %v2898 = vunpack.c.l.b16 %v2773
        %v2899 = vunpack.c.l.b16 %v2774
        %v2900 = vunpack.c.l.b16 %v2775
        %v2901 = vpack.c.b16 %v2886, %v2885
        %v2902 = vpack.c.b16 %v2888, %v2887
        %v2903 = vpack.c.b16 %v2890, %v2889
        %v2904 = vpack.c.b16 %v2892, %v2891
        %v2905 = vpack.c.b16 %v2894, %v2893
        %v2906 = vpack.c.b16 %v2896, %v2895
        %v2907 = vpack.c.b16 %v2898, %v2897
        %v2908 = vpack.c.b16 %v2900, %v2899
        %2917 = vmatprep.subr.bf16.mxu0 0
        %2918 = vmatpush1.bf16.msra.mxu0 %v2901
        %2919 = vmatprep.subr.bf16.mxu0 0
        %2920 = vmatpush1.bf16.msra.mxu0 %v2902
        %2921 = vmatprep.subr.bf16.mxu0 0
        %2922 = vmatpush1.bf16.msra.mxu0 %v2903
        %2923 = vmatprep.subr.bf16.mxu0 0
        %2924 = vmatpush1.bf16.msra.mxu0 %v2904
        %2925 = vmatprep.subr.bf16.mxu0 0
        %2926 = vmatpush1.bf16.msra.mxu0 %v2905
        %2927 = vmatprep.subr.bf16.mxu0 0
        %2928 = vmatpush1.bf16.msra.mxu0 %v2906
        %2929 = vmatprep.subr.bf16.mxu0 0
        %2930 = vmatpush1.bf16.msra.mxu0 %v2907
        %2931 = vmatprep.subr.bf16.mxu0 0
        %2932 = vmatpush1.bf16.msra.mxu0 %v2908
        %2933 = vmatprep.subr.bf16.mxu0 0
        %2934 = vmatpush1.bf16.msra.mxu0 0
        %2935 = vmatprep.subr.bf16.mxu0 0
        %2936 = vmatpush1.bf16.msra.mxu0 0
        %2937 = vmatprep.subr.bf16.mxu0 0
        %2938 = vmatpush1.bf16.msra.mxu0 0
        %2939 = vmatprep.subr.bf16.mxu0 0
        %2940 = vmatpush1.bf16.msra.mxu0 0
        %2941 = vmatprep.subr.bf16.mxu0 0
        %2942 = vmatpush1.bf16.msra.mxu0 0
        %2943 = vmatprep.subr.bf16.mxu0 0
        %2944 = vmatpush1.bf16.msra.mxu0 0
        %2945 = vmatprep.subr.bf16.mxu0 0
        %2946 = vmatpush1.bf16.msra.mxu0 0
        %2947 = vmatprep.subr.bf16.mxu0 0
        %2948 = vmatpush1.bf16.msra.mxu0 0
        %2949 = vmatprep.mubr.bf16.mxu0 0
        %2950 = vmatmul.mubr.bf16.gmra.mrb[0].mxu0 %v2868
        %v2951 = vpop.f32.mrb[0].mxu0
        %v2952 = vadd.f32 0.0, %v2951
        %v2953 = vpop.f32.mrb[0].mxu0
        %v2954 = vpop.f32.mrb[0].mxu0
        %v2955 = vadd.f32 0.0, %v2954
        %v2956 = vpop.f32.mrb[0].mxu0
        %2957 = vdwg.mxu0
        %v2958 = vadd.f32 %v2724, %v2742
        %v2959 = vadd.f32 %v2725, %v2743
        %v2960 = vpack.c.bf16 %v2959, %v2958
        %v2961 = vadd.bf16 %v2744, %v2760
        %v2962 = vadd.bf16 %v2745, %v2761
        %v2963 = vadd.bf16 %v2746, %v2762
        %v2964 = vadd.bf16 %v2747, %v2763
        %v2965 = vadd.bf16 %v2748, %v2764
        %v2966 = vadd.bf16 %v2749, %v2765
        %v2967 = vadd.bf16 %v2750, %v2766
        %v2968 = vadd.bf16 %v2751, %v2767
        %v2969 = vadd.bf16 %v2752, %v2768
        %v2970 = vadd.bf16 %v2753, %v2769
        %v2971 = vadd.bf16 %v2754, %v2770
        %v2972 = vadd.bf16 %v2755, %v2771
        %v2973 = vadd.bf16 %v2756, %v2772
        %v2974 = vadd.bf16 %v2757, %v2773
        %v2975 = vadd.bf16 %v2758, %v2774
        %v2976 = vadd.bf16 %v2759, %v2775
        %v2993 = vunpack.c.l.b16 %v2961
        %v2994 = vunpack.c.l.b16 %v2962
        %v2995 = vunpack.c.l.b16 %v2963
        %v2996 = vunpack.c.l.b16 %v2964
        %v2997 = vunpack.c.l.b16 %v2965
        %v2998 = vunpack.c.l.b16 %v2966
        %v2999 = vunpack.c.l.b16 %v2967
        %v3000 = vunpack.c.l.b16 %v2968
        %v3001 = vunpack.c.l.b16 %v2969
        %v3002 = vunpack.c.l.b16 %v2970
        %v3003 = vunpack.c.l.b16 %v2971
        %v3004 = vunpack.c.l.b16 %v2972
        %v3005 = vunpack.c.l.b16 %v2973
        %v3006 = vunpack.c.l.b16 %v2974
        %v3007 = vunpack.c.l.b16 %v2975
        %v3008 = vunpack.c.l.b16 %v2976
        %v3009 = vpack.c.b16 %v2994, %v2993
        %v3010 = vpack.c.b16 %v2996, %v2995
        %v3011 = vpack.c.b16 %v2998, %v2997
        %v3012 = vpack.c.b16 %v3000, %v2999
        %v3013 = vpack.c.b16 %v3002, %v3001
        %v3014 = vpack.c.b16 %v3004, %v3003
        %v3015 = vpack.c.b16 %v3006, %v3005
        %v3016 = vpack.c.b16 %v3008, %v3007
        %3025 = vmatprep.subr.bf16.mxu0 0
        %3026 = vmatpush1.bf16.msra.mxu0 %v3009
        %3027 = vmatprep.subr.bf16.mxu0 0
        %3028 = vmatpush1.bf16.msra.mxu0 %v3010
        %3029 = vmatprep.subr.bf16.mxu0 0
        %3030 = vmatpush1.bf16.msra.mxu0 %v3011
        %3031 = vmatprep.subr.bf16.mxu0 0
        %3032 = vmatpush1.bf16.msra.mxu0 %v3012
        %3033 = vmatprep.subr.bf16.mxu0 0
        %3034 = vmatpush1.bf16.msra.mxu0 %v3013
        %3035 = vmatprep.subr.bf16.mxu0 0
        %3036 = vmatpush1.bf16.msra.mxu0 %v3014
        %3037 = vmatprep.subr.bf16.mxu0 0
        %3038 = vmatpush1.bf16.msra.mxu0 %v3015
        %3039 = vmatprep.subr.bf16.mxu0 0
        %3040 = vmatpush1.bf16.msra.mxu0 %v3016
        %3041 = vmatprep.subr.bf16.mxu0 0
        %3042 = vmatpush1.bf16.msra.mxu0 0
        %3043 = vmatprep.subr.bf16.mxu0 0
        %3044 = vmatpush1.bf16.msra.mxu0 0
        %3045 = vmatprep.subr.bf16.mxu0 0
        %3046 = vmatpush1.bf16.msra.mxu0 0
        %3047 = vmatprep.subr.bf16.mxu0 0
        %3048 = vmatpush1.bf16.msra.mxu0 0
        %3049 = vmatprep.subr.bf16.mxu0 0
        %3050 = vmatpush1.bf16.msra.mxu0 0
        %3051 = vmatprep.subr.bf16.mxu0 0
        %3052 = vmatpush1.bf16.msra.mxu0 0
        %3053 = vmatprep.subr.bf16.mxu0 0
        %3054 = vmatpush1.bf16.msra.mxu0 0
        %3055 = vmatprep.subr.bf16.mxu0 0
        %3056 = vmatpush1.bf16.msra.mxu0 0
        %3057 = vmatprep.mubr.bf16.mxu0 0
        %3058 = vmatmul.mubr.bf16.gmra.mrb[0].mxu0 %v2960
        %v3059 = vpop.f32.mrb[0].mxu0
        %v3060 = vadd.f32 0.0, %v3059
        %v3061 = vpop.f32.mrb[0].mxu0
        %v3062 = vpop.f32.mrb[0].mxu0
        %v3063 = vadd.f32 0.0, %v3062
        %v3064 = vpop.f32.mrb[0].mxu0
        %3065 = vdwg.mxu0
        %v3066 = vsub.f32 %v2862, %v2952
        %v3067 = vsub.f32 %v2865, %v2955
        %v3068 = vsub.f32 %v3060, %v2862
        %v3069 = vsub.f32 %v3063, %v2865
        %v3070 = vsub.f32 %v3068, %v2952
        %v3071 = vsub.f32 %v3069, %v2955
        %v3073 = vlaneseq
        %v3074 = vshrl.u32 %v3073, 7
        %v3075 = vsub.s32 0, %v3074
        %v3076 = vrot.slane %v2776, %v3075
        %v3078 = vadd.f32 %v3066, %v3076
        %v3079 = vadd.f32 %v3067, %v3076
        %v3081 = vlaneseq
        %v3082 = vshrl.u32 %v3081, 7
        %v3083 = vsub.s32 0, %v3082
        %v3084 = vrot.slane %v2777, %v3083
        %v3086 = vadd.f32 %v3070, %v3084
        %v3087 = vadd.f32 %v3071, %v3084
        %v3088 = vadd.f32 %v2473, %v3078
        %v3089 = vadd.f32 %v2474, %v3079
        %v3090 = vadd.f32 %v2475, %v3086
        %v3091 = vadd.f32 %v2476, %v3087
        %v3092 = vmul.f32 %v3088, %v3088
        %v3093 = vmul.f32 %v3089, %v3089
        %v3094 = vmul.f32 %v3090, %v3090
        %v3095 = vmul.f32 %v3091, %v3091
        %v3096 = vadd.f32 %v3092, %v3094
        %v3097 = vadd.f32 %v3093, %v3095
        %v3098 = vsel %vm1192, %v3096, 0.0
        %3099 = vadd.xlane.f32.xlu0 %v3098
        %v3100 = vpop.xlane.xlu0 %3099
        %v3101 = vsel %vm1192, %v3097, 0.0
        %3102 = vadd.xlane.f32.xlu0 %v3101
        %v3103 = vpop.xlane.xlu0 %3102
        %v3104 = vmul.f32 %v3100, %v1199
        %v3105 = vmul.f32 %v3103, %v1199
        %v3106 = vadd.f32 %v3104, 1e-06
        %v3107 = vadd.f32 %v3105, 1e-06
        %v3108 = vrsqrt.pop %v3106
        %v3109 = vrsqrt.pop %v3107
        %v3110 = vmul.f32 %v3088, %v3108
        %v3111 = vmul.f32 %v3089, %v3109
        %v3112 = vmul.f32 %v3090, %v3108
        %v3113 = vmul.f32 %v3091, %v3109
        %s3114 = scalar_lea.vmem %s8, 16
        %v3115 = vld [vmem:[%s3114] sm:$0xf]
        %v3116 = vld [vmem:[%s3114 + $0x4] sm:$0xf]
        %v3117 = vld [vmem:[%s3114 + $0x8] sm:$0xf]
        %v3118 = vld [vmem:[%s3114 + $0xc] sm:$0xf]
        %s3119 = scalar_lea.vmem %s9, 16
        %v3120 = vld [vmem:[%s3119] sm:$0xf]
        %v3121 = vld [vmem:[%s3119 + $0x4] sm:$0xf]
        %v3122 = vld [vmem:[%s3119 + $0x8] sm:$0xf]
        %v3123 = vld [vmem:[%s3119 + $0xc] sm:$0xf]
        %s3124 = scalar_lea.vmem %s10, 1
        %v3125 = vld [vmem:[%s3124] sm:$0x1]
        %s3126 = scalar_lea.vmem %s11, 1
        %v3127 = vld [vmem:[%s3126] sm:$0x1]
        %v3128 = vpack.c.bf16 %v3111, %v3110
        %v3133 = vunpack.c.l.b16 %v3115
        %v3134 = vunpack.c.l.b16 %v3116
        %v3135 = vunpack.c.l.b16 %v3117
        %v3136 = vunpack.c.l.b16 %v3118
        %v3137 = vpack.c.b16 %v3134, %v3133
        %v3138 = vpack.c.b16 %v3136, %v3135
        %v3142 = vsel %vm1192, %v3128, 0
        %3144 = vmatprep.subr.bf16.mxu0 0
        %3145 = vmatpush1.bf16.msra.mxu0 %v3137
        %3146 = vmatprep.subr.bf16.mxu0 0
        %3147 = vmatpush1.bf16.msra.mxu0 %v3138
        %3148 = vmatprep.subr.bf16.mxu0 0
        %3149 = vmatpush1.bf16.msra.mxu0 0
        %3150 = vmatprep.subr.bf16.mxu0 0
        %3151 = vmatpush1.bf16.msra.mxu0 0
        %3152 = vmatprep.subr.bf16.mxu0 0
        %3153 = vmatpush1.bf16.msra.mxu0 0
        %3154 = vmatprep.subr.bf16.mxu0 0
        %3155 = vmatpush1.bf16.msra.mxu0 0
        %3156 = vmatprep.subr.bf16.mxu0 0
        %3157 = vmatpush1.bf16.msra.mxu0 0
        %3158 = vmatprep.subr.bf16.mxu0 0
        %3159 = vmatpush1.bf16.msra.mxu0 0
        %3160 = vmatprep.subr.bf16.mxu0 0
        %3161 = vmatpush1.bf16.msra.mxu0 0
        %3162 = vmatprep.subr.bf16.mxu0 0
        %3163 = vmatpush1.bf16.msra.mxu0 0
        %3164 = vmatprep.subr.bf16.mxu0 0
        %3165 = vmatpush1.bf16.msra.mxu0 0
        %3166 = vmatprep.subr.bf16.mxu0 0
        %3167 = vmatpush1.bf16.msra.mxu0 0
        %3168 = vmatprep.subr.bf16.mxu0 0
        %3169 = vmatpush1.bf16.msra.mxu0 0
        %3170 = vmatprep.subr.bf16.mxu0 0
        %3171 = vmatpush1.bf16.msra.mxu0 0
        %3172 = vmatprep.subr.bf16.mxu0 0
        %3173 = vmatpush1.bf16.msra.mxu0 0
        %3174 = vmatprep.subr.bf16.mxu0 0
        %3175 = vmatpush1.bf16.msra.mxu0 0
        %3176 = vmatprep.mubr.bf16.mxu0 0
        %3177 = vmatmul.mubr.bf16.gmra.mrb[0].mxu0 %v3142
        %v3178 = vpop.f32.mrb[0].mxu0
        %v3179 = vadd.f32 0.0, %v3178
        %v3180 = vpop.f32.mrb[0].mxu0
        %v3181 = vpop.f32.mrb[0].mxu0
        %v3182 = vadd.f32 0.0, %v3181
        %v3183 = vpop.f32.mrb[0].mxu0
        %3184 = vdwg.mxu0
        %v3185 = vpack.c.bf16 %v3113, %v3112
        %v3190 = vunpack.c.l.b16 %v3120
        %v3191 = vunpack.c.l.b16 %v3121
        %v3192 = vunpack.c.l.b16 %v3122
        %v3193 = vunpack.c.l.b16 %v3123
        %v3194 = vpack.c.b16 %v3191, %v3190
        %v3195 = vpack.c.b16 %v3193, %v3192
        %v3199 = vsel %vm1192, %v3185, 0
        %3201 = vmatprep.subr.bf16.mxu0 0
        %3202 = vmatpush1.bf16.msra.mxu0 %v3194
        %3203 = vmatprep.subr.bf16.mxu0 0
        %3204 = vmatpush1.bf16.msra.mxu0 %v3195
        %3205 = vmatprep.subr.bf16.mxu0 0
        %3206 = vmatpush1.bf16.msra.mxu0 0
        %3207 = vmatprep.subr.bf16.mxu0 0
        %3208 = vmatpush1.bf16.msra.mxu0 0
        %3209 = vmatprep.subr.bf16.mxu0 0
        %3210 = vmatpush1.bf16.msra.mxu0 0
        %3211 = vmatprep.subr.bf16.mxu0 0
        %3212 = vmatpush1.bf16.msra.mxu0 0
        %3213 = vmatprep.subr.bf16.mxu0 0
        %3214 = vmatpush1.bf16.msra.mxu0 0
        %3215 = vmatprep.subr.bf16.mxu0 0
        %3216 = vmatpush1.bf16.msra.mxu0 0
        %3217 = vmatprep.subr.bf16.mxu0 0
        %3218 = vmatpush1.bf16.msra.mxu0 0
        %3219 = vmatprep.subr.bf16.mxu0 0
        %3220 = vmatpush1.bf16.msra.mxu0 0
        %3221 = vmatprep.subr.bf16.mxu0 0
        %3222 = vmatpush1.bf16.msra.mxu0 0
        %3223 = vmatprep.subr.bf16.mxu0 0
        %3224 = vmatpush1.bf16.msra.mxu0 0
        %3225 = vmatprep.subr.bf16.mxu0 0
        %3226 = vmatpush1.bf16.msra.mxu0 0
        %3227 = vmatprep.subr.bf16.mxu0 0
        %3228 = vmatpush1.bf16.msra.mxu0 0
        %3229 = vmatprep.subr.bf16.mxu0 0
        %3230 = vmatpush1.bf16.msra.mxu0 0
        %3231 = vmatprep.subr.bf16.mxu0 0
        %3232 = vmatpush1.bf16.msra.mxu0 0
        %3233 = vmatprep.mubr.bf16.mxu0 0
        %3234 = vmatmul.mubr.bf16.gmra.mrb[0].mxu0 %v3199
        %v3235 = vpop.f32.mrb[0].mxu0
        %v3236 = vadd.f32 0.0, %v3235
        %v3237 = vpop.f32.mrb[0].mxu0
        %v3238 = vpop.f32.mrb[0].mxu0
        %v3239 = vadd.f32 0.0, %v3238
        %v3240 = vpop.f32.mrb[0].mxu0
        %3241 = vdwg.mxu0
        %v3242 = vadd.f32 %v3110, %v3112
        %v3243 = vadd.f32 %v3111, %v3113
        %v3244 = vpack.c.bf16 %v3243, %v3242
        %v3245 = vadd.bf16 %v3115, %v3120
        %v3246 = vadd.bf16 %v3116, %v3121
        %v3247 = vadd.bf16 %v3117, %v3122
        %v3248 = vadd.bf16 %v3118, %v3123
        %v3253 = vunpack.c.l.b16 %v3245
        %v3254 = vunpack.c.l.b16 %v3246
        %v3255 = vunpack.c.l.b16 %v3247
        %v3256 = vunpack.c.l.b16 %v3248
        %v3257 = vpack.c.b16 %v3254, %v3253
        %v3258 = vpack.c.b16 %v3256, %v3255
        %v3262 = vsel %vm1192, %v3244, 0
        %3264 = vmatprep.subr.bf16.mxu0 0
        %3265 = vmatpush1.bf16.msra.mxu0 %v3257
        %3266 = vmatprep.subr.bf16.mxu0 0
        %3267 = vmatpush1.bf16.msra.mxu0 %v3258
        %3268 = vmatprep.subr.bf16.mxu0 0
        %3269 = vmatpush1.bf16.msra.mxu0 0
        %3270 = vmatprep.subr.bf16.mxu0 0
        %3271 = vmatpush1.bf16.msra.mxu0 0
        %3272 = vmatprep.subr.bf16.mxu0 0
        %3273 = vmatpush1.bf16.msra.mxu0 0
        %3274 = vmatprep.subr.bf16.mxu0 0
        %3275 = vmatpush1.bf16.msra.mxu0 0
        %3276 = vmatprep.subr.bf16.mxu0 0
        %3277 = vmatpush1.bf16.msra.mxu0 0
        %3278 = vmatprep.subr.bf16.mxu0 0
        %3279 = vmatpush1.bf16.msra.mxu0 0
        %3280 = vmatprep.subr.bf16.mxu0 0
        %3281 = vmatpush1.bf16.msra.mxu0 0
        %3282 = vmatprep.subr.bf16.mxu0 0
        %3283 = vmatpush1.bf16.msra.mxu0 0
        %3284 = vmatprep.subr.bf16.mxu0 0
        %3285 = vmatpush1.bf16.msra.mxu0 0
        %3286 = vmatprep.subr.bf16.mxu0 0
        %3287 = vmatpush1.bf16.msra.mxu0 0
        %3288 = vmatprep.subr.bf16.mxu0 0
        %3289 = vmatpush1.bf16.msra.mxu0 0
        %3290 = vmatprep.subr.bf16.mxu0 0
        %3291 = vmatpush1.bf16.msra.mxu0 0
        %3292 = vmatprep.subr.bf16.mxu0 0
        %3293 = vmatpush1.bf16.msra.mxu0 0
        %3294 = vmatprep.subr.bf16.mxu0 0
        %3295 = vmatpush1.bf16.msra.mxu0 0
        %3296 = vmatprep.mubr.bf16.mxu0 0
        %3297 = vmatmul.mubr.bf16.gmra.mrb[0].mxu0 %v3262
        %v3298 = vpop.f32.mrb[0].mxu0
        %v3299 = vadd.f32 0.0, %v3298
        %v3300 = vpop.f32.mrb[0].mxu0
        %v3301 = vpop.f32.mrb[0].mxu0
        %v3302 = vadd.f32 0.0, %v3301
        %v3303 = vpop.f32.mrb[0].mxu0
        %3304 = vdwg.mxu0
        %v3305 = vsub.f32 %v3179, %v3236
        %v3306 = vsub.f32 %v3182, %v3239
        %v3307 = vsub.f32 %v3299, %v3179
        %v3308 = vsub.f32 %v3302, %v3182
        %v3309 = vsub.f32 %v3307, %v3236
        %v3310 = vsub.f32 %v3308, %v3239
        %v3312 = vlaneseq
        %v3313 = vshrl.u32 %v3312, 7
        %v3314 = vsub.s32 0, %v3313
        %v3315 = vrot.slane %v3125, %v3314
        %v3317 = vadd.f32 %v3305, %v3315
        %v3318 = vadd.f32 %v3306, %v3315
        %v3320 = vlaneseq
        %v3321 = vshrl.u32 %v3320, 7
        %v3322 = vsub.s32 0, %v3321
        %v3323 = vrot.slane %v3127, %v3322
        %v3325 = vadd.f32 %v3309, %v3323
        %v3326 = vadd.f32 %v3310, %v3323
        %v3327 = vmul.f32 %v3317, 0.35355338
        %v3328 = vmul.f32 %v3318, 0.35355338
        %v3329 = vmul.f32 %v3325, 0.35355338
        %v3330 = vmul.f32 %v3326, 0.35355338
        %3333 = vrot.lane.b32.xlu0 %v3329, 8
        %v3334 = vpop.permute.xlu0 %3333
        %3335 = vrot.lane.b32.xlu0 %v3330, 8
        %v3336 = vpop.permute.xlu0 %3335
        %v3339 = vsel %vm1582, %v3327, %v3334
        %v3340 = vsel %vm1582, %v3328, %v3336
        %v3341 = vpack.c.bf16 %v3340, %v3339
        %3344 = vrot.lane.b32.xlu0 %v3317, 96
        %v3345 = vpop.permute.xlu0 %3344
        %3346 = vrot.lane.b32.xlu0 %v3318, 96
        %v3347 = vpop.permute.xlu0 %3346
        %3352 = vrot.lane.b32.xlu0 %v3325, 104
        %v3353 = vpop.permute.xlu0 %3352
        %3354 = vrot.lane.b32.xlu0 %v3326, 104
        %v3355 = vpop.permute.xlu0 %3354
        %v3358 = vsel %vm1582, %v3345, %v3353
        %v3359 = vsel %vm1582, %v3347, %v3355
        %v3360 = vpack.c.bf16 %v3359, %v3358
        %3361 = vrot.lane.b32.xlu0 %v3317, 64
        %v3362 = vpop.permute.xlu0 %3361
        %3363 = vrot.lane.b32.xlu0 %v3318, 64
        %v3364 = vpop.permute.xlu0 %3363
        %3367 = vrot.lane.b32.xlu0 %v3325, 72
        %v3368 = vpop.permute.xlu0 %3367
        %3369 = vrot.lane.b32.xlu0 %v3326, 72
        %v3370 = vpop.permute.xlu0 %3369
        %v3373 = vsel %vm1582, %v3362, %v3368
        %v3374 = vsel %vm1582, %v3364, %v3370
        %v3375 = vpack.c.bf16 %v3374, %v3373
        %v3377 = vsel %vm868, %v3341, 0
        %v3380 = vsel %vm868, %v3360, 0
        %3382 = vmatprep.subr.bf16.mxu0 0
        %3383 = vmatpush1.bf16.xpose.msra.mxu0 %v3380
        %3384 = vmatprep.subr.bf16.mxu0 0
        %3385 = vmatpush1.bf16.xpose.msra.mxu0 0
        %3386 = vmatprep.subr.bf16.mxu0 0
        %3387 = vmatpush1.bf16.xpose.msra.mxu0 0
        %3388 = vmatprep.subr.bf16.mxu0 0
        %3389 = vmatpush1.bf16.xpose.msra.mxu0 0
        %3390 = vmatprep.subr.bf16.mxu0 0
        %3391 = vmatpush1.bf16.xpose.msra.mxu0 0
        %3392 = vmatprep.subr.bf16.mxu0 0
        %3393 = vmatpush1.bf16.xpose.msra.mxu0 0
        %3394 = vmatprep.subr.bf16.mxu0 0
        %3395 = vmatpush1.bf16.xpose.msra.mxu0 0
        %3396 = vmatprep.subr.bf16.mxu0 0
        %3397 = vmatpush1.bf16.xpose.msra.mxu0 0
        %3398 = vmatprep.subr.bf16.mxu0 0
        %3399 = vmatpush1.bf16.xpose.msra.mxu0 0
        %3400 = vmatprep.subr.bf16.mxu0 0
        %3401 = vmatpush1.bf16.xpose.msra.mxu0 0
        %3402 = vmatprep.subr.bf16.mxu0 0
        %3403 = vmatpush1.bf16.xpose.msra.mxu0 0
        %3404 = vmatprep.subr.bf16.mxu0 0
        %3405 = vmatpush1.bf16.xpose.msra.mxu0 0
        %3406 = vmatprep.subr.bf16.mxu0 0
        %3407 = vmatpush1.bf16.xpose.msra.mxu0 0
        %3408 = vmatprep.subr.bf16.mxu0 0
        %3409 = vmatpush1.bf16.xpose.msra.mxu0 0
        %3410 = vmatprep.subr.bf16.mxu0 0
        %3411 = vmatpush1.bf16.xpose.msra.mxu0 0
        %3412 = vmatprep.subr.bf16.mxu0 0
        %3413 = vmatpush1.bf16.xpose.msra.mxu0 0
        %3414 = vmatprep.mubr.bf16.mxu0 0
        %3415 = vmatmul.mubr.bf16.gmra.mrb[0].mxu0 %v3377
        %v3416 = vpop.f32.mrb[0].mxu0
        %v3417 = vadd.f32 0.0, %v3416
        %v3418 = vpop.f32.mrb[0].mxu0
        %v3419 = vpop.f32.mrb[0].mxu0
        %v3420 = vadd.f32 0.0, %v3419
        %v3421 = vpop.f32.mrb[0].mxu0
        %3422 = vdwg.mxu0
        %v3423 = vsel %vm868, %v3417, -inf
        %3424 = vmax.xlane.f32.xlu0 %v3423
        %v3425 = vpop.xlane.xlu0 %3424
        %v3426 = vsel %vm868, %v3420, -inf
        %3427 = vmax.xlane.f32.xlu0 %v3426
        %v3428 = vpop.xlane.xlu0 %3427
        %v3429 = vsub.f32 %v3417, %v3425
        %v3430 = vsub.f32 %v3420, %v3428
        %v3431 = vmul.f32 %v3429, 1.442695
        %v3432 = vpow.pop %v3431
        %v3433 = vmul.f32 %v3430, 1.442695
        %v3434 = vpow.pop %v3433
        %v3435 = vsel %vm868, %v3432, 0.0
        %3436 = vadd.xlane.f32.xlu0 %v3435
        %v3437 = vpop.xlane.xlu0 %3436
        %v3438 = vsel %vm868, %v3434, 0.0
        %3439 = vadd.xlane.f32.xlu0 %v3438
        %v3440 = vpop.xlane.xlu0 %3439
        %v3441 = vrcp.pop %v3437
        %v3442 = vrcp.pop %v3440
        %v3443 = vmul.f32 %v3432, %v3441
        %v3444 = vmul.f32 %v3434, %v3442
        %v3445 = vpack.c.bf16 %v3444, %v3443
        %v3447 = vsel %vm868, %v3445, 0
        %3449 = vmatprep.subr.bf16.mxu0 0
        %3450 = vmatpush1.bf16.msra.mxu0 %v3375
        %3451 = vmatprep.subr.bf16.mxu0 0
        %3452 = vmatpush1.bf16.msra.mxu0 0
        %3453 = vmatprep.subr.bf16.mxu0 0
        %3454 = vmatpush1.bf16.msra.mxu0 0
        %3455 = vmatprep.subr.bf16.mxu0 0
        %3456 = vmatpush1.bf16.msra.mxu0 0
        %3457 = vmatprep.subr.bf16.mxu0 0
        %3458 = vmatpush1.bf16.msra.mxu0 0
        %3459 = vmatprep.subr.bf16.mxu0 0
        %3460 = vmatpush1.bf16.msra.mxu0 0
        %3461 = vmatprep.subr.bf16.mxu0 0
        %3462 = vmatpush1.bf16.msra.mxu0 0
        %3463 = vmatprep.subr.bf16.mxu0 0
        %3464 = vmatpush1.bf16.msra.mxu0 0
        %3465 = vmatprep.subr.bf16.mxu0 0
        %3466 = vmatpush1.bf16.msra.mxu0 0
        %3467 = vmatprep.subr.bf16.mxu0 0
        %3468 = vmatpush1.bf16.msra.mxu0 0
        %3469 = vmatprep.subr.bf16.mxu0 0
        %3470 = vmatpush1.bf16.msra.mxu0 0
        %3471 = vmatprep.subr.bf16.mxu0 0
        %3472 = vmatpush1.bf16.msra.mxu0 0
        %3473 = vmatprep.subr.bf16.mxu0 0
        %3474 = vmatpush1.bf16.msra.mxu0 0
        %3475 = vmatprep.subr.bf16.mxu0 0
        %3476 = vmatpush1.bf16.msra.mxu0 0
        %3477 = vmatprep.subr.bf16.mxu0 0
        %3478 = vmatpush1.bf16.msra.mxu0 0
        %3479 = vmatprep.subr.bf16.mxu0 0
        %3480 = vmatpush1.bf16.msra.mxu0 0
        %3481 = vmatprep.mubr.bf16.mxu0 0
        %3482 = vmatmul.mubr.bf16.gmra.mrb[0].mxu0 %v3447
        %v3483 = vpop.f32.mrb[0].mxu0
        %v3484 = vadd.f32 0.0, %v3483
        %v3485 = vpop.f32.mrb[0].mxu0
        %v3486 = vpop.f32.mrb[0].mxu0
        %v3487 = vadd.f32 0.0, %v3486
        %v3488 = vpop.f32.mrb[0].mxu0
        %3489 = vdwg.mxu0
        %3492 = vrot.lane.b32.xlu0 %v3327, 120
        %v3493 = vpop.permute.xlu0 %3492
        %3494 = vrot.lane.b32.xlu0 %v3328, 120
        %v3495 = vpop.permute.xlu0 %3494
        %v3498 = vsel %vm1582, %v3493, %v3329
        %v3499 = vsel %vm1582, %v3495, %v3330
        %v3500 = vpack.c.bf16 %v3499, %v3498
        %3501 = vrot.lane.b32.xlu0 %v3317, 88
        %v3502 = vpop.permute.xlu0 %3501
        %3503 = vrot.lane.b32.xlu0 %v3318, 88
        %v3504 = vpop.permute.xlu0 %3503
        %3507 = vrot.lane.b32.xlu0 %v3325, 96
        %v3508 = vpop.permute.xlu0 %3507
        %3509 = vrot.lane.b32.xlu0 %v3326, 96
        %v3510 = vpop.permute.xlu0 %3509
        %v3513 = vsel %vm1582, %v3502, %v3508
        %v3514 = vsel %vm1582, %v3504, %v3510
        %v3515 = vpack.c.bf16 %v3514, %v3513
        %3516 = vrot.lane.b32.xlu0 %v3317, 56
        %v3517 = vpop.permute.xlu0 %3516
        %3518 = vrot.lane.b32.xlu0 %v3318, 56
        %v3519 = vpop.permute.xlu0 %3518
        %3522 = vrot.lane.b32.xlu0 %v3325, 64
        %v3523 = vpop.permute.xlu0 %3522
        %3524 = vrot.lane.b32.xlu0 %v3326, 64
        %v3525 = vpop.permute.xlu0 %3524
        %v3528 = vsel %vm1582, %v3517, %v3523
        %v3529 = vsel %vm1582, %v3519, %v3525
        %v3530 = vpack.c.bf16 %v3529, %v3528
        %v3532 = vsel %vm868, %v3500, 0
        %v3535 = vsel %vm868, %v3515, 0
        %3537 = vmatprep.subr.bf16.mxu0 0
        %3538 = vmatpush1.bf16.xpose.msra.mxu0 %v3535
        %3539 = vmatprep.subr.bf16.mxu0 0
        %3540 = vmatpush1.bf16.xpose.msra.mxu0 0
        %3541 = vmatprep.subr.bf16.mxu0 0
        %3542 = vmatpush1.bf16.xpose.msra.mxu0 0
        %3543 = vmatprep.subr.bf16.mxu0 0
        %3544 = vmatpush1.bf16.xpose.msra.mxu0 0
        %3545 = vmatprep.subr.bf16.mxu0 0
        %3546 = vmatpush1.bf16.xpose.msra.mxu0 0
        %3547 = vmatprep.subr.bf16.mxu0 0
        %3548 = vmatpush1.bf16.xpose.msra.mxu0 0
        %3549 = vmatprep.subr.bf16.mxu0 0
        %3550 = vmatpush1.bf16.xpose.msra.mxu0 0
        %3551 = vmatprep.subr.bf16.mxu0 0
        %3552 = vmatpush1.bf16.xpose.msra.mxu0 0
        %3553 = vmatprep.subr.bf16.mxu0 0
        %3554 = vmatpush1.bf16.xpose.msra.mxu0 0
        %3555 = vmatprep.subr.bf16.mxu0 0
        %3556 = vmatpush1.bf16.xpose.msra.mxu0 0
        %3557 = vmatprep.subr.bf16.mxu0 0
        %3558 = vmatpush1.bf16.xpose.msra.mxu0 0
        %3559 = vmatprep.subr.bf16.mxu0 0
        %3560 = vmatpush1.bf16.xpose.msra.mxu0 0
        %3561 = vmatprep.subr.bf16.mxu0 0
        %3562 = vmatpush1.bf16.xpose.msra.mxu0 0
        %3563 = vmatprep.subr.bf16.mxu0 0
        %3564 = vmatpush1.bf16.xpose.msra.mxu0 0
        %3565 = vmatprep.subr.bf16.mxu0 0
        %3566 = vmatpush1.bf16.xpose.msra.mxu0 0
        %3567 = vmatprep.subr.bf16.mxu0 0
        %3568 = vmatpush1.bf16.xpose.msra.mxu0 0
        %3569 = vmatprep.mubr.bf16.mxu0 0
        %3570 = vmatmul.mubr.bf16.gmra.mrb[0].mxu0 %v3532
        %v3571 = vpop.f32.mrb[0].mxu0
        %v3572 = vadd.f32 0.0, %v3571
        %v3573 = vpop.f32.mrb[0].mxu0
        %v3574 = vpop.f32.mrb[0].mxu0
        %v3575 = vadd.f32 0.0, %v3574
        %v3576 = vpop.f32.mrb[0].mxu0
        %3577 = vdwg.mxu0
        %v3578 = vsel %vm868, %v3572, -inf
        %3579 = vmax.xlane.f32.xlu0 %v3578
        %v3580 = vpop.xlane.xlu0 %3579
        %v3581 = vsel %vm868, %v3575, -inf
        %3582 = vmax.xlane.f32.xlu0 %v3581
        %v3583 = vpop.xlane.xlu0 %3582
        %v3584 = vsub.f32 %v3572, %v3580
        %v3585 = vsub.f32 %v3575, %v3583
        %v3586 = vmul.f32 %v3584, 1.442695
        %v3587 = vpow.pop %v3586
        %v3588 = vmul.f32 %v3585, 1.442695
        %v3589 = vpow.pop %v3588
        %v3590 = vsel %vm868, %v3587, 0.0
        %3591 = vadd.xlane.f32.xlu0 %v3590
        %v3592 = vpop.xlane.xlu0 %3591
        %v3593 = vsel %vm868, %v3589, 0.0
        %3594 = vadd.xlane.f32.xlu0 %v3593
        %v3595 = vpop.xlane.xlu0 %3594
        %v3596 = vrcp.pop %v3592
        %v3597 = vrcp.pop %v3595
        %v3598 = vmul.f32 %v3587, %v3596
        %v3599 = vmul.f32 %v3589, %v3597
        %v3600 = vpack.c.bf16 %v3599, %v3598
        %v3602 = vsel %vm868, %v3600, 0
        %3604 = vmatprep.subr.bf16.mxu0 0
        %3605 = vmatpush1.bf16.msra.mxu0 %v3530
        %3606 = vmatprep.subr.bf16.mxu0 0
        %3607 = vmatpush1.bf16.msra.mxu0 0
        %3608 = vmatprep.subr.bf16.mxu0 0
        %3609 = vmatpush1.bf16.msra.mxu0 0
        %3610 = vmatprep.subr.bf16.mxu0 0
        %3611 = vmatpush1.bf16.msra.mxu0 0
        %3612 = vmatprep.subr.bf16.mxu0 0
        %3613 = vmatpush1.bf16.msra.mxu0 0
        %3614 = vmatprep.subr.bf16.mxu0 0
        %3615 = vmatpush1.bf16.msra.mxu0 0
        %3616 = vmatprep.subr.bf16.mxu0 0
        %3617 = vmatpush1.bf16.msra.mxu0 0
        %3618 = vmatprep.subr.bf16.mxu0 0
        %3619 = vmatpush1.bf16.msra.mxu0 0
        %3620 = vmatprep.subr.bf16.mxu0 0
        %3621 = vmatpush1.bf16.msra.mxu0 0
        %3622 = vmatprep.subr.bf16.mxu0 0
        %3623 = vmatpush1.bf16.msra.mxu0 0
        %3624 = vmatprep.subr.bf16.mxu0 0
        %3625 = vmatpush1.bf16.msra.mxu0 0
        %3626 = vmatprep.subr.bf16.mxu0 0
        %3627 = vmatpush1.bf16.msra.mxu0 0
        %3628 = vmatprep.subr.bf16.mxu0 0
        %3629 = vmatpush1.bf16.msra.mxu0 0
        %3630 = vmatprep.subr.bf16.mxu0 0
        %3631 = vmatpush1.bf16.msra.mxu0 0
        %3632 = vmatprep.subr.bf16.mxu0 0
        %3633 = vmatpush1.bf16.msra.mxu0 0
        %3634 = vmatprep.subr.bf16.mxu0 0
        %3635 = vmatpush1.bf16.msra.mxu0 0
        %3636 = vmatprep.mubr.bf16.mxu0 0
        %3637 = vmatmul.mubr.bf16.gmra.mrb[0].mxu0 %v3602
        %v3638 = vpop.f32.mrb[0].mxu0
        %v3639 = vadd.f32 0.0, %v3638
        %v3640 = vpop.f32.mrb[0].mxu0
        %v3641 = vpop.f32.mrb[0].mxu0
        %v3642 = vadd.f32 0.0, %v3641
        %v3643 = vpop.f32.mrb[0].mxu0
        %3644 = vdwg.mxu0
        %3645 = vrot.lane.b32.xlu0 %v3327, 112
        %v3646 = vpop.permute.xlu0 %3645
        %3647 = vrot.lane.b32.xlu0 %v3328, 112
        %v3648 = vpop.permute.xlu0 %3647
        %3651 = vrot.lane.b32.xlu0 %v3329, 120
        %v3652 = vpop.permute.xlu0 %3651
        %3653 = vrot.lane.b32.xlu0 %v3330, 120
        %v3654 = vpop.permute.xlu0 %3653
        %v3657 = vsel %vm1582, %v3646, %v3652
        %v3658 = vsel %vm1582, %v3648, %v3654
        %v3659 = vpack.c.bf16 %v3658, %v3657
        %3660 = vrot.lane.b32.xlu0 %v3317, 80
        %v3661 = vpop.permute.xlu0 %3660
        %3662 = vrot.lane.b32.xlu0 %v3318, 80
        %v3663 = vpop.permute.xlu0 %3662
        %3666 = vrot.lane.b32.xlu0 %v3325, 88
        %v3667 = vpop.permute.xlu0 %3666
        %3668 = vrot.lane.b32.xlu0 %v3326, 88
        %v3669 = vpop.permute.xlu0 %3668
        %v3672 = vsel %vm1582, %v3661, %v3667
        %v3673 = vsel %vm1582, %v3663, %v3669
        %v3674 = vpack.c.bf16 %v3673, %v3672
        %3675 = vrot.lane.b32.xlu0 %v3317, 48
        %v3676 = vpop.permute.xlu0 %3675
        %3677 = vrot.lane.b32.xlu0 %v3318, 48
        %v3678 = vpop.permute.xlu0 %3677
        %3681 = vrot.lane.b32.xlu0 %v3325, 56
        %v3682 = vpop.permute.xlu0 %3681
        %3683 = vrot.lane.b32.xlu0 %v3326, 56
        %v3684 = vpop.permute.xlu0 %3683
        %v3687 = vsel %vm1582, %v3676, %v3682
        %v3688 = vsel %vm1582, %v3678, %v3684
        %v3689 = vpack.c.bf16 %v3688, %v3687
        %v3691 = vsel %vm868, %v3659, 0
        %v3694 = vsel %vm868, %v3674, 0
        %3696 = vmatprep.subr.bf16.mxu0 0
        %3697 = vmatpush1.bf16.xpose.msra.mxu0 %v3694
        %3698 = vmatprep.subr.bf16.mxu0 0
        %3699 = vmatpush1.bf16.xpose.msra.mxu0 0
        %3700 = vmatprep.subr.bf16.mxu0 0
        %3701 = vmatpush1.bf16.xpose.msra.mxu0 0
        %3702 = vmatprep.subr.bf16.mxu0 0
        %3703 = vmatpush1.bf16.xpose.msra.mxu0 0
        %3704 = vmatprep.subr.bf16.mxu0 0
        %3705 = vmatpush1.bf16.xpose.msra.mxu0 0
        %3706 = vmatprep.subr.bf16.mxu0 0
        %3707 = vmatpush1.bf16.xpose.msra.mxu0 0
        %3708 = vmatprep.subr.bf16.mxu0 0
        %3709 = vmatpush1.bf16.xpose.msra.mxu0 0
        %3710 = vmatprep.subr.bf16.mxu0 0
        %3711 = vmatpush1.bf16.xpose.msra.mxu0 0
        %3712 = vmatprep.subr.bf16.mxu0 0
        %3713 = vmatpush1.bf16.xpose.msra.mxu0 0
        %3714 = vmatprep.subr.bf16.mxu0 0
        %3715 = vmatpush1.bf16.xpose.msra.mxu0 0
        %3716 = vmatprep.subr.bf16.mxu0 0
        %3717 = vmatpush1.bf16.xpose.msra.mxu0 0
        %3718 = vmatprep.subr.bf16.mxu0 0
        %3719 = vmatpush1.bf16.xpose.msra.mxu0 0
        %3720 = vmatprep.subr.bf16.mxu0 0
        %3721 = vmatpush1.bf16.xpose.msra.mxu0 0
        %3722 = vmatprep.subr.bf16.mxu0 0
        %3723 = vmatpush1.bf16.xpose.msra.mxu0 0
        %3724 = vmatprep.subr.bf16.mxu0 0
        %3725 = vmatpush1.bf16.xpose.msra.mxu0 0
        %3726 = vmatprep.subr.bf16.mxu0 0
        %3727 = vmatpush1.bf16.xpose.msra.mxu0 0
        %3728 = vmatprep.mubr.bf16.mxu0 0
        %3729 = vmatmul.mubr.bf16.gmra.mrb[0].mxu0 %v3691
        %v3730 = vpop.f32.mrb[0].mxu0
        %v3731 = vadd.f32 0.0, %v3730
        %v3732 = vpop.f32.mrb[0].mxu0
        %v3733 = vpop.f32.mrb[0].mxu0
        %v3734 = vadd.f32 0.0, %v3733
        %v3735 = vpop.f32.mrb[0].mxu0
        %3736 = vdwg.mxu0
        %v3737 = vsel %vm868, %v3731, -inf
        %3738 = vmax.xlane.f32.xlu0 %v3737
        %v3739 = vpop.xlane.xlu0 %3738
        %v3740 = vsel %vm868, %v3734, -inf
        %3741 = vmax.xlane.f32.xlu0 %v3740
        %v3742 = vpop.xlane.xlu0 %3741
        %v3743 = vsub.f32 %v3731, %v3739
        %v3744 = vsub.f32 %v3734, %v3742
        %v3745 = vmul.f32 %v3743, 1.442695
        %v3746 = vpow.pop %v3745
        %v3747 = vmul.f32 %v3744, 1.442695
        %v3748 = vpow.pop %v3747
        %v3749 = vsel %vm868, %v3746, 0.0
        %3750 = vadd.xlane.f32.xlu0 %v3749
        %v3751 = vpop.xlane.xlu0 %3750
        %v3752 = vsel %vm868, %v3748, 0.0
        %3753 = vadd.xlane.f32.xlu0 %v3752
        %v3754 = vpop.xlane.xlu0 %3753
        %v3755 = vrcp.pop %v3751
        %v3756 = vrcp.pop %v3754
        %v3757 = vmul.f32 %v3746, %v3755
        %v3758 = vmul.f32 %v3748, %v3756
        %v3759 = vpack.c.bf16 %v3758, %v3757
        %v3761 = vsel %vm868, %v3759, 0
        %3763 = vmatprep.subr.bf16.mxu0 0
        %3764 = vmatpush1.bf16.msra.mxu0 %v3689
        %3765 = vmatprep.subr.bf16.mxu0 0
        %3766 = vmatpush1.bf16.msra.mxu0 0
        %3767 = vmatprep.subr.bf16.mxu0 0
        %3768 = vmatpush1.bf16.msra.mxu0 0
        %3769 = vmatprep.subr.bf16.mxu0 0
        %3770 = vmatpush1.bf16.msra.mxu0 0
        %3771 = vmatprep.subr.bf16.mxu0 0
        %3772 = vmatpush1.bf16.msra.mxu0 0
        %3773 = vmatprep.subr.bf16.mxu0 0
        %3774 = vmatpush1.bf16.msra.mxu0 0
        %3775 = vmatprep.subr.bf16.mxu0 0
        %3776 = vmatpush1.bf16.msra.mxu0 0
        %3777 = vmatprep.subr.bf16.mxu0 0
        %3778 = vmatpush1.bf16.msra.mxu0 0
        %3779 = vmatprep.subr.bf16.mxu0 0
        %3780 = vmatpush1.bf16.msra.mxu0 0
        %3781 = vmatprep.subr.bf16.mxu0 0
        %3782 = vmatpush1.bf16.msra.mxu0 0
        %3783 = vmatprep.subr.bf16.mxu0 0
        %3784 = vmatpush1.bf16.msra.mxu0 0
        %3785 = vmatprep.subr.bf16.mxu0 0
        %3786 = vmatpush1.bf16.msra.mxu0 0
        %3787 = vmatprep.subr.bf16.mxu0 0
        %3788 = vmatpush1.bf16.msra.mxu0 0
        %3789 = vmatprep.subr.bf16.mxu0 0
        %3790 = vmatpush1.bf16.msra.mxu0 0
        %3791 = vmatprep.subr.bf16.mxu0 0
        %3792 = vmatpush1.bf16.msra.mxu0 0
        %3793 = vmatprep.subr.bf16.mxu0 0
        %3794 = vmatpush1.bf16.msra.mxu0 0
        %3795 = vmatprep.mubr.bf16.mxu0 0
        %3796 = vmatmul.mubr.bf16.gmra.mrb[0].mxu0 %v3761
        %v3797 = vpop.f32.mrb[0].mxu0
        %v3798 = vadd.f32 0.0, %v3797
        %v3799 = vpop.f32.mrb[0].mxu0
        %v3800 = vpop.f32.mrb[0].mxu0
        %v3801 = vadd.f32 0.0, %v3800
        %v3802 = vpop.f32.mrb[0].mxu0
        %3803 = vdwg.mxu0
        %3804 = vrot.lane.b32.xlu0 %v3327, 104
        %v3805 = vpop.permute.xlu0 %3804
        %3806 = vrot.lane.b32.xlu0 %v3328, 104
        %v3807 = vpop.permute.xlu0 %3806
        %3810 = vrot.lane.b32.xlu0 %v3329, 112
        %v3811 = vpop.permute.xlu0 %3810
        %3812 = vrot.lane.b32.xlu0 %v3330, 112
        %v3813 = vpop.permute.xlu0 %3812
        %v3816 = vsel %vm1582, %v3805, %v3811
        %v3817 = vsel %vm1582, %v3807, %v3813
        %v3818 = vpack.c.bf16 %v3817, %v3816
        %3819 = vrot.lane.b32.xlu0 %v3317, 72
        %v3820 = vpop.permute.xlu0 %3819
        %3821 = vrot.lane.b32.xlu0 %v3318, 72
        %v3822 = vpop.permute.xlu0 %3821
        %3825 = vrot.lane.b32.xlu0 %v3325, 80
        %v3826 = vpop.permute.xlu0 %3825
        %3827 = vrot.lane.b32.xlu0 %v3326, 80
        %v3828 = vpop.permute.xlu0 %3827
        %v3831 = vsel %vm1582, %v3820, %v3826
        %v3832 = vsel %vm1582, %v3822, %v3828
        %v3833 = vpack.c.bf16 %v3832, %v3831
        %3834 = vrot.lane.b32.xlu0 %v3317, 40
        %v3835 = vpop.permute.xlu0 %3834
        %3836 = vrot.lane.b32.xlu0 %v3318, 40
        %v3837 = vpop.permute.xlu0 %3836
        %3840 = vrot.lane.b32.xlu0 %v3325, 48
        %v3841 = vpop.permute.xlu0 %3840
        %3842 = vrot.lane.b32.xlu0 %v3326, 48
        %v3843 = vpop.permute.xlu0 %3842
        %v3846 = vsel %vm1582, %v3835, %v3841
        %v3847 = vsel %vm1582, %v3837, %v3843
        %v3848 = vpack.c.bf16 %v3847, %v3846
        %v3850 = vsel %vm868, %v3818, 0
        %v3853 = vsel %vm868, %v3833, 0
        %3855 = vmatprep.subr.bf16.mxu0 0
        %3856 = vmatpush1.bf16.xpose.msra.mxu0 %v3853
        %3857 = vmatprep.subr.bf16.mxu0 0
        %3858 = vmatpush1.bf16.xpose.msra.mxu0 0
        %3859 = vmatprep.subr.bf16.mxu0 0
        %3860 = vmatpush1.bf16.xpose.msra.mxu0 0
        %3861 = vmatprep.subr.bf16.mxu0 0
        %3862 = vmatpush1.bf16.xpose.msra.mxu0 0
        %3863 = vmatprep.subr.bf16.mxu0 0
        %3864 = vmatpush1.bf16.xpose.msra.mxu0 0
        %3865 = vmatprep.subr.bf16.mxu0 0
        %3866 = vmatpush1.bf16.xpose.msra.mxu0 0
        %3867 = vmatprep.subr.bf16.mxu0 0
        %3868 = vmatpush1.bf16.xpose.msra.mxu0 0
        %3869 = vmatprep.subr.bf16.mxu0 0
        %3870 = vmatpush1.bf16.xpose.msra.mxu0 0
        %3871 = vmatprep.subr.bf16.mxu0 0
        %3872 = vmatpush1.bf16.xpose.msra.mxu0 0
        %3873 = vmatprep.subr.bf16.mxu0 0
        %3874 = vmatpush1.bf16.xpose.msra.mxu0 0
        %3875 = vmatprep.subr.bf16.mxu0 0
        %3876 = vmatpush1.bf16.xpose.msra.mxu0 0
        %3877 = vmatprep.subr.bf16.mxu0 0
        %3878 = vmatpush1.bf16.xpose.msra.mxu0 0
        %3879 = vmatprep.subr.bf16.mxu0 0
        %3880 = vmatpush1.bf16.xpose.msra.mxu0 0
        %3881 = vmatprep.subr.bf16.mxu0 0
        %3882 = vmatpush1.bf16.xpose.msra.mxu0 0
        %3883 = vmatprep.subr.bf16.mxu0 0
        %3884 = vmatpush1.bf16.xpose.msra.mxu0 0
        %3885 = vmatprep.subr.bf16.mxu0 0
        %3886 = vmatpush1.bf16.xpose.msra.mxu0 0
        %3887 = vmatprep.mubr.bf16.mxu0 0
        %3888 = vmatmul.mubr.bf16.gmra.mrb[0].mxu0 %v3850
        %v3889 = vpop.f32.mrb[0].mxu0
        %v3890 = vadd.f32 0.0, %v3889
        %v3891 = vpop.f32.mrb[0].mxu0
        %v3892 = vpop.f32.mrb[0].mxu0
        %v3893 = vadd.f32 0.0, %v3892
        %v3894 = vpop.f32.mrb[0].mxu0
        %3895 = vdwg.mxu0
        %v3896 = vsel %vm868, %v3890, -inf
        %3897 = vmax.xlane.f32.xlu0 %v3896
        %v3898 = vpop.xlane.xlu0 %3897
        %v3899 = vsel %vm868, %v3893, -inf
        %3900 = vmax.xlane.f32.xlu0 %v3899
        %v3901 = vpop.xlane.xlu0 %3900
        %v3902 = vsub.f32 %v3890, %v3898
        %v3903 = vsub.f32 %v3893, %v3901
        %v3904 = vmul.f32 %v3902, 1.442695
        %v3905 = vpow.pop %v3904
        %v3906 = vmul.f32 %v3903, 1.442695
        %v3907 = vpow.pop %v3906
        %v3908 = vsel %vm868, %v3905, 0.0
        %3909 = vadd.xlane.f32.xlu0 %v3908
        %v3910 = vpop.xlane.xlu0 %3909
        %v3911 = vsel %vm868, %v3907, 0.0
        %3912 = vadd.xlane.f32.xlu0 %v3911
        %v3913 = vpop.xlane.xlu0 %3912
        %v3914 = vrcp.pop %v3910
        %v3915 = vrcp.pop %v3913
        %v3916 = vmul.f32 %v3905, %v3914
        %v3917 = vmul.f32 %v3907, %v3915
        %v3918 = vpack.c.bf16 %v3917, %v3916
        %v3920 = vsel %vm868, %v3918, 0
        %3922 = vmatprep.subr.bf16.mxu0 0
        %3923 = vmatpush1.bf16.msra.mxu0 %v3848
        %3924 = vmatprep.subr.bf16.mxu0 0
        %3925 = vmatpush1.bf16.msra.mxu0 0
        %3926 = vmatprep.subr.bf16.mxu0 0
        %3927 = vmatpush1.bf16.msra.mxu0 0
        %3928 = vmatprep.subr.bf16.mxu0 0
        %3929 = vmatpush1.bf16.msra.mxu0 0
        %3930 = vmatprep.subr.bf16.mxu0 0
        %3931 = vmatpush1.bf16.msra.mxu0 0
        %3932 = vmatprep.subr.bf16.mxu0 0
        %3933 = vmatpush1.bf16.msra.mxu0 0
        %3934 = vmatprep.subr.bf16.mxu0 0
        %3935 = vmatpush1.bf16.msra.mxu0 0
        %3936 = vmatprep.subr.bf16.mxu0 0
        %3937 = vmatpush1.bf16.msra.mxu0 0
        %3938 = vmatprep.subr.bf16.mxu0 0
        %3939 = vmatpush1.bf16.msra.mxu0 0
        %3940 = vmatprep.subr.bf16.mxu0 0
        %3941 = vmatpush1.bf16.msra.mxu0 0
        %3942 = vmatprep.subr.bf16.mxu0 0
        %3943 = vmatpush1.bf16.msra.mxu0 0
        %3944 = vmatprep.subr.bf16.mxu0 0
        %3945 = vmatpush1.bf16.msra.mxu0 0
        %3946 = vmatprep.subr.bf16.mxu0 0
        %3947 = vmatpush1.bf16.msra.mxu0 0
        %3948 = vmatprep.subr.bf16.mxu0 0
        %3949 = vmatpush1.bf16.msra.mxu0 0
        %3950 = vmatprep.subr.bf16.mxu0 0
        %3951 = vmatpush1.bf16.msra.mxu0 0
        %3952 = vmatprep.subr.bf16.mxu0 0
        %3953 = vmatpush1.bf16.msra.mxu0 0
        %3954 = vmatprep.mubr.bf16.mxu0 0
        %3955 = vmatmul.mubr.bf16.gmra.mrb[0].mxu0 %v3920
        %v3956 = vpop.f32.mrb[0].mxu0
        %v3957 = vadd.f32 0.0, %v3956
        %v3958 = vpop.f32.mrb[0].mxu0
        %v3959 = vpop.f32.mrb[0].mxu0
        %v3960 = vadd.f32 0.0, %v3959
        %v3961 = vpop.f32.mrb[0].mxu0
        %3962 = vdwg.mxu0
        %3965 = vrot.lane.b32.xlu0 %v3639, 8
        %v3966 = vpop.permute.xlu0 %3965
        %3967 = vrot.lane.b32.xlu0 %v3642, 8
        %v3968 = vpop.permute.xlu0 %3967
        %3973 = vrot.lane.b32.xlu0 %v3798, 16
        %v3974 = vpop.permute.xlu0 %3973
        %3975 = vrot.lane.b32.xlu0 %v3801, 16
        %v3976 = vpop.permute.xlu0 %3975
        %3981 = vrot.lane.b32.xlu0 %v3957, 24
        %v3982 = vpop.permute.xlu0 %3981
        %3983 = vrot.lane.b32.xlu0 %v3960, 24
        %v3984 = vpop.permute.xlu0 %3983
        %v3987 = vsel %vm1582, %v3484, %v3966
        %v3988 = vsel %vm1582, %v3487, %v3968
        %v3989 = vsel %vm868, %v3987, %v3974
        %v3990 = vsel %vm868, %v3988, %v3976
        %v3991 = vsel %vm2235, %v3989, %v3982
        %v3992 = vsel %vm2235, %v3990, %v3984
        %3995 = vrot.lane.b32.xlu0 %v3484, 120
        %v3996 = vpop.permute.xlu0 %3995
        %3997 = vrot.lane.b32.xlu0 %v3487, 120
        %v3998 = vpop.permute.xlu0 %3997
        %4001 = vrot.lane.b32.xlu0 %v3798, 8
        %v4002 = vpop.permute.xlu0 %4001
        %4003 = vrot.lane.b32.xlu0 %v3801, 8
        %v4004 = vpop.permute.xlu0 %4003
        %4007 = vrot.lane.b32.xlu0 %v3957, 16
        %v4008 = vpop.permute.xlu0 %4007
        %4009 = vrot.lane.b32.xlu0 %v3960, 16
        %v4010 = vpop.permute.xlu0 %4009
        %v4013 = vsel %vm1582, %v3996, %v3639
        %v4014 = vsel %vm1582, %v3998, %v3642
        %v4015 = vsel %vm868, %v4013, %v4002
        %v4016 = vsel %vm868, %v4014, %v4004
        %v4017 = vsel %vm2235, %v4015, %v4008
        %v4018 = vsel %vm2235, %v4016, %v4010
        %s4019 = scalar_lea.vmem %s12, 16
        %v4020 = vld [vmem:[%s4019] sm:$0xf]
        %v4021 = vld [vmem:[%s4019 + $0x4] sm:$0xf]
        %v4022 = vld [vmem:[%s4019 + $0x8] sm:$0xf]
        %v4023 = vld [vmem:[%s4019 + $0xc] sm:$0xf]
        %s4024 = scalar_lea.vmem %s13, 16
        %v4025 = vld [vmem:[%s4024] sm:$0xf]
        %v4026 = vld [vmem:[%s4024 + $0x4] sm:$0xf]
        %v4027 = vld [vmem:[%s4024 + $0x8] sm:$0xf]
        %v4028 = vld [vmem:[%s4024 + $0xc] sm:$0xf]
        %s4029 = scalar_lea.vmem %s14, 1
        %v4030 = vld [vmem:[%s4029] sm:$0x1]
        %s4031 = scalar_lea.vmem %s15, 1
        %v4032 = vld [vmem:[%s4031] sm:$0x1]
        %v4033 = vpack.c.bf16 %v3992, %v3991
        %v4038 = vunpack.c.l.b16 %v4020
        %v4039 = vunpack.c.l.b16 %v4021
        %v4040 = vunpack.c.l.b16 %v4022
        %v4041 = vunpack.c.l.b16 %v4023
        %v4042 = vpack.c.b16 %v4039, %v4038
        %v4043 = vpack.c.b16 %v4041, %v4040
        %v4047 = vsel %vm1192, %v4033, 0
        %4049 = vmatprep.subr.bf16.mxu0 0
        %4050 = vmatpush1.bf16.msra.mxu0 %v4042
        %4051 = vmatprep.subr.bf16.mxu0 0
        %4052 = vmatpush1.bf16.msra.mxu0 %v4043
        %4053 = vmatprep.subr.bf16.mxu0 0
        %4054 = vmatpush1.bf16.msra.mxu0 0
        %4055 = vmatprep.subr.bf16.mxu0 0
        %4056 = vmatpush1.bf16.msra.mxu0 0
        %4057 = vmatprep.subr.bf16.mxu0 0
        %4058 = vmatpush1.bf16.msra.mxu0 0
        %4059 = vmatprep.subr.bf16.mxu0 0
        %4060 = vmatpush1.bf16.msra.mxu0 0
        %4061 = vmatprep.subr.bf16.mxu0 0
        %4062 = vmatpush1.bf16.msra.mxu0 0
        %4063 = vmatprep.subr.bf16.mxu0 0
        %4064 = vmatpush1.bf16.msra.mxu0 0
        %4065 = vmatprep.subr.bf16.mxu0 0
        %4066 = vmatpush1.bf16.msra.mxu0 0
        %4067 = vmatprep.subr.bf16.mxu0 0
        %4068 = vmatpush1.bf16.msra.mxu0 0
        %4069 = vmatprep.subr.bf16.mxu0 0
        %4070 = vmatpush1.bf16.msra.mxu0 0
        %4071 = vmatprep.subr.bf16.mxu0 0
        %4072 = vmatpush1.bf16.msra.mxu0 0
        %4073 = vmatprep.subr.bf16.mxu0 0
        %4074 = vmatpush1.bf16.msra.mxu0 0
        %4075 = vmatprep.subr.bf16.mxu0 0
        %4076 = vmatpush1.bf16.msra.mxu0 0
        %4077 = vmatprep.subr.bf16.mxu0 0
        %4078 = vmatpush1.bf16.msra.mxu0 0
        %4079 = vmatprep.subr.bf16.mxu0 0
        %4080 = vmatpush1.bf16.msra.mxu0 0
        %4081 = vmatprep.mubr.bf16.mxu0 0
        %4082 = vmatmul.mubr.bf16.gmra.mrb[0].mxu0 %v4047
        %v4083 = vpop.f32.mrb[0].mxu0
        %v4084 = vadd.f32 0.0, %v4083
        %v4085 = vpop.f32.mrb[0].mxu0
        %v4086 = vpop.f32.mrb[0].mxu0
        %v4087 = vadd.f32 0.0, %v4086
        %v4088 = vpop.f32.mrb[0].mxu0
        %4089 = vdwg.mxu0
        %v4090 = vpack.c.bf16 %v4018, %v4017
        %v4095 = vunpack.c.l.b16 %v4025
        %v4096 = vunpack.c.l.b16 %v4026
        %v4097 = vunpack.c.l.b16 %v4027
        %v4098 = vunpack.c.l.b16 %v4028
        %v4099 = vpack.c.b16 %v4096, %v4095
        %v4100 = vpack.c.b16 %v4098, %v4097
        %v4104 = vsel %vm1192, %v4090, 0
        %4106 = vmatprep.subr.bf16.mxu0 0
        %4107 = vmatpush1.bf16.msra.mxu0 %v4099
        %4108 = vmatprep.subr.bf16.mxu0 0
        %4109 = vmatpush1.bf16.msra.mxu0 %v4100
        %4110 = vmatprep.subr.bf16.mxu0 0
        %4111 = vmatpush1.bf16.msra.mxu0 0
        %4112 = vmatprep.subr.bf16.mxu0 0
        %4113 = vmatpush1.bf16.msra.mxu0 0
        %4114 = vmatprep.subr.bf16.mxu0 0
        %4115 = vmatpush1.bf16.msra.mxu0 0
        %4116 = vmatprep.subr.bf16.mxu0 0
        %4117 = vmatpush1.bf16.msra.mxu0 0
        %4118 = vmatprep.subr.bf16.mxu0 0
        %4119 = vmatpush1.bf16.msra.mxu0 0
        %4120 = vmatprep.subr.bf16.mxu0 0
        %4121 = vmatpush1.bf16.msra.mxu0 0
        %4122 = vmatprep.subr.bf16.mxu0 0
        %4123 = vmatpush1.bf16.msra.mxu0 0
        %4124 = vmatprep.subr.bf16.mxu0 0
        %4125 = vmatpush1.bf16.msra.mxu0 0
        %4126 = vmatprep.subr.bf16.mxu0 0
        %4127 = vmatpush1.bf16.msra.mxu0 0
        %4128 = vmatprep.subr.bf16.mxu0 0
        %4129 = vmatpush1.bf16.msra.mxu0 0
        %4130 = vmatprep.subr.bf16.mxu0 0
        %4131 = vmatpush1.bf16.msra.mxu0 0
        %4132 = vmatprep.subr.bf16.mxu0 0
        %4133 = vmatpush1.bf16.msra.mxu0 0
        %4134 = vmatprep.subr.bf16.mxu0 0
        %4135 = vmatpush1.bf16.msra.mxu0 0
        %4136 = vmatprep.subr.bf16.mxu0 0
        %4137 = vmatpush1.bf16.msra.mxu0 0
        %4138 = vmatprep.mubr.bf16.mxu0 0
        %4139 = vmatmul.mubr.bf16.gmra.mrb[0].mxu0 %v4104
        %v4140 = vpop.f32.mrb[0].mxu0
        %v4141 = vadd.f32 0.0, %v4140
        %v4142 = vpop.f32.mrb[0].mxu0
        %v4143 = vpop.f32.mrb[0].mxu0
        %v4144 = vadd.f32 0.0, %v4143
        %v4145 = vpop.f32.mrb[0].mxu0
        %4146 = vdwg.mxu0
        %v4147 = vadd.f32 %v3991, %v4017
        %v4148 = vadd.f32 %v3992, %v4018
        %v4149 = vpack.c.bf16 %v4148, %v4147
        %v4150 = vadd.bf16 %v4020, %v4025
        %v4151 = vadd.bf16 %v4021, %v4026
        %v4152 = vadd.bf16 %v4022, %v4027
        %v4153 = vadd.bf16 %v4023, %v4028
        %v4158 = vunpack.c.l.b16 %v4150
        %v4159 = vunpack.c.l.b16 %v4151
        %v4160 = vunpack.c.l.b16 %v4152
        %v4161 = vunpack.c.l.b16 %v4153
        %v4162 = vpack.c.b16 %v4159, %v4158
        %v4163 = vpack.c.b16 %v4161, %v4160
        %v4167 = vsel %vm1192, %v4149, 0
        %4169 = vmatprep.subr.bf16.mxu0 0
        %4170 = vmatpush1.bf16.msra.mxu0 %v4162
        %4171 = vmatprep.subr.bf16.mxu0 0
        %4172 = vmatpush1.bf16.msra.mxu0 %v4163
        %4173 = vmatprep.subr.bf16.mxu0 0
        %4174 = vmatpush1.bf16.msra.mxu0 0
        %4175 = vmatprep.subr.bf16.mxu0 0
        %4176 = vmatpush1.bf16.msra.mxu0 0
        %4177 = vmatprep.subr.bf16.mxu0 0
        %4178 = vmatpush1.bf16.msra.mxu0 0
        %4179 = vmatprep.subr.bf16.mxu0 0
        %4180 = vmatpush1.bf16.msra.mxu0 0
        %4181 = vmatprep.subr.bf16.mxu0 0
        %4182 = vmatpush1.bf16.msra.mxu0 0
        %4183 = vmatprep.subr.bf16.mxu0 0
        %4184 = vmatpush1.bf16.msra.mxu0 0
        %4185 = vmatprep.subr.bf16.mxu0 0
        %4186 = vmatpush1.bf16.msra.mxu0 0
        %4187 = vmatprep.subr.bf16.mxu0 0
        %4188 = vmatpush1.bf16.msra.mxu0 0
        %4189 = vmatprep.subr.bf16.mxu0 0
        %4190 = vmatpush1.bf16.msra.mxu0 0
        %4191 = vmatprep.subr.bf16.mxu0 0
        %4192 = vmatpush1.bf16.msra.mxu0 0
        %4193 = vmatprep.subr.bf16.mxu0 0
        %4194 = vmatpush1.bf16.msra.mxu0 0
        %4195 = vmatprep.subr.bf16.mxu0 0
        %4196 = vmatpush1.bf16.msra.mxu0 0
        %4197 = vmatprep.subr.bf16.mxu0 0
        %4198 = vmatpush1.bf16.msra.mxu0 0
        %4199 = vmatprep.subr.bf16.mxu0 0
        %4200 = vmatpush1.bf16.msra.mxu0 0
        %4201 = vmatprep.mubr.bf16.mxu0 0
        %4202 = vmatmul.mubr.bf16.gmra.mrb[0].mxu0 %v4167
        %v4203 = vpop.f32.mrb[0].mxu0
        %v4204 = vadd.f32 0.0, %v4203
        %v4205 = vpop.f32.mrb[0].mxu0
        %v4206 = vpop.f32.mrb[0].mxu0
        %v4207 = vadd.f32 0.0, %v4206
        %v4208 = vpop.f32.mrb[0].mxu0
        %4209 = vdwg.mxu0
        %v4210 = vsub.f32 %v4084, %v4141
        %v4211 = vsub.f32 %v4087, %v4144
        %v4212 = vsub.f32 %v4204, %v4084
        %v4213 = vsub.f32 %v4207, %v4087
        %v4214 = vsub.f32 %v4212, %v4141
        %v4215 = vsub.f32 %v4213, %v4144
        %v4217 = vlaneseq
        %v4218 = vshrl.u32 %v4217, 7
        %v4219 = vsub.s32 0, %v4218
        %v4220 = vrot.slane %v4030, %v4219
        %v4222 = vadd.f32 %v4210, %v4220
        %v4223 = vadd.f32 %v4211, %v4220
        %v4225 = vlaneseq
        %v4226 = vshrl.u32 %v4225, 7
        %v4227 = vsub.s32 0, %v4226
        %v4228 = vrot.slane %v4032, %v4227
        %v4230 = vadd.f32 %v4214, %v4228
        %v4231 = vadd.f32 %v4215, %v4228
        %v4232 = vadd.f32 %v3088, %v4222
        %v4233 = vadd.f32 %v3089, %v4223
        %v4234 = vadd.f32 %v3090, %v4230
        %v4235 = vadd.f32 %v3091, %v4231
        %v4236 = vmul.f32 %v4232, %v4232
        %v4237 = vmul.f32 %v4233, %v4233
        %v4238 = vmul.f32 %v4234, %v4234
        %v4239 = vmul.f32 %v4235, %v4235
        %v4240 = vadd.f32 %v4236, %v4238
        %v4241 = vadd.f32 %v4237, %v4239
        %v4242 = vsel %vm1192, %v4240, 0.0
        %4243 = vadd.xlane.f32.xlu0 %v4242
        %v4244 = vpop.xlane.xlu0 %4243
        %v4245 = vsel %vm1192, %v4241, 0.0
        %4246 = vadd.xlane.f32.xlu0 %v4245
        %v4247 = vpop.xlane.xlu0 %4246
        %v4248 = vmul.f32 %v4244, %v1199
        %v4249 = vmul.f32 %v4247, %v1199
        %v4250 = vadd.f32 %v4248, 1e-06
        %v4251 = vadd.f32 %v4249, 1e-06
        %v4252 = vrsqrt.pop %v4250
        %v4253 = vrsqrt.pop %v4251
        %v4254 = vmul.f32 %v4232, %v4252
        %v4255 = vmul.f32 %v4233, %v4253
        %v4256 = vmul.f32 %v4234, %v4252
        %v4257 = vmul.f32 %v4235, %v4253
        %s4258 = scalar_lea.vmem %s16, 16
        %v4259 = vld [vmem:[%s4258] sm:$0xf]
        %v4260 = vld [vmem:[%s4258 + $0x4] sm:$0xf]
        %v4261 = vld [vmem:[%s4258 + $0x8] sm:$0xf]
        %v4262 = vld [vmem:[%s4258 + $0xc] sm:$0xf]
        %s4263 = scalar_lea.vmem %s17, 16
        %v4264 = vld [vmem:[%s4263] sm:$0xf]
        %v4265 = vld [vmem:[%s4263 + $0x4] sm:$0xf]
        %v4266 = vld [vmem:[%s4263 + $0x8] sm:$0xf]
        %v4267 = vld [vmem:[%s4263 + $0xc] sm:$0xf]
        %s4268 = scalar_lea.vmem %s18, 1
        %v4269 = vld [vmem:[%s4268] sm:$0x1]
        %s4270 = scalar_lea.vmem %s19, 1
        %v4271 = vld [vmem:[%s4270] sm:$0x1]
        %v4272 = vpack.c.bf16 %v4255, %v4254
        %v4277 = vunpack.c.l.b16 %v4259
        %v4278 = vunpack.c.l.b16 %v4260
        %v4279 = vunpack.c.l.b16 %v4261
        %v4280 = vunpack.c.l.b16 %v4262
        %v4281 = vpack.c.b16 %v4278, %v4277
        %v4282 = vpack.c.b16 %v4280, %v4279
        %v4286 = vsel %vm1192, %v4272, 0
        %4288 = vmatprep.subr.bf16.mxu0 0
        %4289 = vmatpush1.bf16.msra.mxu0 %v4281
        %4290 = vmatprep.subr.bf16.mxu0 0
        %4291 = vmatpush1.bf16.msra.mxu0 %v4282
        %4292 = vmatprep.subr.bf16.mxu0 0
        %4293 = vmatpush1.bf16.msra.mxu0 0
        %4294 = vmatprep.subr.bf16.mxu0 0
        %4295 = vmatpush1.bf16.msra.mxu0 0
        %4296 = vmatprep.subr.bf16.mxu0 0
        %4297 = vmatpush1.bf16.msra.mxu0 0
        %4298 = vmatprep.subr.bf16.mxu0 0
        %4299 = vmatpush1.bf16.msra.mxu0 0
        %4300 = vmatprep.subr.bf16.mxu0 0
        %4301 = vmatpush1.bf16.msra.mxu0 0
        %4302 = vmatprep.subr.bf16.mxu0 0
        %4303 = vmatpush1.bf16.msra.mxu0 0
        %4304 = vmatprep.subr.bf16.mxu0 0
        %4305 = vmatpush1.bf16.msra.mxu0 0
        %4306 = vmatprep.subr.bf16.mxu0 0
        %4307 = vmatpush1.bf16.msra.mxu0 0
        %4308 = vmatprep.subr.bf16.mxu0 0
        %4309 = vmatpush1.bf16.msra.mxu0 0
        %4310 = vmatprep.subr.bf16.mxu0 0
        %4311 = vmatpush1.bf16.msra.mxu0 0
        %4312 = vmatprep.subr.bf16.mxu0 0
        %4313 = vmatpush1.bf16.msra.mxu0 0
        %4314 = vmatprep.subr.bf16.mxu0 0
        %4315 = vmatpush1.bf16.msra.mxu0 0
        %4316 = vmatprep.subr.bf16.mxu0 0
        %4317 = vmatpush1.bf16.msra.mxu0 0
        %4318 = vmatprep.subr.bf16.mxu0 0
        %4319 = vmatpush1.bf16.msra.mxu0 0
        %4320 = vmatprep.mubr.bf16.mxu0 0
        %4321 = vmatmul.mubr.bf16.gmra.mrb[0].mxu0 %v4286
        %v4322 = vpop.f32.mrb[0].mxu0
        %v4323 = vadd.f32 0.0, %v4322
        %v4324 = vpop.f32.mrb[0].mxu0
        %v4325 = vpop.f32.mrb[0].mxu0
        %v4326 = vadd.f32 0.0, %v4325
        %v4327 = vpop.f32.mrb[0].mxu0
        %4328 = vdwg.mxu0
        %v4329 = vpack.c.bf16 %v4257, %v4256
        %v4334 = vunpack.c.l.b16 %v4264
        %v4335 = vunpack.c.l.b16 %v4265
        %v4336 = vunpack.c.l.b16 %v4266
        %v4337 = vunpack.c.l.b16 %v4267
        %v4338 = vpack.c.b16 %v4335, %v4334
        %v4339 = vpack.c.b16 %v4337, %v4336
        %v4343 = vsel %vm1192, %v4329, 0
        %4345 = vmatprep.subr.bf16.mxu0 0
        %4346 = vmatpush1.bf16.msra.mxu0 %v4338
        %4347 = vmatprep.subr.bf16.mxu0 0
        %4348 = vmatpush1.bf16.msra.mxu0 %v4339
        %4349 = vmatprep.subr.bf16.mxu0 0
        %4350 = vmatpush1.bf16.msra.mxu0 0
        %4351 = vmatprep.subr.bf16.mxu0 0
        %4352 = vmatpush1.bf16.msra.mxu0 0
        %4353 = vmatprep.subr.bf16.mxu0 0
        %4354 = vmatpush1.bf16.msra.mxu0 0
        %4355 = vmatprep.subr.bf16.mxu0 0
        %4356 = vmatpush1.bf16.msra.mxu0 0
        %4357 = vmatprep.subr.bf16.mxu0 0
        %4358 = vmatpush1.bf16.msra.mxu0 0
        %4359 = vmatprep.subr.bf16.mxu0 0
        %4360 = vmatpush1.bf16.msra.mxu0 0
        %4361 = vmatprep.subr.bf16.mxu0 0
        %4362 = vmatpush1.bf16.msra.mxu0 0
        %4363 = vmatprep.subr.bf16.mxu0 0
        %4364 = vmatpush1.bf16.msra.mxu0 0
        %4365 = vmatprep.subr.bf16.mxu0 0
        %4366 = vmatpush1.bf16.msra.mxu0 0
        %4367 = vmatprep.subr.bf16.mxu0 0
        %4368 = vmatpush1.bf16.msra.mxu0 0
        %4369 = vmatprep.subr.bf16.mxu0 0
        %4370 = vmatpush1.bf16.msra.mxu0 0
        %4371 = vmatprep.subr.bf16.mxu0 0
        %4372 = vmatpush1.bf16.msra.mxu0 0
        %4373 = vmatprep.subr.bf16.mxu0 0
        %4374 = vmatpush1.bf16.msra.mxu0 0
        %4375 = vmatprep.subr.bf16.mxu0 0
        %4376 = vmatpush1.bf16.msra.mxu0 0
        %4377 = vmatprep.mubr.bf16.mxu0 0
        %4378 = vmatmul.mubr.bf16.gmra.mrb[0].mxu0 %v4343
        %v4379 = vpop.f32.mrb[0].mxu0
        %v4380 = vadd.f32 0.0, %v4379
        %v4381 = vpop.f32.mrb[0].mxu0
        %v4382 = vpop.f32.mrb[0].mxu0
        %v4383 = vadd.f32 0.0, %v4382
        %v4384 = vpop.f32.mrb[0].mxu0
        %4385 = vdwg.mxu0
        %v4386 = vadd.f32 %v4254, %v4256
        %v4387 = vadd.f32 %v4255, %v4257
        %v4388 = vpack.c.bf16 %v4387, %v4386
        %v4389 = vadd.bf16 %v4259, %v4264
        %v4390 = vadd.bf16 %v4260, %v4265
        %v4391 = vadd.bf16 %v4261, %v4266
        %v4392 = vadd.bf16 %v4262, %v4267
        %v4397 = vunpack.c.l.b16 %v4389
        %v4398 = vunpack.c.l.b16 %v4390
        %v4399 = vunpack.c.l.b16 %v4391
        %v4400 = vunpack.c.l.b16 %v4392
        %v4401 = vpack.c.b16 %v4398, %v4397
        %v4402 = vpack.c.b16 %v4400, %v4399
        %v4406 = vsel %vm1192, %v4388, 0
        %4408 = vmatprep.subr.bf16.mxu0 0
        %4409 = vmatpush1.bf16.msra.mxu0 %v4401
        %4410 = vmatprep.subr.bf16.mxu0 0
        %4411 = vmatpush1.bf16.msra.mxu0 %v4402
        %4412 = vmatprep.subr.bf16.mxu0 0
        %4413 = vmatpush1.bf16.msra.mxu0 0
        %4414 = vmatprep.subr.bf16.mxu0 0
        %4415 = vmatpush1.bf16.msra.mxu0 0
        %4416 = vmatprep.subr.bf16.mxu0 0
        %4417 = vmatpush1.bf16.msra.mxu0 0
        %4418 = vmatprep.subr.bf16.mxu0 0
        %4419 = vmatpush1.bf16.msra.mxu0 0
        %4420 = vmatprep.subr.bf16.mxu0 0
        %4421 = vmatpush1.bf16.msra.mxu0 0
        %4422 = vmatprep.subr.bf16.mxu0 0
        %4423 = vmatpush1.bf16.msra.mxu0 0
        %4424 = vmatprep.subr.bf16.mxu0 0
        %4425 = vmatpush1.bf16.msra.mxu0 0
        %4426 = vmatprep.subr.bf16.mxu0 0
        %4427 = vmatpush1.bf16.msra.mxu0 0
        %4428 = vmatprep.subr.bf16.mxu0 0
        %4429 = vmatpush1.bf16.msra.mxu0 0
        %4430 = vmatprep.subr.bf16.mxu0 0
        %4431 = vmatpush1.bf16.msra.mxu0 0
        %4432 = vmatprep.subr.bf16.mxu0 0
        %4433 = vmatpush1.bf16.msra.mxu0 0
        %4434 = vmatprep.subr.bf16.mxu0 0
        %4435 = vmatpush1.bf16.msra.mxu0 0
        %4436 = vmatprep.subr.bf16.mxu0 0
        %4437 = vmatpush1.bf16.msra.mxu0 0
        %4438 = vmatprep.subr.bf16.mxu0 0
        %4439 = vmatpush1.bf16.msra.mxu0 0
        %4440 = vmatprep.mubr.bf16.mxu0 0
        %4441 = vmatmul.mubr.bf16.gmra.mrb[0].mxu0 %v4406
        %v4442 = vpop.f32.mrb[0].mxu0
        %v4443 = vadd.f32 0.0, %v4442
        %v4444 = vpop.f32.mrb[0].mxu0
        %v4445 = vpop.f32.mrb[0].mxu0
        %v4446 = vadd.f32 0.0, %v4445
        %v4447 = vpop.f32.mrb[0].mxu0
        %4448 = vdwg.mxu0
        %v4449 = vsub.f32 %v4323, %v4380
        %v4450 = vsub.f32 %v4326, %v4383
        %v4451 = vsub.f32 %v4443, %v4323
        %v4452 = vsub.f32 %v4446, %v4326
        %v4453 = vsub.f32 %v4451, %v4380
        %v4454 = vsub.f32 %v4452, %v4383
        %v4456 = vlaneseq
        %v4457 = vshrl.u32 %v4456, 7
        %v4458 = vsub.s32 0, %v4457
        %v4459 = vrot.slane %v4269, %v4458
        %v4461 = vadd.f32 %v4449, %v4459
        %v4462 = vadd.f32 %v4450, %v4459
        %v4464 = vlaneseq
        %v4465 = vshrl.u32 %v4464, 7
        %v4466 = vsub.s32 0, %v4465
        %v4467 = vrot.slane %v4271, %v4466
        %v4469 = vadd.f32 %v4453, %v4467
        %v4470 = vadd.f32 %v4454, %v4467
        %v4471 = vmul.f32 %v4461, %v4461
        %v4472 = vmul.f32 %v4462, %v4462
        %v4473 = vmul.f32 %v4461, %v4471
        %v4474 = vmul.f32 %v4462, %v4472
        %v4475 = vmul.f32 %v4473, 0.044715
        %v4476 = vmul.f32 %v4474, 0.044715
        %v4477 = vadd.f32 %v4461, %v4475
        %v4478 = vadd.f32 %v4462, %v4476
        %v4479 = vmul.f32 %v4477, 0.7978846
        %v4480 = vmul.f32 %v4478, 0.7978846
        %v4481 = vtanh.pop %v4479
        %v4482 = vtanh.pop %v4480
        %v4483 = vadd.f32 %v4481, 1.0
        %v4484 = vadd.f32 %v4482, 1.0
        %v4485 = vmul.f32 %v4483, 0.5
        %v4486 = vmul.f32 %v4484, 0.5
        %v4487 = vmul.f32 %v4461, %v4485
        %v4488 = vmul.f32 %v4462, %v4486
        %v4489 = vmul.f32 %v4469, %v4469
        %v4490 = vmul.f32 %v4470, %v4470
        %v4491 = vmul.f32 %v4469, %v4489
        %v4492 = vmul.f32 %v4470, %v4490
        %v4493 = vmul.f32 %v4491, 0.044715
        %v4494 = vmul.f32 %v4492, 0.044715
        %v4495 = vadd.f32 %v4469, %v4493
        %v4496 = vadd.f32 %v4470, %v4494
        %v4497 = vmul.f32 %v4495, 0.7978846
        %v4498 = vmul.f32 %v4496, 0.7978846
        %v4499 = vtanh.pop %v4497
        %v4500 = vtanh.pop %v4498
        %v4501 = vadd.f32 %v4499, 1.0
        %v4502 = vadd.f32 %v4500, 1.0
        %v4503 = vmul.f32 %v4501, 0.5
        %v4504 = vmul.f32 %v4502, 0.5
        %v4505 = vmul.f32 %v4469, %v4503
        %v4506 = vmul.f32 %v4470, %v4504
        %s4507 = scalar_lea.vmem %s20, 64
        %v4508 = vld [vmem:[%s4507] sm:$0xf]
        %v4509 = vld [vmem:[%s4507 + $0x4] sm:$0xf]
        %v4510 = vld [vmem:[%s4507 + $0x8] sm:$0xf]
        %v4511 = vld [vmem:[%s4507 + $0xc] sm:$0xf]
        %v4512 = vld [vmem:[%s4507 + $0x10] sm:$0xf]
        %v4513 = vld [vmem:[%s4507 + $0x14] sm:$0xf]
        %v4514 = vld [vmem:[%s4507 + $0x18] sm:$0xf]
        %v4515 = vld [vmem:[%s4507 + $0x1c] sm:$0xf]
        %v4516 = vld [vmem:[%s4507 + $0x20] sm:$0xf]
        %v4517 = vld [vmem:[%s4507 + $0x24] sm:$0xf]
        %v4518 = vld [vmem:[%s4507 + $0x28] sm:$0xf]
        %v4519 = vld [vmem:[%s4507 + $0x2c] sm:$0xf]
        %v4520 = vld [vmem:[%s4507 + $0x30] sm:$0xf]
        %v4521 = vld [vmem:[%s4507 + $0x34] sm:$0xf]
        %v4522 = vld [vmem:[%s4507 + $0x38] sm:$0xf]
        %v4523 = vld [vmem:[%s4507 + $0x3c] sm:$0xf]
        %s4524 = scalar_lea.vmem %s21, 64
        %v4525 = vld [vmem:[%s4524] sm:$0xf]
        %v4526 = vld [vmem:[%s4524 + $0x4] sm:$0xf]
        %v4527 = vld [vmem:[%s4524 + $0x8] sm:$0xf]
        %v4528 = vld [vmem:[%s4524 + $0xc] sm:$0xf]
        %v4529 = vld [vmem:[%s4524 + $0x10] sm:$0xf]
        %v4530 = vld [vmem:[%s4524 + $0x14] sm:$0xf]
        %v4531 = vld [vmem:[%s4524 + $0x18] sm:$0xf]
        %v4532 = vld [vmem:[%s4524 + $0x1c] sm:$0xf]
        %v4533 = vld [vmem:[%s4524 + $0x20] sm:$0xf]
        %v4534 = vld [vmem:[%s4524 + $0x24] sm:$0xf]
        %v4535 = vld [vmem:[%s4524 + $0x28] sm:$0xf]
        %v4536 = vld [vmem:[%s4524 + $0x2c] sm:$0xf]
        %v4537 = vld [vmem:[%s4524 + $0x30] sm:$0xf]
        %v4538 = vld [vmem:[%s4524 + $0x34] sm:$0xf]
        %v4539 = vld [vmem:[%s4524 + $0x38] sm:$0xf]
        %v4540 = vld [vmem:[%s4524 + $0x3c] sm:$0xf]
        %s4541 = scalar_lea.vmem %s22, 1
        %v4542 = vld [vmem:[%s4541] sm:$0x1]
        %s4543 = scalar_lea.vmem %s23, 1
        %v4544 = vld [vmem:[%s4543] sm:$0x1]
        %v4545 = vpack.c.bf16 %v4488, %v4487
        %v4562 = vunpack.c.l.b16 %v4508
        %v4563 = vunpack.c.l.b16 %v4509
        %v4564 = vunpack.c.l.b16 %v4510
        %v4565 = vunpack.c.l.b16 %v4511
        %v4566 = vunpack.c.l.b16 %v4512
        %v4567 = vunpack.c.l.b16 %v4513
        %v4568 = vunpack.c.l.b16 %v4514
        %v4569 = vunpack.c.l.b16 %v4515
        %v4570 = vunpack.c.l.b16 %v4516
        %v4571 = vunpack.c.l.b16 %v4517
        %v4572 = vunpack.c.l.b16 %v4518
        %v4573 = vunpack.c.l.b16 %v4519
        %v4574 = vunpack.c.l.b16 %v4520
        %v4575 = vunpack.c.l.b16 %v4521
        %v4576 = vunpack.c.l.b16 %v4522
        %v4577 = vunpack.c.l.b16 %v4523
        %v4578 = vpack.c.b16 %v4563, %v4562
        %v4579 = vpack.c.b16 %v4565, %v4564
        %v4580 = vpack.c.b16 %v4567, %v4566
        %v4581 = vpack.c.b16 %v4569, %v4568
        %v4582 = vpack.c.b16 %v4571, %v4570
        %v4583 = vpack.c.b16 %v4573, %v4572
        %v4584 = vpack.c.b16 %v4575, %v4574
        %v4585 = vpack.c.b16 %v4577, %v4576
        %4594 = vmatprep.subr.bf16.mxu0 0
        %4595 = vmatpush1.bf16.msra.mxu0 %v4578
        %4596 = vmatprep.subr.bf16.mxu0 0
        %4597 = vmatpush1.bf16.msra.mxu0 %v4579
        %4598 = vmatprep.subr.bf16.mxu0 0
        %4599 = vmatpush1.bf16.msra.mxu0 %v4580
        %4600 = vmatprep.subr.bf16.mxu0 0
        %4601 = vmatpush1.bf16.msra.mxu0 %v4581
        %4602 = vmatprep.subr.bf16.mxu0 0
        %4603 = vmatpush1.bf16.msra.mxu0 %v4582
        %4604 = vmatprep.subr.bf16.mxu0 0
        %4605 = vmatpush1.bf16.msra.mxu0 %v4583
        %4606 = vmatprep.subr.bf16.mxu0 0
        %4607 = vmatpush1.bf16.msra.mxu0 %v4584
        %4608 = vmatprep.subr.bf16.mxu0 0
        %4609 = vmatpush1.bf16.msra.mxu0 %v4585
        %4610 = vmatprep.subr.bf16.mxu0 0
        %4611 = vmatpush1.bf16.msra.mxu0 0
        %4612 = vmatprep.subr.bf16.mxu0 0
        %4613 = vmatpush1.bf16.msra.mxu0 0
        %4614 = vmatprep.subr.bf16.mxu0 0
        %4615 = vmatpush1.bf16.msra.mxu0 0
        %4616 = vmatprep.subr.bf16.mxu0 0
        %4617 = vmatpush1.bf16.msra.mxu0 0
        %4618 = vmatprep.subr.bf16.mxu0 0
        %4619 = vmatpush1.bf16.msra.mxu0 0
        %4620 = vmatprep.subr.bf16.mxu0 0
        %4621 = vmatpush1.bf16.msra.mxu0 0
        %4622 = vmatprep.subr.bf16.mxu0 0
        %4623 = vmatpush1.bf16.msra.mxu0 0
        %4624 = vmatprep.subr.bf16.mxu0 0
        %4625 = vmatpush1.bf16.msra.mxu0 0
        %4626 = vmatprep.mubr.bf16.mxu0 0
        %4627 = vmatmul.mubr.bf16.gmra.mrb[0].mxu0 %v4545
        %v4628 = vpop.f32.mrb[0].mxu0
        %v4629 = vadd.f32 0.0, %v4628
        %v4630 = vpop.f32.mrb[0].mxu0
        %v4631 = vpop.f32.mrb[0].mxu0
        %v4632 = vadd.f32 0.0, %v4631
        %v4633 = vpop.f32.mrb[0].mxu0
        %4634 = vdwg.mxu0
        %v4635 = vpack.c.bf16 %v4506, %v4505
        %v4652 = vunpack.c.l.b16 %v4525
        %v4653 = vunpack.c.l.b16 %v4526
        %v4654 = vunpack.c.l.b16 %v4527
        %v4655 = vunpack.c.l.b16 %v4528
        %v4656 = vunpack.c.l.b16 %v4529
        %v4657 = vunpack.c.l.b16 %v4530
        %v4658 = vunpack.c.l.b16 %v4531
        %v4659 = vunpack.c.l.b16 %v4532
        %v4660 = vunpack.c.l.b16 %v4533
        %v4661 = vunpack.c.l.b16 %v4534
        %v4662 = vunpack.c.l.b16 %v4535
        %v4663 = vunpack.c.l.b16 %v4536
        %v4664 = vunpack.c.l.b16 %v4537
        %v4665 = vunpack.c.l.b16 %v4538
        %v4666 = vunpack.c.l.b16 %v4539
        %v4667 = vunpack.c.l.b16 %v4540
        %v4668 = vpack.c.b16 %v4653, %v4652
        %v4669 = vpack.c.b16 %v4655, %v4654
        %v4670 = vpack.c.b16 %v4657, %v4656
        %v4671 = vpack.c.b16 %v4659, %v4658
        %v4672 = vpack.c.b16 %v4661, %v4660
        %v4673 = vpack.c.b16 %v4663, %v4662
        %v4674 = vpack.c.b16 %v4665, %v4664
        %v4675 = vpack.c.b16 %v4667, %v4666
        %4684 = vmatprep.subr.bf16.mxu0 0
        %4685 = vmatpush1.bf16.msra.mxu0 %v4668
        %4686 = vmatprep.subr.bf16.mxu0 0
        %4687 = vmatpush1.bf16.msra.mxu0 %v4669
        %4688 = vmatprep.subr.bf16.mxu0 0
        %4689 = vmatpush1.bf16.msra.mxu0 %v4670
        %4690 = vmatprep.subr.bf16.mxu0 0
        %4691 = vmatpush1.bf16.msra.mxu0 %v4671
        %4692 = vmatprep.subr.bf16.mxu0 0
        %4693 = vmatpush1.bf16.msra.mxu0 %v4672
        %4694 = vmatprep.subr.bf16.mxu0 0
        %4695 = vmatpush1.bf16.msra.mxu0 %v4673
        %4696 = vmatprep.subr.bf16.mxu0 0
        %4697 = vmatpush1.bf16.msra.mxu0 %v4674
        %4698 = vmatprep.subr.bf16.mxu0 0
        %4699 = vmatpush1.bf16.msra.mxu0 %v4675
        %4700 = vmatprep.subr.bf16.mxu0 0
        %4701 = vmatpush1.bf16.msra.mxu0 0
        %4702 = vmatprep.subr.bf16.mxu0 0
        %4703 = vmatpush1.bf16.msra.mxu0 0
        %4704 = vmatprep.subr.bf16.mxu0 0
        %4705 = vmatpush1.bf16.msra.mxu0 0
        %4706 = vmatprep.subr.bf16.mxu0 0
        %4707 = vmatpush1.bf16.msra.mxu0 0
        %4708 = vmatprep.subr.bf16.mxu0 0
        %4709 = vmatpush1.bf16.msra.mxu0 0
        %4710 = vmatprep.subr.bf16.mxu0 0
        %4711 = vmatpush1.bf16.msra.mxu0 0
        %4712 = vmatprep.subr.bf16.mxu0 0
        %4713 = vmatpush1.bf16.msra.mxu0 0
        %4714 = vmatprep.subr.bf16.mxu0 0
        %4715 = vmatpush1.bf16.msra.mxu0 0
        %4716 = vmatprep.mubr.bf16.mxu0 0
        %4717 = vmatmul.mubr.bf16.gmra.mrb[0].mxu0 %v4635
        %v4718 = vpop.f32.mrb[0].mxu0
        %v4719 = vadd.f32 0.0, %v4718
        %v4720 = vpop.f32.mrb[0].mxu0
        %v4721 = vpop.f32.mrb[0].mxu0
        %v4722 = vadd.f32 0.0, %v4721
        %v4723 = vpop.f32.mrb[0].mxu0
        %4724 = vdwg.mxu0
        %v4725 = vadd.f32 %v4487, %v4505
        %v4726 = vadd.f32 %v4488, %v4506
        %v4727 = vpack.c.bf16 %v4726, %v4725
        %v4728 = vadd.bf16 %v4508, %v4525
        %v4729 = vadd.bf16 %v4509, %v4526
        %v4730 = vadd.bf16 %v4510, %v4527
        %v4731 = vadd.bf16 %v4511, %v4528
        %v4732 = vadd.bf16 %v4512, %v4529
        %v4733 = vadd.bf16 %v4513, %v4530
        %v4734 = vadd.bf16 %v4514, %v4531
        %v4735 = vadd.bf16 %v4515, %v4532
        %v4736 = vadd.bf16 %v4516, %v4533
        %v4737 = vadd.bf16 %v4517, %v4534
        %v4738 = vadd.bf16 %v4518, %v4535
        %v4739 = vadd.bf16 %v4519, %v4536
        %v4740 = vadd.bf16 %v4520, %v4537
        %v4741 = vadd.bf16 %v4521, %v4538
        %v4742 = vadd.bf16 %v4522, %v4539
        %v4743 = vadd.bf16 %v4523, %v4540
        %v4760 = vunpack.c.l.b16 %v4728
        %v4761 = vunpack.c.l.b16 %v4729
        %v4762 = vunpack.c.l.b16 %v4730
        %v4763 = vunpack.c.l.b16 %v4731
        %v4764 = vunpack.c.l.b16 %v4732
        %v4765 = vunpack.c.l.b16 %v4733
        %v4766 = vunpack.c.l.b16 %v4734
        %v4767 = vunpack.c.l.b16 %v4735
        %v4768 = vunpack.c.l.b16 %v4736
        %v4769 = vunpack.c.l.b16 %v4737
        %v4770 = vunpack.c.l.b16 %v4738
        %v4771 = vunpack.c.l.b16 %v4739
        %v4772 = vunpack.c.l.b16 %v4740
        %v4773 = vunpack.c.l.b16 %v4741
        %v4774 = vunpack.c.l.b16 %v4742
        %v4775 = vunpack.c.l.b16 %v4743
        %v4776 = vpack.c.b16 %v4761, %v4760
        %v4777 = vpack.c.b16 %v4763, %v4762
        %v4778 = vpack.c.b16 %v4765, %v4764
        %v4779 = vpack.c.b16 %v4767, %v4766
        %v4780 = vpack.c.b16 %v4769, %v4768
        %v4781 = vpack.c.b16 %v4771, %v4770
        %v4782 = vpack.c.b16 %v4773, %v4772
        %v4783 = vpack.c.b16 %v4775, %v4774
        %4792 = vmatprep.subr.bf16.mxu0 0
        %4793 = vmatpush1.bf16.msra.mxu0 %v4776
        %4794 = vmatprep.subr.bf16.mxu0 0
        %4795 = vmatpush1.bf16.msra.mxu0 %v4777
        %4796 = vmatprep.subr.bf16.mxu0 0
        %4797 = vmatpush1.bf16.msra.mxu0 %v4778
        %4798 = vmatprep.subr.bf16.mxu0 0
        %4799 = vmatpush1.bf16.msra.mxu0 %v4779
        %4800 = vmatprep.subr.bf16.mxu0 0
        %4801 = vmatpush1.bf16.msra.mxu0 %v4780
        %4802 = vmatprep.subr.bf16.mxu0 0
        %4803 = vmatpush1.bf16.msra.mxu0 %v4781
        %4804 = vmatprep.subr.bf16.mxu0 0
        %4805 = vmatpush1.bf16.msra.mxu0 %v4782
        %4806 = vmatprep.subr.bf16.mxu0 0
        %4807 = vmatpush1.bf16.msra.mxu0 %v4783
        %4808 = vmatprep.subr.bf16.mxu0 0
        %4809 = vmatpush1.bf16.msra.mxu0 0
        %4810 = vmatprep.subr.bf16.mxu0 0
        %4811 = vmatpush1.bf16.msra.mxu0 0
        %4812 = vmatprep.subr.bf16.mxu0 0
        %4813 = vmatpush1.bf16.msra.mxu0 0
        %4814 = vmatprep.subr.bf16.mxu0 0
        %4815 = vmatpush1.bf16.msra.mxu0 0
        %4816 = vmatprep.subr.bf16.mxu0 0
        %4817 = vmatpush1.bf16.msra.mxu0 0
        %4818 = vmatprep.subr.bf16.mxu0 0
        %4819 = vmatpush1.bf16.msra.mxu0 0
        %4820 = vmatprep.subr.bf16.mxu0 0
        %4821 = vmatpush1.bf16.msra.mxu0 0
        %4822 = vmatprep.subr.bf16.mxu0 0
        %4823 = vmatpush1.bf16.msra.mxu0 0
        %4824 = vmatprep.mubr.bf16.mxu0 0
        %4825 = vmatmul.mubr.bf16.gmra.mrb[0].mxu0 %v4727
        %v4826 = vpop.f32.mrb[0].mxu0
        %v4827 = vadd.f32 0.0, %v4826
        %v4828 = vpop.f32.mrb[0].mxu0
        %v4829 = vpop.f32.mrb[0].mxu0
        %v4830 = vadd.f32 0.0, %v4829
        %v4831 = vpop.f32.mrb[0].mxu0
        %4832 = vdwg.mxu0
        %v4833 = vsub.f32 %v4629, %v4719
        %v4834 = vsub.f32 %v4632, %v4722
        %v4835 = vsub.f32 %v4827, %v4629
        %v4836 = vsub.f32 %v4830, %v4632
        %v4837 = vsub.f32 %v4835, %v4719
        %v4838 = vsub.f32 %v4836, %v4722
        %v4840 = vlaneseq
        %v4841 = vshrl.u32 %v4840, 7
        %v4842 = vsub.s32 0, %v4841
        %v4843 = vrot.slane %v4542, %v4842
        %v4845 = vadd.f32 %v4833, %v4843
        %v4846 = vadd.f32 %v4834, %v4843
        %v4848 = vlaneseq
        %v4849 = vshrl.u32 %v4848, 7
        %v4850 = vsub.s32 0, %v4849
        %v4851 = vrot.slane %v4544, %v4850
        %v4853 = vadd.f32 %v4837, %v4851
        %v4854 = vadd.f32 %v4838, %v4851
        %v4855 = vadd.f32 %v4232, %v4845
        %v4856 = vadd.f32 %v4233, %v4846
        %v4857 = vadd.f32 %v4234, %v4853
        %v4858 = vadd.f32 %v4235, %v4854
        %v4859 = vmul.f32 %v4855, %v4855
        %v4860 = vmul.f32 %v4856, %v4856
        %v4861 = vmul.f32 %v4857, %v4857
        %v4862 = vmul.f32 %v4858, %v4858
        %v4863 = vadd.f32 %v4859, %v4861
        %v4864 = vadd.f32 %v4860, %v4862
        %v4865 = vsel %vm1192, %v4863, 0.0
        %4866 = vadd.xlane.f32.xlu0 %v4865
        %v4867 = vpop.xlane.xlu0 %4866
        %v4868 = vsel %vm1192, %v4864, 0.0
        %4869 = vadd.xlane.f32.xlu0 %v4868
        %v4870 = vpop.xlane.xlu0 %4869
        %v4871 = vmul.f32 %v4867, %v1199
        %v4872 = vmul.f32 %v4870, %v1199
        %v4873 = vadd.f32 %v4871, 1e-06
        %v4874 = vadd.f32 %v4872, 1e-06
        %v4875 = vrsqrt.pop %v4873
        %v4876 = vrsqrt.pop %v4874
        %v4877 = vmul.f32 %v4855, %v4875
        %v4878 = vmul.f32 %v4856, %v4876
        %v4879 = vmul.f32 %v4857, %v4875
        %v4880 = vmul.f32 %v4858, %v4876
        %v4881 = vsel %vm1192, %v4877, 0.0
        %v4882 = vsel %vm1192, %v4878, 0.0
        %v4883 = vadd.f32 %v4881, %v4882
        %v4884 = vrot.slane %v4883, 4
        %v4885 = vadd.f32 %v4883, %v4884
        %v4886 = vrot.slane %v4885, 2
        %v4887 = vadd.f32 %v4885, %v4886
        %v4888 = vrot.slane %v4887, 1
        %v4889 = vadd.f32 %v4887, %v4888
        %v4890 = vmul.f32 %v4889, %v875
        %v4891 = vsel %vm1192, %v4879, 0.0
        %v4892 = vsel %vm1192, %v4880, 0.0
        %v4893 = vadd.f32 %v4891, %v4892
        %v4894 = vrot.slane %v4893, 4
        %v4895 = vadd.f32 %v4893, %v4894
        %v4896 = vrot.slane %v4895, 2
        %v4897 = vadd.f32 %v4895, %v4896
        %v4898 = vrot.slane %v4897, 1
        %v4899 = vadd.f32 %v4897, %v4898
        %v4900 = vmul.f32 %v4899, %v875
        %v4901 = vld [vmem:[%s24] sm:$0xf]
        %v4902 = vld [vmem:[%s24 + $0x4] sm:$0xf]
        %v4903 = vld [vmem:[%s24 + $0x8] sm:$0xf]
        %v4904 = vld [vmem:[%s24 + $0xc] sm:$0xf]
        %v4905 = vld [vmem:[%s25] sm:$0xf]
        %v4906 = vld [vmem:[%s25 + $0x4] sm:$0xf]
        %v4907 = vld [vmem:[%s25 + $0x8] sm:$0xf]
        %v4908 = vld [vmem:[%s25 + $0xc] sm:$0xf]
        %v4909 = vld [vmem:[%s26] sm:$0x1]
        %v4910 = vld [vmem:[%s27] sm:$0x1]
        %v4911 = vpack.c.bf16 %v4890, %v4890
        %v4916 = vunpack.c.l.b16 %v4901
        %v4917 = vunpack.c.l.b16 %v4902
        %v4918 = vunpack.c.l.b16 %v4903
        %v4919 = vunpack.c.l.b16 %v4904
        %v4920 = vpack.c.b16 %v4917, %v4916
        %v4921 = vpack.c.b16 %v4919, %v4918
        %v4925 = vsel %vm1192, %v4911, 0
        %4927 = vmatprep.subr.bf16.mxu0 0
        %4928 = vmatpush1.bf16.msra.mxu0 %v4920
        %4929 = vmatprep.subr.bf16.mxu0 0
        %4930 = vmatpush1.bf16.msra.mxu0 %v4921
        %4931 = vmatprep.subr.bf16.mxu0 0
        %4932 = vmatpush1.bf16.msra.mxu0 0
        %4933 = vmatprep.subr.bf16.mxu0 0
        %4934 = vmatpush1.bf16.msra.mxu0 0
        %4935 = vmatprep.subr.bf16.mxu0 0
        %4936 = vmatpush1.bf16.msra.mxu0 0
        %4937 = vmatprep.subr.bf16.mxu0 0
        %4938 = vmatpush1.bf16.msra.mxu0 0
        %4939 = vmatprep.subr.bf16.mxu0 0
        %4940 = vmatpush1.bf16.msra.mxu0 0
        %4941 = vmatprep.subr.bf16.mxu0 0
        %4942 = vmatpush1.bf16.msra.mxu0 0
        %4943 = vmatprep.subr.bf16.mxu0 0
        %4944 = vmatpush1.bf16.msra.mxu0 0
        %4945 = vmatprep.subr.bf16.mxu0 0
        %4946 = vmatpush1.bf16.msra.mxu0 0
        %4947 = vmatprep.subr.bf16.mxu0 0
        %4948 = vmatpush1.bf16.msra.mxu0 0
        %4949 = vmatprep.subr.bf16.mxu0 0
        %4950 = vmatpush1.bf16.msra.mxu0 0
        %4951 = vmatprep.subr.bf16.mxu0 0
        %4952 = vmatpush1.bf16.msra.mxu0 0
        %4953 = vmatprep.subr.bf16.mxu0 0
        %4954 = vmatpush1.bf16.msra.mxu0 0
        %4955 = vmatprep.subr.bf16.mxu0 0
        %4956 = vmatpush1.bf16.msra.mxu0 0
        %4957 = vmatprep.subr.bf16.mxu0 0
        %4958 = vmatpush1.bf16.msra.mxu0 0
        %4959 = vmatprep.mubr.bf16.mxu0 0
        %4960 = vmatmul.mubr.bf16.gmra.mrb[0].mxu0 %v4925
        %v4961 = vpop.f32.mrb[0].mxu0
        %v4962 = vadd.f32 0.0, %v4961
        %v4963 = vpop.f32.mrb[0].mxu0
        %v4964 = vpop.f32.mrb[0].mxu0
        %v4965 = vpop.f32.mrb[0].mxu0
        %4966 = vdwg.mxu0
        %v4967 = vpack.c.bf16 %v4900, %v4900
        %v4972 = vunpack.c.l.b16 %v4905
        %v4973 = vunpack.c.l.b16 %v4906
        %v4974 = vunpack.c.l.b16 %v4907
        %v4975 = vunpack.c.l.b16 %v4908
        %v4976 = vpack.c.b16 %v4973, %v4972
        %v4977 = vpack.c.b16 %v4975, %v4974
        %v4981 = vsel %vm1192, %v4967, 0
        %4983 = vmatprep.subr.bf16.mxu0 0
        %4984 = vmatpush1.bf16.msra.mxu0 %v4976
        %4985 = vmatprep.subr.bf16.mxu0 0
        %4986 = vmatpush1.bf16.msra.mxu0 %v4977
        %4987 = vmatprep.subr.bf16.mxu0 0
        %4988 = vmatpush1.bf16.msra.mxu0 0
        %4989 = vmatprep.subr.bf16.mxu0 0
        %4990 = vmatpush1.bf16.msra.mxu0 0
        %4991 = vmatprep.subr.bf16.mxu0 0
        %4992 = vmatpush1.bf16.msra.mxu0 0
        %4993 = vmatprep.subr.bf16.mxu0 0
        %4994 = vmatpush1.bf16.msra.mxu0 0
        %4995 = vmatprep.subr.bf16.mxu0 0
        %4996 = vmatpush1.bf16.msra.mxu0 0
        %4997 = vmatprep.subr.bf16.mxu0 0
        %4998 = vmatpush1.bf16.msra.mxu0 0
        %4999 = vmatprep.subr.bf16.mxu0 0
        %5000 = vmatpush1.bf16.msra.mxu0 0
        %5001 = vmatprep.subr.bf16.mxu0 0
        %5002 = vmatpush1.bf16.msra.mxu0 0
        %5003 = vmatprep.subr.bf16.mxu0 0
        %5004 = vmatpush1.bf16.msra.mxu0 0
        %5005 = vmatprep.subr.bf16.mxu0 0
        %5006 = vmatpush1.bf16.msra.mxu0 0
        %5007 = vmatprep.subr.bf16.mxu0 0
        %5008 = vmatpush1.bf16.msra.mxu0 0
        %5009 = vmatprep.subr.bf16.mxu0 0
        %5010 = vmatpush1.bf16.msra.mxu0 0
        %5011 = vmatprep.subr.bf16.mxu0 0
        %5012 = vmatpush1.bf16.msra.mxu0 0
        %5013 = vmatprep.subr.bf16.mxu0 0
        %5014 = vmatpush1.bf16.msra.mxu0 0
        %5015 = vmatprep.mubr.bf16.mxu0 0
        %5016 = vmatmul.mubr.bf16.gmra.mrb[0].mxu0 %v4981
        %v5017 = vpop.f32.mrb[0].mxu0
        %v5018 = vadd.f32 0.0, %v5017
        %v5019 = vpop.f32.mrb[0].mxu0
        %v5020 = vpop.f32.mrb[0].mxu0
        %v5021 = vpop.f32.mrb[0].mxu0
        %5022 = vdwg.mxu0
        %v5023 = vadd.f32 %v4890, %v4900
        %v5024 = vpack.c.bf16 %v5023, %v5023
        %v5025 = vadd.bf16 %v4901, %v4905
        %v5026 = vadd.bf16 %v4902, %v4906
        %v5027 = vadd.bf16 %v4903, %v4907
        %v5028 = vadd.bf16 %v4904, %v4908
        %v5033 = vunpack.c.l.b16 %v5025
        %v5034 = vunpack.c.l.b16 %v5026
        %v5035 = vunpack.c.l.b16 %v5027
        %v5036 = vunpack.c.l.b16 %v5028
        %v5037 = vpack.c.b16 %v5034, %v5033
        %v5038 = vpack.c.b16 %v5036, %v5035
        %v5042 = vsel %vm1192, %v5024, 0
        %5044 = vmatprep.subr.bf16.mxu0 0
        %5045 = vmatpush1.bf16.msra.mxu0 %v5037
        %5046 = vmatprep.subr.bf16.mxu0 0
        %5047 = vmatpush1.bf16.msra.mxu0 %v5038
        %5048 = vmatprep.subr.bf16.mxu0 0
        %5049 = vmatpush1.bf16.msra.mxu0 0
        %5050 = vmatprep.subr.bf16.mxu0 0
        %5051 = vmatpush1.bf16.msra.mxu0 0
        %5052 = vmatprep.subr.bf16.mxu0 0
        %5053 = vmatpush1.bf16.msra.mxu0 0
        %5054 = vmatprep.subr.bf16.mxu0 0
        %5055 = vmatpush1.bf16.msra.mxu0 0
        %5056 = vmatprep.subr.bf16.mxu0 0
        %5057 = vmatpush1.bf16.msra.mxu0 0
        %5058 = vmatprep.subr.bf16.mxu0 0
        %5059 = vmatpush1.bf16.msra.mxu0 0
        %5060 = vmatprep.subr.bf16.mxu0 0
        %5061 = vmatpush1.bf16.msra.mxu0 0
        %5062 = vmatprep.subr.bf16.mxu0 0
        %5063 = vmatpush1.bf16.msra.mxu0 0
        %5064 = vmatprep.subr.bf16.mxu0 0
        %5065 = vmatpush1.bf16.msra.mxu0 0
        %5066 = vmatprep.subr.bf16.mxu0 0
        %5067 = vmatpush1.bf16.msra.mxu0 0
        %5068 = vmatprep.subr.bf16.mxu0 0
        %5069 = vmatpush1.bf16.msra.mxu0 0
        %5070 = vmatprep.subr.bf16.mxu0 0
        %5071 = vmatpush1.bf16.msra.mxu0 0
        %5072 = vmatprep.subr.bf16.mxu0 0
        %5073 = vmatpush1.bf16.msra.mxu0 0
        %5074 = vmatprep.subr.bf16.mxu0 0
        %5075 = vmatpush1.bf16.msra.mxu0 0
        %5076 = vmatprep.mubr.bf16.mxu0 0
        %5077 = vmatmul.mubr.bf16.gmra.mrb[0].mxu0 %v5042
        %v5078 = vpop.f32.mrb[0].mxu0
        %v5079 = vadd.f32 0.0, %v5078
        %v5080 = vpop.f32.mrb[0].mxu0
        %v5081 = vpop.f32.mrb[0].mxu0
        %v5082 = vpop.f32.mrb[0].mxu0
        %5083 = vdwg.mxu0
        %v5084 = vsub.f32 %v4962, %v5018
        %v5085 = vsub.f32 %v5079, %v4962
        %v5086 = vsub.f32 %v5085, %v5018
        %v5087 = vadd.f32 %v5084, %v4909
        %v5088 = vadd.f32 %v5086, %v4910
        %v5089 = vmul.f32 %v5087, %v5087
        %v5090 = vmul.f32 %v5088, %v5088
        %v5091 = vadd.f32 %v5089, %v5090
        %v5092 = vrsqrt.pop %v5091
        %v5093 = vmul.f32 %v5091, %v5092
        %vm5094 = vcmp.eq.f32.partialorder %v5091, inf
        %v5095 = vsel %vm5094, %v5091, %v5093
        %vm5096 = vcmp.eq.f32.partialorder %v5091, 0.0
        %v5097 = vand.u32 %v5091, 2147483648
        %v5098 = vsel %vm5096, %v5097, %v5095
        %vm5099 = vcmask 73728
        %5100 = vst.msk [vmem:[%s852] sm:$0x1] %vm5099, %v5098
        %s5101 = sand.u32 %s648, 1
        %s5102 = scalar_lea.sflag [#allocation3], %s5101
        %s5103 = sand.u32 %s648, 1
        %s5104 = scalar_lea.vmem [#allocation2], %s5103
        // Predicated region
        $region133: #{model_forward.1} parent=131 // pred_check
          %p5105 = pneg %p658
        $region134: #{model_forward.1} parent=131 // pred_check_branch
          %5107 = sbr.rel (%p5105) target = $region136
        $region135: #{model_forward.1} parent=131 // pred_region
          %s5109 = ssub.s32 16, 16
          %5110 = vsyncadd %s5102, %s5109
          %s5111 = smul.addr %s42, 16
          %s5112 = scalar_lea.hbm %s28, %s5111
          %s5114 = sshll.u32 %s5104, 4
          %s5115 = int_to_ptr.vmem [resolvable:$true] %s5114
          %5117 = dma.vmem_to_hbm [thread:$0]  %s5115, 16, %s5112, %s5102
        $region136: #{model_forward.1} parent=131 // pred_fallthru
          _
      $region132: #{model_forward.1} parent=5 // pred_fallthru
        _
      %p5118 = scmp.le.s32.totalorder 2, %s37
      // Predicated region
      $region137: #{model_forward.1} parent=5 // pred_check
        %p5119 = pneg %p5118
      $region138: #{model_forward.1} parent=5 // pred_check_branch
        %5121 = sbr.rel (%p5119) target = $region140
      $region139: #{model_forward.1} parent=5 // pred_region
        %s5122 = ssub.s32 %s37, 2
        // Predicated region
        $region141: #{model_forward.1} parent=139 // pred_check
          %p5123 = pneg %p664
        $region142: #{model_forward.1} parent=139 // pred_check_branch
          %5125 = sbr.rel (%p5123) target = $region144
        $region143: #{model_forward.1} parent=139 // pred_region
          %s5126 = sand.u32 %s649, 1
          %s5127 = scalar_lea.sflag [#allocation3], %s5126
          %s5128 = sand.u32 %s649, 1
          %s5129 = scalar_lea.vmem [#allocation2], %s5128
          %5130 = dma.done %s5127, 16
        $region144: #{model_forward.1} parent=139 // pred_fallthru
          _
      $region140: #{model_forward.1} parent=5 // pred_fallthru
        _
    $region6: #{model_forward.1} parent=1 // loop_footer
      %s41 = sadd.s32 1, %s37
    $region7: #{model_forward.1} parent=1 // loop_footer_branch
      %36 = sbr.rel target = $region3
    $region8: #{model_forward.1} parent=1 // loop_exit
      _
    %5131 = vsyncpa [#allocation3], 1
    %s5132 = scalar_lea.sflag [#allocation3], 1
    %5133 = vsyncpa %s5132, 1

</llo_original>
